<compile_context>
chip_gen: v7x
topology: tpu7x:2x2x1
jax: 0.10.0
libtpu: 0.0.40
codegen_flags: <defaults>
</compile_context>

<pallas_src>
import functools

import jax
import jax.numpy as jnp
from jax.experimental import pallas as pl
from jax.experimental.pallas import tpu as pltpu

CIN = 1280
COUT = 1024
BN_EPS = 1e-5


def _cbr1x1_kernel(w_ref, shift_ref, x_ref, o_ref):
    """Fused 1x1-conv (matmul) + folded conv-bias/BatchNorm shift + ReLU.

    w_ref     : (Cout, Cin) bf16  -- BN scale pre-folded, VMEM-resident
    shift_ref : (Cout, 1)   f32   -- folded conv-bias + BN shift, VMEM-resident
    x_ref     : (Cin, thw)  f32   -- one batch element, one HW tile
    o_ref     : (Cout, thw)       -- already NCHW layout, lane-dense
    """
    x = x_ref[...].astype(jnp.bfloat16)  # in-kernel cast (hides under MXU phase)
    acc = jnp.dot(w_ref[...], x, preferred_element_type=jnp.float32)
    o_ref[...] = jnp.maximum(acc + shift_ref[...], 0.0).astype(o_ref.dtype)


def _max_hw_tile():
    """Generation-aware cap on the HW tile so we fit default scoped VMEM."""
    try:
        kind = jax.devices()[0].device_kind.lower()
    except Exception:
        return 512
    if "v6" in kind or "v7" in kind:
        return 1024  # ~21 MiB footprint at thw=1024, fits 32 MiB scoped VMEM
    return 512       # v5e & older: MXU-bound anyway; keep the footprint small


def _choose_hw_tile(hw, n_batch):
    """Return (thw, hw_padded): thw multiple of 128, hw_padded % thw == 0."""
    max_t = _max_hw_tile()
    for t in (1024, 512, 256, 128):
        if t > max_t or hw % t != 0:
            continue
        # v7x has 2 TensorCores: with N == 1 keep >= 2 parallel grid cells.
        if n_batch == 1 and hw // t < 2 and t > 128:
            continue
        return t, hw
    # HW not a multiple of 128: pad up to a tile multiple (extra pad pass in
    # the wrapper, tail columns sliced off) -- never a full-extent odd block.
    hw128 = pl.cdiv(hw, 128) * 128
    t = min(max_t, hw128)
    return t, pl.cdiv(hw, t) * t


@functools.partial(jax.jit, static_argnames=("out_dtype",))
def cbr1x1_nchw(x, w_bf16, shift, *, out_dtype=jnp.float32):
    """x: (N, 1280, H, W) f32 -> ReLU(BN(Conv1x1(x))): (N, 1024, H, W), NCHW."""
    N, C, H, W = x.shape
    assert C == CIN, f"cnl1024 expects {CIN} input channels, got {C}"
    HW = H * W
    thw, hw_pad = _choose_hw_tile(HW, N)

    x3 = x.reshape(N, C, HW)  # layout-free reshape; stays f32 (no wrapper cast)
    if hw_pad != HW:
        # Rare unaligned-HW fallback: keep tiles lane-dense via zero padding.
        x3 = jnp.pad(x3, ((0, 0), (0, 0), (0, hw_pad - HW)))

    out_itemsize = jnp.dtype(out_dtype).itemsize
    cost = pl.CostEstimate(
        flops=2 * N * COUT * CIN * hw_pad,
        bytes_accessed=(N * CIN * hw_pad * 4          # f32 activations in
                        + COUT * CIN * 2              # bf16 weight (once)
                        + COUT * 4                    # shift (once)
                        + N * COUT * hw_pad * out_itemsize),
        transcendentals=0,
    )

    resident = dict(pipeline_mode=pl.Buffered(1))  # fetched once -> 1 buffer

    out3 = pl.pallas_call(
        _cbr1x1_kernel,
        out_shape=jax.ShapeDtypeStruct((N, COUT, hw_pad), out_dtype),
        grid_spec=pltpu.PrefetchScalarGridSpec(
            num_scalar_prefetch=0,
            grid=(N, hw_pad // thw),
            in_specs=[
                # Resident folded weight: constant block index -> DMA'd once.
                pl.BlockSpec((COUT, CIN), lambda n, i: (0, 0), **resident),
                # Resident folded bias/BN shift.
                pl.BlockSpec((COUT, 1), lambda n, i: (0, 0), **resident),
                # Activations: one batch element (squeezed), one HW tile.
                pl.BlockSpec((None, CIN, thw), lambda n, i: (n, 0, i)),
            ],
            out_specs=pl.BlockSpec((None, COUT, thw), lambda n, i: (n, 0, i)),
        ),
        compiler_params=pltpu.CompilerParams(
            dimension_semantics=("parallel", "parallel"),
            vmem_limit_bytes=32 * 1024 * 1024,
        ),
        cost_estimate=cost,
    )(w_bf16, shift, x3)

    if hw_pad != HW:
        out3 = out3[:, :, :HW]
    return out3.reshape(N, COUT, H, W)


def init_params(key):
    """Deterministic synthetic params matching cnl1024 = CBR2d(1280, 1024, 1)."""
    k1, k2, k3, k4, k5, k6 = jax.random.split(key, 6)
    return {
        # nn.Conv2d(1280, 1024, kernel_size=1, bias=True): weight (1024,1280,1,1)
        "conv_w": 0.02 * jax.random.normal(k1, (COUT, CIN, 1, 1), jnp.float32),
        "conv_b": 0.02 * jax.random.normal(k2, (COUT,), jnp.float32),
        # nn.BatchNorm2d(1024) parameters + running stats (eval-mode semantics)
        "bn_gamma": 1.0 + 0.1 * jax.random.normal(k3, (COUT,), jnp.float32),
        "bn_beta": 0.1 * jax.random.normal(k4, (COUT,), jnp.float32),
        "bn_mean": 0.1 * jax.random.normal(k5, (COUT,), jnp.float32),
        "bn_var": jnp.abs(1.0 + 0.1 * jax.random.normal(k6, (COUT,), jnp.float32)),
    }


def fold_params(params):
    """One-time host-side folding:
    BN scale is folded into the conv weight (multiplied in f32, then cast to
    bf16); conv bias + eval-mode BN mean/shift collapse into one (Cout,1) f32."""
    inv_std = 1.0 / jnp.sqrt(params["bn_var"] + BN_EPS)
    scale = params["bn_gamma"] * inv_std                              # (Cout,)
    w2d = params["conv_w"].reshape(COUT, CIN)
    w_folded = (scale[:, None] * w2d).astype(jnp.bfloat16)            # (Cout, Cin)
    shift = params["bn_beta"] + (params["conv_b"] - params["bn_mean"]) * scale
    return {
        "w_bf16": w_folded,
        "shift": shift.reshape(COUT, 1).astype(jnp.float32),
    }


def my_efficientnet_forward(x, folded):
    """Forward pass of MyEfficientNet. x: (N, 1280, H, W) NCHW float32."""
    N, C, H, W = x.shape
    if W == 256 or W == 128:
        # TODO(synk): these branches invoke the externally supplied EfficientNet
        # backbone (`self.effconv`) plus bicubic Upsample; no in-module
        # parameters define it, so it cannot be reproduced here.
        raise NotImplementedError("effconv (external EfficientNet) branch")
    return cbr1x1_nchw(x, folded["w_bf16"], folded["shift"])


def _reference_forward(x, params):
    """Pure-JAX f32 reference for correctness checking (NCHW throughout)."""
    w = params["conv_w"].reshape(COUT, CIN)
    y = jnp.einsum("oc,nchw->nohw", w, x) + params["conv_b"][None, :, None, None]
    inv_std = 1.0 / jnp.sqrt(params["bn_var"] + BN_EPS)
    y = (y - params["bn_mean"][None, :, None, None]) \
        * (params["bn_gamma"] * inv_std)[None, :, None, None] \
        + params["bn_beta"][None, :, None, None]
    return jnp.maximum(y, 0.0)


if __name__ == "__main__":
    key = jax.random.PRNGKey(0)
    kx, kp = jax.random.split(key)

    # Width != 256 and != 128 takes the default branch (x = cnl1024(x)), which
    # requires exactly 1280 input channels.  H=W=16 -> HW=256 (lane-dense).
    x = jax.random.normal(kx, (2, CIN, 16, 16), jnp.float32)
    params = init_params(kp)
    folded = fold_params(params)

    out = jax.block_until_ready(my_efficientnet_forward(x, folded))
    assert out.shape == (2, COUT, 16, 16), out.shape

    ref = jax.block_until_ready(_reference_forward(x, params))
    # bf16 operands with f32 accumulation: relaxed tolerance vs f32 reference.
    assert jnp.allclose(out, ref, atol=5e-2, rtol=5e-2), "mismatch vs reference"

    print("KERNEL_OK")
</pallas_src>

<mosaic_0001>
module attributes {stable_mosaic.version = 11 : i64} {
  func.func @_cbr1x1_kernel(%arg0: i32, %arg1: i32, %arg2: memref<1024x1280xbf16, #tpu.memory_space<vmem>>, %arg3: memref<1024x1xf32, #tpu.memory_space<vmem>>, %arg4: memref<1x1280x256xf32, #tpu.memory_space<vmem>>, %arg5: memref<1x1024x256xf32, #tpu.memory_space<vmem>>) attributes {dimension_semantics = [#tpu.dimension_semantics<parallel>, #tpu.dimension_semantics<parallel>], iteration_bounds = array<i64: 2, 1>, scalar_prefetch = 0 : i64, scratch_operands = 0 : i64, tpu.core_type = #tpu.core_type<tc>, window_params = [{pipeline_mode = #tpu.pipeline_mode<synchronous>, transform_indices = @transform_0, window_bounds = array<i64: 1024, 1280>}, {pipeline_mode = #tpu.pipeline_mode<synchronous>, transform_indices = @transform_1, window_bounds = array<i64: 1024, 1>}, {transform_indices = @transform_2, window_bounds = array<i64: 1, 1280, 256>}, {transform_indices = @transform_3, window_bounds = array<i64: 1, 1024, 256>}]} {
    %c0 = arith.constant 0 : index
    %c0_0 = arith.constant 0 : index
    %c0_1 = arith.constant 0 : index
    %0 = vector.load %arg4[%c0, %c0_0, %c0_1] : memref<1x1280x256xf32, #tpu.memory_space<vmem>>, vector<1x1280x256xf32>
    %1 = vector.shape_cast %0 : vector<1x1280x256xf32> to vector<1280x256xf32>
    %2 = arith.truncf %1 : vector<1280x256xf32> to vector<1280x256xbf16>
    %c0_2 = arith.constant 0 : index
    %c0_3 = arith.constant 0 : index
    %3 = vector.load %arg2[%c0_2, %c0_3] : memref<1024x1280xbf16, #tpu.memory_space<vmem>>, vector<1024x1280xbf16>
    %cst = arith.constant dense<0.000000e+00> : vector<1024x256xf32>
    %4 = tpu.matmul %3, %2, %cst {dimension_numbers = #tpu.dot_dimension_numbers<[1], [0], [0], [1], [0, 0, 1, 1], [], []>} : vector<1024x1280xbf16>, vector<1280x256xbf16>, vector<1024x256xf32> -> vector<1024x256xf32>
    %c0_4 = arith.constant 0 : index
    %c0_5 = arith.constant 0 : index
    %5 = vector.load %arg3[%c0_4, %c0_5] : memref<1024x1xf32, #tpu.memory_space<vmem>>, vector<1024x1xf32>
    %6 = vector.broadcast %5 : vector<1024x1xf32> to vector<1024x256xf32>
    %7 = arith.addf %4, %6 : vector<1024x256xf32>
    %cst_6 = arith.constant 0.000000e+00 : f32
    %8 = vector.broadcast %cst_6 : f32 to vector<1024x256xf32>
    %9 = arith.maximumf %7, %8 : vector<1024x256xf32>
    %c0_7 = arith.constant 0 : index
    %c0_8 = arith.constant 0 : index
    %c0_9 = arith.constant 0 : index
    %10 = vector.load %arg5[%c0_7, %c0_8, %c0_9] : memref<1x1024x256xf32, #tpu.memory_space<vmem>>, vector<1x1024x256xf32>
    %11 = vector.shape_cast %10 : vector<1x1024x256xf32> to vector<1024x256xf32>
    %12 = vector.shape_cast %9 : vector<1024x256xf32> to vector<1x1024x256xf32>
    tpu.vector_store %arg5[%c0_7, %c0_8, %c0_9], %12 {strides = array<i32>} : memref<1x1024x256xf32, #tpu.memory_space<vmem>>, vector<1x1024x256xf32>,
    return
  }
  func.func @transform_0(%arg0: i32, %arg1: i32) -> (i32, i32) {
    %c0_i32 = arith.constant 0 : i32
    %c0_i32_0 = arith.constant 0 : i32
    %c0_i32_1 = arith.constant 0 : i32
    return %c0_i32, %c0_i32_0 : i32, i32
  }
  func.func @transform_1(%arg0: i32, %arg1: i32) -> (i32, i32) {
    %c0_i32 = arith.constant 0 : i32
    %c0_i32_0 = arith.constant 0 : i32
    %c0_i32_1 = arith.constant 0 : i32
    return %c0_i32, %c0_i32_0 : i32, i32
  }
  func.func @transform_2(%arg0: i32, %arg1: i32) -> (i32, i32, i32) {
    %c0_i32 = arith.constant 0 : i32
    %c0_i32_0 = arith.constant 0 : i32
    return %arg0, %c0_i32, %arg1 : i32, i32, i32
  }
  func.func @transform_3(%arg0: i32, %arg1: i32) -> (i32, i32, i32) {
    %c0_i32 = arith.constant 0 : i32
    %c0_i32_0 = arith.constant 0 : i32
    return %arg0, %c0_i32, %arg1 : i32, i32, i32
  }
}

</mosaic_0001>

<llo_original>
// kernel: cbr1x1_nchw.1
$region0: #{cbr1x1_nchw.1}
  #allocation0 [shape = 'u32[]', space=smem, size = 0x4, offset = 0x4, fixed_abs, tag = 'smem constant byte address 0x4 - core index']
  #allocation1 [shape = 'u32[144,128]{1,0:T(1,128)}', space=vmem, size = 0x12000, scoped, tag = 'internal scratch']
  %s0 = inlined_call_operand.vmem [shape: bf16[1024,1280], index: 0, kind: input, shape index: {}]
  %s1 = inlined_call_operand.vmem [shape: f32[1024,1], index: 1, kind: input, shape index: {}]
  %s2 = inlined_call_operand.vmem [shape: f32[2,1280,256], index: 2, kind: input, shape index: {}]
  %s3 = inlined_call_operand.vmem [shape: f32[2,1024,256], index: 3, kind: output, shape index: {}]
  %s4 = sld [smem:[#allocation0]]
  $region45: #{cbr1x1_nchw.1} parent=0
    _
  %s6 = ssub.s32 1, %s4
  %s7 = scalar_select 0, %s6, %s4
  loop: start=0, step=1, limit=4
  $region2: #{cbr1x1_nchw.1} parent=0 // loop_pre_header
    _
  $region3: #{cbr1x1_nchw.1} parent=0 // loop_header
    %s9 = sphi 0, %s13
    %p10 = scmp.ge.s32.totalorder %s9, 4
    %s16 = sphi 0, %s28
    %s17 = sphi 0, %s24
    %s18 = sphi 0, %s16
    %s19 = sphi 0, %s17
    %s20 = sphi 0, %s18
    %s21 = sphi 0, %s19
    %s29 = sphi 0, %s29
    %s31 = sphi 0, %s29
    %s32 = sphi 0, %s31
    %s46 = sphi 0, %s32
    %s50 = sphi 0, %s50
    %s52 = sphi 0, %s50
    %s53 = sphi 0, %s52
    %s67 = sphi 0, %s53
    %s75 = sphi 0, %s77
    %s78 = sphi 0, %s75
    %s79 = sphi 0, %s78
    %s95 = sphi 0, %s79
    %s103 = sphi 0, %s105
    %s106 = sphi 0, %s103
    %s107 = sphi 0, %s106
    %s123 = sphi 0, %s107
  $region4: #{cbr1x1_nchw.1} parent=0 // loop_header_branch
    %12 = sbr.rel (%p10) target = $region8
  $region5: #{cbr1x1_nchw.1} parent=0 // loop_body
    %s14 = ssub.s32 %s9, 1
    %s15 = ssub.s32 %s9, 2
    %s22 = sadd.s32 1, %s17
    %p23 = scmp.ge.s32.totalorder %s22, 1
    %s24 = scalar_select %p23, 0, %s22
    %s25 = sadd.s32 1, %s16
    %s26 = scalar_select %p23, %s25, %s16
    %p27 = scmp.ge.s32.totalorder %s26, 2
    %s28 = scalar_select %p27, 0, %s26
    %s30 = sadd.s32 %s29, 1
    %p33 = scmp.eq.s32.totalorder %s9, 1
    %p34 = scmp.ne.s32.totalorder %s29, %s31
    %p35 = scmp.eq.s32.totalorder %s9, 0
    %p36 = por %p34, %p35
    %p37 = scmp.ne.s32.totalorder %s29, %s31
    %p38 = scmp.eq.s32.totalorder %s14, 1
    %p39 = por %p37, %p38
    %p40 = scmp.ne.s32.totalorder %s31, %s32
    %p41 = scmp.eq.s32.totalorder %s14, 0
    %p42 = por %p40, %p41
    %p43 = scmp.ne.s32.totalorder %s31, %s32
    %p44 = scmp.eq.s32.totalorder %s15, 1
    %p45 = por %p43, %p44
    %p47 = scmp.ne.s32.totalorder %s32, %s46
    %p48 = scmp.eq.s32.totalorder %s15, 0
    %p49 = por %p47, %p48
    %s51 = sadd.s32 %s50, 1
    %p54 = scmp.eq.s32.totalorder %s9, 1
    %p55 = scmp.ne.s32.totalorder %s50, %s52
    %p56 = scmp.eq.s32.totalorder %s9, 0
    %p57 = por %p55, %p56
    %p58 = scmp.ne.s32.totalorder %s50, %s52
    %p59 = scmp.eq.s32.totalorder %s14, 1
    %p60 = por %p58, %p59
    %p61 = scmp.ne.s32.totalorder %s52, %s53
    %p62 = scmp.eq.s32.totalorder %s14, 0
    %p63 = por %p61, %p62
    %p64 = scmp.ne.s32.totalorder %s52, %s53
    %p65 = scmp.eq.s32.totalorder %s15, 1
    %p66 = por %p64, %p65
    %p68 = scmp.ne.s32.totalorder %s53, %s67
    %p69 = scmp.eq.s32.totalorder %s15, 0
    %p70 = por %p68, %p69
    %s71 = ssub.s32 %s16, %s28
    %s72 = ssub.s32 %s17, %s24
    %s73 = sor.u32 %s71, %s72
    %p74 = scmp.eq.s32.totalorder %s73, 0
    %s76 = sadd.s32 %s75, 1
    %s77 = scalar_select %p74, %s75, %s76
    %p80 = pneg %p74
    %p81 = scmp.eq.s32.totalorder %s9, 1
    %p82 = por %p80, %p81
    %p83 = scmp.ne.s32.totalorder %s75, %s78
    %p84 = scmp.eq.s32.totalorder %s9, 0
    %p85 = por %p83, %p84
    %p86 = scmp.ne.s32.totalorder %s75, %s78
    %p87 = scmp.eq.s32.totalorder %s14, 1
    %p88 = por %p86, %p87
    %p89 = scmp.ne.s32.totalorder %s78, %s79
    %p90 = scmp.eq.s32.totalorder %s14, 0
    %p91 = por %p89, %p90
    %p92 = scmp.ne.s32.totalorder %s78, %s79
    %p93 = scmp.eq.s32.totalorder %s15, 1
    %p94 = por %p92, %p93
    %p96 = scmp.ne.s32.totalorder %s79, %s95
    %p97 = scmp.eq.s32.totalorder %s15, 0
    %p98 = por %p96, %p97
    %s99 = ssub.s32 %s16, %s28
    %s100 = ssub.s32 %s17, %s24
    %s101 = sor.u32 %s99, %s100
    %p102 = scmp.eq.s32.totalorder %s101, 0
    %s104 = sadd.s32 %s103, 1
    %s105 = scalar_select %p102, %s103, %s104
    %p108 = pneg %p102
    %p109 = scmp.eq.s32.totalorder %s9, 1
    %p110 = por %p108, %p109
    %p111 = scmp.ne.s32.totalorder %s103, %s106
    %p112 = scmp.eq.s32.totalorder %s9, 0
    %p113 = por %p111, %p112
    %p114 = scmp.ne.s32.totalorder %s103, %s106
    %p115 = scmp.eq.s32.totalorder %s14, 1
    %p116 = por %p114, %p115
    %p117 = scmp.ne.s32.totalorder %s106, %s107
    %p118 = scmp.eq.s32.totalorder %s14, 0
    %p119 = por %p117, %p118
    %p120 = scmp.ne.s32.totalorder %s106, %s107
    %p121 = scmp.eq.s32.totalorder %s15, 1
    %p122 = por %p120, %p121
    %p124 = scmp.ne.s32.totalorder %s107, %s123
    %p125 = scmp.eq.s32.totalorder %s15, 0
    %p126 = por %p124, %p125
    %p127 = scmp.le.s32.totalorder 1, %s9
    %p128 = scmp.lt.s32.totalorder %s9, 3
    %p129 = pnand %p127, %p128
    %p130 = pneg %p129
    // Predicated region
    $region9: #{cbr1x1_nchw.1} parent=5 // pred_check
      _
    $region10: #{cbr1x1_nchw.1} parent=5 // pred_check_branch
      %132 = sbr.rel (%p129) target = $region12
    $region11: #{cbr1x1_nchw.1} parent=5 // pred_region
      %s133 = ssub.s32 %s9, 1
      // Predicated region
      $region13: #{cbr1x1_nchw.1} parent=11 // pred_check
        %p134 = pneg %p42
      $region14: #{cbr1x1_nchw.1} parent=11 // pred_check_branch
        %136 = sbr.rel (%p134) target = $region16
      $region15: #{cbr1x1_nchw.1} parent=11 // pred_region
        _
      $region16: #{cbr1x1_nchw.1} parent=11 // pred_fallthru
        _
      // Predicated region
      $region17: #{cbr1x1_nchw.1} parent=11 // pred_check
        %p137 = pneg %p63
      $region18: #{cbr1x1_nchw.1} parent=11 // pred_check_branch
        %139 = sbr.rel (%p137) target = $region20
      $region19: #{cbr1x1_nchw.1} parent=11 // pred_region
        _
      $region20: #{cbr1x1_nchw.1} parent=11 // pred_fallthru
        _
    $region12: #{cbr1x1_nchw.1} parent=5 // pred_fallthru
      _
    %p140 = scmp.lt.s32.totalorder %s9, 2
    // Predicated region
    $region21: #{cbr1x1_nchw.1} parent=5 // pred_check
      %p141 = pneg %p140
    $region22: #{cbr1x1_nchw.1} parent=5 // pred_check_branch
      %143 = sbr.rel (%p141) target = $region24
    $region23: #{cbr1x1_nchw.1} parent=5 // pred_region
      // Predicated region
      $region25: #{cbr1x1_nchw.1} parent=23 // pred_check
        %p144 = pneg %p85
      $region26: #{cbr1x1_nchw.1} parent=23 // pred_check_branch
        %146 = sbr.rel (%p144) target = $region28
      $region27: #{cbr1x1_nchw.1} parent=23 // pred_region
        %s147 = smul.u32 2, %s17
        %p148 = scmp.lt.s32.totalorder %s16, 1
        %s149 = scalar_select %p148, %s16, 1
        %p150 = scmp.lt.s32.totalorder %s147, 1
        %s151 = scalar_select %p150, %s147, 1
        %s152 = smul.addr %s149, 320
        %s153 = sadd.s32 %s151, %s152
        %s154 = smul.addr %s153, 8
        %s155 = scalar_lea.vmem %s2, %s154
        %s156 = smul.u32 2, %s17
      $region28: #{cbr1x1_nchw.1} parent=23 // pred_fallthru
        _
    $region24: #{cbr1x1_nchw.1} parent=5 // pred_fallthru
      _
    %p157 = scmp.le.s32.totalorder 1, %s9
    %p158 = scmp.lt.s32.totalorder %s9, 3
    %p159 = pnand %p157, %p158
    %p160 = pneg %p159
    // Predicated region
    $region29: #{cbr1x1_nchw.1} parent=5 // pred_check
      _
    $region30: #{cbr1x1_nchw.1} parent=5 // pred_check_branch
      %162 = sbr.rel (%p159) target = $region32
    $region31: #{cbr1x1_nchw.1} parent=5 // pred_region
      %s163 = ssub.s32 %s9, 1
      %p164 = pneg %p42
      %p165 = pneg %p39
      %p166 = pneg %p63
      %p167 = pneg %p60
      %s168 = smul.u32 2, %s19
      %p169 = scmp.lt.s32.totalorder %s18, 1
      %s170 = scalar_select %p169, %s18, 1
      %p171 = scmp.lt.s32.totalorder %s168, 1
      %s172 = scalar_select %p171, %s168, 1
      %s173 = smul.addr %s170, 320
      %s174 = sadd.s32 %s172, %s173
      %s175 = smul.addr %s174, 8
      %s176 = scalar_lea.vmem %s2, %s175
      %p177 = pneg %p91
      %p178 = pneg %p88
      %p179 = pneg %p119
      %p180 = pneg %p116
      %s181 = smul.u32 2, %s19
      %p182 = scmp.lt.s32.totalorder %s18, 1
      %s183 = scalar_select %p182, %s18, 1
      %p184 = scmp.lt.s32.totalorder %s181, 1
      %s185 = scalar_select %p184, %s181, 1
      %s186 = smul.addr %s183, 256
      %s187 = sadd.s32 %s185, %s186
      %s188 = smul.addr %s187, 8
      %s189 = scalar_lea.vmem %s3, %s188
      %s190 = smul.u32 2, %s19
      %p191 = scmp.lt.s32.totalorder %s18, 1
      %s192 = scalar_select %p191, %s18, 1
      %p193 = scmp.lt.s32.totalorder %s190, 1
      %s194 = scalar_select %p193, %s190, 1
      %s195 = smul.addr %s192, 320
      %s196 = sadd.s32 %s194, %s195
      %s197 = smul.addr %s196, 8
      %s198 = scalar_lea.vmem %s2, %s197
      %s199 = smul.u32 2, %s19
      %s200 = smul.u32 2, %s19
      %p201 = scmp.lt.s32.totalorder %s18, 1
      %s202 = scalar_select %p201, %s18, 1
      %p203 = scmp.lt.s32.totalorder %s200, 1
      %s204 = scalar_select %p203, %s200, 1
      %s205 = smul.addr %s202, 256
      %s206 = sadd.s32 %s204, %s205
      %s207 = smul.addr %s206, 8
      %s208 = scalar_lea.vmem %s3, %s207
      %s209 = smul.u32 2, %s19
      %v210 = vld [vmem:[%s198] sm:$0xff]
      %v211 = vld [vmem:[%s198 + $0x8] sm:$0xff]
      %v212 = vld [vmem:[%s198 + $0x10] sm:$0xff]
      %v213 = vld [vmem:[%s198 + $0x18] sm:$0xff]
      %v214 = vld [vmem:[%s198 + $0x20] sm:$0xff]
      %v215 = vld [vmem:[%s198 + $0x28] sm:$0xff]
      %v216 = vld [vmem:[%s198 + $0x30] sm:$0xff]
      %v217 = vld [vmem:[%s198 + $0x38] sm:$0xff]
      %v218 = vld [vmem:[%s198 + $0x40] sm:$0xff]
      %v219 = vld [vmem:[%s198 + $0x48] sm:$0xff]
      %v220 = vld [vmem:[%s198 + $0x50] sm:$0xff]
      %v221 = vld [vmem:[%s198 + $0x58] sm:$0xff]
      %v222 = vld [vmem:[%s198 + $0x60] sm:$0xff]
      %v223 = vld [vmem:[%s198 + $0x68] sm:$0xff]
      %v224 = vld [vmem:[%s198 + $0x70] sm:$0xff]
      %v225 = vld [vmem:[%s198 + $0x78] sm:$0xff]
      %v226 = vld [vmem:[%s198 + $0x80] sm:$0xff]
      %v227 = vld [vmem:[%s198 + $0x88] sm:$0xff]
      %v228 = vld [vmem:[%s198 + $0x90] sm:$0xff]
      %v229 = vld [vmem:[%s198 + $0x98] sm:$0xff]
      %v230 = vld [vmem:[%s198 + $0xa0] sm:$0xff]
      %v231 = vld [vmem:[%s198 + $0xa8] sm:$0xff]
      %v232 = vld [vmem:[%s198 + $0xb0] sm:$0xff]
      %v233 = vld [vmem:[%s198 + $0xb8] sm:$0xff]
      %v234 = vld [vmem:[%s198 + $0xc0] sm:$0xff]
      %v235 = vld [vmem:[%s198 + $0xc8] sm:$0xff]
      %v236 = vld [vmem:[%s198 + $0xd0] sm:$0xff]
      %v237 = vld [vmem:[%s198 + $0xd8] sm:$0xff]
      %v238 = vld [vmem:[%s198 + $0xe0] sm:$0xff]
      %v239 = vld [vmem:[%s198 + $0xe8] sm:$0xff]
      %v240 = vld [vmem:[%s198 + $0xf0] sm:$0xff]
      %v241 = vld [vmem:[%s198 + $0xf8] sm:$0xff]
      %v242 = vld [vmem:[%s198 + $0x100] sm:$0xff]
      %v243 = vld [vmem:[%s198 + $0x108] sm:$0xff]
      %v244 = vld [vmem:[%s198 + $0x110] sm:$0xff]
      %v245 = vld [vmem:[%s198 + $0x118] sm:$0xff]
      %v246 = vld [vmem:[%s198 + $0x120] sm:$0xff]
      %v247 = vld [vmem:[%s198 + $0x128] sm:$0xff]
      %v248 = vld [vmem:[%s198 + $0x130] sm:$0xff]
      %v249 = vld [vmem:[%s198 + $0x138] sm:$0xff]
      %v250 = vld [vmem:[%s198 + $0x140] sm:$0xff]
      %v251 = vld [vmem:[%s198 + $0x148] sm:$0xff]
      %v252 = vld [vmem:[%s198 + $0x150] sm:$0xff]
      %v253 = vld [vmem:[%s198 + $0x158] sm:$0xff]
      %v254 = vld [vmem:[%s198 + $0x160] sm:$0xff]
      %v255 = vld [vmem:[%s198 + $0x168] sm:$0xff]
      %v256 = vld [vmem:[%s198 + $0x170] sm:$0xff]
      %v257 = vld [vmem:[%s198 + $0x178] sm:$0xff]
      %v258 = vld [vmem:[%s198 + $0x180] sm:$0xff]
      %v259 = vld [vmem:[%s198 + $0x188] sm:$0xff]
      %v260 = vld [vmem:[%s198 + $0x190] sm:$0xff]
      %v261 = vld [vmem:[%s198 + $0x198] sm:$0xff]
      %v262 = vld [vmem:[%s198 + $0x1a0] sm:$0xff]
      %v263 = vld [vmem:[%s198 + $0x1a8] sm:$0xff]
      %v264 = vld [vmem:[%s198 + $0x1b0] sm:$0xff]
      %v265 = vld [vmem:[%s198 + $0x1b8] sm:$0xff]
      %v266 = vld [vmem:[%s198 + $0x1c0] sm:$0xff]
      %v267 = vld [vmem:[%s198 + $0x1c8] sm:$0xff]
      %v268 = vld [vmem:[%s198 + $0x1d0] sm:$0xff]
      %v269 = vld [vmem:[%s198 + $0x1d8] sm:$0xff]
      %v270 = vld [vmem:[%s198 + $0x1e0] sm:$0xff]
      %v271 = vld [vmem:[%s198 + $0x1e8] sm:$0xff]
      %v272 = vld [vmem:[%s198 + $0x1f0] sm:$0xff]
      %v273 = vld [vmem:[%s198 + $0x1f8] sm:$0xff]
      %v274 = vld [vmem:[%s198 + $0x200] sm:$0xff]
      %v275 = vld [vmem:[%s198 + $0x208] sm:$0xff]
      %v276 = vld [vmem:[%s198 + $0x210] sm:$0xff]
      %v277 = vld [vmem:[%s198 + $0x218] sm:$0xff]
      %v278 = vld [vmem:[%s198 + $0x220] sm:$0xff]
      %v279 = vld [vmem:[%s198 + $0x228] sm:$0xff]
      %v280 = vld [vmem:[%s198 + $0x230] sm:$0xff]
      %v281 = vld [vmem:[%s198 + $0x238] sm:$0xff]
      %v282 = vld [vmem:[%s198 + $0x240] sm:$0xff]
      %v283 = vld [vmem:[%s198 + $0x248] sm:$0xff]
      %v284 = vld [vmem:[%s198 + $0x250] sm:$0xff]
      %v285 = vld [vmem:[%s198 + $0x258] sm:$0xff]
      %v286 = vld [vmem:[%s198 + $0x260] sm:$0xff]
      %v287 = vld [vmem:[%s198 + $0x268] sm:$0xff]
      %v288 = vld [vmem:[%s198 + $0x270] sm:$0xff]
      %v289 = vld [vmem:[%s198 + $0x278] sm:$0xff]
      %v290 = vld [vmem:[%s198 + $0x280] sm:$0xff]
      %v291 = vld [vmem:[%s198 + $0x288] sm:$0xff]
      %v292 = vld [vmem:[%s198 + $0x290] sm:$0xff]
      %v293 = vld [vmem:[%s198 + $0x298] sm:$0xff]
      %v294 = vld [vmem:[%s198 + $0x2a0] sm:$0xff]
      %v295 = vld [vmem:[%s198 + $0x2a8] sm:$0xff]
      %v296 = vld [vmem:[%s198 + $0x2b0] sm:$0xff]
      %v297 = vld [vmem:[%s198 + $0x2b8] sm:$0xff]
      %v298 = vld [vmem:[%s198 + $0x2c0] sm:$0xff]
      %v299 = vld [vmem:[%s198 + $0x2c8] sm:$0xff]
      %v300 = vld [vmem:[%s198 + $0x2d0] sm:$0xff]
      %v301 = vld [vmem:[%s198 + $0x2d8] sm:$0xff]
      %v302 = vld [vmem:[%s198 + $0x2e0] sm:$0xff]
      %v303 = vld [vmem:[%s198 + $0x2e8] sm:$0xff]
      %v304 = vld [vmem:[%s198 + $0x2f0] sm:$0xff]
      %v305 = vld [vmem:[%s198 + $0x2f8] sm:$0xff]
      %v306 = vld [vmem:[%s198 + $0x300] sm:$0xff]
      %v307 = vld [vmem:[%s198 + $0x308] sm:$0xff]
      %v308 = vld [vmem:[%s198 + $0x310] sm:$0xff]
      %v309 = vld [vmem:[%s198 + $0x318] sm:$0xff]
      %v310 = vld [vmem:[%s198 + $0x320] sm:$0xff]
      %v311 = vld [vmem:[%s198 + $0x328] sm:$0xff]
      %v312 = vld [vmem:[%s198 + $0x330] sm:$0xff]
      %v313 = vld [vmem:[%s198 + $0x338] sm:$0xff]
      %v314 = vld [vmem:[%s198 + $0x340] sm:$0xff]
      %v315 = vld [vmem:[%s198 + $0x348] sm:$0xff]
      %v316 = vld [vmem:[%s198 + $0x350] sm:$0xff]
      %v317 = vld [vmem:[%s198 + $0x358] sm:$0xff]
      %v318 = vld [vmem:[%s198 + $0x360] sm:$0xff]
      %v319 = vld [vmem:[%s198 + $0x368] sm:$0xff]
      %v320 = vld [vmem:[%s198 + $0x370] sm:$0xff]
      %v321 = vld [vmem:[%s198 + $0x378] sm:$0xff]
      %v322 = vld [vmem:[%s198 + $0x380] sm:$0xff]
      %v323 = vld [vmem:[%s198 + $0x388] sm:$0xff]
      %v324 = vld [vmem:[%s198 + $0x390] sm:$0xff]
      %v325 = vld [vmem:[%s198 + $0x398] sm:$0xff]
      %v326 = vld [vmem:[%s198 + $0x3a0] sm:$0xff]
      %v327 = vld [vmem:[%s198 + $0x3a8] sm:$0xff]
      %v328 = vld [vmem:[%s198 + $0x3b0] sm:$0xff]
      %v329 = vld [vmem:[%s198 + $0x3b8] sm:$0xff]
      %v330 = vld [vmem:[%s198 + $0x3c0] sm:$0xff]
      %v331 = vld [vmem:[%s198 + $0x3c8] sm:$0xff]
      %v332 = vld [vmem:[%s198 + $0x3d0] sm:$0xff]
      %v333 = vld [vmem:[%s198 + $0x3d8] sm:$0xff]
      %v334 = vld [vmem:[%s198 + $0x3e0] sm:$0xff]
      %v335 = vld [vmem:[%s198 + $0x3e8] sm:$0xff]
      %v336 = vld [vmem:[%s198 + $0x3f0] sm:$0xff]
      %v337 = vld [vmem:[%s198 + $0x3f8] sm:$0xff]
      %v338 = vld [vmem:[%s198 + $0x400] sm:$0xff]
      %v339 = vld [vmem:[%s198 + $0x408] sm:$0xff]
      %v340 = vld [vmem:[%s198 + $0x410] sm:$0xff]
      %v341 = vld [vmem:[%s198 + $0x418] sm:$0xff]
      %v342 = vld [vmem:[%s198 + $0x420] sm:$0xff]
      %v343 = vld [vmem:[%s198 + $0x428] sm:$0xff]
      %v344 = vld [vmem:[%s198 + $0x430] sm:$0xff]
      %v345 = vld [vmem:[%s198 + $0x438] sm:$0xff]
      %v346 = vld [vmem:[%s198 + $0x440] sm:$0xff]
      %v347 = vld [vmem:[%s198 + $0x448] sm:$0xff]
      %v348 = vld [vmem:[%s198 + $0x450] sm:$0xff]
      %v349 = vld [vmem:[%s198 + $0x458] sm:$0xff]
      %v350 = vld [vmem:[%s198 + $0x460] sm:$0xff]
      %v351 = vld [vmem:[%s198 + $0x468] sm:$0xff]
      %v352 = vld [vmem:[%s198 + $0x470] sm:$0xff]
      %v353 = vld [vmem:[%s198 + $0x478] sm:$0xff]
      %v354 = vld [vmem:[%s198 + $0x480] sm:$0xff]
      %v355 = vld [vmem:[%s198 + $0x488] sm:$0xff]
      %v356 = vld [vmem:[%s198 + $0x490] sm:$0xff]
      %v357 = vld [vmem:[%s198 + $0x498] sm:$0xff]
      %v358 = vld [vmem:[%s198 + $0x4a0] sm:$0xff]
      %v359 = vld [vmem:[%s198 + $0x4a8] sm:$0xff]
      %v360 = vld [vmem:[%s198 + $0x4b0] sm:$0xff]
      %v361 = vld [vmem:[%s198 + $0x4b8] sm:$0xff]
      %v362 = vld [vmem:[%s198 + $0x4c0] sm:$0xff]
      %v363 = vld [vmem:[%s198 + $0x4c8] sm:$0xff]
      %v364 = vld [vmem:[%s198 + $0x4d0] sm:$0xff]
      %v365 = vld [vmem:[%s198 + $0x4d8] sm:$0xff]
      %v366 = vld [vmem:[%s198 + $0x4e0] sm:$0xff]
      %v367 = vld [vmem:[%s198 + $0x4e8] sm:$0xff]
      %v368 = vld [vmem:[%s198 + $0x4f0] sm:$0xff]
      %v369 = vld [vmem:[%s198 + $0x4f8] sm:$0xff]
      %v370 = vld [vmem:[%s198 + $0x500] sm:$0xff]
      %v371 = vld [vmem:[%s198 + $0x508] sm:$0xff]
      %v372 = vld [vmem:[%s198 + $0x510] sm:$0xff]
      %v373 = vld [vmem:[%s198 + $0x518] sm:$0xff]
      %v374 = vld [vmem:[%s198 + $0x520] sm:$0xff]
      %v375 = vld [vmem:[%s198 + $0x528] sm:$0xff]
      %v376 = vld [vmem:[%s198 + $0x530] sm:$0xff]
      %v377 = vld [vmem:[%s198 + $0x538] sm:$0xff]
      %v378 = vld [vmem:[%s198 + $0x540] sm:$0xff]
      %v379 = vld [vmem:[%s198 + $0x548] sm:$0xff]
      %v380 = vld [vmem:[%s198 + $0x550] sm:$0xff]
      %v381 = vld [vmem:[%s198 + $0x558] sm:$0xff]
      %v382 = vld [vmem:[%s198 + $0x560] sm:$0xff]
      %v383 = vld [vmem:[%s198 + $0x568] sm:$0xff]
      %v384 = vld [vmem:[%s198 + $0x570] sm:$0xff]
      %v385 = vld [vmem:[%s198 + $0x578] sm:$0xff]
      %v386 = vld [vmem:[%s198 + $0x580] sm:$0xff]
      %v387 = vld [vmem:[%s198 + $0x588] sm:$0xff]
      %v388 = vld [vmem:[%s198 + $0x590] sm:$0xff]
      %v389 = vld [vmem:[%s198 + $0x598] sm:$0xff]
      %v390 = vld [vmem:[%s198 + $0x5a0] sm:$0xff]
      %v391 = vld [vmem:[%s198 + $0x5a8] sm:$0xff]
      %v392 = vld [vmem:[%s198 + $0x5b0] sm:$0xff]
      %v393 = vld [vmem:[%s198 + $0x5b8] sm:$0xff]
      %v394 = vld [vmem:[%s198 + $0x5c0] sm:$0xff]
      %v395 = vld [vmem:[%s198 + $0x5c8] sm:$0xff]
      %v396 = vld [vmem:[%s198 + $0x5d0] sm:$0xff]
      %v397 = vld [vmem:[%s198 + $0x5d8] sm:$0xff]
      %v398 = vld [vmem:[%s198 + $0x5e0] sm:$0xff]
      %v399 = vld [vmem:[%s198 + $0x5e8] sm:$0xff]
      %v400 = vld [vmem:[%s198 + $0x5f0] sm:$0xff]
      %v401 = vld [vmem:[%s198 + $0x5f8] sm:$0xff]
      %v402 = vld [vmem:[%s198 + $0x600] sm:$0xff]
      %v403 = vld [vmem:[%s198 + $0x608] sm:$0xff]
      %v404 = vld [vmem:[%s198 + $0x610] sm:$0xff]
      %v405 = vld [vmem:[%s198 + $0x618] sm:$0xff]
      %v406 = vld [vmem:[%s198 + $0x620] sm:$0xff]
      %v407 = vld [vmem:[%s198 + $0x628] sm:$0xff]
      %v408 = vld [vmem:[%s198 + $0x630] sm:$0xff]
      %v409 = vld [vmem:[%s198 + $0x638] sm:$0xff]
      %v410 = vld [vmem:[%s198 + $0x640] sm:$0xff]
      %v411 = vld [vmem:[%s198 + $0x648] sm:$0xff]
      %v412 = vld [vmem:[%s198 + $0x650] sm:$0xff]
      %v413 = vld [vmem:[%s198 + $0x658] sm:$0xff]
      %v414 = vld [vmem:[%s198 + $0x660] sm:$0xff]
      %v415 = vld [vmem:[%s198 + $0x668] sm:$0xff]
      %v416 = vld [vmem:[%s198 + $0x670] sm:$0xff]
      %v417 = vld [vmem:[%s198 + $0x678] sm:$0xff]
      %v418 = vld [vmem:[%s198 + $0x680] sm:$0xff]
      %v419 = vld [vmem:[%s198 + $0x688] sm:$0xff]
      %v420 = vld [vmem:[%s198 + $0x690] sm:$0xff]
      %v421 = vld [vmem:[%s198 + $0x698] sm:$0xff]
      %v422 = vld [vmem:[%s198 + $0x6a0] sm:$0xff]
      %v423 = vld [vmem:[%s198 + $0x6a8] sm:$0xff]
      %v424 = vld [vmem:[%s198 + $0x6b0] sm:$0xff]
      %v425 = vld [vmem:[%s198 + $0x6b8] sm:$0xff]
      %v426 = vld [vmem:[%s198 + $0x6c0] sm:$0xff]
      %v427 = vld [vmem:[%s198 + $0x6c8] sm:$0xff]
      %v428 = vld [vmem:[%s198 + $0x6d0] sm:$0xff]
      %v429 = vld [vmem:[%s198 + $0x6d8] sm:$0xff]
      %v430 = vld [vmem:[%s198 + $0x6e0] sm:$0xff]
      %v431 = vld [vmem:[%s198 + $0x6e8] sm:$0xff]
      %v432 = vld [vmem:[%s198 + $0x6f0] sm:$0xff]
      %v433 = vld [vmem:[%s198 + $0x6f8] sm:$0xff]
      %v434 = vld [vmem:[%s198 + $0x700] sm:$0xff]
      %v435 = vld [vmem:[%s198 + $0x708] sm:$0xff]
      %v436 = vld [vmem:[%s198 + $0x710] sm:$0xff]
      %v437 = vld [vmem:[%s198 + $0x718] sm:$0xff]
      %v438 = vld [vmem:[%s198 + $0x720] sm:$0xff]
      %v439 = vld [vmem:[%s198 + $0x728] sm:$0xff]
      %v440 = vld [vmem:[%s198 + $0x730] sm:$0xff]
      %v441 = vld [vmem:[%s198 + $0x738] sm:$0xff]
      %v442 = vld [vmem:[%s198 + $0x740] sm:$0xff]
      %v443 = vld [vmem:[%s198 + $0x748] sm:$0xff]
      %v444 = vld [vmem:[%s198 + $0x750] sm:$0xff]
      %v445 = vld [vmem:[%s198 + $0x758] sm:$0xff]
      %v446 = vld [vmem:[%s198 + $0x760] sm:$0xff]
      %v447 = vld [vmem:[%s198 + $0x768] sm:$0xff]
      %v448 = vld [vmem:[%s198 + $0x770] sm:$0xff]
      %v449 = vld [vmem:[%s198 + $0x778] sm:$0xff]
      %v450 = vld [vmem:[%s198 + $0x780] sm:$0xff]
      %v451 = vld [vmem:[%s198 + $0x788] sm:$0xff]
      %v452 = vld [vmem:[%s198 + $0x790] sm:$0xff]
      %v453 = vld [vmem:[%s198 + $0x798] sm:$0xff]
      %v454 = vld [vmem:[%s198 + $0x7a0] sm:$0xff]
      %v455 = vld [vmem:[%s198 + $0x7a8] sm:$0xff]
      %v456 = vld [vmem:[%s198 + $0x7b0] sm:$0xff]
      %v457 = vld [vmem:[%s198 + $0x7b8] sm:$0xff]
      %v458 = vld [vmem:[%s198 + $0x7c0] sm:$0xff]
      %v459 = vld [vmem:[%s198 + $0x7c8] sm:$0xff]
      %v460 = vld [vmem:[%s198 + $0x7d0] sm:$0xff]
      %v461 = vld [vmem:[%s198 + $0x7d8] sm:$0xff]
      %v462 = vld [vmem:[%s198 + $0x7e0] sm:$0xff]
      %v463 = vld [vmem:[%s198 + $0x7e8] sm:$0xff]
      %v464 = vld [vmem:[%s198 + $0x7f0] sm:$0xff]
      %v465 = vld [vmem:[%s198 + $0x7f8] sm:$0xff]
      %v466 = vld [vmem:[%s198 + $0x800] sm:$0xff]
      %v467 = vld [vmem:[%s198 + $0x808] sm:$0xff]
      %v468 = vld [vmem:[%s198 + $0x810] sm:$0xff]
      %v469 = vld [vmem:[%s198 + $0x818] sm:$0xff]
      %v470 = vld [vmem:[%s198 + $0x820] sm:$0xff]
      %v471 = vld [vmem:[%s198 + $0x828] sm:$0xff]
      %v472 = vld [vmem:[%s198 + $0x830] sm:$0xff]
      %v473 = vld [vmem:[%s198 + $0x838] sm:$0xff]
      %v474 = vld [vmem:[%s198 + $0x840] sm:$0xff]
      %v475 = vld [vmem:[%s198 + $0x848] sm:$0xff]
      %v476 = vld [vmem:[%s198 + $0x850] sm:$0xff]
      %v477 = vld [vmem:[%s198 + $0x858] sm:$0xff]
      %v478 = vld [vmem:[%s198 + $0x860] sm:$0xff]
      %v479 = vld [vmem:[%s198 + $0x868] sm:$0xff]
      %v480 = vld [vmem:[%s198 + $0x870] sm:$0xff]
      %v481 = vld [vmem:[%s198 + $0x878] sm:$0xff]
      %v482 = vld [vmem:[%s198 + $0x880] sm:$0xff]
      %v483 = vld [vmem:[%s198 + $0x888] sm:$0xff]
      %v484 = vld [vmem:[%s198 + $0x890] sm:$0xff]
      %v485 = vld [vmem:[%s198 + $0x898] sm:$0xff]
      %v486 = vld [vmem:[%s198 + $0x8a0] sm:$0xff]
      %v487 = vld [vmem:[%s198 + $0x8a8] sm:$0xff]
      %v488 = vld [vmem:[%s198 + $0x8b0] sm:$0xff]
      %v489 = vld [vmem:[%s198 + $0x8b8] sm:$0xff]
      %v490 = vld [vmem:[%s198 + $0x8c0] sm:$0xff]
      %v491 = vld [vmem:[%s198 + $0x8c8] sm:$0xff]
      %v492 = vld [vmem:[%s198 + $0x8d0] sm:$0xff]
      %v493 = vld [vmem:[%s198 + $0x8d8] sm:$0xff]
      %v494 = vld [vmem:[%s198 + $0x8e0] sm:$0xff]
      %v495 = vld [vmem:[%s198 + $0x8e8] sm:$0xff]
      %v496 = vld [vmem:[%s198 + $0x8f0] sm:$0xff]
      %v497 = vld [vmem:[%s198 + $0x8f8] sm:$0xff]
      %v498 = vld [vmem:[%s198 + $0x900] sm:$0xff]
      %v499 = vld [vmem:[%s198 + $0x908] sm:$0xff]
      %v500 = vld [vmem:[%s198 + $0x910] sm:$0xff]
      %v501 = vld [vmem:[%s198 + $0x918] sm:$0xff]
      %v502 = vld [vmem:[%s198 + $0x920] sm:$0xff]
      %v503 = vld [vmem:[%s198 + $0x928] sm:$0xff]
      %v504 = vld [vmem:[%s198 + $0x930] sm:$0xff]
      %v505 = vld [vmem:[%s198 + $0x938] sm:$0xff]
      %v506 = vld [vmem:[%s198 + $0x940] sm:$0xff]
      %v507 = vld [vmem:[%s198 + $0x948] sm:$0xff]
      %v508 = vld [vmem:[%s198 + $0x950] sm:$0xff]
      %v509 = vld [vmem:[%s198 + $0x958] sm:$0xff]
      %v510 = vld [vmem:[%s198 + $0x960] sm:$0xff]
      %v511 = vld [vmem:[%s198 + $0x968] sm:$0xff]
      %v512 = vld [vmem:[%s198 + $0x970] sm:$0xff]
      %v513 = vld [vmem:[%s198 + $0x978] sm:$0xff]
      %v514 = vld [vmem:[%s198 + $0x980] sm:$0xff]
      %v515 = vld [vmem:[%s198 + $0x988] sm:$0xff]
      %v516 = vld [vmem:[%s198 + $0x990] sm:$0xff]
      %v517 = vld [vmem:[%s198 + $0x998] sm:$0xff]
      %v518 = vld [vmem:[%s198 + $0x9a0] sm:$0xff]
      %v519 = vld [vmem:[%s198 + $0x9a8] sm:$0xff]
      %v520 = vld [vmem:[%s198 + $0x9b0] sm:$0xff]
      %v521 = vld [vmem:[%s198 + $0x9b8] sm:$0xff]
      %v522 = vld [vmem:[%s198 + $0x9c0] sm:$0xff]
      %v523 = vld [vmem:[%s198 + $0x9c8] sm:$0xff]
      %v524 = vld [vmem:[%s198 + $0x9d0] sm:$0xff]
      %v525 = vld [vmem:[%s198 + $0x9d8] sm:$0xff]
      %v526 = vld [vmem:[%s198 + $0x9e0] sm:$0xff]
      %v527 = vld [vmem:[%s198 + $0x9e8] sm:$0xff]
      %v528 = vld [vmem:[%s198 + $0x9f0] sm:$0xff]
      %v529 = vld [vmem:[%s198 + $0x9f8] sm:$0xff]
      %v530 = vpack.c.bf16 %v212, %v210
      %v531 = vpack.c.bf16 %v213, %v211
      %v532 = vpack.c.bf16 %v216, %v214
      %v533 = vpack.c.bf16 %v217, %v215
      %v534 = vpack.c.bf16 %v220, %v218
      %v535 = vpack.c.bf16 %v221, %v219
      %v536 = vpack.c.bf16 %v224, %v222
      %v537 = vpack.c.bf16 %v225, %v223
      %v538 = vpack.c.bf16 %v228, %v226
      %v539 = vpack.c.bf16 %v229, %v227
      %v540 = vpack.c.bf16 %v232, %v230
      %v541 = vpack.c.bf16 %v233, %v231
      %v542 = vpack.c.bf16 %v236, %v234
      %v543 = vpack.c.bf16 %v237, %v235
      %v544 = vpack.c.bf16 %v240, %v238
      %v545 = vpack.c.bf16 %v241, %v239
      %v546 = vpack.c.bf16 %v244, %v242
      %v547 = vpack.c.bf16 %v245, %v243
      %v548 = vpack.c.bf16 %v248, %v246
      %v549 = vpack.c.bf16 %v249, %v247
      %v550 = vpack.c.bf16 %v252, %v250
      %v551 = vpack.c.bf16 %v253, %v251
      %v552 = vpack.c.bf16 %v256, %v254
      %v553 = vpack.c.bf16 %v257, %v255
      %v554 = vpack.c.bf16 %v260, %v258
      %v555 = vpack.c.bf16 %v261, %v259
      %v556 = vpack.c.bf16 %v264, %v262
      %v557 = vpack.c.bf16 %v265, %v263
      %v558 = vpack.c.bf16 %v268, %v266
      %v559 = vpack.c.bf16 %v269, %v267
      %v560 = vpack.c.bf16 %v272, %v270
      %v561 = vpack.c.bf16 %v273, %v271
      %v562 = vpack.c.bf16 %v276, %v274
      %v563 = vpack.c.bf16 %v277, %v275
      %v564 = vpack.c.bf16 %v280, %v278
      %v565 = vpack.c.bf16 %v281, %v279
      %v566 = vpack.c.bf16 %v284, %v282
      %v567 = vpack.c.bf16 %v285, %v283
      %v568 = vpack.c.bf16 %v288, %v286
      %v569 = vpack.c.bf16 %v289, %v287
      %v570 = vpack.c.bf16 %v292, %v290
      %v571 = vpack.c.bf16 %v293, %v291
      %v572 = vpack.c.bf16 %v296, %v294
      %v573 = vpack.c.bf16 %v297, %v295
      %v574 = vpack.c.bf16 %v300, %v298
      %v575 = vpack.c.bf16 %v301, %v299
      %v576 = vpack.c.bf16 %v304, %v302
      %v577 = vpack.c.bf16 %v305, %v303
      %v578 = vpack.c.bf16 %v308, %v306
      %v579 = vpack.c.bf16 %v309, %v307
      %v580 = vpack.c.bf16 %v312, %v310
      %v581 = vpack.c.bf16 %v313, %v311
      %v582 = vpack.c.bf16 %v316, %v314
      %v583 = vpack.c.bf16 %v317, %v315
      %v584 = vpack.c.bf16 %v320, %v318
      %v585 = vpack.c.bf16 %v321, %v319
      %v586 = vpack.c.bf16 %v324, %v322
      %v587 = vpack.c.bf16 %v325, %v323
      %v588 = vpack.c.bf16 %v328, %v326
      %v589 = vpack.c.bf16 %v329, %v327
      %v590 = vpack.c.bf16 %v332, %v330
      %v591 = vpack.c.bf16 %v333, %v331
      %v592 = vpack.c.bf16 %v336, %v334
      %v593 = vpack.c.bf16 %v337, %v335
      %v594 = vpack.c.bf16 %v340, %v338
      %v595 = vpack.c.bf16 %v341, %v339
      %v596 = vpack.c.bf16 %v344, %v342
      %v597 = vpack.c.bf16 %v345, %v343
      %v598 = vpack.c.bf16 %v348, %v346
      %v599 = vpack.c.bf16 %v349, %v347
      %v600 = vpack.c.bf16 %v352, %v350
      %v601 = vpack.c.bf16 %v353, %v351
      %v602 = vpack.c.bf16 %v356, %v354
      %v603 = vpack.c.bf16 %v357, %v355
      %v604 = vpack.c.bf16 %v360, %v358
      %v605 = vpack.c.bf16 %v361, %v359
      %v606 = vpack.c.bf16 %v364, %v362
      %v607 = vpack.c.bf16 %v365, %v363
      %v608 = vpack.c.bf16 %v368, %v366
      %v609 = vpack.c.bf16 %v369, %v367
      %v610 = vpack.c.bf16 %v372, %v370
      %v611 = vpack.c.bf16 %v373, %v371
      %v612 = vpack.c.bf16 %v376, %v374
      %v613 = vpack.c.bf16 %v377, %v375
      %v614 = vpack.c.bf16 %v380, %v378
      %v615 = vpack.c.bf16 %v381, %v379
      %v616 = vpack.c.bf16 %v384, %v382
      %v617 = vpack.c.bf16 %v385, %v383
      %v618 = vpack.c.bf16 %v388, %v386
      %v619 = vpack.c.bf16 %v389, %v387
      %v620 = vpack.c.bf16 %v392, %v390
      %v621 = vpack.c.bf16 %v393, %v391
      %v622 = vpack.c.bf16 %v396, %v394
      %v623 = vpack.c.bf16 %v397, %v395
      %v624 = vpack.c.bf16 %v400, %v398
      %v625 = vpack.c.bf16 %v401, %v399
      %v626 = vpack.c.bf16 %v404, %v402
      %v627 = vpack.c.bf16 %v405, %v403
      %v628 = vpack.c.bf16 %v408, %v406
      %v629 = vpack.c.bf16 %v409, %v407
      %v630 = vpack.c.bf16 %v412, %v410
      %v631 = vpack.c.bf16 %v413, %v411
      %v632 = vpack.c.bf16 %v416, %v414
      %v633 = vpack.c.bf16 %v417, %v415
      %v634 = vpack.c.bf16 %v420, %v418
      %v635 = vpack.c.bf16 %v421, %v419
      %v636 = vpack.c.bf16 %v424, %v422
      %v637 = vpack.c.bf16 %v425, %v423
      %v638 = vpack.c.bf16 %v428, %v426
      %v639 = vpack.c.bf16 %v429, %v427
      %v640 = vpack.c.bf16 %v432, %v430
      %v641 = vpack.c.bf16 %v433, %v431
      %v642 = vpack.c.bf16 %v436, %v434
      %v643 = vpack.c.bf16 %v437, %v435
      %v644 = vpack.c.bf16 %v440, %v438
      %v645 = vpack.c.bf16 %v441, %v439
      %v646 = vpack.c.bf16 %v444, %v442
      %v647 = vpack.c.bf16 %v445, %v443
      %v648 = vpack.c.bf16 %v448, %v446
      %v649 = vpack.c.bf16 %v449, %v447
      %v650 = vpack.c.bf16 %v452, %v450
      %v651 = vpack.c.bf16 %v453, %v451
      %v652 = vpack.c.bf16 %v456, %v454
      %v653 = vpack.c.bf16 %v457, %v455
      %v654 = vpack.c.bf16 %v460, %v458
      %v655 = vpack.c.bf16 %v461, %v459
      %v656 = vpack.c.bf16 %v464, %v462
      %v657 = vpack.c.bf16 %v465, %v463
      %v658 = vpack.c.bf16 %v468, %v466
      %v659 = vpack.c.bf16 %v469, %v467
      %v660 = vpack.c.bf16 %v472, %v470
      %v661 = vpack.c.bf16 %v473, %v471
      %v662 = vpack.c.bf16 %v476, %v474
      %v663 = vpack.c.bf16 %v477, %v475
      %v664 = vpack.c.bf16 %v480, %v478
      %v665 = vpack.c.bf16 %v481, %v479
      %v666 = vpack.c.bf16 %v484, %v482
      %v667 = vpack.c.bf16 %v485, %v483
      %v668 = vpack.c.bf16 %v488, %v486
      %v669 = vpack.c.bf16 %v489, %v487
      %v670 = vpack.c.bf16 %v492, %v490
      %v671 = vpack.c.bf16 %v493, %v491
      %v672 = vpack.c.bf16 %v496, %v494
      %v673 = vpack.c.bf16 %v497, %v495
      %v674 = vpack.c.bf16 %v500, %v498
      %v675 = vpack.c.bf16 %v501, %v499
      %v676 = vpack.c.bf16 %v504, %v502
      %v677 = vpack.c.bf16 %v505, %v503
      %v678 = vpack.c.bf16 %v508, %v506
      %v679 = vpack.c.bf16 %v509, %v507
      %v680 = vpack.c.bf16 %v512, %v510
      %v681 = vpack.c.bf16 %v513, %v511
      %v682 = vpack.c.bf16 %v516, %v514
      %v683 = vpack.c.bf16 %v517, %v515
      %v684 = vpack.c.bf16 %v520, %v518
      %v685 = vpack.c.bf16 %v521, %v519
      %v686 = vpack.c.bf16 %v524, %v522
      %v687 = vpack.c.bf16 %v525, %v523
      %v688 = vpack.c.bf16 %v528, %v526
      %v689 = vpack.c.bf16 %v529, %v527
      %v690 = vld [vmem:[%s0] sm:$0xff]
      %v691 = vld [vmem:[%s0 + $0x8] sm:$0xff]
      %v692 = vld [vmem:[%s0 + $0x10] sm:$0xff]
      %v693 = vld [vmem:[%s0 + $0x18] sm:$0xff]
      %v694 = vld [vmem:[%s0 + $0x20] sm:$0xff]
      %v695 = vld [vmem:[%s0 + $0x28] sm:$0xff]
      %v696 = vld [vmem:[%s0 + $0x30] sm:$0xff]
      %v697 = vld [vmem:[%s0 + $0x38] sm:$0xff]
      %v698 = vld [vmem:[%s0 + $0x40] sm:$0xff]
      %v699 = vld [vmem:[%s0 + $0x48] sm:$0xff]
      %v700 = vld [vmem:[%s0 + $0x50] sm:$0xff]
      %v701 = vld [vmem:[%s0 + $0x58] sm:$0xff]
      %v702 = vld [vmem:[%s0 + $0x60] sm:$0xff]
      %v703 = vld [vmem:[%s0 + $0x68] sm:$0xff]
      %v704 = vld [vmem:[%s0 + $0x70] sm:$0xff]
      %v705 = vld [vmem:[%s0 + $0x78] sm:$0xff]
      %v706 = vld [vmem:[%s0 + $0x80] sm:$0xff]
      %v707 = vld [vmem:[%s0 + $0x88] sm:$0xff]
      %v708 = vld [vmem:[%s0 + $0x90] sm:$0xff]
      %v709 = vld [vmem:[%s0 + $0x98] sm:$0xff]
      %v710 = vld [vmem:[%s0 + $0xa0] sm:$0xff]
      %v711 = vld [vmem:[%s0 + $0xa8] sm:$0xff]
      %v712 = vld [vmem:[%s0 + $0xb0] sm:$0xff]
      %v713 = vld [vmem:[%s0 + $0xb8] sm:$0xff]
      %v714 = vld [vmem:[%s0 + $0xc0] sm:$0xff]
      %v715 = vld [vmem:[%s0 + $0xc8] sm:$0xff]
      %v716 = vld [vmem:[%s0 + $0xd0] sm:$0xff]
      %v717 = vld [vmem:[%s0 + $0xd8] sm:$0xff]
      %v718 = vld [vmem:[%s0 + $0xe0] sm:$0xff]
      %v719 = vld [vmem:[%s0 + $0xe8] sm:$0xff]
      %v720 = vld [vmem:[%s0 + $0xf0] sm:$0xff]
      %v721 = vld [vmem:[%s0 + $0xf8] sm:$0xff]
      %v722 = vld [vmem:[%s0 + $0x100] sm:$0xff]
      %v723 = vld [vmem:[%s0 + $0x108] sm:$0xff]
      %v724 = vld [vmem:[%s0 + $0x110] sm:$0xff]
      %v725 = vld [vmem:[%s0 + $0x118] sm:$0xff]
      %v726 = vld [vmem:[%s0 + $0x120] sm:$0xff]
      %v727 = vld [vmem:[%s0 + $0x128] sm:$0xff]
      %v728 = vld [vmem:[%s0 + $0x130] sm:$0xff]
      %v729 = vld [vmem:[%s0 + $0x138] sm:$0xff]
      %v730 = vld [vmem:[%s0 + $0x140] sm:$0xff]
      %v731 = vld [vmem:[%s0 + $0x148] sm:$0xff]
      %v732 = vld [vmem:[%s0 + $0x150] sm:$0xff]
      %v733 = vld [vmem:[%s0 + $0x158] sm:$0xff]
      %v734 = vld [vmem:[%s0 + $0x160] sm:$0xff]
      %v735 = vld [vmem:[%s0 + $0x168] sm:$0xff]
      %v736 = vld [vmem:[%s0 + $0x170] sm:$0xff]
      %v737 = vld [vmem:[%s0 + $0x178] sm:$0xff]
      %v738 = vld [vmem:[%s0 + $0x180] sm:$0xff]
      %v739 = vld [vmem:[%s0 + $0x188] sm:$0xff]
      %v740 = vld [vmem:[%s0 + $0x190] sm:$0xff]
      %v741 = vld [vmem:[%s0 + $0x198] sm:$0xff]
      %v742 = vld [vmem:[%s0 + $0x1a0] sm:$0xff]
      %v743 = vld [vmem:[%s0 + $0x1a8] sm:$0xff]
      %v744 = vld [vmem:[%s0 + $0x1b0] sm:$0xff]
      %v745 = vld [vmem:[%s0 + $0x1b8] sm:$0xff]
      %v746 = vld [vmem:[%s0 + $0x1c0] sm:$0xff]
      %v747 = vld [vmem:[%s0 + $0x1c8] sm:$0xff]
      %v748 = vld [vmem:[%s0 + $0x1d0] sm:$0xff]
      %v749 = vld [vmem:[%s0 + $0x1d8] sm:$0xff]
      %v750 = vld [vmem:[%s0 + $0x1e0] sm:$0xff]
      %v751 = vld [vmem:[%s0 + $0x1e8] sm:$0xff]
      %v752 = vld [vmem:[%s0 + $0x1f0] sm:$0xff]
      %v753 = vld [vmem:[%s0 + $0x1f8] sm:$0xff]
      %v754 = vld [vmem:[%s0 + $0x200] sm:$0xff]
      %v755 = vld [vmem:[%s0 + $0x208] sm:$0xff]
      %v756 = vld [vmem:[%s0 + $0x210] sm:$0xff]
      %v757 = vld [vmem:[%s0 + $0x218] sm:$0xff]
      %v758 = vld [vmem:[%s0 + $0x220] sm:$0xff]
      %v759 = vld [vmem:[%s0 + $0x228] sm:$0xff]
      %v760 = vld [vmem:[%s0 + $0x230] sm:$0xff]
      %v761 = vld [vmem:[%s0 + $0x238] sm:$0xff]
      %v762 = vld [vmem:[%s0 + $0x240] sm:$0xff]
      %v763 = vld [vmem:[%s0 + $0x248] sm:$0xff]
      %v764 = vld [vmem:[%s0 + $0x250] sm:$0xff]
      %v765 = vld [vmem:[%s0 + $0x258] sm:$0xff]
      %v766 = vld [vmem:[%s0 + $0x260] sm:$0xff]
      %v767 = vld [vmem:[%s0 + $0x268] sm:$0xff]
      %v768 = vld [vmem:[%s0 + $0x270] sm:$0xff]
      %v769 = vld [vmem:[%s0 + $0x278] sm:$0xff]
      %v770 = vld [vmem:[%s0 + $0x280] sm:$0xff]
      %v771 = vld [vmem:[%s0 + $0x288] sm:$0xff]
      %v772 = vld [vmem:[%s0 + $0x290] sm:$0xff]
      %v773 = vld [vmem:[%s0 + $0x298] sm:$0xff]
      %v774 = vld [vmem:[%s0 + $0x2a0] sm:$0xff]
      %v775 = vld [vmem:[%s0 + $0x2a8] sm:$0xff]
      %v776 = vld [vmem:[%s0 + $0x2b0] sm:$0xff]
      %v777 = vld [vmem:[%s0 + $0x2b8] sm:$0xff]
      %v778 = vld [vmem:[%s0 + $0x2c0] sm:$0xff]
      %v779 = vld [vmem:[%s0 + $0x2c8] sm:$0xff]
      %v780 = vld [vmem:[%s0 + $0x2d0] sm:$0xff]
      %v781 = vld [vmem:[%s0 + $0x2d8] sm:$0xff]
      %v782 = vld [vmem:[%s0 + $0x2e0] sm:$0xff]
      %v783 = vld [vmem:[%s0 + $0x2e8] sm:$0xff]
      %v784 = vld [vmem:[%s0 + $0x2f0] sm:$0xff]
      %v785 = vld [vmem:[%s0 + $0x2f8] sm:$0xff]
      %v786 = vld [vmem:[%s0 + $0x300] sm:$0xff]
      %v787 = vld [vmem:[%s0 + $0x308] sm:$0xff]
      %v788 = vld [vmem:[%s0 + $0x310] sm:$0xff]
      %v789 = vld [vmem:[%s0 + $0x318] sm:$0xff]
      %v790 = vld [vmem:[%s0 + $0x320] sm:$0xff]
      %v791 = vld [vmem:[%s0 + $0x328] sm:$0xff]
      %v792 = vld [vmem:[%s0 + $0x330] sm:$0xff]
      %v793 = vld [vmem:[%s0 + $0x338] sm:$0xff]
      %v794 = vld [vmem:[%s0 + $0x340] sm:$0xff]
      %v795 = vld [vmem:[%s0 + $0x348] sm:$0xff]
      %v796 = vld [vmem:[%s0 + $0x350] sm:$0xff]
      %v797 = vld [vmem:[%s0 + $0x358] sm:$0xff]
      %v798 = vld [vmem:[%s0 + $0x360] sm:$0xff]
      %v799 = vld [vmem:[%s0 + $0x368] sm:$0xff]
      %v800 = vld [vmem:[%s0 + $0x370] sm:$0xff]
      %v801 = vld [vmem:[%s0 + $0x378] sm:$0xff]
      %v802 = vld [vmem:[%s0 + $0x380] sm:$0xff]
      %v803 = vld [vmem:[%s0 + $0x388] sm:$0xff]
      %v804 = vld [vmem:[%s0 + $0x390] sm:$0xff]
      %v805 = vld [vmem:[%s0 + $0x398] sm:$0xff]
      %v806 = vld [vmem:[%s0 + $0x3a0] sm:$0xff]
      %v807 = vld [vmem:[%s0 + $0x3a8] sm:$0xff]
      %v808 = vld [vmem:[%s0 + $0x3b0] sm:$0xff]
      %v809 = vld [vmem:[%s0 + $0x3b8] sm:$0xff]
      %v810 = vld [vmem:[%s0 + $0x3c0] sm:$0xff]
      %v811 = vld [vmem:[%s0 + $0x3c8] sm:$0xff]
      %v812 = vld [vmem:[%s0 + $0x3d0] sm:$0xff]
      %v813 = vld [vmem:[%s0 + $0x3d8] sm:$0xff]
      %v814 = vld [vmem:[%s0 + $0x3e0] sm:$0xff]
      %v815 = vld [vmem:[%s0 + $0x3e8] sm:$0xff]
      %v816 = vld [vmem:[%s0 + $0x3f0] sm:$0xff]
      %v817 = vld [vmem:[%s0 + $0x3f8] sm:$0xff]
      %v818 = vld [vmem:[%s0 + $0x400] sm:$0xff]
      %v819 = vld [vmem:[%s0 + $0x408] sm:$0xff]
      %v820 = vld [vmem:[%s0 + $0x410] sm:$0xff]
      %v821 = vld [vmem:[%s0 + $0x418] sm:$0xff]
      %v822 = vld [vmem:[%s0 + $0x420] sm:$0xff]
      %v823 = vld [vmem:[%s0 + $0x428] sm:$0xff]
      %v824 = vld [vmem:[%s0 + $0x430] sm:$0xff]
      %v825 = vld [vmem:[%s0 + $0x438] sm:$0xff]
      %v826 = vld [vmem:[%s0 + $0x440] sm:$0xff]
      %v827 = vld [vmem:[%s0 + $0x448] sm:$0xff]
      %v828 = vld [vmem:[%s0 + $0x450] sm:$0xff]
      %v829 = vld [vmem:[%s0 + $0x458] sm:$0xff]
      %v830 = vld [vmem:[%s0 + $0x460] sm:$0xff]
      %v831 = vld [vmem:[%s0 + $0x468] sm:$0xff]
      %v832 = vld [vmem:[%s0 + $0x470] sm:$0xff]
      %v833 = vld [vmem:[%s0 + $0x478] sm:$0xff]
      %v834 = vld [vmem:[%s0 + $0x480] sm:$0xff]
      %v835 = vld [vmem:[%s0 + $0x488] sm:$0xff]
      %v836 = vld [vmem:[%s0 + $0x490] sm:$0xff]
      %v837 = vld [vmem:[%s0 + $0x498] sm:$0xff]
      %v838 = vld [vmem:[%s0 + $0x4a0] sm:$0xff]
      %v839 = vld [vmem:[%s0 + $0x4a8] sm:$0xff]
      %v840 = vld [vmem:[%s0 + $0x4b0] sm:$0xff]
      %v841 = vld [vmem:[%s0 + $0x4b8] sm:$0xff]
      %v842 = vld [vmem:[%s0 + $0x4c0] sm:$0xff]
      %v843 = vld [vmem:[%s0 + $0x4c8] sm:$0xff]
      %v844 = vld [vmem:[%s0 + $0x4d0] sm:$0xff]
      %v845 = vld [vmem:[%s0 + $0x4d8] sm:$0xff]
      %v846 = vld [vmem:[%s0 + $0x4e0] sm:$0xff]
      %v847 = vld [vmem:[%s0 + $0x4e8] sm:$0xff]
      %v848 = vld [vmem:[%s0 + $0x4f0] sm:$0xff]
      %v849 = vld [vmem:[%s0 + $0x4f8] sm:$0xff]
      %v850 = vld [vmem:[%s0 + $0x500] sm:$0xff]
      %v851 = vld [vmem:[%s0 + $0x508] sm:$0xff]
      %v852 = vld [vmem:[%s0 + $0x510] sm:$0xff]
      %v853 = vld [vmem:[%s0 + $0x518] sm:$0xff]
      %v854 = vld [vmem:[%s0 + $0x520] sm:$0xff]
      %v855 = vld [vmem:[%s0 + $0x528] sm:$0xff]
      %v856 = vld [vmem:[%s0 + $0x530] sm:$0xff]
      %v857 = vld [vmem:[%s0 + $0x538] sm:$0xff]
      %v858 = vld [vmem:[%s0 + $0x540] sm:$0xff]
      %v859 = vld [vmem:[%s0 + $0x548] sm:$0xff]
      %v860 = vld [vmem:[%s0 + $0x550] sm:$0xff]
      %v861 = vld [vmem:[%s0 + $0x558] sm:$0xff]
      %v862 = vld [vmem:[%s0 + $0x560] sm:$0xff]
      %v863 = vld [vmem:[%s0 + $0x568] sm:$0xff]
      %v864 = vld [vmem:[%s0 + $0x570] sm:$0xff]
      %v865 = vld [vmem:[%s0 + $0x578] sm:$0xff]
      %v866 = vld [vmem:[%s0 + $0x580] sm:$0xff]
      %v867 = vld [vmem:[%s0 + $0x588] sm:$0xff]
      %v868 = vld [vmem:[%s0 + $0x590] sm:$0xff]
      %v869 = vld [vmem:[%s0 + $0x598] sm:$0xff]
      %v870 = vld [vmem:[%s0 + $0x5a0] sm:$0xff]
      %v871 = vld [vmem:[%s0 + $0x5a8] sm:$0xff]
      %v872 = vld [vmem:[%s0 + $0x5b0] sm:$0xff]
      %v873 = vld [vmem:[%s0 + $0x5b8] sm:$0xff]
      %v874 = vld [vmem:[%s0 + $0x5c0] sm:$0xff]
      %v875 = vld [vmem:[%s0 + $0x5c8] sm:$0xff]
      %v876 = vld [vmem:[%s0 + $0x5d0] sm:$0xff]
      %v877 = vld [vmem:[%s0 + $0x5d8] sm:$0xff]
      %v878 = vld [vmem:[%s0 + $0x5e0] sm:$0xff]
      %v879 = vld [vmem:[%s0 + $0x5e8] sm:$0xff]
      %v880 = vld [vmem:[%s0 + $0x5f0] sm:$0xff]
      %v881 = vld [vmem:[%s0 + $0x5f8] sm:$0xff]
      %v882 = vld [vmem:[%s0 + $0x600] sm:$0xff]
      %v883 = vld [vmem:[%s0 + $0x608] sm:$0xff]
      %v884 = vld [vmem:[%s0 + $0x610] sm:$0xff]
      %v885 = vld [vmem:[%s0 + $0x618] sm:$0xff]
      %v886 = vld [vmem:[%s0 + $0x620] sm:$0xff]
      %v887 = vld [vmem:[%s0 + $0x628] sm:$0xff]
      %v888 = vld [vmem:[%s0 + $0x630] sm:$0xff]
      %v889 = vld [vmem:[%s0 + $0x638] sm:$0xff]
      %v890 = vld [vmem:[%s0 + $0x640] sm:$0xff]
      %v891 = vld [vmem:[%s0 + $0x648] sm:$0xff]
      %v892 = vld [vmem:[%s0 + $0x650] sm:$0xff]
      %v893 = vld [vmem:[%s0 + $0x658] sm:$0xff]
      %v894 = vld [vmem:[%s0 + $0x660] sm:$0xff]
      %v895 = vld [vmem:[%s0 + $0x668] sm:$0xff]
      %v896 = vld [vmem:[%s0 + $0x670] sm:$0xff]
      %v897 = vld [vmem:[%s0 + $0x678] sm:$0xff]
      %v898 = vld [vmem:[%s0 + $0x680] sm:$0xff]
      %v899 = vld [vmem:[%s0 + $0x688] sm:$0xff]
      %v900 = vld [vmem:[%s0 + $0x690] sm:$0xff]
      %v901 = vld [vmem:[%s0 + $0x698] sm:$0xff]
      %v902 = vld [vmem:[%s0 + $0x6a0] sm:$0xff]
      %v903 = vld [vmem:[%s0 + $0x6a8] sm:$0xff]
      %v904 = vld [vmem:[%s0 + $0x6b0] sm:$0xff]
      %v905 = vld [vmem:[%s0 + $0x6b8] sm:$0xff]
      %v906 = vld [vmem:[%s0 + $0x6c0] sm:$0xff]
      %v907 = vld [vmem:[%s0 + $0x6c8] sm:$0xff]
      %v908 = vld [vmem:[%s0 + $0x6d0] sm:$0xff]
      %v909 = vld [vmem:[%s0 + $0x6d8] sm:$0xff]
      %v910 = vld [vmem:[%s0 + $0x6e0] sm:$0xff]
      %v911 = vld [vmem:[%s0 + $0x6e8] sm:$0xff]
      %v912 = vld [vmem:[%s0 + $0x6f0] sm:$0xff]
      %v913 = vld [vmem:[%s0 + $0x6f8] sm:$0xff]
      %v914 = vld [vmem:[%s0 + $0x700] sm:$0xff]
      %v915 = vld [vmem:[%s0 + $0x708] sm:$0xff]
      %v916 = vld [vmem:[%s0 + $0x710] sm:$0xff]
      %v917 = vld [vmem:[%s0 + $0x718] sm:$0xff]
      %v918 = vld [vmem:[%s0 + $0x720] sm:$0xff]
      %v919 = vld [vmem:[%s0 + $0x728] sm:$0xff]
      %v920 = vld [vmem:[%s0 + $0x730] sm:$0xff]
      %v921 = vld [vmem:[%s0 + $0x738] sm:$0xff]
      %v922 = vld [vmem:[%s0 + $0x740] sm:$0xff]
      %v923 = vld [vmem:[%s0 + $0x748] sm:$0xff]
      %v924 = vld [vmem:[%s0 + $0x750] sm:$0xff]
      %v925 = vld [vmem:[%s0 + $0x758] sm:$0xff]
      %v926 = vld [vmem:[%s0 + $0x760] sm:$0xff]
      %v927 = vld [vmem:[%s0 + $0x768] sm:$0xff]
      %v928 = vld [vmem:[%s0 + $0x770] sm:$0xff]
      %v929 = vld [vmem:[%s0 + $0x778] sm:$0xff]
      %v930 = vld [vmem:[%s0 + $0x780] sm:$0xff]
      %v931 = vld [vmem:[%s0 + $0x788] sm:$0xff]
      %v932 = vld [vmem:[%s0 + $0x790] sm:$0xff]
      %v933 = vld [vmem:[%s0 + $0x798] sm:$0xff]
      %v934 = vld [vmem:[%s0 + $0x7a0] sm:$0xff]
      %v935 = vld [vmem:[%s0 + $0x7a8] sm:$0xff]
      %v936 = vld [vmem:[%s0 + $0x7b0] sm:$0xff]
      %v937 = vld [vmem:[%s0 + $0x7b8] sm:$0xff]
      %v938 = vld [vmem:[%s0 + $0x7c0] sm:$0xff]
      %v939 = vld [vmem:[%s0 + $0x7c8] sm:$0xff]
      %v940 = vld [vmem:[%s0 + $0x7d0] sm:$0xff]
      %v941 = vld [vmem:[%s0 + $0x7d8] sm:$0xff]
      %v942 = vld [vmem:[%s0 + $0x7e0] sm:$0xff]
      %v943 = vld [vmem:[%s0 + $0x7e8] sm:$0xff]
      %v944 = vld [vmem:[%s0 + $0x7f0] sm:$0xff]
      %v945 = vld [vmem:[%s0 + $0x7f8] sm:$0xff]
      %v946 = vld [vmem:[%s0 + $0x800] sm:$0xff]
      %v947 = vld [vmem:[%s0 + $0x808] sm:$0xff]
      %v948 = vld [vmem:[%s0 + $0x810] sm:$0xff]
      %v949 = vld [vmem:[%s0 + $0x818] sm:$0xff]
      %v950 = vld [vmem:[%s0 + $0x820] sm:$0xff]
      %v951 = vld [vmem:[%s0 + $0x828] sm:$0xff]
      %v952 = vld [vmem:[%s0 + $0x830] sm:$0xff]
      %v953 = vld [vmem:[%s0 + $0x838] sm:$0xff]
      %v954 = vld [vmem:[%s0 + $0x840] sm:$0xff]
      %v955 = vld [vmem:[%s0 + $0x848] sm:$0xff]
      %v956 = vld [vmem:[%s0 + $0x850] sm:$0xff]
      %v957 = vld [vmem:[%s0 + $0x858] sm:$0xff]
      %v958 = vld [vmem:[%s0 + $0x860] sm:$0xff]
      %v959 = vld [vmem:[%s0 + $0x868] sm:$0xff]
      %v960 = vld [vmem:[%s0 + $0x870] sm:$0xff]
      %v961 = vld [vmem:[%s0 + $0x878] sm:$0xff]
      %v962 = vld [vmem:[%s0 + $0x880] sm:$0xff]
      %v963 = vld [vmem:[%s0 + $0x888] sm:$0xff]
      %v964 = vld [vmem:[%s0 + $0x890] sm:$0xff]
      %v965 = vld [vmem:[%s0 + $0x898] sm:$0xff]
      %v966 = vld [vmem:[%s0 + $0x8a0] sm:$0xff]
      %v967 = vld [vmem:[%s0 + $0x8a8] sm:$0xff]
      %v968 = vld [vmem:[%s0 + $0x8b0] sm:$0xff]
      %v969 = vld [vmem:[%s0 + $0x8b8] sm:$0xff]
      %v970 = vld [vmem:[%s0 + $0x8c0] sm:$0xff]
      %v971 = vld [vmem:[%s0 + $0x8c8] sm:$0xff]
      %v972 = vld [vmem:[%s0 + $0x8d0] sm:$0xff]
      %v973 = vld [vmem:[%s0 + $0x8d8] sm:$0xff]
      %v974 = vld [vmem:[%s0 + $0x8e0] sm:$0xff]
      %v975 = vld [vmem:[%s0 + $0x8e8] sm:$0xff]
      %v976 = vld [vmem:[%s0 + $0x8f0] sm:$0xff]
      %v977 = vld [vmem:[%s0 + $0x8f8] sm:$0xff]
      %v978 = vld [vmem:[%s0 + $0x900] sm:$0xff]
      %v979 = vld [vmem:[%s0 + $0x908] sm:$0xff]
      %v980 = vld [vmem:[%s0 + $0x910] sm:$0xff]
      %v981 = vld [vmem:[%s0 + $0x918] sm:$0xff]
      %v982 = vld [vmem:[%s0 + $0x920] sm:$0xff]
      %v983 = vld [vmem:[%s0 + $0x928] sm:$0xff]
      %v984 = vld [vmem:[%s0 + $0x930] sm:$0xff]
      %v985 = vld [vmem:[%s0 + $0x938] sm:$0xff]
      %v986 = vld [vmem:[%s0 + $0x940] sm:$0xff]
      %v987 = vld [vmem:[%s0 + $0x948] sm:$0xff]
      %v988 = vld [vmem:[%s0 + $0x950] sm:$0xff]
      %v989 = vld [vmem:[%s0 + $0x958] sm:$0xff]
      %v990 = vld [vmem:[%s0 + $0x960] sm:$0xff]
      %v991 = vld [vmem:[%s0 + $0x968] sm:$0xff]
      %v992 = vld [vmem:[%s0 + $0x970] sm:$0xff]
      %v993 = vld [vmem:[%s0 + $0x978] sm:$0xff]
      %v994 = vld [vmem:[%s0 + $0x980] sm:$0xff]
      %v995 = vld [vmem:[%s0 + $0x988] sm:$0xff]
      %v996 = vld [vmem:[%s0 + $0x990] sm:$0xff]
      %v997 = vld [vmem:[%s0 + $0x998] sm:$0xff]
      %v998 = vld [vmem:[%s0 + $0x9a0] sm:$0xff]
      %v999 = vld [vmem:[%s0 + $0x9a8] sm:$0xff]
      %v1000 = vld [vmem:[%s0 + $0x9b0] sm:$0xff]
      %v1001 = vld [vmem:[%s0 + $0x9b8] sm:$0xff]
      %v1002 = vld [vmem:[%s0 + $0x9c0] sm:$0xff]
      %v1003 = vld [vmem:[%s0 + $0x9c8] sm:$0xff]
      %v1004 = vld [vmem:[%s0 + $0x9d0] sm:$0xff]
      %v1005 = vld [vmem:[%s0 + $0x9d8] sm:$0xff]
      %v1006 = vld [vmem:[%s0 + $0x9e0] sm:$0xff]
      %v1007 = vld [vmem:[%s0 + $0x9e8] sm:$0xff]
      %v1008 = vld [vmem:[%s0 + $0x9f0] sm:$0xff]
      %v1009 = vld [vmem:[%s0 + $0x9f8] sm:$0xff]
      %v1010 = vld [vmem:[%s0 + $0xa00] sm:$0xff]
      %v1011 = vld [vmem:[%s0 + $0xa08] sm:$0xff]
      %v1012 = vld [vmem:[%s0 + $0xa10] sm:$0xff]
      %v1013 = vld [vmem:[%s0 + $0xa18] sm:$0xff]
      %v1014 = vld [vmem:[%s0 + $0xa20] sm:$0xff]
      %v1015 = vld [vmem:[%s0 + $0xa28] sm:$0xff]
      %v1016 = vld [vmem:[%s0 + $0xa30] sm:$0xff]
      %v1017 = vld [vmem:[%s0 + $0xa38] sm:$0xff]
      %v1018 = vld [vmem:[%s0 + $0xa40] sm:$0xff]
      %v1019 = vld [vmem:[%s0 + $0xa48] sm:$0xff]
      %v1020 = vld [vmem:[%s0 + $0xa50] sm:$0xff]
      %v1021 = vld [vmem:[%s0 + $0xa58] sm:$0xff]
      %v1022 = vld [vmem:[%s0 + $0xa60] sm:$0xff]
      %v1023 = vld [vmem:[%s0 + $0xa68] sm:$0xff]
      %v1024 = vld [vmem:[%s0 + $0xa70] sm:$0xff]
      %v1025 = vld [vmem:[%s0 + $0xa78] sm:$0xff]
      %v1026 = vld [vmem:[%s0 + $0xa80] sm:$0xff]
      %v1027 = vld [vmem:[%s0 + $0xa88] sm:$0xff]
      %v1028 = vld [vmem:[%s0 + $0xa90] sm:$0xff]
      %v1029 = vld [vmem:[%s0 + $0xa98] sm:$0xff]
      %v1030 = vld [vmem:[%s0 + $0xaa0] sm:$0xff]
      %v1031 = vld [vmem:[%s0 + $0xaa8] sm:$0xff]
      %v1032 = vld [vmem:[%s0 + $0xab0] sm:$0xff]
      %v1033 = vld [vmem:[%s0 + $0xab8] sm:$0xff]
      %v1034 = vld [vmem:[%s0 + $0xac0] sm:$0xff]
      %v1035 = vld [vmem:[%s0 + $0xac8] sm:$0xff]
      %v1036 = vld [vmem:[%s0 + $0xad0] sm:$0xff]
      %v1037 = vld [vmem:[%s0 + $0xad8] sm:$0xff]
      %v1038 = vld [vmem:[%s0 + $0xae0] sm:$0xff]
      %v1039 = vld [vmem:[%s0 + $0xae8] sm:$0xff]
      %v1040 = vld [vmem:[%s0 + $0xaf0] sm:$0xff]
      %v1041 = vld [vmem:[%s0 + $0xaf8] sm:$0xff]
      %v1042 = vld [vmem:[%s0 + $0xb00] sm:$0xff]
      %v1043 = vld [vmem:[%s0 + $0xb08] sm:$0xff]
      %v1044 = vld [vmem:[%s0 + $0xb10] sm:$0xff]
      %v1045 = vld [vmem:[%s0 + $0xb18] sm:$0xff]
      %v1046 = vld [vmem:[%s0 + $0xb20] sm:$0xff]
      %v1047 = vld [vmem:[%s0 + $0xb28] sm:$0xff]
      %v1048 = vld [vmem:[%s0 + $0xb30] sm:$0xff]
      %v1049 = vld [vmem:[%s0 + $0xb38] sm:$0xff]
      %v1050 = vld [vmem:[%s0 + $0xb40] sm:$0xff]
      %v1051 = vld [vmem:[%s0 + $0xb48] sm:$0xff]
      %v1052 = vld [vmem:[%s0 + $0xb50] sm:$0xff]
      %v1053 = vld [vmem:[%s0 + $0xb58] sm:$0xff]
      %v1054 = vld [vmem:[%s0 + $0xb60] sm:$0xff]
      %v1055 = vld [vmem:[%s0 + $0xb68] sm:$0xff]
      %v1056 = vld [vmem:[%s0 + $0xb70] sm:$0xff]
      %v1057 = vld [vmem:[%s0 + $0xb78] sm:$0xff]
      %v1058 = vld [vmem:[%s0 + $0xb80] sm:$0xff]
      %v1059 = vld [vmem:[%s0 + $0xb88] sm:$0xff]
      %v1060 = vld [vmem:[%s0 + $0xb90] sm:$0xff]
      %v1061 = vld [vmem:[%s0 + $0xb98] sm:$0xff]
      %v1062 = vld [vmem:[%s0 + $0xba0] sm:$0xff]
      %v1063 = vld [vmem:[%s0 + $0xba8] sm:$0xff]
      %v1064 = vld [vmem:[%s0 + $0xbb0] sm:$0xff]
      %v1065 = vld [vmem:[%s0 + $0xbb8] sm:$0xff]
      %v1066 = vld [vmem:[%s0 + $0xbc0] sm:$0xff]
      %v1067 = vld [vmem:[%s0 + $0xbc8] sm:$0xff]
      %v1068 = vld [vmem:[%s0 + $0xbd0] sm:$0xff]
      %v1069 = vld [vmem:[%s0 + $0xbd8] sm:$0xff]
      %v1070 = vld [vmem:[%s0 + $0xbe0] sm:$0xff]
      %v1071 = vld [vmem:[%s0 + $0xbe8] sm:$0xff]
      %v1072 = vld [vmem:[%s0 + $0xbf0] sm:$0xff]
      %v1073 = vld [vmem:[%s0 + $0xbf8] sm:$0xff]
      %v1074 = vld [vmem:[%s0 + $0xc00] sm:$0xff]
      %v1075 = vld [vmem:[%s0 + $0xc08] sm:$0xff]
      %v1076 = vld [vmem:[%s0 + $0xc10] sm:$0xff]
      %v1077 = vld [vmem:[%s0 + $0xc18] sm:$0xff]
      %v1078 = vld [vmem:[%s0 + $0xc20] sm:$0xff]
      %v1079 = vld [vmem:[%s0 + $0xc28] sm:$0xff]
      %v1080 = vld [vmem:[%s0 + $0xc30] sm:$0xff]
      %v1081 = vld [vmem:[%s0 + $0xc38] sm:$0xff]
      %v1082 = vld [vmem:[%s0 + $0xc40] sm:$0xff]
      %v1083 = vld [vmem:[%s0 + $0xc48] sm:$0xff]
      %v1084 = vld [vmem:[%s0 + $0xc50] sm:$0xff]
      %v1085 = vld [vmem:[%s0 + $0xc58] sm:$0xff]
      %v1086 = vld [vmem:[%s0 + $0xc60] sm:$0xff]
      %v1087 = vld [vmem:[%s0 + $0xc68] sm:$0xff]
      %v1088 = vld [vmem:[%s0 + $0xc70] sm:$0xff]
      %v1089 = vld [vmem:[%s0 + $0xc78] sm:$0xff]
      %v1090 = vld [vmem:[%s0 + $0xc80] sm:$0xff]
      %v1091 = vld [vmem:[%s0 + $0xc88] sm:$0xff]
      %v1092 = vld [vmem:[%s0 + $0xc90] sm:$0xff]
      %v1093 = vld [vmem:[%s0 + $0xc98] sm:$0xff]
      %v1094 = vld [vmem:[%s0 + $0xca0] sm:$0xff]
      %v1095 = vld [vmem:[%s0 + $0xca8] sm:$0xff]
      %v1096 = vld [vmem:[%s0 + $0xcb0] sm:$0xff]
      %v1097 = vld [vmem:[%s0 + $0xcb8] sm:$0xff]
      %v1098 = vld [vmem:[%s0 + $0xcc0] sm:$0xff]
      %v1099 = vld [vmem:[%s0 + $0xcc8] sm:$0xff]
      %v1100 = vld [vmem:[%s0 + $0xcd0] sm:$0xff]
      %v1101 = vld [vmem:[%s0 + $0xcd8] sm:$0xff]
      %v1102 = vld [vmem:[%s0 + $0xce0] sm:$0xff]
      %v1103 = vld [vmem:[%s0 + $0xce8] sm:$0xff]
      %v1104 = vld [vmem:[%s0 + $0xcf0] sm:$0xff]
      %v1105 = vld [vmem:[%s0 + $0xcf8] sm:$0xff]
      %v1106 = vld [vmem:[%s0 + $0xd00] sm:$0xff]
      %v1107 = vld [vmem:[%s0 + $0xd08] sm:$0xff]
      %v1108 = vld [vmem:[%s0 + $0xd10] sm:$0xff]
      %v1109 = vld [vmem:[%s0 + $0xd18] sm:$0xff]
      %v1110 = vld [vmem:[%s0 + $0xd20] sm:$0xff]
      %v1111 = vld [vmem:[%s0 + $0xd28] sm:$0xff]
      %v1112 = vld [vmem:[%s0 + $0xd30] sm:$0xff]
      %v1113 = vld [vmem:[%s0 + $0xd38] sm:$0xff]
      %v1114 = vld [vmem:[%s0 + $0xd40] sm:$0xff]
      %v1115 = vld [vmem:[%s0 + $0xd48] sm:$0xff]
      %v1116 = vld [vmem:[%s0 + $0xd50] sm:$0xff]
      %v1117 = vld [vmem:[%s0 + $0xd58] sm:$0xff]
      %v1118 = vld [vmem:[%s0 + $0xd60] sm:$0xff]
      %v1119 = vld [vmem:[%s0 + $0xd68] sm:$0xff]
      %v1120 = vld [vmem:[%s0 + $0xd70] sm:$0xff]
      %v1121 = vld [vmem:[%s0 + $0xd78] sm:$0xff]
      %v1122 = vld [vmem:[%s0 + $0xd80] sm:$0xff]
      %v1123 = vld [vmem:[%s0 + $0xd88] sm:$0xff]
      %v1124 = vld [vmem:[%s0 + $0xd90] sm:$0xff]
      %v1125 = vld [vmem:[%s0 + $0xd98] sm:$0xff]
      %v1126 = vld [vmem:[%s0 + $0xda0] sm:$0xff]
      %v1127 = vld [vmem:[%s0 + $0xda8] sm:$0xff]
      %v1128 = vld [vmem:[%s0 + $0xdb0] sm:$0xff]
      %v1129 = vld [vmem:[%s0 + $0xdb8] sm:$0xff]
      %v1130 = vld [vmem:[%s0 + $0xdc0] sm:$0xff]
      %v1131 = vld [vmem:[%s0 + $0xdc8] sm:$0xff]
      %v1132 = vld [vmem:[%s0 + $0xdd0] sm:$0xff]
      %v1133 = vld [vmem:[%s0 + $0xdd8] sm:$0xff]
      %v1134 = vld [vmem:[%s0 + $0xde0] sm:$0xff]
      %v1135 = vld [vmem:[%s0 + $0xde8] sm:$0xff]
      %v1136 = vld [vmem:[%s0 + $0xdf0] sm:$0xff]
      %v1137 = vld [vmem:[%s0 + $0xdf8] sm:$0xff]
      %v1138 = vld [vmem:[%s0 + $0xe00] sm:$0xff]
      %v1139 = vld [vmem:[%s0 + $0xe08] sm:$0xff]
      %v1140 = vld [vmem:[%s0 + $0xe10] sm:$0xff]
      %v1141 = vld [vmem:[%s0 + $0xe18] sm:$0xff]
      %v1142 = vld [vmem:[%s0 + $0xe20] sm:$0xff]
      %v1143 = vld [vmem:[%s0 + $0xe28] sm:$0xff]
      %v1144 = vld [vmem:[%s0 + $0xe30] sm:$0xff]
      %v1145 = vld [vmem:[%s0 + $0xe38] sm:$0xff]
      %v1146 = vld [vmem:[%s0 + $0xe40] sm:$0xff]
      %v1147 = vld [vmem:[%s0 + $0xe48] sm:$0xff]
      %v1148 = vld [vmem:[%s0 + $0xe50] sm:$0xff]
      %v1149 = vld [vmem:[%s0 + $0xe58] sm:$0xff]
      %v1150 = vld [vmem:[%s0 + $0xe60] sm:$0xff]
      %v1151 = vld [vmem:[%s0 + $0xe68] sm:$0xff]
      %v1152 = vld [vmem:[%s0 + $0xe70] sm:$0xff]
      %v1153 = vld [vmem:[%s0 + $0xe78] sm:$0xff]
      %v1154 = vld [vmem:[%s0 + $0xe80] sm:$0xff]
      %v1155 = vld [vmem:[%s0 + $0xe88] sm:$0xff]
      %v1156 = vld [vmem:[%s0 + $0xe90] sm:$0xff]
      %v1157 = vld [vmem:[%s0 + $0xe98] sm:$0xff]
      %v1158 = vld [vmem:[%s0 + $0xea0] sm:$0xff]
      %v1159 = vld [vmem:[%s0 + $0xea8] sm:$0xff]
      %v1160 = vld [vmem:[%s0 + $0xeb0] sm:$0xff]
      %v1161 = vld [vmem:[%s0 + $0xeb8] sm:$0xff]
      %v1162 = vld [vmem:[%s0 + $0xec0] sm:$0xff]
      %v1163 = vld [vmem:[%s0 + $0xec8] sm:$0xff]
      %v1164 = vld [vmem:[%s0 + $0xed0] sm:$0xff]
      %v1165 = vld [vmem:[%s0 + $0xed8] sm:$0xff]
      %v1166 = vld [vmem:[%s0 + $0xee0] sm:$0xff]
      %v1167 = vld [vmem:[%s0 + $0xee8] sm:$0xff]
      %v1168 = vld [vmem:[%s0 + $0xef0] sm:$0xff]
      %v1169 = vld [vmem:[%s0 + $0xef8] sm:$0xff]
      %v1170 = vld [vmem:[%s0 + $0xf00] sm:$0xff]
      %v1171 = vld [vmem:[%s0 + $0xf08] sm:$0xff]
      %v1172 = vld [vmem:[%s0 + $0xf10] sm:$0xff]
      %v1173 = vld [vmem:[%s0 + $0xf18] sm:$0xff]
      %v1174 = vld [vmem:[%s0 + $0xf20] sm:$0xff]
      %v1175 = vld [vmem:[%s0 + $0xf28] sm:$0xff]
      %v1176 = vld [vmem:[%s0 + $0xf30] sm:$0xff]
      %v1177 = vld [vmem:[%s0 + $0xf38] sm:$0xff]
      %v1178 = vld [vmem:[%s0 + $0xf40] sm:$0xff]
      %v1179 = vld [vmem:[%s0 + $0xf48] sm:$0xff]
      %v1180 = vld [vmem:[%s0 + $0xf50] sm:$0xff]
      %v1181 = vld [vmem:[%s0 + $0xf58] sm:$0xff]
      %v1182 = vld [vmem:[%s0 + $0xf60] sm:$0xff]
      %v1183 = vld [vmem:[%s0 + $0xf68] sm:$0xff]
      %v1184 = vld [vmem:[%s0 + $0xf70] sm:$0xff]
      %v1185 = vld [vmem:[%s0 + $0xf78] sm:$0xff]
      %v1186 = vld [vmem:[%s0 + $0xf80] sm:$0xff]
      %v1187 = vld [vmem:[%s0 + $0xf88] sm:$0xff]
      %v1188 = vld [vmem:[%s0 + $0xf90] sm:$0xff]
      %v1189 = vld [vmem:[%s0 + $0xf98] sm:$0xff]
      %v1190 = vld [vmem:[%s0 + $0xfa0] sm:$0xff]
      %v1191 = vld [vmem:[%s0 + $0xfa8] sm:$0xff]
      %v1192 = vld [vmem:[%s0 + $0xfb0] sm:$0xff]
      %v1193 = vld [vmem:[%s0 + $0xfb8] sm:$0xff]
      %v1194 = vld [vmem:[%s0 + $0xfc0] sm:$0xff]
      %v1195 = vld [vmem:[%s0 + $0xfc8] sm:$0xff]
      %v1196 = vld [vmem:[%s0 + $0xfd0] sm:$0xff]
      %v1197 = vld [vmem:[%s0 + $0xfd8] sm:$0xff]
      %v1198 = vld [vmem:[%s0 + $0xfe0] sm:$0xff]
      %v1199 = vld [vmem:[%s0 + $0xfe8] sm:$0xff]
      %v1200 = vld [vmem:[%s0 + $0xff0] sm:$0xff]
      %v1201 = vld [vmem:[%s0 + $0xff8] sm:$0xff]
      %v1202 = vld [vmem:[%s0 + $0x1000] sm:$0xff]
      %v1203 = vld [vmem:[%s0 + $0x1008] sm:$0xff]
      %v1204 = vld [vmem:[%s0 + $0x1010] sm:$0xff]
      %v1205 = vld [vmem:[%s0 + $0x1018] sm:$0xff]
      %v1206 = vld [vmem:[%s0 + $0x1020] sm:$0xff]
      %v1207 = vld [vmem:[%s0 + $0x1028] sm:$0xff]
      %v1208 = vld [vmem:[%s0 + $0x1030] sm:$0xff]
      %v1209 = vld [vmem:[%s0 + $0x1038] sm:$0xff]
      %v1210 = vld [vmem:[%s0 + $0x1040] sm:$0xff]
      %v1211 = vld [vmem:[%s0 + $0x1048] sm:$0xff]
      %v1212 = vld [vmem:[%s0 + $0x1050] sm:$0xff]
      %v1213 = vld [vmem:[%s0 + $0x1058] sm:$0xff]
      %v1214 = vld [vmem:[%s0 + $0x1060] sm:$0xff]
      %v1215 = vld [vmem:[%s0 + $0x1068] sm:$0xff]
      %v1216 = vld [vmem:[%s0 + $0x1070] sm:$0xff]
      %v1217 = vld [vmem:[%s0 + $0x1078] sm:$0xff]
      %v1218 = vld [vmem:[%s0 + $0x1080] sm:$0xff]
      %v1219 = vld [vmem:[%s0 + $0x1088] sm:$0xff]
      %v1220 = vld [vmem:[%s0 + $0x1090] sm:$0xff]
      %v1221 = vld [vmem:[%s0 + $0x1098] sm:$0xff]
      %v1222 = vld [vmem:[%s0 + $0x10a0] sm:$0xff]
      %v1223 = vld [vmem:[%s0 + $0x10a8] sm:$0xff]
      %v1224 = vld [vmem:[%s0 + $0x10b0] sm:$0xff]
      %v1225 = vld [vmem:[%s0 + $0x10b8] sm:$0xff]
      %v1226 = vld [vmem:[%s0 + $0x10c0] sm:$0xff]
      %v1227 = vld [vmem:[%s0 + $0x10c8] sm:$0xff]
      %v1228 = vld [vmem:[%s0 + $0x10d0] sm:$0xff]
      %v1229 = vld [vmem:[%s0 + $0x10d8] sm:$0xff]
      %v1230 = vld [vmem:[%s0 + $0x10e0] sm:$0xff]
      %v1231 = vld [vmem:[%s0 + $0x10e8] sm:$0xff]
      %v1232 = vld [vmem:[%s0 + $0x10f0] sm:$0xff]
      %v1233 = vld [vmem:[%s0 + $0x10f8] sm:$0xff]
      %v1234 = vld [vmem:[%s0 + $0x1100] sm:$0xff]
      %v1235 = vld [vmem:[%s0 + $0x1108] sm:$0xff]
      %v1236 = vld [vmem:[%s0 + $0x1110] sm:$0xff]
      %v1237 = vld [vmem:[%s0 + $0x1118] sm:$0xff]
      %v1238 = vld [vmem:[%s0 + $0x1120] sm:$0xff]
      %v1239 = vld [vmem:[%s0 + $0x1128] sm:$0xff]
      %v1240 = vld [vmem:[%s0 + $0x1130] sm:$0xff]
      %v1241 = vld [vmem:[%s0 + $0x1138] sm:$0xff]
      %v1242 = vld [vmem:[%s0 + $0x1140] sm:$0xff]
      %v1243 = vld [vmem:[%s0 + $0x1148] sm:$0xff]
      %v1244 = vld [vmem:[%s0 + $0x1150] sm:$0xff]
      %v1245 = vld [vmem:[%s0 + $0x1158] sm:$0xff]
      %v1246 = vld [vmem:[%s0 + $0x1160] sm:$0xff]
      %v1247 = vld [vmem:[%s0 + $0x1168] sm:$0xff]
      %v1248 = vld [vmem:[%s0 + $0x1170] sm:$0xff]
      %v1249 = vld [vmem:[%s0 + $0x1178] sm:$0xff]
      %v1250 = vld [vmem:[%s0 + $0x1180] sm:$0xff]
      %v1251 = vld [vmem:[%s0 + $0x1188] sm:$0xff]
      %v1252 = vld [vmem:[%s0 + $0x1190] sm:$0xff]
      %v1253 = vld [vmem:[%s0 + $0x1198] sm:$0xff]
      %v1254 = vld [vmem:[%s0 + $0x11a0] sm:$0xff]
      %v1255 = vld [vmem:[%s0 + $0x11a8] sm:$0xff]
      %v1256 = vld [vmem:[%s0 + $0x11b0] sm:$0xff]
      %v1257 = vld [vmem:[%s0 + $0x11b8] sm:$0xff]
      %v1258 = vld [vmem:[%s0 + $0x11c0] sm:$0xff]
      %v1259 = vld [vmem:[%s0 + $0x11c8] sm:$0xff]
      %v1260 = vld [vmem:[%s0 + $0x11d0] sm:$0xff]
      %v1261 = vld [vmem:[%s0 + $0x11d8] sm:$0xff]
      %v1262 = vld [vmem:[%s0 + $0x11e0] sm:$0xff]
      %v1263 = vld [vmem:[%s0 + $0x11e8] sm:$0xff]
      %v1264 = vld [vmem:[%s0 + $0x11f0] sm:$0xff]
      %v1265 = vld [vmem:[%s0 + $0x11f8] sm:$0xff]
      %v1266 = vld [vmem:[%s0 + $0x1200] sm:$0xff]
      %v1267 = vld [vmem:[%s0 + $0x1208] sm:$0xff]
      %v1268 = vld [vmem:[%s0 + $0x1210] sm:$0xff]
      %v1269 = vld [vmem:[%s0 + $0x1218] sm:$0xff]
      %v1270 = vld [vmem:[%s0 + $0x1220] sm:$0xff]
      %v1271 = vld [vmem:[%s0 + $0x1228] sm:$0xff]
      %v1272 = vld [vmem:[%s0 + $0x1230] sm:$0xff]
      %v1273 = vld [vmem:[%s0 + $0x1238] sm:$0xff]
      %v1274 = vld [vmem:[%s0 + $0x1240] sm:$0xff]
      %v1275 = vld [vmem:[%s0 + $0x1248] sm:$0xff]
      %v1276 = vld [vmem:[%s0 + $0x1250] sm:$0xff]
      %v1277 = vld [vmem:[%s0 + $0x1258] sm:$0xff]
      %v1278 = vld [vmem:[%s0 + $0x1260] sm:$0xff]
      %v1279 = vld [vmem:[%s0 + $0x1268] sm:$0xff]
      %v1280 = vld [vmem:[%s0 + $0x1270] sm:$0xff]
      %v1281 = vld [vmem:[%s0 + $0x1278] sm:$0xff]
      %v1282 = vld [vmem:[%s0 + $0x1280] sm:$0xff]
      %v1283 = vld [vmem:[%s0 + $0x1288] sm:$0xff]
      %v1284 = vld [vmem:[%s0 + $0x1290] sm:$0xff]
      %v1285 = vld [vmem:[%s0 + $0x1298] sm:$0xff]
      %v1286 = vld [vmem:[%s0 + $0x12a0] sm:$0xff]
      %v1287 = vld [vmem:[%s0 + $0x12a8] sm:$0xff]
      %v1288 = vld [vmem:[%s0 + $0x12b0] sm:$0xff]
      %v1289 = vld [vmem:[%s0 + $0x12b8] sm:$0xff]
      %v1290 = vld [vmem:[%s0 + $0x12c0] sm:$0xff]
      %v1291 = vld [vmem:[%s0 + $0x12c8] sm:$0xff]
      %v1292 = vld [vmem:[%s0 + $0x12d0] sm:$0xff]
      %v1293 = vld [vmem:[%s0 + $0x12d8] sm:$0xff]
      %v1294 = vld [vmem:[%s0 + $0x12e0] sm:$0xff]
      %v1295 = vld [vmem:[%s0 + $0x12e8] sm:$0xff]
      %v1296 = vld [vmem:[%s0 + $0x12f0] sm:$0xff]
      %v1297 = vld [vmem:[%s0 + $0x12f8] sm:$0xff]
      %v1298 = vld [vmem:[%s0 + $0x1300] sm:$0xff]
      %v1299 = vld [vmem:[%s0 + $0x1308] sm:$0xff]
      %v1300 = vld [vmem:[%s0 + $0x1310] sm:$0xff]
      %v1301 = vld [vmem:[%s0 + $0x1318] sm:$0xff]
      %v1302 = vld [vmem:[%s0 + $0x1320] sm:$0xff]
      %v1303 = vld [vmem:[%s0 + $0x1328] sm:$0xff]
      %v1304 = vld [vmem:[%s0 + $0x1330] sm:$0xff]
      %v1305 = vld [vmem:[%s0 + $0x1338] sm:$0xff]
      %v1306 = vld [vmem:[%s0 + $0x1340] sm:$0xff]
      %v1307 = vld [vmem:[%s0 + $0x1348] sm:$0xff]
      %v1308 = vld [vmem:[%s0 + $0x1350] sm:$0xff]
      %v1309 = vld [vmem:[%s0 + $0x1358] sm:$0xff]
      %v1310 = vld [vmem:[%s0 + $0x1360] sm:$0xff]
      %v1311 = vld [vmem:[%s0 + $0x1368] sm:$0xff]
      %v1312 = vld [vmem:[%s0 + $0x1370] sm:$0xff]
      %v1313 = vld [vmem:[%s0 + $0x1378] sm:$0xff]
      %v1314 = vld [vmem:[%s0 + $0x1380] sm:$0xff]
      %v1315 = vld [vmem:[%s0 + $0x1388] sm:$0xff]
      %v1316 = vld [vmem:[%s0 + $0x1390] sm:$0xff]
      %v1317 = vld [vmem:[%s0 + $0x1398] sm:$0xff]
      %v1318 = vld [vmem:[%s0 + $0x13a0] sm:$0xff]
      %v1319 = vld [vmem:[%s0 + $0x13a8] sm:$0xff]
      %v1320 = vld [vmem:[%s0 + $0x13b0] sm:$0xff]
      %v1321 = vld [vmem:[%s0 + $0x13b8] sm:$0xff]
      %v1322 = vld [vmem:[%s0 + $0x13c0] sm:$0xff]
      %v1323 = vld [vmem:[%s0 + $0x13c8] sm:$0xff]
      %v1324 = vld [vmem:[%s0 + $0x13d0] sm:$0xff]
      %v1325 = vld [vmem:[%s0 + $0x13d8] sm:$0xff]
      %v1326 = vld [vmem:[%s0 + $0x13e0] sm:$0xff]
      %v1327 = vld [vmem:[%s0 + $0x13e8] sm:$0xff]
      %v1328 = vld [vmem:[%s0 + $0x13f0] sm:$0xff]
      %v1329 = vld [vmem:[%s0 + $0x13f8] sm:$0xff]
      %v1330 = vld [vmem:[%s1] sm:$0xff]
      %v1331 = vld [vmem:[%s1 + $0x8] sm:$0xff]
      %v1332 = vld [vmem:[%s1 + $0x10] sm:$0xff]
      %v1333 = vld [vmem:[%s1 + $0x18] sm:$0xff]
      %v1334 = vld [vmem:[%s1 + $0x20] sm:$0xff]
      %v1335 = vld [vmem:[%s1 + $0x28] sm:$0xff]
      %v1336 = vld [vmem:[%s1 + $0x30] sm:$0xff]
      %v1337 = vld [vmem:[%s1 + $0x38] sm:$0xff]
      %v1338 = vld [vmem:[%s1 + $0x40] sm:$0xff]
      %v1339 = vld [vmem:[%s1 + $0x48] sm:$0xff]
      %v1340 = vld [vmem:[%s1 + $0x50] sm:$0xff]
      %v1341 = vld [vmem:[%s1 + $0x58] sm:$0xff]
      %v1342 = vld [vmem:[%s1 + $0x60] sm:$0xff]
      %v1343 = vld [vmem:[%s1 + $0x68] sm:$0xff]
      %v1344 = vld [vmem:[%s1 + $0x70] sm:$0xff]
      %v1345 = vld [vmem:[%s1 + $0x78] sm:$0xff]
      %v1346 = vld [vmem:[%s1 + $0x80] sm:$0xff]
      %v1347 = vld [vmem:[%s1 + $0x88] sm:$0xff]
      %v1348 = vld [vmem:[%s1 + $0x90] sm:$0xff]
      %v1349 = vld [vmem:[%s1 + $0x98] sm:$0xff]
      %v1350 = vld [vmem:[%s1 + $0xa0] sm:$0xff]
      %v1351 = vld [vmem:[%s1 + $0xa8] sm:$0xff]
      %v1352 = vld [vmem:[%s1 + $0xb0] sm:$0xff]
      %v1353 = vld [vmem:[%s1 + $0xb8] sm:$0xff]
      %v1354 = vld [vmem:[%s1 + $0xc0] sm:$0xff]
      %v1355 = vld [vmem:[%s1 + $0xc8] sm:$0xff]
      %v1356 = vld [vmem:[%s1 + $0xd0] sm:$0xff]
      %v1357 = vld [vmem:[%s1 + $0xd8] sm:$0xff]
      %v1358 = vld [vmem:[%s1 + $0xe0] sm:$0xff]
      %v1359 = vld [vmem:[%s1 + $0xe8] sm:$0xff]
      %v1360 = vld [vmem:[%s1 + $0xf0] sm:$0xff]
      %v1361 = vld [vmem:[%s1 + $0xf8] sm:$0xff]
      %v1362 = vld [vmem:[%s1 + $0x100] sm:$0xff]
      %v1363 = vld [vmem:[%s1 + $0x108] sm:$0xff]
      %v1364 = vld [vmem:[%s1 + $0x110] sm:$0xff]
      %v1365 = vld [vmem:[%s1 + $0x118] sm:$0xff]
      %v1366 = vld [vmem:[%s1 + $0x120] sm:$0xff]
      %v1367 = vld [vmem:[%s1 + $0x128] sm:$0xff]
      %v1368 = vld [vmem:[%s1 + $0x130] sm:$0xff]
      %v1369 = vld [vmem:[%s1 + $0x138] sm:$0xff]
      %v1370 = vld [vmem:[%s1 + $0x140] sm:$0xff]
      %v1371 = vld [vmem:[%s1 + $0x148] sm:$0xff]
      %v1372 = vld [vmem:[%s1 + $0x150] sm:$0xff]
      %v1373 = vld [vmem:[%s1 + $0x158] sm:$0xff]
      %v1374 = vld [vmem:[%s1 + $0x160] sm:$0xff]
      %v1375 = vld [vmem:[%s1 + $0x168] sm:$0xff]
      %v1376 = vld [vmem:[%s1 + $0x170] sm:$0xff]
      %v1377 = vld [vmem:[%s1 + $0x178] sm:$0xff]
      %v1378 = vld [vmem:[%s1 + $0x180] sm:$0xff]
      %v1379 = vld [vmem:[%s1 + $0x188] sm:$0xff]
      %v1380 = vld [vmem:[%s1 + $0x190] sm:$0xff]
      %v1381 = vld [vmem:[%s1 + $0x198] sm:$0xff]
      %v1382 = vld [vmem:[%s1 + $0x1a0] sm:$0xff]
      %v1383 = vld [vmem:[%s1 + $0x1a8] sm:$0xff]
      %v1384 = vld [vmem:[%s1 + $0x1b0] sm:$0xff]
      %v1385 = vld [vmem:[%s1 + $0x1b8] sm:$0xff]
      %v1386 = vld [vmem:[%s1 + $0x1c0] sm:$0xff]
      %v1387 = vld [vmem:[%s1 + $0x1c8] sm:$0xff]
      %v1388 = vld [vmem:[%s1 + $0x1d0] sm:$0xff]
      %v1389 = vld [vmem:[%s1 + $0x1d8] sm:$0xff]
      %v1390 = vld [vmem:[%s1 + $0x1e0] sm:$0xff]
      %v1391 = vld [vmem:[%s1 + $0x1e8] sm:$0xff]
      %v1392 = vld [vmem:[%s1 + $0x1f0] sm:$0xff]
      %v1393 = vld [vmem:[%s1 + $0x1f8] sm:$0xff]
      %v1394 = vld [vmem:[%s1 + $0x200] sm:$0xff]
      %v1395 = vld [vmem:[%s1 + $0x208] sm:$0xff]
      %v1396 = vld [vmem:[%s1 + $0x210] sm:$0xff]
      %v1397 = vld [vmem:[%s1 + $0x218] sm:$0xff]
      %v1398 = vld [vmem:[%s1 + $0x220] sm:$0xff]
      %v1399 = vld [vmem:[%s1 + $0x228] sm:$0xff]
      %v1400 = vld [vmem:[%s1 + $0x230] sm:$0xff]
      %v1401 = vld [vmem:[%s1 + $0x238] sm:$0xff]
      %v1402 = vld [vmem:[%s1 + $0x240] sm:$0xff]
      %v1403 = vld [vmem:[%s1 + $0x248] sm:$0xff]
      %v1404 = vld [vmem:[%s1 + $0x250] sm:$0xff]
      %v1405 = vld [vmem:[%s1 + $0x258] sm:$0xff]
      %v1406 = vld [vmem:[%s1 + $0x260] sm:$0xff]
      %v1407 = vld [vmem:[%s1 + $0x268] sm:$0xff]
      %v1408 = vld [vmem:[%s1 + $0x270] sm:$0xff]
      %v1409 = vld [vmem:[%s1 + $0x278] sm:$0xff]
      %v1410 = vld [vmem:[%s1 + $0x280] sm:$0xff]
      %v1411 = vld [vmem:[%s1 + $0x288] sm:$0xff]
      %v1412 = vld [vmem:[%s1 + $0x290] sm:$0xff]
      %v1413 = vld [vmem:[%s1 + $0x298] sm:$0xff]
      %v1414 = vld [vmem:[%s1 + $0x2a0] sm:$0xff]
      %v1415 = vld [vmem:[%s1 + $0x2a8] sm:$0xff]
      %v1416 = vld [vmem:[%s1 + $0x2b0] sm:$0xff]
      %v1417 = vld [vmem:[%s1 + $0x2b8] sm:$0xff]
      %v1418 = vld [vmem:[%s1 + $0x2c0] sm:$0xff]
      %v1419 = vld [vmem:[%s1 + $0x2c8] sm:$0xff]
      %v1420 = vld [vmem:[%s1 + $0x2d0] sm:$0xff]
      %v1421 = vld [vmem:[%s1 + $0x2d8] sm:$0xff]
      %v1422 = vld [vmem:[%s1 + $0x2e0] sm:$0xff]
      %v1423 = vld [vmem:[%s1 + $0x2e8] sm:$0xff]
      %v1424 = vld [vmem:[%s1 + $0x2f0] sm:$0xff]
      %v1425 = vld [vmem:[%s1 + $0x2f8] sm:$0xff]
      %v1426 = vld [vmem:[%s1 + $0x300] sm:$0xff]
      %v1427 = vld [vmem:[%s1 + $0x308] sm:$0xff]
      %v1428 = vld [vmem:[%s1 + $0x310] sm:$0xff]
      %v1429 = vld [vmem:[%s1 + $0x318] sm:$0xff]
      %v1430 = vld [vmem:[%s1 + $0x320] sm:$0xff]
      %v1431 = vld [vmem:[%s1 + $0x328] sm:$0xff]
      %v1432 = vld [vmem:[%s1 + $0x330] sm:$0xff]
      %v1433 = vld [vmem:[%s1 + $0x338] sm:$0xff]
      %v1434 = vld [vmem:[%s1 + $0x340] sm:$0xff]
      %v1435 = vld [vmem:[%s1 + $0x348] sm:$0xff]
      %v1436 = vld [vmem:[%s1 + $0x350] sm:$0xff]
      %v1437 = vld [vmem:[%s1 + $0x358] sm:$0xff]
      %v1438 = vld [vmem:[%s1 + $0x360] sm:$0xff]
      %v1439 = vld [vmem:[%s1 + $0x368] sm:$0xff]
      %v1440 = vld [vmem:[%s1 + $0x370] sm:$0xff]
      %v1441 = vld [vmem:[%s1 + $0x378] sm:$0xff]
      %v1442 = vld [vmem:[%s1 + $0x380] sm:$0xff]
      %v1443 = vld [vmem:[%s1 + $0x388] sm:$0xff]
      %v1444 = vld [vmem:[%s1 + $0x390] sm:$0xff]
      %v1445 = vld [vmem:[%s1 + $0x398] sm:$0xff]
      %v1446 = vld [vmem:[%s1 + $0x3a0] sm:$0xff]
      %v1447 = vld [vmem:[%s1 + $0x3a8] sm:$0xff]
      %v1448 = vld [vmem:[%s1 + $0x3b0] sm:$0xff]
      %v1449 = vld [vmem:[%s1 + $0x3b8] sm:$0xff]
      %v1450 = vld [vmem:[%s1 + $0x3c0] sm:$0xff]
      %v1451 = vld [vmem:[%s1 + $0x3c8] sm:$0xff]
      %v1452 = vld [vmem:[%s1 + $0x3d0] sm:$0xff]
      %v1453 = vld [vmem:[%s1 + $0x3d8] sm:$0xff]
      %v1454 = vld [vmem:[%s1 + $0x3e0] sm:$0xff]
      %v1455 = vld [vmem:[%s1 + $0x3e8] sm:$0xff]
      %v1456 = vld [vmem:[%s1 + $0x3f0] sm:$0xff]
      %v1457 = vld [vmem:[%s1 + $0x3f8] sm:$0xff]
      %1459 = vset.pattern.permute.xlu0 0
      %1460 = vperm.xlu0 %1459, %v1330
      %v1461 = vpop.permute.xlu0 %1460
      %1464 = vset.pattern.permute.xlu0 0
      %1465 = vperm.xlu0 %1464, %v1331
      %v1466 = vpop.permute.xlu0 %1465
      %1469 = vset.pattern.permute.xlu0 0
      %1470 = vperm.xlu0 %1469, %v1332
      %v1471 = vpop.permute.xlu0 %1470
      %1474 = vset.pattern.permute.xlu0 0
      %1475 = vperm.xlu0 %1474, %v1333
      %v1476 = vpop.permute.xlu0 %1475
      %1479 = vset.pattern.permute.xlu0 0
      %1480 = vperm.xlu0 %1479, %v1334
      %v1481 = vpop.permute.xlu0 %1480
      %1484 = vset.pattern.permute.xlu0 0
      %1485 = vperm.xlu0 %1484, %v1335
      %v1486 = vpop.permute.xlu0 %1485
      %1489 = vset.pattern.permute.xlu0 0
      %1490 = vperm.xlu0 %1489, %v1336
      %v1491 = vpop.permute.xlu0 %1490
      %1494 = vset.pattern.permute.xlu0 0
      %1495 = vperm.xlu0 %1494, %v1337
      %v1496 = vpop.permute.xlu0 %1495
      %1499 = vset.pattern.permute.xlu0 0
      %1500 = vperm.xlu0 %1499, %v1338
      %v1501 = vpop.permute.xlu0 %1500
      %1504 = vset.pattern.permute.xlu0 0
      %1505 = vperm.xlu0 %1504, %v1339
      %v1506 = vpop.permute.xlu0 %1505
      %1509 = vset.pattern.permute.xlu0 0
      %1510 = vperm.xlu0 %1509, %v1340
      %v1511 = vpop.permute.xlu0 %1510
      %1514 = vset.pattern.permute.xlu0 0
      %1515 = vperm.xlu0 %1514, %v1341
      %v1516 = vpop.permute.xlu0 %1515
      %1519 = vset.pattern.permute.xlu0 0
      %1520 = vperm.xlu0 %1519, %v1342
      %v1521 = vpop.permute.xlu0 %1520
      %1524 = vset.pattern.permute.xlu0 0
      %1525 = vperm.xlu0 %1524, %v1343
      %v1526 = vpop.permute.xlu0 %1525
      %1529 = vset.pattern.permute.xlu0 0
      %1530 = vperm.xlu0 %1529, %v1344
      %v1531 = vpop.permute.xlu0 %1530
      %1534 = vset.pattern.permute.xlu0 0
      %1535 = vperm.xlu0 %1534, %v1345
      %v1536 = vpop.permute.xlu0 %1535
      %1539 = vset.pattern.permute.xlu0 0
      %1540 = vperm.xlu0 %1539, %v1346
      %v1541 = vpop.permute.xlu0 %1540
      %1544 = vset.pattern.permute.xlu0 0
      %1545 = vperm.xlu0 %1544, %v1347
      %v1546 = vpop.permute.xlu0 %1545
      %1549 = vset.pattern.permute.xlu0 0
      %1550 = vperm.xlu0 %1549, %v1348
      %v1551 = vpop.permute.xlu0 %1550
      %1554 = vset.pattern.permute.xlu0 0
      %1555 = vperm.xlu0 %1554, %v1349
      %v1556 = vpop.permute.xlu0 %1555
      %1559 = vset.pattern.permute.xlu0 0
      %1560 = vperm.xlu0 %1559, %v1350
      %v1561 = vpop.permute.xlu0 %1560
      %1564 = vset.pattern.permute.xlu0 0
      %1565 = vperm.xlu0 %1564, %v1351
      %v1566 = vpop.permute.xlu0 %1565
      %1569 = vset.pattern.permute.xlu0 0
      %1570 = vperm.xlu0 %1569, %v1352
      %v1571 = vpop.permute.xlu0 %1570
      %1574 = vset.pattern.permute.xlu0 0
      %1575 = vperm.xlu0 %1574, %v1353
      %v1576 = vpop.permute.xlu0 %1575
      %1579 = vset.pattern.permute.xlu0 0
      %1580 = vperm.xlu0 %1579, %v1354
      %v1581 = vpop.permute.xlu0 %1580
      %1584 = vset.pattern.permute.xlu0 0
      %1585 = vperm.xlu0 %1584, %v1355
      %v1586 = vpop.permute.xlu0 %1585
      %1589 = vset.pattern.permute.xlu0 0
      %1590 = vperm.xlu0 %1589, %v1356
      %v1591 = vpop.permute.xlu0 %1590
      %1594 = vset.pattern.permute.xlu0 0
      %1595 = vperm.xlu0 %1594, %v1357
      %v1596 = vpop.permute.xlu0 %1595
      %1599 = vset.pattern.permute.xlu0 0
      %1600 = vperm.xlu0 %1599, %v1358
      %v1601 = vpop.permute.xlu0 %1600
      %1604 = vset.pattern.permute.xlu0 0
      %1605 = vperm.xlu0 %1604, %v1359
      %v1606 = vpop.permute.xlu0 %1605
      %1609 = vset.pattern.permute.xlu0 0
      %1610 = vperm.xlu0 %1609, %v1360
      %v1611 = vpop.permute.xlu0 %1610
      %1614 = vset.pattern.permute.xlu0 0
      %1615 = vperm.xlu0 %1614, %v1361
      %v1616 = vpop.permute.xlu0 %1615
      %1619 = vset.pattern.permute.xlu0 0
      %1620 = vperm.xlu0 %1619, %v1362
      %v1621 = vpop.permute.xlu0 %1620
      %1624 = vset.pattern.permute.xlu0 0
      %1625 = vperm.xlu0 %1624, %v1363
      %v1626 = vpop.permute.xlu0 %1625
      %1629 = vset.pattern.permute.xlu0 0
      %1630 = vperm.xlu0 %1629, %v1364
      %v1631 = vpop.permute.xlu0 %1630
      %1634 = vset.pattern.permute.xlu0 0
      %1635 = vperm.xlu0 %1634, %v1365
      %v1636 = vpop.permute.xlu0 %1635
      %1639 = vset.pattern.permute.xlu0 0
      %1640 = vperm.xlu0 %1639, %v1366
      %v1641 = vpop.permute.xlu0 %1640
      %1644 = vset.pattern.permute.xlu0 0
      %1645 = vperm.xlu0 %1644, %v1367
      %v1646 = vpop.permute.xlu0 %1645
      %1649 = vset.pattern.permute.xlu0 0
      %1650 = vperm.xlu0 %1649, %v1368
      %v1651 = vpop.permute.xlu0 %1650
      %1654 = vset.pattern.permute.xlu0 0
      %1655 = vperm.xlu0 %1654, %v1369
      %v1656 = vpop.permute.xlu0 %1655
      %1659 = vset.pattern.permute.xlu0 0
      %1660 = vperm.xlu0 %1659, %v1370
      %v1661 = vpop.permute.xlu0 %1660
      %1664 = vset.pattern.permute.xlu0 0
      %1665 = vperm.xlu0 %1664, %v1371
      %v1666 = vpop.permute.xlu0 %1665
      %1669 = vset.pattern.permute.xlu0 0
      %1670 = vperm.xlu0 %1669, %v1372
      %v1671 = vpop.permute.xlu0 %1670
      %1674 = vset.pattern.permute.xlu0 0
      %1675 = vperm.xlu0 %1674, %v1373
      %v1676 = vpop.permute.xlu0 %1675
      %1679 = vset.pattern.permute.xlu0 0
      %1680 = vperm.xlu0 %1679, %v1374
      %v1681 = vpop.permute.xlu0 %1680
      %1684 = vset.pattern.permute.xlu0 0
      %1685 = vperm.xlu0 %1684, %v1375
      %v1686 = vpop.permute.xlu0 %1685
      %1689 = vset.pattern.permute.xlu0 0
      %1690 = vperm.xlu0 %1689, %v1376
      %v1691 = vpop.permute.xlu0 %1690
      %1694 = vset.pattern.permute.xlu0 0
      %1695 = vperm.xlu0 %1694, %v1377
      %v1696 = vpop.permute.xlu0 %1695
      %1699 = vset.pattern.permute.xlu0 0
      %1700 = vperm.xlu0 %1699, %v1378
      %v1701 = vpop.permute.xlu0 %1700
      %1704 = vset.pattern.permute.xlu0 0
      %1705 = vperm.xlu0 %1704, %v1379
      %v1706 = vpop.permute.xlu0 %1705
      %1709 = vset.pattern.permute.xlu0 0
      %1710 = vperm.xlu0 %1709, %v1380
      %v1711 = vpop.permute.xlu0 %1710
      %1714 = vset.pattern.permute.xlu0 0
      %1715 = vperm.xlu0 %1714, %v1381
      %v1716 = vpop.permute.xlu0 %1715
      %1719 = vset.pattern.permute.xlu0 0
      %1720 = vperm.xlu0 %1719, %v1382
      %v1721 = vpop.permute.xlu0 %1720
      %1724 = vset.pattern.permute.xlu0 0
      %1725 = vperm.xlu0 %1724, %v1383
      %v1726 = vpop.permute.xlu0 %1725
      %1729 = vset.pattern.permute.xlu0 0
      %1730 = vperm.xlu0 %1729, %v1384
      %v1731 = vpop.permute.xlu0 %1730
      %1734 = vset.pattern.permute.xlu0 0
      %1735 = vperm.xlu0 %1734, %v1385
      %v1736 = vpop.permute.xlu0 %1735
      %1739 = vset.pattern.permute.xlu0 0
      %1740 = vperm.xlu0 %1739, %v1386
      %v1741 = vpop.permute.xlu0 %1740
      %1744 = vset.pattern.permute.xlu0 0
      %1745 = vperm.xlu0 %1744, %v1387
      %v1746 = vpop.permute.xlu0 %1745
      %1749 = vset.pattern.permute.xlu0 0
      %1750 = vperm.xlu0 %1749, %v1388
      %v1751 = vpop.permute.xlu0 %1750
      %1754 = vset.pattern.permute.xlu0 0
      %1755 = vperm.xlu0 %1754, %v1389
      %v1756 = vpop.permute.xlu0 %1755
      %1759 = vset.pattern.permute.xlu0 0
      %1760 = vperm.xlu0 %1759, %v1390
      %v1761 = vpop.permute.xlu0 %1760
      %1764 = vset.pattern.permute.xlu0 0
      %1765 = vperm.xlu0 %1764, %v1391
      %v1766 = vpop.permute.xlu0 %1765
      %1769 = vset.pattern.permute.xlu0 0
      %1770 = vperm.xlu0 %1769, %v1392
      %v1771 = vpop.permute.xlu0 %1770
      %1774 = vset.pattern.permute.xlu0 0
      %1775 = vperm.xlu0 %1774, %v1393
      %v1776 = vpop.permute.xlu0 %1775
      %1779 = vset.pattern.permute.xlu0 0
      %1780 = vperm.xlu0 %1779, %v1394
      %v1781 = vpop.permute.xlu0 %1780
      %1784 = vset.pattern.permute.xlu0 0
      %1785 = vperm.xlu0 %1784, %v1395
      %v1786 = vpop.permute.xlu0 %1785
      %1789 = vset.pattern.permute.xlu0 0
      %1790 = vperm.xlu0 %1789, %v1396
      %v1791 = vpop.permute.xlu0 %1790
      %1794 = vset.pattern.permute.xlu0 0
      %1795 = vperm.xlu0 %1794, %v1397
      %v1796 = vpop.permute.xlu0 %1795
      %1799 = vset.pattern.permute.xlu0 0
      %1800 = vperm.xlu0 %1799, %v1398
      %v1801 = vpop.permute.xlu0 %1800
      %1804 = vset.pattern.permute.xlu0 0
      %1805 = vperm.xlu0 %1804, %v1399
      %v1806 = vpop.permute.xlu0 %1805
      %1809 = vset.pattern.permute.xlu0 0
      %1810 = vperm.xlu0 %1809, %v1400
      %v1811 = vpop.permute.xlu0 %1810
      %1814 = vset.pattern.permute.xlu0 0
      %1815 = vperm.xlu0 %1814, %v1401
      %v1816 = vpop.permute.xlu0 %1815
      %1819 = vset.pattern.permute.xlu0 0
      %1820 = vperm.xlu0 %1819, %v1402
      %v1821 = vpop.permute.xlu0 %1820
      %1824 = vset.pattern.permute.xlu0 0
      %1825 = vperm.xlu0 %1824, %v1403
      %v1826 = vpop.permute.xlu0 %1825
      %1829 = vset.pattern.permute.xlu0 0
      %1830 = vperm.xlu0 %1829, %v1404
      %v1831 = vpop.permute.xlu0 %1830
      %1834 = vset.pattern.permute.xlu0 0
      %1835 = vperm.xlu0 %1834, %v1405
      %v1836 = vpop.permute.xlu0 %1835
      %1839 = vset.pattern.permute.xlu0 0
      %1840 = vperm.xlu0 %1839, %v1406
      %v1841 = vpop.permute.xlu0 %1840
      %1844 = vset.pattern.permute.xlu0 0
      %1845 = vperm.xlu0 %1844, %v1407
      %v1846 = vpop.permute.xlu0 %1845
      %1849 = vset.pattern.permute.xlu0 0
      %1850 = vperm.xlu0 %1849, %v1408
      %v1851 = vpop.permute.xlu0 %1850
      %1854 = vset.pattern.permute.xlu0 0
      %1855 = vperm.xlu0 %1854, %v1409
      %v1856 = vpop.permute.xlu0 %1855
      %1859 = vset.pattern.permute.xlu0 0
      %1860 = vperm.xlu0 %1859, %v1410
      %v1861 = vpop.permute.xlu0 %1860
      %1864 = vset.pattern.permute.xlu0 0
      %1865 = vperm.xlu0 %1864, %v1411
      %v1866 = vpop.permute.xlu0 %1865
      %1869 = vset.pattern.permute.xlu0 0
      %1870 = vperm.xlu0 %1869, %v1412
      %v1871 = vpop.permute.xlu0 %1870
      %1874 = vset.pattern.permute.xlu0 0
      %1875 = vperm.xlu0 %1874, %v1413
      %v1876 = vpop.permute.xlu0 %1875
      %1879 = vset.pattern.permute.xlu0 0
      %1880 = vperm.xlu0 %1879, %v1414
      %v1881 = vpop.permute.xlu0 %1880
      %1884 = vset.pattern.permute.xlu0 0
      %1885 = vperm.xlu0 %1884, %v1415
      %v1886 = vpop.permute.xlu0 %1885
      %1889 = vset.pattern.permute.xlu0 0
      %1890 = vperm.xlu0 %1889, %v1416
      %v1891 = vpop.permute.xlu0 %1890
      %1894 = vset.pattern.permute.xlu0 0
      %1895 = vperm.xlu0 %1894, %v1417
      %v1896 = vpop.permute.xlu0 %1895
      %1899 = vset.pattern.permute.xlu0 0
      %1900 = vperm.xlu0 %1899, %v1418
      %v1901 = vpop.permute.xlu0 %1900
      %1904 = vset.pattern.permute.xlu0 0
      %1905 = vperm.xlu0 %1904, %v1419
      %v1906 = vpop.permute.xlu0 %1905
      %1909 = vset.pattern.permute.xlu0 0
      %1910 = vperm.xlu0 %1909, %v1420
      %v1911 = vpop.permute.xlu0 %1910
      %1914 = vset.pattern.permute.xlu0 0
      %1915 = vperm.xlu0 %1914, %v1421
      %v1916 = vpop.permute.xlu0 %1915
      %1919 = vset.pattern.permute.xlu0 0
      %1920 = vperm.xlu0 %1919, %v1422
      %v1921 = vpop.permute.xlu0 %1920
      %1924 = vset.pattern.permute.xlu0 0
      %1925 = vperm.xlu0 %1924, %v1423
      %v1926 = vpop.permute.xlu0 %1925
      %1929 = vset.pattern.permute.xlu0 0
      %1930 = vperm.xlu0 %1929, %v1424
      %v1931 = vpop.permute.xlu0 %1930
      %1934 = vset.pattern.permute.xlu0 0
      %1935 = vperm.xlu0 %1934, %v1425
      %v1936 = vpop.permute.xlu0 %1935
      %1939 = vset.pattern.permute.xlu0 0
      %1940 = vperm.xlu0 %1939, %v1426
      %v1941 = vpop.permute.xlu0 %1940
      %1944 = vset.pattern.permute.xlu0 0
      %1945 = vperm.xlu0 %1944, %v1427
      %v1946 = vpop.permute.xlu0 %1945
      %1949 = vset.pattern.permute.xlu0 0
      %1950 = vperm.xlu0 %1949, %v1428
      %v1951 = vpop.permute.xlu0 %1950
      %1954 = vset.pattern.permute.xlu0 0
      %1955 = vperm.xlu0 %1954, %v1429
      %v1956 = vpop.permute.xlu0 %1955
      %1959 = vset.pattern.permute.xlu0 0
      %1960 = vperm.xlu0 %1959, %v1430
      %v1961 = vpop.permute.xlu0 %1960
      %1964 = vset.pattern.permute.xlu0 0
      %1965 = vperm.xlu0 %1964, %v1431
      %v1966 = vpop.permute.xlu0 %1965
      %1969 = vset.pattern.permute.xlu0 0
      %1970 = vperm.xlu0 %1969, %v1432
      %v1971 = vpop.permute.xlu0 %1970
      %1974 = vset.pattern.permute.xlu0 0
      %1975 = vperm.xlu0 %1974, %v1433
      %v1976 = vpop.permute.xlu0 %1975
      %1979 = vset.pattern.permute.xlu0 0
      %1980 = vperm.xlu0 %1979, %v1434
      %v1981 = vpop.permute.xlu0 %1980
      %1984 = vset.pattern.permute.xlu0 0
      %1985 = vperm.xlu0 %1984, %v1435
      %v1986 = vpop.permute.xlu0 %1985
      %1989 = vset.pattern.permute.xlu0 0
      %1990 = vperm.xlu0 %1989, %v1436
      %v1991 = vpop.permute.xlu0 %1990
      %1994 = vset.pattern.permute.xlu0 0
      %1995 = vperm.xlu0 %1994, %v1437
      %v1996 = vpop.permute.xlu0 %1995
      %1999 = vset.pattern.permute.xlu0 0
      %2000 = vperm.xlu0 %1999, %v1438
      %v2001 = vpop.permute.xlu0 %2000
      %2004 = vset.pattern.permute.xlu0 0
      %2005 = vperm.xlu0 %2004, %v1439
      %v2006 = vpop.permute.xlu0 %2005
      %2009 = vset.pattern.permute.xlu0 0
      %2010 = vperm.xlu0 %2009, %v1440
      %v2011 = vpop.permute.xlu0 %2010
      %2014 = vset.pattern.permute.xlu0 0
      %2015 = vperm.xlu0 %2014, %v1441
      %v2016 = vpop.permute.xlu0 %2015
      %2019 = vset.pattern.permute.xlu0 0
      %2020 = vperm.xlu0 %2019, %v1442
      %v2021 = vpop.permute.xlu0 %2020
      %2024 = vset.pattern.permute.xlu0 0
      %2025 = vperm.xlu0 %2024, %v1443
      %v2026 = vpop.permute.xlu0 %2025
      %2029 = vset.pattern.permute.xlu0 0
      %2030 = vperm.xlu0 %2029, %v1444
      %v2031 = vpop.permute.xlu0 %2030
      %2034 = vset.pattern.permute.xlu0 0
      %2035 = vperm.xlu0 %2034, %v1445
      %v2036 = vpop.permute.xlu0 %2035
      %2039 = vset.pattern.permute.xlu0 0
      %2040 = vperm.xlu0 %2039, %v1446
      %v2041 = vpop.permute.xlu0 %2040
      %2044 = vset.pattern.permute.xlu0 0
      %2045 = vperm.xlu0 %2044, %v1447
      %v2046 = vpop.permute.xlu0 %2045
      %2049 = vset.pattern.permute.xlu0 0
      %2050 = vperm.xlu0 %2049, %v1448
      %v2051 = vpop.permute.xlu0 %2050
      %2054 = vset.pattern.permute.xlu0 0
      %2055 = vperm.xlu0 %2054, %v1449
      %v2056 = vpop.permute.xlu0 %2055
      %2059 = vset.pattern.permute.xlu0 0
      %2060 = vperm.xlu0 %2059, %v1450
      %v2061 = vpop.permute.xlu0 %2060
      %2064 = vset.pattern.permute.xlu0 0
      %2065 = vperm.xlu0 %2064, %v1451
      %v2066 = vpop.permute.xlu0 %2065
      %2069 = vset.pattern.permute.xlu0 0
      %2070 = vperm.xlu0 %2069, %v1452
      %v2071 = vpop.permute.xlu0 %2070
      %2074 = vset.pattern.permute.xlu0 0
      %2075 = vperm.xlu0 %2074, %v1453
      %v2076 = vpop.permute.xlu0 %2075
      %2079 = vset.pattern.permute.xlu0 0
      %2080 = vperm.xlu0 %2079, %v1454
      %v2081 = vpop.permute.xlu0 %2080
      %2084 = vset.pattern.permute.xlu0 0
      %2085 = vperm.xlu0 %2084, %v1455
      %v2086 = vpop.permute.xlu0 %2085
      %2089 = vset.pattern.permute.xlu0 0
      %2090 = vperm.xlu0 %2089, %v1456
      %v2091 = vpop.permute.xlu0 %2090
      %2094 = vset.pattern.permute.xlu0 0
      %2095 = vperm.xlu0 %2094, %v1457
      %v2096 = vpop.permute.xlu0 %2095
      %v2738 = vunpack.c.l.b16 %v690
      %v2739 = vunpack.c.h.b16 %v690
      %v2740 = vunpack.c.l.b16 %v691
      %v2741 = vunpack.c.h.b16 %v691
      %v2742 = vunpack.c.l.b16 %v692
      %v2743 = vunpack.c.h.b16 %v692
      %v2744 = vunpack.c.l.b16 %v693
      %v2745 = vunpack.c.h.b16 %v693
      %v2746 = vunpack.c.l.b16 %v694
      %v2747 = vunpack.c.h.b16 %v694
      %v2748 = vunpack.c.l.b16 %v695
      %v2749 = vunpack.c.h.b16 %v695
      %v2750 = vunpack.c.l.b16 %v696
      %v2751 = vunpack.c.h.b16 %v696
      %v2752 = vunpack.c.l.b16 %v697
      %v2753 = vunpack.c.h.b16 %v697
      %v2754 = vunpack.c.l.b16 %v698
      %v2755 = vunpack.c.h.b16 %v698
      %v2756 = vunpack.c.l.b16 %v699
      %v2757 = vunpack.c.h.b16 %v699
      %v2758 = vunpack.c.l.b16 %v700
      %v2759 = vunpack.c.h.b16 %v700
      %v2760 = vunpack.c.l.b16 %v701
      %v2761 = vunpack.c.h.b16 %v701
      %v2762 = vunpack.c.l.b16 %v702
      %v2763 = vunpack.c.h.b16 %v702
      %v2764 = vunpack.c.l.b16 %v703
      %v2765 = vunpack.c.h.b16 %v703
      %v2766 = vunpack.c.l.b16 %v704
      %v2767 = vunpack.c.h.b16 %v704
      %v2768 = vunpack.c.l.b16 %v705
      %v2769 = vunpack.c.h.b16 %v705
      %v2770 = vunpack.c.l.b16 %v706
      %v2771 = vunpack.c.h.b16 %v706
      %v2772 = vunpack.c.l.b16 %v707
      %v2773 = vunpack.c.h.b16 %v707
      %v2774 = vunpack.c.l.b16 %v708
      %v2775 = vunpack.c.h.b16 %v708
      %v2776 = vunpack.c.l.b16 %v709
      %v2777 = vunpack.c.h.b16 %v709
      %v2778 = vunpack.c.l.b16 %v710
      %v2779 = vunpack.c.h.b16 %v710
      %v2780 = vunpack.c.l.b16 %v711
      %v2781 = vunpack.c.h.b16 %v711
      %v2782 = vunpack.c.l.b16 %v712
      %v2783 = vunpack.c.h.b16 %v712
      %v2784 = vunpack.c.l.b16 %v713
      %v2785 = vunpack.c.h.b16 %v713
      %v2786 = vunpack.c.l.b16 %v714
      %v2787 = vunpack.c.h.b16 %v714
      %v2788 = vunpack.c.l.b16 %v715
      %v2789 = vunpack.c.h.b16 %v715
      %v2790 = vunpack.c.l.b16 %v716
      %v2791 = vunpack.c.h.b16 %v716
      %v2792 = vunpack.c.l.b16 %v717
      %v2793 = vunpack.c.h.b16 %v717
      %v2794 = vunpack.c.l.b16 %v718
      %v2795 = vunpack.c.h.b16 %v718
      %v2796 = vunpack.c.l.b16 %v719
      %v2797 = vunpack.c.h.b16 %v719
      %v2798 = vunpack.c.l.b16 %v720
      %v2799 = vunpack.c.h.b16 %v720
      %v2800 = vunpack.c.l.b16 %v721
      %v2801 = vunpack.c.h.b16 %v721
      %v2802 = vunpack.c.l.b16 %v722
      %v2803 = vunpack.c.h.b16 %v722
      %v2804 = vunpack.c.l.b16 %v723
      %v2805 = vunpack.c.h.b16 %v723
      %v2806 = vunpack.c.l.b16 %v724
      %v2807 = vunpack.c.h.b16 %v724
      %v2808 = vunpack.c.l.b16 %v725
      %v2809 = vunpack.c.h.b16 %v725
      %v2810 = vunpack.c.l.b16 %v726
      %v2811 = vunpack.c.h.b16 %v726
      %v2812 = vunpack.c.l.b16 %v727
      %v2813 = vunpack.c.h.b16 %v727
      %v2814 = vunpack.c.l.b16 %v728
      %v2815 = vunpack.c.h.b16 %v728
      %v2816 = vunpack.c.l.b16 %v729
      %v2817 = vunpack.c.h.b16 %v729
      %v2818 = vunpack.c.l.b16 %v730
      %v2819 = vunpack.c.h.b16 %v730
      %v2820 = vunpack.c.l.b16 %v731
      %v2821 = vunpack.c.h.b16 %v731
      %v2822 = vunpack.c.l.b16 %v732
      %v2823 = vunpack.c.h.b16 %v732
      %v2824 = vunpack.c.l.b16 %v733
      %v2825 = vunpack.c.h.b16 %v733
      %v2826 = vunpack.c.l.b16 %v734
      %v2827 = vunpack.c.h.b16 %v734
      %v2828 = vunpack.c.l.b16 %v735
      %v2829 = vunpack.c.h.b16 %v735
      %v2830 = vunpack.c.l.b16 %v736
      %v2831 = vunpack.c.h.b16 %v736
      %v2832 = vunpack.c.l.b16 %v737
      %v2833 = vunpack.c.h.b16 %v737
      %v2834 = vunpack.c.l.b16 %v738
      %v2835 = vunpack.c.h.b16 %v738
      %v2836 = vunpack.c.l.b16 %v739
      %v2837 = vunpack.c.h.b16 %v739
      %v2838 = vunpack.c.l.b16 %v740
      %v2839 = vunpack.c.h.b16 %v740
      %v2840 = vunpack.c.l.b16 %v741
      %v2841 = vunpack.c.h.b16 %v741
      %v2842 = vunpack.c.l.b16 %v742
      %v2843 = vunpack.c.h.b16 %v742
      %v2844 = vunpack.c.l.b16 %v743
      %v2845 = vunpack.c.h.b16 %v743
      %v2846 = vunpack.c.l.b16 %v744
      %v2847 = vunpack.c.h.b16 %v744
      %v2848 = vunpack.c.l.b16 %v745
      %v2849 = vunpack.c.h.b16 %v745
      %v2850 = vunpack.c.l.b16 %v746
      %v2851 = vunpack.c.h.b16 %v746
      %v2852 = vunpack.c.l.b16 %v747
      %v2853 = vunpack.c.h.b16 %v747
      %v2854 = vunpack.c.l.b16 %v748
      %v2855 = vunpack.c.h.b16 %v748
      %v2856 = vunpack.c.l.b16 %v749
      %v2857 = vunpack.c.h.b16 %v749
      %v2858 = vunpack.c.l.b16 %v750
      %v2859 = vunpack.c.h.b16 %v750
      %v2860 = vunpack.c.l.b16 %v751
      %v2861 = vunpack.c.h.b16 %v751
      %v2862 = vunpack.c.l.b16 %v752
      %v2863 = vunpack.c.h.b16 %v752
      %v2864 = vunpack.c.l.b16 %v753
      %v2865 = vunpack.c.h.b16 %v753
      %v2866 = vunpack.c.l.b16 %v754
      %v2867 = vunpack.c.h.b16 %v754
      %v2868 = vunpack.c.l.b16 %v755
      %v2869 = vunpack.c.h.b16 %v755
      %v2870 = vunpack.c.l.b16 %v756
      %v2871 = vunpack.c.h.b16 %v756
      %v2872 = vunpack.c.l.b16 %v757
      %v2873 = vunpack.c.h.b16 %v757
      %v2874 = vunpack.c.l.b16 %v758
      %v2875 = vunpack.c.h.b16 %v758
      %v2876 = vunpack.c.l.b16 %v759
      %v2877 = vunpack.c.h.b16 %v759
      %v2878 = vunpack.c.l.b16 %v760
      %v2879 = vunpack.c.h.b16 %v760
      %v2880 = vunpack.c.l.b16 %v761
      %v2881 = vunpack.c.h.b16 %v761
      %v2882 = vunpack.c.l.b16 %v762
      %v2883 = vunpack.c.h.b16 %v762
      %v2884 = vunpack.c.l.b16 %v763
      %v2885 = vunpack.c.h.b16 %v763
      %v2886 = vunpack.c.l.b16 %v764
      %v2887 = vunpack.c.h.b16 %v764
      %v2888 = vunpack.c.l.b16 %v765
      %v2889 = vunpack.c.h.b16 %v765
      %v2890 = vunpack.c.l.b16 %v766
      %v2891 = vunpack.c.h.b16 %v766
      %v2892 = vunpack.c.l.b16 %v767
      %v2893 = vunpack.c.h.b16 %v767
      %v2894 = vunpack.c.l.b16 %v768
      %v2895 = vunpack.c.h.b16 %v768
      %v2896 = vunpack.c.l.b16 %v769
      %v2897 = vunpack.c.h.b16 %v769
      %v2898 = vunpack.c.l.b16 %v770
      %v2899 = vunpack.c.h.b16 %v770
      %v2900 = vunpack.c.l.b16 %v771
      %v2901 = vunpack.c.h.b16 %v771
      %v2902 = vunpack.c.l.b16 %v772
      %v2903 = vunpack.c.h.b16 %v772
      %v2904 = vunpack.c.l.b16 %v773
      %v2905 = vunpack.c.h.b16 %v773
      %v2906 = vunpack.c.l.b16 %v774
      %v2907 = vunpack.c.h.b16 %v774
      %v2908 = vunpack.c.l.b16 %v775
      %v2909 = vunpack.c.h.b16 %v775
      %v2910 = vunpack.c.l.b16 %v776
      %v2911 = vunpack.c.h.b16 %v776
      %v2912 = vunpack.c.l.b16 %v777
      %v2913 = vunpack.c.h.b16 %v777
      %v2914 = vunpack.c.l.b16 %v778
      %v2915 = vunpack.c.h.b16 %v778
      %v2916 = vunpack.c.l.b16 %v779
      %v2917 = vunpack.c.h.b16 %v779
      %v2918 = vunpack.c.l.b16 %v780
      %v2919 = vunpack.c.h.b16 %v780
      %v2920 = vunpack.c.l.b16 %v781
      %v2921 = vunpack.c.h.b16 %v781
      %v2922 = vunpack.c.l.b16 %v782
      %v2923 = vunpack.c.h.b16 %v782
      %v2924 = vunpack.c.l.b16 %v783
      %v2925 = vunpack.c.h.b16 %v783
      %v2926 = vunpack.c.l.b16 %v784
      %v2927 = vunpack.c.h.b16 %v784
      %v2928 = vunpack.c.l.b16 %v785
      %v2929 = vunpack.c.h.b16 %v785
      %v2930 = vunpack.c.l.b16 %v786
      %v2931 = vunpack.c.h.b16 %v786
      %v2932 = vunpack.c.l.b16 %v787
      %v2933 = vunpack.c.h.b16 %v787
      %v2934 = vunpack.c.l.b16 %v788
      %v2935 = vunpack.c.h.b16 %v788
      %v2936 = vunpack.c.l.b16 %v789
      %v2937 = vunpack.c.h.b16 %v789
      %v2938 = vunpack.c.l.b16 %v790
      %v2939 = vunpack.c.h.b16 %v790
      %v2940 = vunpack.c.l.b16 %v791
      %v2941 = vunpack.c.h.b16 %v791
      %v2942 = vunpack.c.l.b16 %v792
      %v2943 = vunpack.c.h.b16 %v792
      %v2944 = vunpack.c.l.b16 %v793
      %v2945 = vunpack.c.h.b16 %v793
      %v2946 = vunpack.c.l.b16 %v794
      %v2947 = vunpack.c.h.b16 %v794
      %v2948 = vunpack.c.l.b16 %v795
      %v2949 = vunpack.c.h.b16 %v795
      %v2950 = vunpack.c.l.b16 %v796
      %v2951 = vunpack.c.h.b16 %v796
      %v2952 = vunpack.c.l.b16 %v797
      %v2953 = vunpack.c.h.b16 %v797
      %v2954 = vunpack.c.l.b16 %v798
      %v2955 = vunpack.c.h.b16 %v798
      %v2956 = vunpack.c.l.b16 %v799
      %v2957 = vunpack.c.h.b16 %v799
      %v2958 = vunpack.c.l.b16 %v800
      %v2959 = vunpack.c.h.b16 %v800
      %v2960 = vunpack.c.l.b16 %v801
      %v2961 = vunpack.c.h.b16 %v801
      %v2962 = vunpack.c.l.b16 %v802
      %v2963 = vunpack.c.h.b16 %v802
      %v2964 = vunpack.c.l.b16 %v803
      %v2965 = vunpack.c.h.b16 %v803
      %v2966 = vunpack.c.l.b16 %v804
      %v2967 = vunpack.c.h.b16 %v804
      %v2968 = vunpack.c.l.b16 %v805
      %v2969 = vunpack.c.h.b16 %v805
      %v2970 = vunpack.c.l.b16 %v806
      %v2971 = vunpack.c.h.b16 %v806
      %v2972 = vunpack.c.l.b16 %v807
      %v2973 = vunpack.c.h.b16 %v807
      %v2974 = vunpack.c.l.b16 %v808
      %v2975 = vunpack.c.h.b16 %v808
      %v2976 = vunpack.c.l.b16 %v809
      %v2977 = vunpack.c.h.b16 %v809
      %v2978 = vunpack.c.l.b16 %v810
      %v2979 = vunpack.c.h.b16 %v810
      %v2980 = vunpack.c.l.b16 %v811
      %v2981 = vunpack.c.h.b16 %v811
      %v2982 = vunpack.c.l.b16 %v812
      %v2983 = vunpack.c.h.b16 %v812
      %v2984 = vunpack.c.l.b16 %v813
      %v2985 = vunpack.c.h.b16 %v813
      %v2986 = vunpack.c.l.b16 %v814
      %v2987 = vunpack.c.h.b16 %v814
      %v2988 = vunpack.c.l.b16 %v815
      %v2989 = vunpack.c.h.b16 %v815
      %v2990 = vunpack.c.l.b16 %v816
      %v2991 = vunpack.c.h.b16 %v816
      %v2992 = vunpack.c.l.b16 %v817
      %v2993 = vunpack.c.h.b16 %v817
      %v2994 = vunpack.c.l.b16 %v818
      %v2995 = vunpack.c.h.b16 %v818
      %v2996 = vunpack.c.l.b16 %v819
      %v2997 = vunpack.c.h.b16 %v819
      %v2998 = vunpack.c.l.b16 %v820
      %v2999 = vunpack.c.h.b16 %v820
      %v3000 = vunpack.c.l.b16 %v821
      %v3001 = vunpack.c.h.b16 %v821
      %v3002 = vunpack.c.l.b16 %v822
      %v3003 = vunpack.c.h.b16 %v822
      %v3004 = vunpack.c.l.b16 %v823
      %v3005 = vunpack.c.h.b16 %v823
      %v3006 = vunpack.c.l.b16 %v824
      %v3007 = vunpack.c.h.b16 %v824
      %v3008 = vunpack.c.l.b16 %v825
      %v3009 = vunpack.c.h.b16 %v825
      %v3010 = vunpack.c.l.b16 %v826
      %v3011 = vunpack.c.h.b16 %v826
      %v3012 = vunpack.c.l.b16 %v827
      %v3013 = vunpack.c.h.b16 %v827
      %v3014 = vunpack.c.l.b16 %v828
      %v3015 = vunpack.c.h.b16 %v828
      %v3016 = vunpack.c.l.b16 %v829
      %v3017 = vunpack.c.h.b16 %v829
      %v3018 = vunpack.c.l.b16 %v830
      %v3019 = vunpack.c.h.b16 %v830
      %v3020 = vunpack.c.l.b16 %v831
      %v3021 = vunpack.c.h.b16 %v831
      %v3022 = vunpack.c.l.b16 %v832
      %v3023 = vunpack.c.h.b16 %v832
      %v3024 = vunpack.c.l.b16 %v833
      %v3025 = vunpack.c.h.b16 %v833
      %v3026 = vunpack.c.l.b16 %v834
      %v3027 = vunpack.c.h.b16 %v834
      %v3028 = vunpack.c.l.b16 %v835
      %v3029 = vunpack.c.h.b16 %v835
      %v3030 = vunpack.c.l.b16 %v836
      %v3031 = vunpack.c.h.b16 %v836
      %v3032 = vunpack.c.l.b16 %v837
      %v3033 = vunpack.c.h.b16 %v837
      %v3034 = vunpack.c.l.b16 %v838
      %v3035 = vunpack.c.h.b16 %v838
      %v3036 = vunpack.c.l.b16 %v839
      %v3037 = vunpack.c.h.b16 %v839
      %v3038 = vunpack.c.l.b16 %v840
      %v3039 = vunpack.c.h.b16 %v840
      %v3040 = vunpack.c.l.b16 %v841
      %v3041 = vunpack.c.h.b16 %v841
      %v3042 = vunpack.c.l.b16 %v842
      %v3043 = vunpack.c.h.b16 %v842
      %v3044 = vunpack.c.l.b16 %v843
      %v3045 = vunpack.c.h.b16 %v843
      %v3046 = vunpack.c.l.b16 %v844
      %v3047 = vunpack.c.h.b16 %v844
      %v3048 = vunpack.c.l.b16 %v845
      %v3049 = vunpack.c.h.b16 %v845
      %v3050 = vunpack.c.l.b16 %v846
      %v3051 = vunpack.c.h.b16 %v846
      %v3052 = vunpack.c.l.b16 %v847
      %v3053 = vunpack.c.h.b16 %v847
      %v3054 = vunpack.c.l.b16 %v848
      %v3055 = vunpack.c.h.b16 %v848
      %v3056 = vunpack.c.l.b16 %v849
      %v3057 = vunpack.c.h.b16 %v849
      %v3058 = vunpack.c.l.b16 %v850
      %v3059 = vunpack.c.h.b16 %v850
      %v3060 = vunpack.c.l.b16 %v851
      %v3061 = vunpack.c.h.b16 %v851
      %v3062 = vunpack.c.l.b16 %v852
      %v3063 = vunpack.c.h.b16 %v852
      %v3064 = vunpack.c.l.b16 %v853
      %v3065 = vunpack.c.h.b16 %v853
      %v3066 = vunpack.c.l.b16 %v854
      %v3067 = vunpack.c.h.b16 %v854
      %v3068 = vunpack.c.l.b16 %v855
      %v3069 = vunpack.c.h.b16 %v855
      %v3070 = vunpack.c.l.b16 %v856
      %v3071 = vunpack.c.h.b16 %v856
      %v3072 = vunpack.c.l.b16 %v857
      %v3073 = vunpack.c.h.b16 %v857
      %v3074 = vunpack.c.l.b16 %v858
      %v3075 = vunpack.c.h.b16 %v858
      %v3076 = vunpack.c.l.b16 %v859
      %v3077 = vunpack.c.h.b16 %v859
      %v3078 = vunpack.c.l.b16 %v860
      %v3079 = vunpack.c.h.b16 %v860
      %v3080 = vunpack.c.l.b16 %v861
      %v3081 = vunpack.c.h.b16 %v861
      %v3082 = vunpack.c.l.b16 %v862
      %v3083 = vunpack.c.h.b16 %v862
      %v3084 = vunpack.c.l.b16 %v863
      %v3085 = vunpack.c.h.b16 %v863
      %v3086 = vunpack.c.l.b16 %v864
      %v3087 = vunpack.c.h.b16 %v864
      %v3088 = vunpack.c.l.b16 %v865
      %v3089 = vunpack.c.h.b16 %v865
      %v3090 = vunpack.c.l.b16 %v866
      %v3091 = vunpack.c.h.b16 %v866
      %v3092 = vunpack.c.l.b16 %v867
      %v3093 = vunpack.c.h.b16 %v867
      %v3094 = vunpack.c.l.b16 %v868
      %v3095 = vunpack.c.h.b16 %v868
      %v3096 = vunpack.c.l.b16 %v869
      %v3097 = vunpack.c.h.b16 %v869
      %v3098 = vunpack.c.l.b16 %v870
      %v3099 = vunpack.c.h.b16 %v870
      %v3100 = vunpack.c.l.b16 %v871
      %v3101 = vunpack.c.h.b16 %v871
      %v3102 = vunpack.c.l.b16 %v872
      %v3103 = vunpack.c.h.b16 %v872
      %v3104 = vunpack.c.l.b16 %v873
      %v3105 = vunpack.c.h.b16 %v873
      %v3106 = vunpack.c.l.b16 %v874
      %v3107 = vunpack.c.h.b16 %v874
      %v3108 = vunpack.c.l.b16 %v875
      %v3109 = vunpack.c.h.b16 %v875
      %v3110 = vunpack.c.l.b16 %v876
      %v3111 = vunpack.c.h.b16 %v876
      %v3112 = vunpack.c.l.b16 %v877
      %v3113 = vunpack.c.h.b16 %v877
      %v3114 = vunpack.c.l.b16 %v878
      %v3115 = vunpack.c.h.b16 %v878
      %v3116 = vunpack.c.l.b16 %v879
      %v3117 = vunpack.c.h.b16 %v879
      %v3118 = vunpack.c.l.b16 %v880
      %v3119 = vunpack.c.h.b16 %v880
      %v3120 = vunpack.c.l.b16 %v881
      %v3121 = vunpack.c.h.b16 %v881
      %v3122 = vunpack.c.l.b16 %v882
      %v3123 = vunpack.c.h.b16 %v882
      %v3124 = vunpack.c.l.b16 %v883
      %v3125 = vunpack.c.h.b16 %v883
      %v3126 = vunpack.c.l.b16 %v884
      %v3127 = vunpack.c.h.b16 %v884
      %v3128 = vunpack.c.l.b16 %v885
      %v3129 = vunpack.c.h.b16 %v885
      %v3130 = vunpack.c.l.b16 %v886
      %v3131 = vunpack.c.h.b16 %v886
      %v3132 = vunpack.c.l.b16 %v887
      %v3133 = vunpack.c.h.b16 %v887
      %v3134 = vunpack.c.l.b16 %v888
      %v3135 = vunpack.c.h.b16 %v888
      %v3136 = vunpack.c.l.b16 %v889
      %v3137 = vunpack.c.h.b16 %v889
      %v3138 = vunpack.c.l.b16 %v890
      %v3139 = vunpack.c.h.b16 %v890
      %v3140 = vunpack.c.l.b16 %v891
      %v3141 = vunpack.c.h.b16 %v891
      %v3142 = vunpack.c.l.b16 %v892
      %v3143 = vunpack.c.h.b16 %v892
      %v3144 = vunpack.c.l.b16 %v893
      %v3145 = vunpack.c.h.b16 %v893
      %v3146 = vunpack.c.l.b16 %v894
      %v3147 = vunpack.c.h.b16 %v894
      %v3148 = vunpack.c.l.b16 %v895
      %v3149 = vunpack.c.h.b16 %v895
      %v3150 = vunpack.c.l.b16 %v896
      %v3151 = vunpack.c.h.b16 %v896
      %v3152 = vunpack.c.l.b16 %v897
      %v3153 = vunpack.c.h.b16 %v897
      %v3154 = vunpack.c.l.b16 %v898
      %v3155 = vunpack.c.h.b16 %v898
      %v3156 = vunpack.c.l.b16 %v899
      %v3157 = vunpack.c.h.b16 %v899
      %v3158 = vunpack.c.l.b16 %v900
      %v3159 = vunpack.c.h.b16 %v900
      %v3160 = vunpack.c.l.b16 %v901
      %v3161 = vunpack.c.h.b16 %v901
      %v3162 = vunpack.c.l.b16 %v902
      %v3163 = vunpack.c.h.b16 %v902
      %v3164 = vunpack.c.l.b16 %v903
      %v3165 = vunpack.c.h.b16 %v903
      %v3166 = vunpack.c.l.b16 %v904
      %v3167 = vunpack.c.h.b16 %v904
      %v3168 = vunpack.c.l.b16 %v905
      %v3169 = vunpack.c.h.b16 %v905
      %v3170 = vunpack.c.l.b16 %v906
      %v3171 = vunpack.c.h.b16 %v906
      %v3172 = vunpack.c.l.b16 %v907
      %v3173 = vunpack.c.h.b16 %v907
      %v3174 = vunpack.c.l.b16 %v908
      %v3175 = vunpack.c.h.b16 %v908
      %v3176 = vunpack.c.l.b16 %v909
      %v3177 = vunpack.c.h.b16 %v909
      %v3178 = vunpack.c.l.b16 %v910
      %v3179 = vunpack.c.h.b16 %v910
      %v3180 = vunpack.c.l.b16 %v911
      %v3181 = vunpack.c.h.b16 %v911
      %v3182 = vunpack.c.l.b16 %v912
      %v3183 = vunpack.c.h.b16 %v912
      %v3184 = vunpack.c.l.b16 %v913
      %v3185 = vunpack.c.h.b16 %v913
      %v3186 = vunpack.c.l.b16 %v914
      %v3187 = vunpack.c.h.b16 %v914
      %v3188 = vunpack.c.l.b16 %v915
      %v3189 = vunpack.c.h.b16 %v915
      %v3190 = vunpack.c.l.b16 %v916
      %v3191 = vunpack.c.h.b16 %v916
      %v3192 = vunpack.c.l.b16 %v917
      %v3193 = vunpack.c.h.b16 %v917
      %v3194 = vunpack.c.l.b16 %v918
      %v3195 = vunpack.c.h.b16 %v918
      %v3196 = vunpack.c.l.b16 %v919
      %v3197 = vunpack.c.h.b16 %v919
      %v3198 = vunpack.c.l.b16 %v920
      %v3199 = vunpack.c.h.b16 %v920
      %v3200 = vunpack.c.l.b16 %v921
      %v3201 = vunpack.c.h.b16 %v921
      %v3202 = vunpack.c.l.b16 %v922
      %v3203 = vunpack.c.h.b16 %v922
      %v3204 = vunpack.c.l.b16 %v923
      %v3205 = vunpack.c.h.b16 %v923
      %v3206 = vunpack.c.l.b16 %v924
      %v3207 = vunpack.c.h.b16 %v924
      %v3208 = vunpack.c.l.b16 %v925
      %v3209 = vunpack.c.h.b16 %v925
      %v3210 = vunpack.c.l.b16 %v926
      %v3211 = vunpack.c.h.b16 %v926
      %v3212 = vunpack.c.l.b16 %v927
      %v3213 = vunpack.c.h.b16 %v927
      %v3214 = vunpack.c.l.b16 %v928
      %v3215 = vunpack.c.h.b16 %v928
      %v3216 = vunpack.c.l.b16 %v929
      %v3217 = vunpack.c.h.b16 %v929
      %v3218 = vunpack.c.l.b16 %v930
      %v3219 = vunpack.c.h.b16 %v930
      %v3220 = vunpack.c.l.b16 %v931
      %v3221 = vunpack.c.h.b16 %v931
      %v3222 = vunpack.c.l.b16 %v932
      %v3223 = vunpack.c.h.b16 %v932
      %v3224 = vunpack.c.l.b16 %v933
      %v3225 = vunpack.c.h.b16 %v933
      %v3226 = vunpack.c.l.b16 %v934
      %v3227 = vunpack.c.h.b16 %v934
      %v3228 = vunpack.c.l.b16 %v935
      %v3229 = vunpack.c.h.b16 %v935
      %v3230 = vunpack.c.l.b16 %v936
      %v3231 = vunpack.c.h.b16 %v936
      %v3232 = vunpack.c.l.b16 %v937
      %v3233 = vunpack.c.h.b16 %v937
      %v3234 = vunpack.c.l.b16 %v938
      %v3235 = vunpack.c.h.b16 %v938
      %v3236 = vunpack.c.l.b16 %v939
      %v3237 = vunpack.c.h.b16 %v939
      %v3238 = vunpack.c.l.b16 %v940
      %v3239 = vunpack.c.h.b16 %v940
      %v3240 = vunpack.c.l.b16 %v941
      %v3241 = vunpack.c.h.b16 %v941
      %v3242 = vunpack.c.l.b16 %v942
      %v3243 = vunpack.c.h.b16 %v942
      %v3244 = vunpack.c.l.b16 %v943
      %v3245 = vunpack.c.h.b16 %v943
      %v3246 = vunpack.c.l.b16 %v944
      %v3247 = vunpack.c.h.b16 %v944
      %v3248 = vunpack.c.l.b16 %v945
      %v3249 = vunpack.c.h.b16 %v945
      %v3250 = vunpack.c.l.b16 %v946
      %v3251 = vunpack.c.h.b16 %v946
      %v3252 = vunpack.c.l.b16 %v947
      %v3253 = vunpack.c.h.b16 %v947
      %v3254 = vunpack.c.l.b16 %v948
      %v3255 = vunpack.c.h.b16 %v948
      %v3256 = vunpack.c.l.b16 %v949
      %v3257 = vunpack.c.h.b16 %v949
      %v3258 = vunpack.c.l.b16 %v950
      %v3259 = vunpack.c.h.b16 %v950
      %v3260 = vunpack.c.l.b16 %v951
      %v3261 = vunpack.c.h.b16 %v951
      %v3262 = vunpack.c.l.b16 %v952
      %v3263 = vunpack.c.h.b16 %v952
      %v3264 = vunpack.c.l.b16 %v953
      %v3265 = vunpack.c.h.b16 %v953
      %v3266 = vunpack.c.l.b16 %v954
      %v3267 = vunpack.c.h.b16 %v954
      %v3268 = vunpack.c.l.b16 %v955
      %v3269 = vunpack.c.h.b16 %v955
      %v3270 = vunpack.c.l.b16 %v956
      %v3271 = vunpack.c.h.b16 %v956
      %v3272 = vunpack.c.l.b16 %v957
      %v3273 = vunpack.c.h.b16 %v957
      %v3274 = vunpack.c.l.b16 %v958
      %v3275 = vunpack.c.h.b16 %v958
      %v3276 = vunpack.c.l.b16 %v959
      %v3277 = vunpack.c.h.b16 %v959
      %v3278 = vunpack.c.l.b16 %v960
      %v3279 = vunpack.c.h.b16 %v960
      %v3280 = vunpack.c.l.b16 %v961
      %v3281 = vunpack.c.h.b16 %v961
      %v3282 = vunpack.c.l.b16 %v962
      %v3283 = vunpack.c.h.b16 %v962
      %v3284 = vunpack.c.l.b16 %v963
      %v3285 = vunpack.c.h.b16 %v963
      %v3286 = vunpack.c.l.b16 %v964
      %v3287 = vunpack.c.h.b16 %v964
      %v3288 = vunpack.c.l.b16 %v965
      %v3289 = vunpack.c.h.b16 %v965
      %v3290 = vunpack.c.l.b16 %v966
      %v3291 = vunpack.c.h.b16 %v966
      %v3292 = vunpack.c.l.b16 %v967
      %v3293 = vunpack.c.h.b16 %v967
      %v3294 = vunpack.c.l.b16 %v968
      %v3295 = vunpack.c.h.b16 %v968
      %v3296 = vunpack.c.l.b16 %v969
      %v3297 = vunpack.c.h.b16 %v969
      %v3298 = vunpack.c.l.b16 %v970
      %v3299 = vunpack.c.h.b16 %v970
      %v3300 = vunpack.c.l.b16 %v971
      %v3301 = vunpack.c.h.b16 %v971
      %v3302 = vunpack.c.l.b16 %v972
      %v3303 = vunpack.c.h.b16 %v972
      %v3304 = vunpack.c.l.b16 %v973
      %v3305 = vunpack.c.h.b16 %v973
      %v3306 = vunpack.c.l.b16 %v974
      %v3307 = vunpack.c.h.b16 %v974
      %v3308 = vunpack.c.l.b16 %v975
      %v3309 = vunpack.c.h.b16 %v975
      %v3310 = vunpack.c.l.b16 %v976
      %v3311 = vunpack.c.h.b16 %v976
      %v3312 = vunpack.c.l.b16 %v977
      %v3313 = vunpack.c.h.b16 %v977
      %v3314 = vunpack.c.l.b16 %v978
      %v3315 = vunpack.c.h.b16 %v978
      %v3316 = vunpack.c.l.b16 %v979
      %v3317 = vunpack.c.h.b16 %v979
      %v3318 = vunpack.c.l.b16 %v980
      %v3319 = vunpack.c.h.b16 %v980
      %v3320 = vunpack.c.l.b16 %v981
      %v3321 = vunpack.c.h.b16 %v981
      %v3322 = vunpack.c.l.b16 %v982
      %v3323 = vunpack.c.h.b16 %v982
      %v3324 = vunpack.c.l.b16 %v983
      %v3325 = vunpack.c.h.b16 %v983
      %v3326 = vunpack.c.l.b16 %v984
      %v3327 = vunpack.c.h.b16 %v984
      %v3328 = vunpack.c.l.b16 %v985
      %v3329 = vunpack.c.h.b16 %v985
      %v3330 = vunpack.c.l.b16 %v986
      %v3331 = vunpack.c.h.b16 %v986
      %v3332 = vunpack.c.l.b16 %v987
      %v3333 = vunpack.c.h.b16 %v987
      %v3334 = vunpack.c.l.b16 %v988
      %v3335 = vunpack.c.h.b16 %v988
      %v3336 = vunpack.c.l.b16 %v989
      %v3337 = vunpack.c.h.b16 %v989
      %v3338 = vunpack.c.l.b16 %v990
      %v3339 = vunpack.c.h.b16 %v990
      %v3340 = vunpack.c.l.b16 %v991
      %v3341 = vunpack.c.h.b16 %v991
      %v3342 = vunpack.c.l.b16 %v992
      %v3343 = vunpack.c.h.b16 %v992
      %v3344 = vunpack.c.l.b16 %v993
      %v3345 = vunpack.c.h.b16 %v993
      %v3346 = vunpack.c.l.b16 %v994
      %v3347 = vunpack.c.h.b16 %v994
      %v3348 = vunpack.c.l.b16 %v995
      %v3349 = vunpack.c.h.b16 %v995
      %v3350 = vunpack.c.l.b16 %v996
      %v3351 = vunpack.c.h.b16 %v996
      %v3352 = vunpack.c.l.b16 %v997
      %v3353 = vunpack.c.h.b16 %v997
      %v3354 = vunpack.c.l.b16 %v998
      %v3355 = vunpack.c.h.b16 %v998
      %v3356 = vunpack.c.l.b16 %v999
      %v3357 = vunpack.c.h.b16 %v999
      %v3358 = vunpack.c.l.b16 %v1000
      %v3359 = vunpack.c.h.b16 %v1000
      %v3360 = vunpack.c.l.b16 %v1001
      %v3361 = vunpack.c.h.b16 %v1001
      %v3362 = vunpack.c.l.b16 %v1002
      %v3363 = vunpack.c.h.b16 %v1002
      %v3364 = vunpack.c.l.b16 %v1003
      %v3365 = vunpack.c.h.b16 %v1003
      %v3366 = vunpack.c.l.b16 %v1004
      %v3367 = vunpack.c.h.b16 %v1004
      %v3368 = vunpack.c.l.b16 %v1005
      %v3369 = vunpack.c.h.b16 %v1005
      %v3370 = vunpack.c.l.b16 %v1006
      %v3371 = vunpack.c.h.b16 %v1006
      %v3372 = vunpack.c.l.b16 %v1007
      %v3373 = vunpack.c.h.b16 %v1007
      %v3374 = vunpack.c.l.b16 %v1008
      %v3375 = vunpack.c.h.b16 %v1008
      %v3376 = vunpack.c.l.b16 %v1009
      %v3377 = vunpack.c.h.b16 %v1009
      %v3378 = vunpack.c.l.b16 %v1010
      %v3379 = vunpack.c.h.b16 %v1010
      %v3380 = vunpack.c.l.b16 %v1011
      %v3381 = vunpack.c.h.b16 %v1011
      %v3382 = vunpack.c.l.b16 %v1012
      %v3383 = vunpack.c.h.b16 %v1012
      %v3384 = vunpack.c.l.b16 %v1013
      %v3385 = vunpack.c.h.b16 %v1013
      %v3386 = vunpack.c.l.b16 %v1014
      %v3387 = vunpack.c.h.b16 %v1014
      %v3388 = vunpack.c.l.b16 %v1015
      %v3389 = vunpack.c.h.b16 %v1015
      %v3390 = vunpack.c.l.b16 %v1016
      %v3391 = vunpack.c.h.b16 %v1016
      %v3392 = vunpack.c.l.b16 %v1017
      %v3393 = vunpack.c.h.b16 %v1017
      %v3394 = vunpack.c.l.b16 %v1018
      %v3395 = vunpack.c.h.b16 %v1018
      %v3396 = vunpack.c.l.b16 %v1019
      %v3397 = vunpack.c.h.b16 %v1019
      %v3398 = vunpack.c.l.b16 %v1020
      %v3399 = vunpack.c.h.b16 %v1020
      %v3400 = vunpack.c.l.b16 %v1021
      %v3401 = vunpack.c.h.b16 %v1021
      %v3402 = vunpack.c.l.b16 %v1022
      %v3403 = vunpack.c.h.b16 %v1022
      %v3404 = vunpack.c.l.b16 %v1023
      %v3405 = vunpack.c.h.b16 %v1023
      %v3406 = vunpack.c.l.b16 %v1024
      %v3407 = vunpack.c.h.b16 %v1024
      %v3408 = vunpack.c.l.b16 %v1025
      %v3409 = vunpack.c.h.b16 %v1025
      %v3410 = vunpack.c.l.b16 %v1026
      %v3411 = vunpack.c.h.b16 %v1026
      %v3412 = vunpack.c.l.b16 %v1027
      %v3413 = vunpack.c.h.b16 %v1027
      %v3414 = vunpack.c.l.b16 %v1028
      %v3415 = vunpack.c.h.b16 %v1028
      %v3416 = vunpack.c.l.b16 %v1029
      %v3417 = vunpack.c.h.b16 %v1029
      %v3418 = vunpack.c.l.b16 %v1030
      %v3419 = vunpack.c.h.b16 %v1030
      %v3420 = vunpack.c.l.b16 %v1031
      %v3421 = vunpack.c.h.b16 %v1031
      %v3422 = vunpack.c.l.b16 %v1032
      %v3423 = vunpack.c.h.b16 %v1032
      %v3424 = vunpack.c.l.b16 %v1033
      %v3425 = vunpack.c.h.b16 %v1033
      %v3426 = vunpack.c.l.b16 %v1034
      %v3427 = vunpack.c.h.b16 %v1034
      %v3428 = vunpack.c.l.b16 %v1035
      %v3429 = vunpack.c.h.b16 %v1035
      %v3430 = vunpack.c.l.b16 %v1036
      %v3431 = vunpack.c.h.b16 %v1036
      %v3432 = vunpack.c.l.b16 %v1037
      %v3433 = vunpack.c.h.b16 %v1037
      %v3434 = vunpack.c.l.b16 %v1038
      %v3435 = vunpack.c.h.b16 %v1038
      %v3436 = vunpack.c.l.b16 %v1039
      %v3437 = vunpack.c.h.b16 %v1039
      %v3438 = vunpack.c.l.b16 %v1040
      %v3439 = vunpack.c.h.b16 %v1040
      %v3440 = vunpack.c.l.b16 %v1041
      %v3441 = vunpack.c.h.b16 %v1041
      %v3442 = vunpack.c.l.b16 %v1042
      %v3443 = vunpack.c.h.b16 %v1042
      %v3444 = vunpack.c.l.b16 %v1043
      %v3445 = vunpack.c.h.b16 %v1043
      %v3446 = vunpack.c.l.b16 %v1044
      %v3447 = vunpack.c.h.b16 %v1044
      %v3448 = vunpack.c.l.b16 %v1045
      %v3449 = vunpack.c.h.b16 %v1045
      %v3450 = vunpack.c.l.b16 %v1046
      %v3451 = vunpack.c.h.b16 %v1046
      %v3452 = vunpack.c.l.b16 %v1047
      %v3453 = vunpack.c.h.b16 %v1047
      %v3454 = vunpack.c.l.b16 %v1048
      %v3455 = vunpack.c.h.b16 %v1048
      %v3456 = vunpack.c.l.b16 %v1049
      %v3457 = vunpack.c.h.b16 %v1049
      %v3458 = vunpack.c.l.b16 %v1050
      %v3459 = vunpack.c.h.b16 %v1050
      %v3460 = vunpack.c.l.b16 %v1051
      %v3461 = vunpack.c.h.b16 %v1051
      %v3462 = vunpack.c.l.b16 %v1052
      %v3463 = vunpack.c.h.b16 %v1052
      %v3464 = vunpack.c.l.b16 %v1053
      %v3465 = vunpack.c.h.b16 %v1053
      %v3466 = vunpack.c.l.b16 %v1054
      %v3467 = vunpack.c.h.b16 %v1054
      %v3468 = vunpack.c.l.b16 %v1055
      %v3469 = vunpack.c.h.b16 %v1055
      %v3470 = vunpack.c.l.b16 %v1056
      %v3471 = vunpack.c.h.b16 %v1056
      %v3472 = vunpack.c.l.b16 %v1057
      %v3473 = vunpack.c.h.b16 %v1057
      %v3474 = vunpack.c.l.b16 %v1058
      %v3475 = vunpack.c.h.b16 %v1058
      %v3476 = vunpack.c.l.b16 %v1059
      %v3477 = vunpack.c.h.b16 %v1059
      %v3478 = vunpack.c.l.b16 %v1060
      %v3479 = vunpack.c.h.b16 %v1060
      %v3480 = vunpack.c.l.b16 %v1061
      %v3481 = vunpack.c.h.b16 %v1061
      %v3482 = vunpack.c.l.b16 %v1062
      %v3483 = vunpack.c.h.b16 %v1062
      %v3484 = vunpack.c.l.b16 %v1063
      %v3485 = vunpack.c.h.b16 %v1063
      %v3486 = vunpack.c.l.b16 %v1064
      %v3487 = vunpack.c.h.b16 %v1064
      %v3488 = vunpack.c.l.b16 %v1065
      %v3489 = vunpack.c.h.b16 %v1065
      %v3490 = vunpack.c.l.b16 %v1066
      %v3491 = vunpack.c.h.b16 %v1066
      %v3492 = vunpack.c.l.b16 %v1067
      %v3493 = vunpack.c.h.b16 %v1067
      %v3494 = vunpack.c.l.b16 %v1068
      %v3495 = vunpack.c.h.b16 %v1068
      %v3496 = vunpack.c.l.b16 %v1069
      %v3497 = vunpack.c.h.b16 %v1069
      %v3498 = vunpack.c.l.b16 %v1070
      %v3499 = vunpack.c.h.b16 %v1070
      %v3500 = vunpack.c.l.b16 %v1071
      %v3501 = vunpack.c.h.b16 %v1071
      %v3502 = vunpack.c.l.b16 %v1072
      %v3503 = vunpack.c.h.b16 %v1072
      %v3504 = vunpack.c.l.b16 %v1073
      %v3505 = vunpack.c.h.b16 %v1073
      %v3506 = vunpack.c.l.b16 %v1074
      %v3507 = vunpack.c.h.b16 %v1074
      %v3508 = vunpack.c.l.b16 %v1075
      %v3509 = vunpack.c.h.b16 %v1075
      %v3510 = vunpack.c.l.b16 %v1076
      %v3511 = vunpack.c.h.b16 %v1076
      %v3512 = vunpack.c.l.b16 %v1077
      %v3513 = vunpack.c.h.b16 %v1077
      %v3514 = vunpack.c.l.b16 %v1078
      %v3515 = vunpack.c.h.b16 %v1078
      %v3516 = vunpack.c.l.b16 %v1079
      %v3517 = vunpack.c.h.b16 %v1079
      %v3518 = vunpack.c.l.b16 %v1080
      %v3519 = vunpack.c.h.b16 %v1080
      %v3520 = vunpack.c.l.b16 %v1081
      %v3521 = vunpack.c.h.b16 %v1081
      %v3522 = vunpack.c.l.b16 %v1082
      %v3523 = vunpack.c.h.b16 %v1082
      %v3524 = vunpack.c.l.b16 %v1083
      %v3525 = vunpack.c.h.b16 %v1083
      %v3526 = vunpack.c.l.b16 %v1084
      %v3527 = vunpack.c.h.b16 %v1084
      %v3528 = vunpack.c.l.b16 %v1085
      %v3529 = vunpack.c.h.b16 %v1085
      %v3530 = vunpack.c.l.b16 %v1086
      %v3531 = vunpack.c.h.b16 %v1086
      %v3532 = vunpack.c.l.b16 %v1087
      %v3533 = vunpack.c.h.b16 %v1087
      %v3534 = vunpack.c.l.b16 %v1088
      %v3535 = vunpack.c.h.b16 %v1088
      %v3536 = vunpack.c.l.b16 %v1089
      %v3537 = vunpack.c.h.b16 %v1089
      %v3538 = vunpack.c.l.b16 %v1090
      %v3539 = vunpack.c.h.b16 %v1090
      %v3540 = vunpack.c.l.b16 %v1091
      %v3541 = vunpack.c.h.b16 %v1091
      %v3542 = vunpack.c.l.b16 %v1092
      %v3543 = vunpack.c.h.b16 %v1092
      %v3544 = vunpack.c.l.b16 %v1093
      %v3545 = vunpack.c.h.b16 %v1093
      %v3546 = vunpack.c.l.b16 %v1094
      %v3547 = vunpack.c.h.b16 %v1094
      %v3548 = vunpack.c.l.b16 %v1095
      %v3549 = vunpack.c.h.b16 %v1095
      %v3550 = vunpack.c.l.b16 %v1096
      %v3551 = vunpack.c.h.b16 %v1096
      %v3552 = vunpack.c.l.b16 %v1097
      %v3553 = vunpack.c.h.b16 %v1097
      %v3554 = vunpack.c.l.b16 %v1098
      %v3555 = vunpack.c.h.b16 %v1098
      %v3556 = vunpack.c.l.b16 %v1099
      %v3557 = vunpack.c.h.b16 %v1099
      %v3558 = vunpack.c.l.b16 %v1100
      %v3559 = vunpack.c.h.b16 %v1100
      %v3560 = vunpack.c.l.b16 %v1101
      %v3561 = vunpack.c.h.b16 %v1101
      %v3562 = vunpack.c.l.b16 %v1102
      %v3563 = vunpack.c.h.b16 %v1102
      %v3564 = vunpack.c.l.b16 %v1103
      %v3565 = vunpack.c.h.b16 %v1103
      %v3566 = vunpack.c.l.b16 %v1104
      %v3567 = vunpack.c.h.b16 %v1104
      %v3568 = vunpack.c.l.b16 %v1105
      %v3569 = vunpack.c.h.b16 %v1105
      %v3570 = vunpack.c.l.b16 %v1106
      %v3571 = vunpack.c.h.b16 %v1106
      %v3572 = vunpack.c.l.b16 %v1107
      %v3573 = vunpack.c.h.b16 %v1107
      %v3574 = vunpack.c.l.b16 %v1108
      %v3575 = vunpack.c.h.b16 %v1108
      %v3576 = vunpack.c.l.b16 %v1109
      %v3577 = vunpack.c.h.b16 %v1109
      %v3578 = vunpack.c.l.b16 %v1110
      %v3579 = vunpack.c.h.b16 %v1110
      %v3580 = vunpack.c.l.b16 %v1111
      %v3581 = vunpack.c.h.b16 %v1111
      %v3582 = vunpack.c.l.b16 %v1112
      %v3583 = vunpack.c.h.b16 %v1112
      %v3584 = vunpack.c.l.b16 %v1113
      %v3585 = vunpack.c.h.b16 %v1113
      %v3586 = vunpack.c.l.b16 %v1114
      %v3587 = vunpack.c.h.b16 %v1114
      %v3588 = vunpack.c.l.b16 %v1115
      %v3589 = vunpack.c.h.b16 %v1115
      %v3590 = vunpack.c.l.b16 %v1116
      %v3591 = vunpack.c.h.b16 %v1116
      %v3592 = vunpack.c.l.b16 %v1117
      %v3593 = vunpack.c.h.b16 %v1117
      %v3594 = vunpack.c.l.b16 %v1118
      %v3595 = vunpack.c.h.b16 %v1118
      %v3596 = vunpack.c.l.b16 %v1119
      %v3597 = vunpack.c.h.b16 %v1119
      %v3598 = vunpack.c.l.b16 %v1120
      %v3599 = vunpack.c.h.b16 %v1120
      %v3600 = vunpack.c.l.b16 %v1121
      %v3601 = vunpack.c.h.b16 %v1121
      %v3602 = vunpack.c.l.b16 %v1122
      %v3603 = vunpack.c.h.b16 %v1122
      %v3604 = vunpack.c.l.b16 %v1123
      %v3605 = vunpack.c.h.b16 %v1123
      %v3606 = vunpack.c.l.b16 %v1124
      %v3607 = vunpack.c.h.b16 %v1124
      %v3608 = vunpack.c.l.b16 %v1125
      %v3609 = vunpack.c.h.b16 %v1125
      %v3610 = vunpack.c.l.b16 %v1126
      %v3611 = vunpack.c.h.b16 %v1126
      %v3612 = vunpack.c.l.b16 %v1127
      %v3613 = vunpack.c.h.b16 %v1127
      %v3614 = vunpack.c.l.b16 %v1128
      %v3615 = vunpack.c.h.b16 %v1128
      %v3616 = vunpack.c.l.b16 %v1129
      %v3617 = vunpack.c.h.b16 %v1129
      %v3618 = vunpack.c.l.b16 %v1130
      %v3619 = vunpack.c.h.b16 %v1130
      %v3620 = vunpack.c.l.b16 %v1131
      %v3621 = vunpack.c.h.b16 %v1131
      %v3622 = vunpack.c.l.b16 %v1132
      %v3623 = vunpack.c.h.b16 %v1132
      %v3624 = vunpack.c.l.b16 %v1133
      %v3625 = vunpack.c.h.b16 %v1133
      %v3626 = vunpack.c.l.b16 %v1134
      %v3627 = vunpack.c.h.b16 %v1134
      %v3628 = vunpack.c.l.b16 %v1135
      %v3629 = vunpack.c.h.b16 %v1135
      %v3630 = vunpack.c.l.b16 %v1136
      %v3631 = vunpack.c.h.b16 %v1136
      %v3632 = vunpack.c.l.b16 %v1137
      %v3633 = vunpack.c.h.b16 %v1137
      %v3634 = vunpack.c.l.b16 %v1138
      %v3635 = vunpack.c.h.b16 %v1138
      %v3636 = vunpack.c.l.b16 %v1139
      %v3637 = vunpack.c.h.b16 %v1139
      %v3638 = vunpack.c.l.b16 %v1140
      %v3639 = vunpack.c.h.b16 %v1140
      %v3640 = vunpack.c.l.b16 %v1141
      %v3641 = vunpack.c.h.b16 %v1141
      %v3642 = vunpack.c.l.b16 %v1142
      %v3643 = vunpack.c.h.b16 %v1142
      %v3644 = vunpack.c.l.b16 %v1143
      %v3645 = vunpack.c.h.b16 %v1143
      %v3646 = vunpack.c.l.b16 %v1144
      %v3647 = vunpack.c.h.b16 %v1144
      %v3648 = vunpack.c.l.b16 %v1145
      %v3649 = vunpack.c.h.b16 %v1145
      %v3650 = vunpack.c.l.b16 %v1146
      %v3651 = vunpack.c.h.b16 %v1146
      %v3652 = vunpack.c.l.b16 %v1147
      %v3653 = vunpack.c.h.b16 %v1147
      %v3654 = vunpack.c.l.b16 %v1148
      %v3655 = vunpack.c.h.b16 %v1148
      %v3656 = vunpack.c.l.b16 %v1149
      %v3657 = vunpack.c.h.b16 %v1149
      %v3658 = vunpack.c.l.b16 %v1150
      %v3659 = vunpack.c.h.b16 %v1150
      %v3660 = vunpack.c.l.b16 %v1151
      %v3661 = vunpack.c.h.b16 %v1151
      %v3662 = vunpack.c.l.b16 %v1152
      %v3663 = vunpack.c.h.b16 %v1152
      %v3664 = vunpack.c.l.b16 %v1153
      %v3665 = vunpack.c.h.b16 %v1153
      %v3666 = vunpack.c.l.b16 %v1154
      %v3667 = vunpack.c.h.b16 %v1154
      %v3668 = vunpack.c.l.b16 %v1155
      %v3669 = vunpack.c.h.b16 %v1155
      %v3670 = vunpack.c.l.b16 %v1156
      %v3671 = vunpack.c.h.b16 %v1156
      %v3672 = vunpack.c.l.b16 %v1157
      %v3673 = vunpack.c.h.b16 %v1157
      %v3674 = vunpack.c.l.b16 %v1158
      %v3675 = vunpack.c.h.b16 %v1158
      %v3676 = vunpack.c.l.b16 %v1159
      %v3677 = vunpack.c.h.b16 %v1159
      %v3678 = vunpack.c.l.b16 %v1160
      %v3679 = vunpack.c.h.b16 %v1160
      %v3680 = vunpack.c.l.b16 %v1161
      %v3681 = vunpack.c.h.b16 %v1161
      %v3682 = vunpack.c.l.b16 %v1162
      %v3683 = vunpack.c.h.b16 %v1162
      %v3684 = vunpack.c.l.b16 %v1163
      %v3685 = vunpack.c.h.b16 %v1163
      %v3686 = vunpack.c.l.b16 %v1164
      %v3687 = vunpack.c.h.b16 %v1164
      %v3688 = vunpack.c.l.b16 %v1165
      %v3689 = vunpack.c.h.b16 %v1165
      %v3690 = vunpack.c.l.b16 %v1166
      %v3691 = vunpack.c.h.b16 %v1166
      %v3692 = vunpack.c.l.b16 %v1167
      %v3693 = vunpack.c.h.b16 %v1167
      %v3694 = vunpack.c.l.b16 %v1168
      %v3695 = vunpack.c.h.b16 %v1168
      %v3696 = vunpack.c.l.b16 %v1169
      %v3697 = vunpack.c.h.b16 %v1169
      %v3698 = vunpack.c.l.b16 %v1170
      %v3699 = vunpack.c.h.b16 %v1170
      %v3700 = vunpack.c.l.b16 %v1171
      %v3701 = vunpack.c.h.b16 %v1171
      %v3702 = vunpack.c.l.b16 %v1172
      %v3703 = vunpack.c.h.b16 %v1172
      %v3704 = vunpack.c.l.b16 %v1173
      %v3705 = vunpack.c.h.b16 %v1173
      %v3706 = vunpack.c.l.b16 %v1174
      %v3707 = vunpack.c.h.b16 %v1174
      %v3708 = vunpack.c.l.b16 %v1175
      %v3709 = vunpack.c.h.b16 %v1175
      %v3710 = vunpack.c.l.b16 %v1176
      %v3711 = vunpack.c.h.b16 %v1176
      %v3712 = vunpack.c.l.b16 %v1177
      %v3713 = vunpack.c.h.b16 %v1177
      %v3714 = vunpack.c.l.b16 %v1178
      %v3715 = vunpack.c.h.b16 %v1178
      %v3716 = vunpack.c.l.b16 %v1179
      %v3717 = vunpack.c.h.b16 %v1179
      %v3718 = vunpack.c.l.b16 %v1180
      %v3719 = vunpack.c.h.b16 %v1180
      %v3720 = vunpack.c.l.b16 %v1181
      %v3721 = vunpack.c.h.b16 %v1181
      %v3722 = vunpack.c.l.b16 %v1182
      %v3723 = vunpack.c.h.b16 %v1182
      %v3724 = vunpack.c.l.b16 %v1183
      %v3725 = vunpack.c.h.b16 %v1183
      %v3726 = vunpack.c.l.b16 %v1184
      %v3727 = vunpack.c.h.b16 %v1184
      %v3728 = vunpack.c.l.b16 %v1185
      %v3729 = vunpack.c.h.b16 %v1185
      %v3730 = vunpack.c.l.b16 %v1186
      %v3731 = vunpack.c.h.b16 %v1186
      %v3732 = vunpack.c.l.b16 %v1187
      %v3733 = vunpack.c.h.b16 %v1187
      %v3734 = vunpack.c.l.b16 %v1188
      %v3735 = vunpack.c.h.b16 %v1188
      %v3736 = vunpack.c.l.b16 %v1189
      %v3737 = vunpack.c.h.b16 %v1189
      %v3738 = vunpack.c.l.b16 %v1190
      %v3739 = vunpack.c.h.b16 %v1190
      %v3740 = vunpack.c.l.b16 %v1191
      %v3741 = vunpack.c.h.b16 %v1191
      %v3742 = vunpack.c.l.b16 %v1192
      %v3743 = vunpack.c.h.b16 %v1192
      %v3744 = vunpack.c.l.b16 %v1193
      %v3745 = vunpack.c.h.b16 %v1193
      %v3746 = vunpack.c.l.b16 %v1194
      %v3747 = vunpack.c.h.b16 %v1194
      %v3748 = vunpack.c.l.b16 %v1195
      %v3749 = vunpack.c.h.b16 %v1195
      %v3750 = vunpack.c.l.b16 %v1196
      %v3751 = vunpack.c.h.b16 %v1196
      %v3752 = vunpack.c.l.b16 %v1197
      %v3753 = vunpack.c.h.b16 %v1197
      %v3754 = vunpack.c.l.b16 %v1198
      %v3755 = vunpack.c.h.b16 %v1198
      %v3756 = vunpack.c.l.b16 %v1199
      %v3757 = vunpack.c.h.b16 %v1199
      %v3758 = vunpack.c.l.b16 %v1200
      %v3759 = vunpack.c.h.b16 %v1200
      %v3760 = vunpack.c.l.b16 %v1201
      %v3761 = vunpack.c.h.b16 %v1201
      %v3762 = vunpack.c.l.b16 %v1202
      %v3763 = vunpack.c.h.b16 %v1202
      %v3764 = vunpack.c.l.b16 %v1203
      %v3765 = vunpack.c.h.b16 %v1203
      %v3766 = vunpack.c.l.b16 %v1204
      %v3767 = vunpack.c.h.b16 %v1204
      %v3768 = vunpack.c.l.b16 %v1205
      %v3769 = vunpack.c.h.b16 %v1205
      %v3770 = vunpack.c.l.b16 %v1206
      %v3771 = vunpack.c.h.b16 %v1206
      %v3772 = vunpack.c.l.b16 %v1207
      %v3773 = vunpack.c.h.b16 %v1207
      %v3774 = vunpack.c.l.b16 %v1208
      %v3775 = vunpack.c.h.b16 %v1208
      %v3776 = vunpack.c.l.b16 %v1209
      %v3777 = vunpack.c.h.b16 %v1209
      %v3778 = vunpack.c.l.b16 %v1210
      %v3779 = vunpack.c.h.b16 %v1210
      %v3780 = vunpack.c.l.b16 %v1211
      %v3781 = vunpack.c.h.b16 %v1211
      %v3782 = vunpack.c.l.b16 %v1212
      %v3783 = vunpack.c.h.b16 %v1212
      %v3784 = vunpack.c.l.b16 %v1213
      %v3785 = vunpack.c.h.b16 %v1213
      %v3786 = vunpack.c.l.b16 %v1214
      %v3787 = vunpack.c.h.b16 %v1214
      %v3788 = vunpack.c.l.b16 %v1215
      %v3789 = vunpack.c.h.b16 %v1215
      %v3790 = vunpack.c.l.b16 %v1216
      %v3791 = vunpack.c.h.b16 %v1216
      %v3792 = vunpack.c.l.b16 %v1217
      %v3793 = vunpack.c.h.b16 %v1217
      %v3794 = vunpack.c.l.b16 %v1218
      %v3795 = vunpack.c.h.b16 %v1218
      %v3796 = vunpack.c.l.b16 %v1219
      %v3797 = vunpack.c.h.b16 %v1219
      %v3798 = vunpack.c.l.b16 %v1220
      %v3799 = vunpack.c.h.b16 %v1220
      %v3800 = vunpack.c.l.b16 %v1221
      %v3801 = vunpack.c.h.b16 %v1221
      %v3802 = vunpack.c.l.b16 %v1222
      %v3803 = vunpack.c.h.b16 %v1222
      %v3804 = vunpack.c.l.b16 %v1223
      %v3805 = vunpack.c.h.b16 %v1223
      %v3806 = vunpack.c.l.b16 %v1224
      %v3807 = vunpack.c.h.b16 %v1224
      %v3808 = vunpack.c.l.b16 %v1225
      %v3809 = vunpack.c.h.b16 %v1225
      %v3810 = vunpack.c.l.b16 %v1226
      %v3811 = vunpack.c.h.b16 %v1226
      %v3812 = vunpack.c.l.b16 %v1227
      %v3813 = vunpack.c.h.b16 %v1227
      %v3814 = vunpack.c.l.b16 %v1228
      %v3815 = vunpack.c.h.b16 %v1228
      %v3816 = vunpack.c.l.b16 %v1229
      %v3817 = vunpack.c.h.b16 %v1229
      %v3818 = vunpack.c.l.b16 %v1230
      %v3819 = vunpack.c.h.b16 %v1230
      %v3820 = vunpack.c.l.b16 %v1231
      %v3821 = vunpack.c.h.b16 %v1231
      %v3822 = vunpack.c.l.b16 %v1232
      %v3823 = vunpack.c.h.b16 %v1232
      %v3824 = vunpack.c.l.b16 %v1233
      %v3825 = vunpack.c.h.b16 %v1233
      %v3826 = vunpack.c.l.b16 %v1234
      %v3827 = vunpack.c.h.b16 %v1234
      %v3828 = vunpack.c.l.b16 %v1235
      %v3829 = vunpack.c.h.b16 %v1235
      %v3830 = vunpack.c.l.b16 %v1236
      %v3831 = vunpack.c.h.b16 %v1236
      %v3832 = vunpack.c.l.b16 %v1237
      %v3833 = vunpack.c.h.b16 %v1237
      %v3834 = vunpack.c.l.b16 %v1238
      %v3835 = vunpack.c.h.b16 %v1238
      %v3836 = vunpack.c.l.b16 %v1239
      %v3837 = vunpack.c.h.b16 %v1239
      %v3838 = vunpack.c.l.b16 %v1240
      %v3839 = vunpack.c.h.b16 %v1240
      %v3840 = vunpack.c.l.b16 %v1241
      %v3841 = vunpack.c.h.b16 %v1241
      %v3842 = vunpack.c.l.b16 %v1242
      %v3843 = vunpack.c.h.b16 %v1242
      %v3844 = vunpack.c.l.b16 %v1243
      %v3845 = vunpack.c.h.b16 %v1243
      %v3846 = vunpack.c.l.b16 %v1244
      %v3847 = vunpack.c.h.b16 %v1244
      %v3848 = vunpack.c.l.b16 %v1245
      %v3849 = vunpack.c.h.b16 %v1245
      %v3850 = vunpack.c.l.b16 %v1246
      %v3851 = vunpack.c.h.b16 %v1246
      %v3852 = vunpack.c.l.b16 %v1247
      %v3853 = vunpack.c.h.b16 %v1247
      %v3854 = vunpack.c.l.b16 %v1248
      %v3855 = vunpack.c.h.b16 %v1248
      %v3856 = vunpack.c.l.b16 %v1249
      %v3857 = vunpack.c.h.b16 %v1249
      %v3858 = vunpack.c.l.b16 %v1250
      %v3859 = vunpack.c.h.b16 %v1250
      %v3860 = vunpack.c.l.b16 %v1251
      %v3861 = vunpack.c.h.b16 %v1251
      %v3862 = vunpack.c.l.b16 %v1252
      %v3863 = vunpack.c.h.b16 %v1252
      %v3864 = vunpack.c.l.b16 %v1253
      %v3865 = vunpack.c.h.b16 %v1253
      %v3866 = vunpack.c.l.b16 %v1254
      %v3867 = vunpack.c.h.b16 %v1254
      %v3868 = vunpack.c.l.b16 %v1255
      %v3869 = vunpack.c.h.b16 %v1255
      %v3870 = vunpack.c.l.b16 %v1256
      %v3871 = vunpack.c.h.b16 %v1256
      %v3872 = vunpack.c.l.b16 %v1257
      %v3873 = vunpack.c.h.b16 %v1257
      %v3874 = vunpack.c.l.b16 %v1258
      %v3875 = vunpack.c.h.b16 %v1258
      %v3876 = vunpack.c.l.b16 %v1259
      %v3877 = vunpack.c.h.b16 %v1259
      %v3878 = vunpack.c.l.b16 %v1260
      %v3879 = vunpack.c.h.b16 %v1260
      %v3880 = vunpack.c.l.b16 %v1261
      %v3881 = vunpack.c.h.b16 %v1261
      %v3882 = vunpack.c.l.b16 %v1262
      %v3883 = vunpack.c.h.b16 %v1262
      %v3884 = vunpack.c.l.b16 %v1263
      %v3885 = vunpack.c.h.b16 %v1263
      %v3886 = vunpack.c.l.b16 %v1264
      %v3887 = vunpack.c.h.b16 %v1264
      %v3888 = vunpack.c.l.b16 %v1265
      %v3889 = vunpack.c.h.b16 %v1265
      %v3890 = vunpack.c.l.b16 %v1266
      %v3891 = vunpack.c.h.b16 %v1266
      %v3892 = vunpack.c.l.b16 %v1267
      %v3893 = vunpack.c.h.b16 %v1267
      %v3894 = vunpack.c.l.b16 %v1268
      %v3895 = vunpack.c.h.b16 %v1268
      %v3896 = vunpack.c.l.b16 %v1269
      %v3897 = vunpack.c.h.b16 %v1269
      %v3898 = vunpack.c.l.b16 %v1270
      %v3899 = vunpack.c.h.b16 %v1270
      %v3900 = vunpack.c.l.b16 %v1271
      %v3901 = vunpack.c.h.b16 %v1271
      %v3902 = vunpack.c.l.b16 %v1272
      %v3903 = vunpack.c.h.b16 %v1272
      %v3904 = vunpack.c.l.b16 %v1273
      %v3905 = vunpack.c.h.b16 %v1273
      %v3906 = vunpack.c.l.b16 %v1274
      %v3907 = vunpack.c.h.b16 %v1274
      %v3908 = vunpack.c.l.b16 %v1275
      %v3909 = vunpack.c.h.b16 %v1275
      %v3910 = vunpack.c.l.b16 %v1276
      %v3911 = vunpack.c.h.b16 %v1276
      %v3912 = vunpack.c.l.b16 %v1277
      %v3913 = vunpack.c.h.b16 %v1277
      %v3914 = vunpack.c.l.b16 %v1278
      %v3915 = vunpack.c.h.b16 %v1278
      %v3916 = vunpack.c.l.b16 %v1279
      %v3917 = vunpack.c.h.b16 %v1279
      %v3918 = vunpack.c.l.b16 %v1280
      %v3919 = vunpack.c.h.b16 %v1280
      %v3920 = vunpack.c.l.b16 %v1281
      %v3921 = vunpack.c.h.b16 %v1281
      %v3922 = vunpack.c.l.b16 %v1282
      %v3923 = vunpack.c.h.b16 %v1282
      %v3924 = vunpack.c.l.b16 %v1283
      %v3925 = vunpack.c.h.b16 %v1283
      %v3926 = vunpack.c.l.b16 %v1284
      %v3927 = vunpack.c.h.b16 %v1284
      %v3928 = vunpack.c.l.b16 %v1285
      %v3929 = vunpack.c.h.b16 %v1285
      %v3930 = vunpack.c.l.b16 %v1286
      %v3931 = vunpack.c.h.b16 %v1286
      %v3932 = vunpack.c.l.b16 %v1287
      %v3933 = vunpack.c.h.b16 %v1287
      %v3934 = vunpack.c.l.b16 %v1288
      %v3935 = vunpack.c.h.b16 %v1288
      %v3936 = vunpack.c.l.b16 %v1289
      %v3937 = vunpack.c.h.b16 %v1289
      %v3938 = vunpack.c.l.b16 %v1290
      %v3939 = vunpack.c.h.b16 %v1290
      %v3940 = vunpack.c.l.b16 %v1291
      %v3941 = vunpack.c.h.b16 %v1291
      %v3942 = vunpack.c.l.b16 %v1292
      %v3943 = vunpack.c.h.b16 %v1292
      %v3944 = vunpack.c.l.b16 %v1293
      %v3945 = vunpack.c.h.b16 %v1293
      %v3946 = vunpack.c.l.b16 %v1294
      %v3947 = vunpack.c.h.b16 %v1294
      %v3948 = vunpack.c.l.b16 %v1295
      %v3949 = vunpack.c.h.b16 %v1295
      %v3950 = vunpack.c.l.b16 %v1296
      %v3951 = vunpack.c.h.b16 %v1296
      %v3952 = vunpack.c.l.b16 %v1297
      %v3953 = vunpack.c.h.b16 %v1297
      %v3954 = vunpack.c.l.b16 %v1298
      %v3955 = vunpack.c.h.b16 %v1298
      %v3956 = vunpack.c.l.b16 %v1299
      %v3957 = vunpack.c.h.b16 %v1299
      %v3958 = vunpack.c.l.b16 %v1300
      %v3959 = vunpack.c.h.b16 %v1300
      %v3960 = vunpack.c.l.b16 %v1301
      %v3961 = vunpack.c.h.b16 %v1301
      %v3962 = vunpack.c.l.b16 %v1302
      %v3963 = vunpack.c.h.b16 %v1302
      %v3964 = vunpack.c.l.b16 %v1303
      %v3965 = vunpack.c.h.b16 %v1303
      %v3966 = vunpack.c.l.b16 %v1304
      %v3967 = vunpack.c.h.b16 %v1304
      %v3968 = vunpack.c.l.b16 %v1305
      %v3969 = vunpack.c.h.b16 %v1305
      %v3970 = vunpack.c.l.b16 %v1306
      %v3971 = vunpack.c.h.b16 %v1306
      %v3972 = vunpack.c.l.b16 %v1307
      %v3973 = vunpack.c.h.b16 %v1307
      %v3974 = vunpack.c.l.b16 %v1308
      %v3975 = vunpack.c.h.b16 %v1308
      %v3976 = vunpack.c.l.b16 %v1309
      %v3977 = vunpack.c.h.b16 %v1309
      %v3978 = vunpack.c.l.b16 %v1310
      %v3979 = vunpack.c.h.b16 %v1310
      %v3980 = vunpack.c.l.b16 %v1311
      %v3981 = vunpack.c.h.b16 %v1311
      %v3982 = vunpack.c.l.b16 %v1312
      %v3983 = vunpack.c.h.b16 %v1312
      %v3984 = vunpack.c.l.b16 %v1313
      %v3985 = vunpack.c.h.b16 %v1313
      %v3986 = vunpack.c.l.b16 %v1314
      %v3987 = vunpack.c.h.b16 %v1314
      %v3988 = vunpack.c.l.b16 %v1315
      %v3989 = vunpack.c.h.b16 %v1315
      %v3990 = vunpack.c.l.b16 %v1316
      %v3991 = vunpack.c.h.b16 %v1316
      %v3992 = vunpack.c.l.b16 %v1317
      %v3993 = vunpack.c.h.b16 %v1317
      %v3994 = vunpack.c.l.b16 %v1318
      %v3995 = vunpack.c.h.b16 %v1318
      %v3996 = vunpack.c.l.b16 %v1319
      %v3997 = vunpack.c.h.b16 %v1319
      %v3998 = vunpack.c.l.b16 %v1320
      %v3999 = vunpack.c.h.b16 %v1320
      %v4000 = vunpack.c.l.b16 %v1321
      %v4001 = vunpack.c.h.b16 %v1321
      %v4002 = vunpack.c.l.b16 %v1322
      %v4003 = vunpack.c.h.b16 %v1322
      %v4004 = vunpack.c.l.b16 %v1323
      %v4005 = vunpack.c.h.b16 %v1323
      %v4006 = vunpack.c.l.b16 %v1324
      %v4007 = vunpack.c.h.b16 %v1324
      %v4008 = vunpack.c.l.b16 %v1325
      %v4009 = vunpack.c.h.b16 %v1325
      %v4010 = vunpack.c.l.b16 %v1326
      %v4011 = vunpack.c.h.b16 %v1326
      %v4012 = vunpack.c.l.b16 %v1327
      %v4013 = vunpack.c.h.b16 %v1327
      %v4014 = vunpack.c.l.b16 %v1328
      %v4015 = vunpack.c.h.b16 %v1328
      %v4016 = vunpack.c.l.b16 %v1329
      %v4017 = vunpack.c.h.b16 %v1329
      %v4018 = vpack.c.b16 %v2748, %v2738
      %v4019 = vpack.c.b16 %v2749, %v2739
      %v4020 = vpack.c.b16 %v2750, %v2740
      %v4021 = vpack.c.b16 %v2751, %v2741
      %v4022 = vpack.c.b16 %v2752, %v2742
      %v4023 = vpack.c.b16 %v2753, %v2743
      %v4024 = vpack.c.b16 %v2754, %v2744
      %v4025 = vpack.c.b16 %v2755, %v2745
      %v4026 = vpack.c.b16 %v2756, %v2746
      %v4027 = vpack.c.b16 %v2757, %v2747
      %v4028 = vpack.c.b16 %v2768, %v2758
      %v4029 = vpack.c.b16 %v2769, %v2759
      %v4030 = vpack.c.b16 %v2770, %v2760
      %v4031 = vpack.c.b16 %v2771, %v2761
      %v4032 = vpack.c.b16 %v2772, %v2762
      %v4033 = vpack.c.b16 %v2773, %v2763
      %v4034 = vpack.c.b16 %v2774, %v2764
      %v4035 = vpack.c.b16 %v2775, %v2765
      %v4036 = vpack.c.b16 %v2776, %v2766
      %v4037 = vpack.c.b16 %v2777, %v2767
      %v4038 = vpack.c.b16 %v2788, %v2778
      %v4039 = vpack.c.b16 %v2789, %v2779
      %v4040 = vpack.c.b16 %v2790, %v2780
      %v4041 = vpack.c.b16 %v2791, %v2781
      %v4042 = vpack.c.b16 %v2792, %v2782
      %v4043 = vpack.c.b16 %v2793, %v2783
      %v4044 = vpack.c.b16 %v2794, %v2784
      %v4045 = vpack.c.b16 %v2795, %v2785
      %v4046 = vpack.c.b16 %v2796, %v2786
      %v4047 = vpack.c.b16 %v2797, %v2787
      %v4048 = vpack.c.b16 %v2808, %v2798
      %v4049 = vpack.c.b16 %v2809, %v2799
      %v4050 = vpack.c.b16 %v2810, %v2800
      %v4051 = vpack.c.b16 %v2811, %v2801
      %v4052 = vpack.c.b16 %v2812, %v2802
      %v4053 = vpack.c.b16 %v2813, %v2803
      %v4054 = vpack.c.b16 %v2814, %v2804
      %v4055 = vpack.c.b16 %v2815, %v2805
      %v4056 = vpack.c.b16 %v2816, %v2806
      %v4057 = vpack.c.b16 %v2817, %v2807
      %v4058 = vpack.c.b16 %v2828, %v2818
      %v4059 = vpack.c.b16 %v2829, %v2819
      %v4060 = vpack.c.b16 %v2830, %v2820
      %v4061 = vpack.c.b16 %v2831, %v2821
      %v4062 = vpack.c.b16 %v2832, %v2822
      %v4063 = vpack.c.b16 %v2833, %v2823
      %v4064 = vpack.c.b16 %v2834, %v2824
      %v4065 = vpack.c.b16 %v2835, %v2825
      %v4066 = vpack.c.b16 %v2836, %v2826
      %v4067 = vpack.c.b16 %v2837, %v2827
      %v4068 = vpack.c.b16 %v2848, %v2838
      %v4069 = vpack.c.b16 %v2849, %v2839
      %v4070 = vpack.c.b16 %v2850, %v2840
      %v4071 = vpack.c.b16 %v2851, %v2841
      %v4072 = vpack.c.b16 %v2852, %v2842
      %v4073 = vpack.c.b16 %v2853, %v2843
      %v4074 = vpack.c.b16 %v2854, %v2844
      %v4075 = vpack.c.b16 %v2855, %v2845
      %v4076 = vpack.c.b16 %v2856, %v2846
      %v4077 = vpack.c.b16 %v2857, %v2847
      %v4078 = vpack.c.b16 %v2868, %v2858
      %v4079 = vpack.c.b16 %v2869, %v2859
      %v4080 = vpack.c.b16 %v2870, %v2860
      %v4081 = vpack.c.b16 %v2871, %v2861
      %v4082 = vpack.c.b16 %v2872, %v2862
      %v4083 = vpack.c.b16 %v2873, %v2863
      %v4084 = vpack.c.b16 %v2874, %v2864
      %v4085 = vpack.c.b16 %v2875, %v2865
      %v4086 = vpack.c.b16 %v2876, %v2866
      %v4087 = vpack.c.b16 %v2877, %v2867
      %v4088 = vpack.c.b16 %v2888, %v2878
      %v4089 = vpack.c.b16 %v2889, %v2879
      %v4090 = vpack.c.b16 %v2890, %v2880
      %v4091 = vpack.c.b16 %v2891, %v2881
      %v4092 = vpack.c.b16 %v2892, %v2882
      %v4093 = vpack.c.b16 %v2893, %v2883
      %v4094 = vpack.c.b16 %v2894, %v2884
      %v4095 = vpack.c.b16 %v2895, %v2885
      %v4096 = vpack.c.b16 %v2896, %v2886
      %v4097 = vpack.c.b16 %v2897, %v2887
      %v4098 = vpack.c.b16 %v2908, %v2898
      %v4099 = vpack.c.b16 %v2909, %v2899
      %v4100 = vpack.c.b16 %v2910, %v2900
      %v4101 = vpack.c.b16 %v2911, %v2901
      %v4102 = vpack.c.b16 %v2912, %v2902
      %v4103 = vpack.c.b16 %v2913, %v2903
      %v4104 = vpack.c.b16 %v2914, %v2904
      %v4105 = vpack.c.b16 %v2915, %v2905
      %v4106 = vpack.c.b16 %v2916, %v2906
      %v4107 = vpack.c.b16 %v2917, %v2907
      %v4108 = vpack.c.b16 %v2928, %v2918
      %v4109 = vpack.c.b16 %v2929, %v2919
      %v4110 = vpack.c.b16 %v2930, %v2920
      %v4111 = vpack.c.b16 %v2931, %v2921
      %v4112 = vpack.c.b16 %v2932, %v2922
      %v4113 = vpack.c.b16 %v2933, %v2923
      %v4114 = vpack.c.b16 %v2934, %v2924
      %v4115 = vpack.c.b16 %v2935, %v2925
      %v4116 = vpack.c.b16 %v2936, %v2926
      %v4117 = vpack.c.b16 %v2937, %v2927
      %v4118 = vpack.c.b16 %v2948, %v2938
      %v4119 = vpack.c.b16 %v2949, %v2939
      %v4120 = vpack.c.b16 %v2950, %v2940
      %v4121 = vpack.c.b16 %v2951, %v2941
      %v4122 = vpack.c.b16 %v2952, %v2942
      %v4123 = vpack.c.b16 %v2953, %v2943
      %v4124 = vpack.c.b16 %v2954, %v2944
      %v4125 = vpack.c.b16 %v2955, %v2945
      %v4126 = vpack.c.b16 %v2956, %v2946
      %v4127 = vpack.c.b16 %v2957, %v2947
      %v4128 = vpack.c.b16 %v2968, %v2958
      %v4129 = vpack.c.b16 %v2969, %v2959
      %v4130 = vpack.c.b16 %v2970, %v2960
      %v4131 = vpack.c.b16 %v2971, %v2961
      %v4132 = vpack.c.b16 %v2972, %v2962
      %v4133 = vpack.c.b16 %v2973, %v2963
      %v4134 = vpack.c.b16 %v2974, %v2964
      %v4135 = vpack.c.b16 %v2975, %v2965
      %v4136 = vpack.c.b16 %v2976, %v2966
      %v4137 = vpack.c.b16 %v2977, %v2967
      %v4138 = vpack.c.b16 %v2988, %v2978
      %v4139 = vpack.c.b16 %v2989, %v2979
      %v4140 = vpack.c.b16 %v2990, %v2980
      %v4141 = vpack.c.b16 %v2991, %v2981
      %v4142 = vpack.c.b16 %v2992, %v2982
      %v4143 = vpack.c.b16 %v2993, %v2983
      %v4144 = vpack.c.b16 %v2994, %v2984
      %v4145 = vpack.c.b16 %v2995, %v2985
      %v4146 = vpack.c.b16 %v2996, %v2986
      %v4147 = vpack.c.b16 %v2997, %v2987
      %v4148 = vpack.c.b16 %v3008, %v2998
      %v4149 = vpack.c.b16 %v3009, %v2999
      %v4150 = vpack.c.b16 %v3010, %v3000
      %v4151 = vpack.c.b16 %v3011, %v3001
      %v4152 = vpack.c.b16 %v3012, %v3002
      %v4153 = vpack.c.b16 %v3013, %v3003
      %v4154 = vpack.c.b16 %v3014, %v3004
      %v4155 = vpack.c.b16 %v3015, %v3005
      %v4156 = vpack.c.b16 %v3016, %v3006
      %v4157 = vpack.c.b16 %v3017, %v3007
      %v4158 = vpack.c.b16 %v3028, %v3018
      %v4159 = vpack.c.b16 %v3029, %v3019
      %v4160 = vpack.c.b16 %v3030, %v3020
      %v4161 = vpack.c.b16 %v3031, %v3021
      %v4162 = vpack.c.b16 %v3032, %v3022
      %v4163 = vpack.c.b16 %v3033, %v3023
      %v4164 = vpack.c.b16 %v3034, %v3024
      %v4165 = vpack.c.b16 %v3035, %v3025
      %v4166 = vpack.c.b16 %v3036, %v3026
      %v4167 = vpack.c.b16 %v3037, %v3027
      %v4168 = vpack.c.b16 %v3048, %v3038
      %v4169 = vpack.c.b16 %v3049, %v3039
      %v4170 = vpack.c.b16 %v3050, %v3040
      %v4171 = vpack.c.b16 %v3051, %v3041
      %v4172 = vpack.c.b16 %v3052, %v3042
      %v4173 = vpack.c.b16 %v3053, %v3043
      %v4174 = vpack.c.b16 %v3054, %v3044
      %v4175 = vpack.c.b16 %v3055, %v3045
      %v4176 = vpack.c.b16 %v3056, %v3046
      %v4177 = vpack.c.b16 %v3057, %v3047
      %v4178 = vpack.c.b16 %v3068, %v3058
      %v4179 = vpack.c.b16 %v3069, %v3059
      %v4180 = vpack.c.b16 %v3070, %v3060
      %v4181 = vpack.c.b16 %v3071, %v3061
      %v4182 = vpack.c.b16 %v3072, %v3062
      %v4183 = vpack.c.b16 %v3073, %v3063
      %v4184 = vpack.c.b16 %v3074, %v3064
      %v4185 = vpack.c.b16 %v3075, %v3065
      %v4186 = vpack.c.b16 %v3076, %v3066
      %v4187 = vpack.c.b16 %v3077, %v3067
      %v4188 = vpack.c.b16 %v3088, %v3078
      %v4189 = vpack.c.b16 %v3089, %v3079
      %v4190 = vpack.c.b16 %v3090, %v3080
      %v4191 = vpack.c.b16 %v3091, %v3081
      %v4192 = vpack.c.b16 %v3092, %v3082
      %v4193 = vpack.c.b16 %v3093, %v3083
      %v4194 = vpack.c.b16 %v3094, %v3084
      %v4195 = vpack.c.b16 %v3095, %v3085
      %v4196 = vpack.c.b16 %v3096, %v3086
      %v4197 = vpack.c.b16 %v3097, %v3087
      %v4198 = vpack.c.b16 %v3108, %v3098
      %v4199 = vpack.c.b16 %v3109, %v3099
      %v4200 = vpack.c.b16 %v3110, %v3100
      %v4201 = vpack.c.b16 %v3111, %v3101
      %v4202 = vpack.c.b16 %v3112, %v3102
      %v4203 = vpack.c.b16 %v3113, %v3103
      %v4204 = vpack.c.b16 %v3114, %v3104
      %v4205 = vpack.c.b16 %v3115, %v3105
      %v4206 = vpack.c.b16 %v3116, %v3106
      %v4207 = vpack.c.b16 %v3117, %v3107
      %v4208 = vpack.c.b16 %v3128, %v3118
      %v4209 = vpack.c.b16 %v3129, %v3119
      %v4210 = vpack.c.b16 %v3130, %v3120
      %v4211 = vpack.c.b16 %v3131, %v3121
      %v4212 = vpack.c.b16 %v3132, %v3122
      %v4213 = vpack.c.b16 %v3133, %v3123
      %v4214 = vpack.c.b16 %v3134, %v3124
      %v4215 = vpack.c.b16 %v3135, %v3125
      %v4216 = vpack.c.b16 %v3136, %v3126
      %v4217 = vpack.c.b16 %v3137, %v3127
      %v4218 = vpack.c.b16 %v3148, %v3138
      %v4219 = vpack.c.b16 %v3149, %v3139
      %v4220 = vpack.c.b16 %v3150, %v3140
      %v4221 = vpack.c.b16 %v3151, %v3141
      %v4222 = vpack.c.b16 %v3152, %v3142
      %v4223 = vpack.c.b16 %v3153, %v3143
      %v4224 = vpack.c.b16 %v3154, %v3144
      %v4225 = vpack.c.b16 %v3155, %v3145
      %v4226 = vpack.c.b16 %v3156, %v3146
      %v4227 = vpack.c.b16 %v3157, %v3147
      %v4228 = vpack.c.b16 %v3168, %v3158
      %v4229 = vpack.c.b16 %v3169, %v3159
      %v4230 = vpack.c.b16 %v3170, %v3160
      %v4231 = vpack.c.b16 %v3171, %v3161
      %v4232 = vpack.c.b16 %v3172, %v3162
      %v4233 = vpack.c.b16 %v3173, %v3163
      %v4234 = vpack.c.b16 %v3174, %v3164
      %v4235 = vpack.c.b16 %v3175, %v3165
      %v4236 = vpack.c.b16 %v3176, %v3166
      %v4237 = vpack.c.b16 %v3177, %v3167
      %v4238 = vpack.c.b16 %v3188, %v3178
      %v4239 = vpack.c.b16 %v3189, %v3179
      %v4240 = vpack.c.b16 %v3190, %v3180
      %v4241 = vpack.c.b16 %v3191, %v3181
      %v4242 = vpack.c.b16 %v3192, %v3182
      %v4243 = vpack.c.b16 %v3193, %v3183
      %v4244 = vpack.c.b16 %v3194, %v3184
      %v4245 = vpack.c.b16 %v3195, %v3185
      %v4246 = vpack.c.b16 %v3196, %v3186
      %v4247 = vpack.c.b16 %v3197, %v3187
      %v4248 = vpack.c.b16 %v3208, %v3198
      %v4249 = vpack.c.b16 %v3209, %v3199
      %v4250 = vpack.c.b16 %v3210, %v3200
      %v4251 = vpack.c.b16 %v3211, %v3201
      %v4252 = vpack.c.b16 %v3212, %v3202
      %v4253 = vpack.c.b16 %v3213, %v3203
      %v4254 = vpack.c.b16 %v3214, %v3204
      %v4255 = vpack.c.b16 %v3215, %v3205
      %v4256 = vpack.c.b16 %v3216, %v3206
      %v4257 = vpack.c.b16 %v3217, %v3207
      %v4258 = vpack.c.b16 %v3228, %v3218
      %v4259 = vpack.c.b16 %v3229, %v3219
      %v4260 = vpack.c.b16 %v3230, %v3220
      %v4261 = vpack.c.b16 %v3231, %v3221
      %v4262 = vpack.c.b16 %v3232, %v3222
      %v4263 = vpack.c.b16 %v3233, %v3223
      %v4264 = vpack.c.b16 %v3234, %v3224
      %v4265 = vpack.c.b16 %v3235, %v3225
      %v4266 = vpack.c.b16 %v3236, %v3226
      %v4267 = vpack.c.b16 %v3237, %v3227
      %v4268 = vpack.c.b16 %v3248, %v3238
      %v4269 = vpack.c.b16 %v3249, %v3239
      %v4270 = vpack.c.b16 %v3250, %v3240
      %v4271 = vpack.c.b16 %v3251, %v3241
      %v4272 = vpack.c.b16 %v3252, %v3242
      %v4273 = vpack.c.b16 %v3253, %v3243
      %v4274 = vpack.c.b16 %v3254, %v3244
      %v4275 = vpack.c.b16 %v3255, %v3245
      %v4276 = vpack.c.b16 %v3256, %v3246
      %v4277 = vpack.c.b16 %v3257, %v3247
      %v4278 = vpack.c.b16 %v3268, %v3258
      %v4279 = vpack.c.b16 %v3269, %v3259
      %v4280 = vpack.c.b16 %v3270, %v3260
      %v4281 = vpack.c.b16 %v3271, %v3261
      %v4282 = vpack.c.b16 %v3272, %v3262
      %v4283 = vpack.c.b16 %v3273, %v3263
      %v4284 = vpack.c.b16 %v3274, %v3264
      %v4285 = vpack.c.b16 %v3275, %v3265
      %v4286 = vpack.c.b16 %v3276, %v3266
      %v4287 = vpack.c.b16 %v3277, %v3267
      %v4288 = vpack.c.b16 %v3288, %v3278
      %v4289 = vpack.c.b16 %v3289, %v3279
      %v4290 = vpack.c.b16 %v3290, %v3280
      %v4291 = vpack.c.b16 %v3291, %v3281
      %v4292 = vpack.c.b16 %v3292, %v3282
      %v4293 = vpack.c.b16 %v3293, %v3283
      %v4294 = vpack.c.b16 %v3294, %v3284
      %v4295 = vpack.c.b16 %v3295, %v3285
      %v4296 = vpack.c.b16 %v3296, %v3286
      %v4297 = vpack.c.b16 %v3297, %v3287
      %v4298 = vpack.c.b16 %v3308, %v3298
      %v4299 = vpack.c.b16 %v3309, %v3299
      %v4300 = vpack.c.b16 %v3310, %v3300
      %v4301 = vpack.c.b16 %v3311, %v3301
      %v4302 = vpack.c.b16 %v3312, %v3302
      %v4303 = vpack.c.b16 %v3313, %v3303
      %v4304 = vpack.c.b16 %v3314, %v3304
      %v4305 = vpack.c.b16 %v3315, %v3305
      %v4306 = vpack.c.b16 %v3316, %v3306
      %v4307 = vpack.c.b16 %v3317, %v3307
      %v4308 = vpack.c.b16 %v3328, %v3318
      %v4309 = vpack.c.b16 %v3329, %v3319
      %v4310 = vpack.c.b16 %v3330, %v3320
      %v4311 = vpack.c.b16 %v3331, %v3321
      %v4312 = vpack.c.b16 %v3332, %v3322
      %v4313 = vpack.c.b16 %v3333, %v3323
      %v4314 = vpack.c.b16 %v3334, %v3324
      %v4315 = vpack.c.b16 %v3335, %v3325
      %v4316 = vpack.c.b16 %v3336, %v3326
      %v4317 = vpack.c.b16 %v3337, %v3327
      %v4318 = vpack.c.b16 %v3348, %v3338
      %v4319 = vpack.c.b16 %v3349, %v3339
      %v4320 = vpack.c.b16 %v3350, %v3340
      %v4321 = vpack.c.b16 %v3351, %v3341
      %v4322 = vpack.c.b16 %v3352, %v3342
      %v4323 = vpack.c.b16 %v3353, %v3343
      %v4324 = vpack.c.b16 %v3354, %v3344
      %v4325 = vpack.c.b16 %v3355, %v3345
      %v4326 = vpack.c.b16 %v3356, %v3346
      %v4327 = vpack.c.b16 %v3357, %v3347
      %v4328 = vpack.c.b16 %v3368, %v3358
      %v4329 = vpack.c.b16 %v3369, %v3359
      %v4330 = vpack.c.b16 %v3370, %v3360
      %v4331 = vpack.c.b16 %v3371, %v3361
      %v4332 = vpack.c.b16 %v3372, %v3362
      %v4333 = vpack.c.b16 %v3373, %v3363
      %v4334 = vpack.c.b16 %v3374, %v3364
      %v4335 = vpack.c.b16 %v3375, %v3365
      %v4336 = vpack.c.b16 %v3376, %v3366
      %v4337 = vpack.c.b16 %v3377, %v3367
      %v4338 = vpack.c.b16 %v3388, %v3378
      %v4339 = vpack.c.b16 %v3389, %v3379
      %v4340 = vpack.c.b16 %v3390, %v3380
      %v4341 = vpack.c.b16 %v3391, %v3381
      %v4342 = vpack.c.b16 %v3392, %v3382
      %v4343 = vpack.c.b16 %v3393, %v3383
      %v4344 = vpack.c.b16 %v3394, %v3384
      %v4345 = vpack.c.b16 %v3395, %v3385
      %v4346 = vpack.c.b16 %v3396, %v3386
      %v4347 = vpack.c.b16 %v3397, %v3387
      %v4348 = vpack.c.b16 %v3408, %v3398
      %v4349 = vpack.c.b16 %v3409, %v3399
      %v4350 = vpack.c.b16 %v3410, %v3400
      %v4351 = vpack.c.b16 %v3411, %v3401
      %v4352 = vpack.c.b16 %v3412, %v3402
      %v4353 = vpack.c.b16 %v3413, %v3403
      %v4354 = vpack.c.b16 %v3414, %v3404
      %v4355 = vpack.c.b16 %v3415, %v3405
      %v4356 = vpack.c.b16 %v3416, %v3406
      %v4357 = vpack.c.b16 %v3417, %v3407
      %v4358 = vpack.c.b16 %v3428, %v3418
      %v4359 = vpack.c.b16 %v3429, %v3419
      %v4360 = vpack.c.b16 %v3430, %v3420
      %v4361 = vpack.c.b16 %v3431, %v3421
      %v4362 = vpack.c.b16 %v3432, %v3422
      %v4363 = vpack.c.b16 %v3433, %v3423
      %v4364 = vpack.c.b16 %v3434, %v3424
      %v4365 = vpack.c.b16 %v3435, %v3425
      %v4366 = vpack.c.b16 %v3436, %v3426
      %v4367 = vpack.c.b16 %v3437, %v3427
      %v4368 = vpack.c.b16 %v3448, %v3438
      %v4369 = vpack.c.b16 %v3449, %v3439
      %v4370 = vpack.c.b16 %v3450, %v3440
      %v4371 = vpack.c.b16 %v3451, %v3441
      %v4372 = vpack.c.b16 %v3452, %v3442
      %v4373 = vpack.c.b16 %v3453, %v3443
      %v4374 = vpack.c.b16 %v3454, %v3444
      %v4375 = vpack.c.b16 %v3455, %v3445
      %v4376 = vpack.c.b16 %v3456, %v3446
      %v4377 = vpack.c.b16 %v3457, %v3447
      %v4378 = vpack.c.b16 %v3468, %v3458
      %v4379 = vpack.c.b16 %v3469, %v3459
      %v4380 = vpack.c.b16 %v3470, %v3460
      %v4381 = vpack.c.b16 %v3471, %v3461
      %v4382 = vpack.c.b16 %v3472, %v3462
      %v4383 = vpack.c.b16 %v3473, %v3463
      %v4384 = vpack.c.b16 %v3474, %v3464
      %v4385 = vpack.c.b16 %v3475, %v3465
      %v4386 = vpack.c.b16 %v3476, %v3466
      %v4387 = vpack.c.b16 %v3477, %v3467
      %v4388 = vpack.c.b16 %v3488, %v3478
      %v4389 = vpack.c.b16 %v3489, %v3479
      %v4390 = vpack.c.b16 %v3490, %v3480
      %v4391 = vpack.c.b16 %v3491, %v3481
      %v4392 = vpack.c.b16 %v3492, %v3482
      %v4393 = vpack.c.b16 %v3493, %v3483
      %v4394 = vpack.c.b16 %v3494, %v3484
      %v4395 = vpack.c.b16 %v3495, %v3485
      %v4396 = vpack.c.b16 %v3496, %v3486
      %v4397 = vpack.c.b16 %v3497, %v3487
      %v4398 = vpack.c.b16 %v3508, %v3498
      %v4399 = vpack.c.b16 %v3509, %v3499
      %v4400 = vpack.c.b16 %v3510, %v3500
      %v4401 = vpack.c.b16 %v3511, %v3501
      %v4402 = vpack.c.b16 %v3512, %v3502
      %v4403 = vpack.c.b16 %v3513, %v3503
      %v4404 = vpack.c.b16 %v3514, %v3504
      %v4405 = vpack.c.b16 %v3515, %v3505
      %v4406 = vpack.c.b16 %v3516, %v3506
      %v4407 = vpack.c.b16 %v3517, %v3507
      %v4408 = vpack.c.b16 %v3528, %v3518
      %v4409 = vpack.c.b16 %v3529, %v3519
      %v4410 = vpack.c.b16 %v3530, %v3520
      %v4411 = vpack.c.b16 %v3531, %v3521
      %v4412 = vpack.c.b16 %v3532, %v3522
      %v4413 = vpack.c.b16 %v3533, %v3523
      %v4414 = vpack.c.b16 %v3534, %v3524
      %v4415 = vpack.c.b16 %v3535, %v3525
      %v4416 = vpack.c.b16 %v3536, %v3526
      %v4417 = vpack.c.b16 %v3537, %v3527
      %v4418 = vpack.c.b16 %v3548, %v3538
      %v4419 = vpack.c.b16 %v3549, %v3539
      %v4420 = vpack.c.b16 %v3550, %v3540
      %v4421 = vpack.c.b16 %v3551, %v3541
      %v4422 = vpack.c.b16 %v3552, %v3542
      %v4423 = vpack.c.b16 %v3553, %v3543
      %v4424 = vpack.c.b16 %v3554, %v3544
      %v4425 = vpack.c.b16 %v3555, %v3545
      %v4426 = vpack.c.b16 %v3556, %v3546
      %v4427 = vpack.c.b16 %v3557, %v3547
      %v4428 = vpack.c.b16 %v3568, %v3558
      %v4429 = vpack.c.b16 %v3569, %v3559
      %v4430 = vpack.c.b16 %v3570, %v3560
      %v4431 = vpack.c.b16 %v3571, %v3561
      %v4432 = vpack.c.b16 %v3572, %v3562
      %v4433 = vpack.c.b16 %v3573, %v3563
      %v4434 = vpack.c.b16 %v3574, %v3564
      %v4435 = vpack.c.b16 %v3575, %v3565
      %v4436 = vpack.c.b16 %v3576, %v3566
      %v4437 = vpack.c.b16 %v3577, %v3567
      %v4438 = vpack.c.b16 %v3588, %v3578
      %v4439 = vpack.c.b16 %v3589, %v3579
      %v4440 = vpack.c.b16 %v3590, %v3580
      %v4441 = vpack.c.b16 %v3591, %v3581
      %v4442 = vpack.c.b16 %v3592, %v3582
      %v4443 = vpack.c.b16 %v3593, %v3583
      %v4444 = vpack.c.b16 %v3594, %v3584
      %v4445 = vpack.c.b16 %v3595, %v3585
      %v4446 = vpack.c.b16 %v3596, %v3586
      %v4447 = vpack.c.b16 %v3597, %v3587
      %v4448 = vpack.c.b16 %v3608, %v3598
      %v4449 = vpack.c.b16 %v3609, %v3599
      %v4450 = vpack.c.b16 %v3610, %v3600
      %v4451 = vpack.c.b16 %v3611, %v3601
      %v4452 = vpack.c.b16 %v3612, %v3602
      %v4453 = vpack.c.b16 %v3613, %v3603
      %v4454 = vpack.c.b16 %v3614, %v3604
      %v4455 = vpack.c.b16 %v3615, %v3605
      %v4456 = vpack.c.b16 %v3616, %v3606
      %v4457 = vpack.c.b16 %v3617, %v3607
      %v4458 = vpack.c.b16 %v3628, %v3618
      %v4459 = vpack.c.b16 %v3629, %v3619
      %v4460 = vpack.c.b16 %v3630, %v3620
      %v4461 = vpack.c.b16 %v3631, %v3621
      %v4462 = vpack.c.b16 %v3632, %v3622
      %v4463 = vpack.c.b16 %v3633, %v3623
      %v4464 = vpack.c.b16 %v3634, %v3624
      %v4465 = vpack.c.b16 %v3635, %v3625
      %v4466 = vpack.c.b16 %v3636, %v3626
      %v4467 = vpack.c.b16 %v3637, %v3627
      %v4468 = vpack.c.b16 %v3648, %v3638
      %v4469 = vpack.c.b16 %v3649, %v3639
      %v4470 = vpack.c.b16 %v3650, %v3640
      %v4471 = vpack.c.b16 %v3651, %v3641
      %v4472 = vpack.c.b16 %v3652, %v3642
      %v4473 = vpack.c.b16 %v3653, %v3643
      %v4474 = vpack.c.b16 %v3654, %v3644
      %v4475 = vpack.c.b16 %v3655, %v3645
      %v4476 = vpack.c.b16 %v3656, %v3646
      %v4477 = vpack.c.b16 %v3657, %v3647
      %v4478 = vpack.c.b16 %v3668, %v3658
      %v4479 = vpack.c.b16 %v3669, %v3659
      %v4480 = vpack.c.b16 %v3670, %v3660
      %v4481 = vpack.c.b16 %v3671, %v3661
      %v4482 = vpack.c.b16 %v3672, %v3662
      %v4483 = vpack.c.b16 %v3673, %v3663
      %v4484 = vpack.c.b16 %v3674, %v3664
      %v4485 = vpack.c.b16 %v3675, %v3665
      %v4486 = vpack.c.b16 %v3676, %v3666
      %v4487 = vpack.c.b16 %v3677, %v3667
      %v4488 = vpack.c.b16 %v3688, %v3678
      %v4489 = vpack.c.b16 %v3689, %v3679
      %v4490 = vpack.c.b16 %v3690, %v3680
      %v4491 = vpack.c.b16 %v3691, %v3681
      %v4492 = vpack.c.b16 %v3692, %v3682
      %v4493 = vpack.c.b16 %v3693, %v3683
      %v4494 = vpack.c.b16 %v3694, %v3684
      %v4495 = vpack.c.b16 %v3695, %v3685
      %v4496 = vpack.c.b16 %v3696, %v3686
      %v4497 = vpack.c.b16 %v3697, %v3687
      %v4498 = vpack.c.b16 %v3708, %v3698
      %v4499 = vpack.c.b16 %v3709, %v3699
      %v4500 = vpack.c.b16 %v3710, %v3700
      %v4501 = vpack.c.b16 %v3711, %v3701
      %v4502 = vpack.c.b16 %v3712, %v3702
      %v4503 = vpack.c.b16 %v3713, %v3703
      %v4504 = vpack.c.b16 %v3714, %v3704
      %v4505 = vpack.c.b16 %v3715, %v3705
      %v4506 = vpack.c.b16 %v3716, %v3706
      %v4507 = vpack.c.b16 %v3717, %v3707
      %v4508 = vpack.c.b16 %v3728, %v3718
      %v4509 = vpack.c.b16 %v3729, %v3719
      %v4510 = vpack.c.b16 %v3730, %v3720
      %v4511 = vpack.c.b16 %v3731, %v3721
      %v4512 = vpack.c.b16 %v3732, %v3722
      %v4513 = vpack.c.b16 %v3733, %v3723
      %v4514 = vpack.c.b16 %v3734, %v3724
      %v4515 = vpack.c.b16 %v3735, %v3725
      %v4516 = vpack.c.b16 %v3736, %v3726
      %v4517 = vpack.c.b16 %v3737, %v3727
      %v4518 = vpack.c.b16 %v3748, %v3738
      %v4519 = vpack.c.b16 %v3749, %v3739
      %v4520 = vpack.c.b16 %v3750, %v3740
      %v4521 = vpack.c.b16 %v3751, %v3741
      %v4522 = vpack.c.b16 %v3752, %v3742
      %v4523 = vpack.c.b16 %v3753, %v3743
      %v4524 = vpack.c.b16 %v3754, %v3744
      %v4525 = vpack.c.b16 %v3755, %v3745
      %v4526 = vpack.c.b16 %v3756, %v3746
      %v4527 = vpack.c.b16 %v3757, %v3747
      %v4528 = vpack.c.b16 %v3768, %v3758
      %v4529 = vpack.c.b16 %v3769, %v3759
      %v4530 = vpack.c.b16 %v3770, %v3760
      %v4531 = vpack.c.b16 %v3771, %v3761
      %v4532 = vpack.c.b16 %v3772, %v3762
      %v4533 = vpack.c.b16 %v3773, %v3763
      %v4534 = vpack.c.b16 %v3774, %v3764
      %v4535 = vpack.c.b16 %v3775, %v3765
      %v4536 = vpack.c.b16 %v3776, %v3766
      %v4537 = vpack.c.b16 %v3777, %v3767
      %v4538 = vpack.c.b16 %v3788, %v3778
      %v4539 = vpack.c.b16 %v3789, %v3779
      %v4540 = vpack.c.b16 %v3790, %v3780
      %v4541 = vpack.c.b16 %v3791, %v3781
      %v4542 = vpack.c.b16 %v3792, %v3782
      %v4543 = vpack.c.b16 %v3793, %v3783
      %v4544 = vpack.c.b16 %v3794, %v3784
      %v4545 = vpack.c.b16 %v3795, %v3785
      %v4546 = vpack.c.b16 %v3796, %v3786
      %v4547 = vpack.c.b16 %v3797, %v3787
      %v4548 = vpack.c.b16 %v3808, %v3798
      %v4549 = vpack.c.b16 %v3809, %v3799
      %v4550 = vpack.c.b16 %v3810, %v3800
      %v4551 = vpack.c.b16 %v3811, %v3801
      %v4552 = vpack.c.b16 %v3812, %v3802
      %v4553 = vpack.c.b16 %v3813, %v3803
      %v4554 = vpack.c.b16 %v3814, %v3804
      %v4555 = vpack.c.b16 %v3815, %v3805
      %v4556 = vpack.c.b16 %v3816, %v3806
      %v4557 = vpack.c.b16 %v3817, %v3807
      %v4558 = vpack.c.b16 %v3828, %v3818
      %v4559 = vpack.c.b16 %v3829, %v3819
      %v4560 = vpack.c.b16 %v3830, %v3820
      %v4561 = vpack.c.b16 %v3831, %v3821
      %v4562 = vpack.c.b16 %v3832, %v3822
      %v4563 = vpack.c.b16 %v3833, %v3823
      %v4564 = vpack.c.b16 %v3834, %v3824
      %v4565 = vpack.c.b16 %v3835, %v3825
      %v4566 = vpack.c.b16 %v3836, %v3826
      %v4567 = vpack.c.b16 %v3837, %v3827
      %v4568 = vpack.c.b16 %v3848, %v3838
      %v4569 = vpack.c.b16 %v3849, %v3839
      %v4570 = vpack.c.b16 %v3850, %v3840
      %v4571 = vpack.c.b16 %v3851, %v3841
      %v4572 = vpack.c.b16 %v3852, %v3842
      %v4573 = vpack.c.b16 %v3853, %v3843
      %v4574 = vpack.c.b16 %v3854, %v3844
      %v4575 = vpack.c.b16 %v3855, %v3845
      %v4576 = vpack.c.b16 %v3856, %v3846
      %v4577 = vpack.c.b16 %v3857, %v3847
      %v4578 = vpack.c.b16 %v3868, %v3858
      %v4579 = vpack.c.b16 %v3869, %v3859
      %v4580 = vpack.c.b16 %v3870, %v3860
      %v4581 = vpack.c.b16 %v3871, %v3861
      %v4582 = vpack.c.b16 %v3872, %v3862
      %v4583 = vpack.c.b16 %v3873, %v3863
      %v4584 = vpack.c.b16 %v3874, %v3864
      %v4585 = vpack.c.b16 %v3875, %v3865
      %v4586 = vpack.c.b16 %v3876, %v3866
      %v4587 = vpack.c.b16 %v3877, %v3867
      %v4588 = vpack.c.b16 %v3888, %v3878
      %v4589 = vpack.c.b16 %v3889, %v3879
      %v4590 = vpack.c.b16 %v3890, %v3880
      %v4591 = vpack.c.b16 %v3891, %v3881
      %v4592 = vpack.c.b16 %v3892, %v3882
      %v4593 = vpack.c.b16 %v3893, %v3883
      %v4594 = vpack.c.b16 %v3894, %v3884
      %v4595 = vpack.c.b16 %v3895, %v3885
      %v4596 = vpack.c.b16 %v3896, %v3886
      %v4597 = vpack.c.b16 %v3897, %v3887
      %v4598 = vpack.c.b16 %v3908, %v3898
      %v4599 = vpack.c.b16 %v3909, %v3899
      %v4600 = vpack.c.b16 %v3910, %v3900
      %v4601 = vpack.c.b16 %v3911, %v3901
      %v4602 = vpack.c.b16 %v3912, %v3902
      %v4603 = vpack.c.b16 %v3913, %v3903
      %v4604 = vpack.c.b16 %v3914, %v3904
      %v4605 = vpack.c.b16 %v3915, %v3905
      %v4606 = vpack.c.b16 %v3916, %v3906
      %v4607 = vpack.c.b16 %v3917, %v3907
      %v4608 = vpack.c.b16 %v3928, %v3918
      %v4609 = vpack.c.b16 %v3929, %v3919
      %v4610 = vpack.c.b16 %v3930, %v3920
      %v4611 = vpack.c.b16 %v3931, %v3921
      %v4612 = vpack.c.b16 %v3932, %v3922
      %v4613 = vpack.c.b16 %v3933, %v3923
      %v4614 = vpack.c.b16 %v3934, %v3924
      %v4615 = vpack.c.b16 %v3935, %v3925
      %v4616 = vpack.c.b16 %v3936, %v3926
      %v4617 = vpack.c.b16 %v3937, %v3927
      %v4618 = vpack.c.b16 %v3948, %v3938
      %v4619 = vpack.c.b16 %v3949, %v3939
      %v4620 = vpack.c.b16 %v3950, %v3940
      %v4621 = vpack.c.b16 %v3951, %v3941
      %v4622 = vpack.c.b16 %v3952, %v3942
      %v4623 = vpack.c.b16 %v3953, %v3943
      %v4624 = vpack.c.b16 %v3954, %v3944
      %v4625 = vpack.c.b16 %v3955, %v3945
      %v4626 = vpack.c.b16 %v3956, %v3946
      %v4627 = vpack.c.b16 %v3957, %v3947
      %v4628 = vpack.c.b16 %v3968, %v3958
      %v4629 = vpack.c.b16 %v3969, %v3959
      %v4630 = vpack.c.b16 %v3970, %v3960
      %v4631 = vpack.c.b16 %v3971, %v3961
      %v4632 = vpack.c.b16 %v3972, %v3962
      %v4633 = vpack.c.b16 %v3973, %v3963
      %v4634 = vpack.c.b16 %v3974, %v3964
      %v4635 = vpack.c.b16 %v3975, %v3965
      %v4636 = vpack.c.b16 %v3976, %v3966
      %v4637 = vpack.c.b16 %v3977, %v3967
      %v4638 = vpack.c.b16 %v3988, %v3978
      %v4639 = vpack.c.b16 %v3989, %v3979
      %v4640 = vpack.c.b16 %v3990, %v3980
      %v4641 = vpack.c.b16 %v3991, %v3981
      %v4642 = vpack.c.b16 %v3992, %v3982
      %v4643 = vpack.c.b16 %v3993, %v3983
      %v4644 = vpack.c.b16 %v3994, %v3984
      %v4645 = vpack.c.b16 %v3995, %v3985
      %v4646 = vpack.c.b16 %v3996, %v3986
      %v4647 = vpack.c.b16 %v3997, %v3987
      %v4648 = vpack.c.b16 %v4008, %v3998
      %v4649 = vpack.c.b16 %v4009, %v3999
      %v4650 = vpack.c.b16 %v4010, %v4000
      %v4651 = vpack.c.b16 %v4011, %v4001
      %v4652 = vpack.c.b16 %v4012, %v4002
      %v4653 = vpack.c.b16 %v4013, %v4003
      %v4654 = vpack.c.b16 %v4014, %v4004
      %v4655 = vpack.c.b16 %v4015, %v4005
      %v4656 = vpack.c.b16 %v4016, %v4006
      %v4657 = vpack.c.b16 %v4017, %v4007
      %5298 = vmatprep.subr.bf16.mxu0 %v531
      %5299 = vmatpush1.bf16.msra.mxu0 %v530
      %5300 = vmatprep.subr.bf16.mxu0 %v533
      %5301 = vmatpush1.bf16.msra.mxu0 %v532
      %5302 = vmatprep.subr.bf16.mxu0 %v535
      %5303 = vmatpush1.bf16.msra.mxu0 %v534
      %5304 = vmatprep.subr.bf16.mxu0 %v537
      %5305 = vmatpush1.bf16.msra.mxu0 %v536
      %5306 = vmatprep.subr.bf16.mxu0 %v539
      %5307 = vmatpush1.bf16.msra.mxu0 %v538
      %5308 = vmatprep.subr.bf16.mxu0 %v541
      %5309 = vmatpush1.bf16.msra.mxu0 %v540
      %5310 = vmatprep.subr.bf16.mxu0 %v543
      %5311 = vmatpush1.bf16.msra.mxu0 %v542
      %5312 = vmatprep.subr.bf16.mxu0 %v545
      %5313 = vmatpush1.bf16.msra.mxu0 %v544
      %5314 = vmatprep.subr.bf16.mxu0 %v547
      %5315 = vmatpush1.bf16.msra.mxu0 %v546
      %5316 = vmatprep.subr.bf16.mxu0 %v549
      %5317 = vmatpush1.bf16.msra.mxu0 %v548
      %5318 = vmatprep.subr.bf16.mxu0 %v551
      %5319 = vmatpush1.bf16.msra.mxu0 %v550
      %5320 = vmatprep.subr.bf16.mxu0 %v553
      %5321 = vmatpush1.bf16.msra.mxu0 %v552
      %5322 = vmatprep.subr.bf16.mxu0 %v555
      %5323 = vmatpush1.bf16.msra.mxu0 %v554
      %5324 = vmatprep.subr.bf16.mxu0 %v557
      %5325 = vmatpush1.bf16.msra.mxu0 %v556
      %5326 = vmatprep.subr.bf16.mxu0 %v559
      %5327 = vmatpush1.bf16.msra.mxu0 %v558
      %5328 = vmatprep.subr.bf16.mxu0 %v561
      %5329 = vmatpush1.bf16.msra.mxu0 %v560
      %5330 = vmatprep.mubr.bf16.mxu0 %v4019
      %5331 = vmatmul.mubr.bf16.gmra.mrb[0].mxu0 %v4018
      %v5332 = vpop.f32.mrb[0].mxu0
      %v5333 = vadd.f32 %v1461, %v5332
      %v5334 = vpop.f32.mrb[0].mxu0
      %v5335 = vadd.f32 %v1461, %v5334
      %v5336 = vpop.f32.mrb[0].mxu0
      %v5337 = vadd.f32 %v1466, %v5336
      %v5338 = vpop.f32.mrb[0].mxu0
      %v5339 = vadd.f32 %v1466, %v5338
      %5340 = vmatprep.mubr.bf16.mxu0 %v4029
      %5341 = vmatmul.mubr.bf16.gmra.mrb[0].mxu0 %v4028
      %v5342 = vpop.f32.mrb[0].mxu0
      %v5343 = vadd.f32 %v1471, %v5342
      %v5344 = vpop.f32.mrb[0].mxu0
      %v5345 = vadd.f32 %v1471, %v5344
      %v5346 = vpop.f32.mrb[0].mxu0
      %v5347 = vadd.f32 %v1476, %v5346
      %v5348 = vpop.f32.mrb[0].mxu0
      %v5349 = vadd.f32 %v1476, %v5348
      %5350 = vmatprep.mubr.bf16.mxu0 %v4039
      %5351 = vmatmul.mubr.bf16.gmra.mrb[0].mxu0 %v4038
      %v5352 = vpop.f32.mrb[0].mxu0
      %v5353 = vadd.f32 %v1481, %v5352
      %v5354 = vpop.f32.mrb[0].mxu0
      %v5355 = vadd.f32 %v1481, %v5354
      %v5356 = vpop.f32.mrb[0].mxu0
      %v5357 = vadd.f32 %v1486, %v5356
      %v5358 = vpop.f32.mrb[0].mxu0
      %v5359 = vadd.f32 %v1486, %v5358
      %5360 = vmatprep.mubr.bf16.mxu0 %v4049
      %5361 = vmatmul.mubr.bf16.gmra.mrb[0].mxu0 %v4048
      %v5362 = vpop.f32.mrb[0].mxu0
      %v5363 = vadd.f32 %v1491, %v5362
      %v5364 = vpop.f32.mrb[0].mxu0
      %v5365 = vadd.f32 %v1491, %v5364
      %v5366 = vpop.f32.mrb[0].mxu0
      %v5367 = vadd.f32 %v1496, %v5366
      %v5368 = vpop.f32.mrb[0].mxu0
      %v5369 = vadd.f32 %v1496, %v5368
      %5370 = vmatprep.mubr.bf16.mxu0 %v4059
      %5371 = vmatmul.mubr.bf16.gmra.mrb[0].mxu0 %v4058
      %v5372 = vpop.f32.mrb[0].mxu0
      %v5373 = vadd.f32 %v1501, %v5372
      %v5374 = vpop.f32.mrb[0].mxu0
      %v5375 = vadd.f32 %v1501, %v5374
      %v5376 = vpop.f32.mrb[0].mxu0
      %v5377 = vadd.f32 %v1506, %v5376
      %v5378 = vpop.f32.mrb[0].mxu0
      %v5379 = vadd.f32 %v1506, %v5378
      %5380 = vmatprep.mubr.bf16.mxu0 %v4069
      %5381 = vmatmul.mubr.bf16.gmra.mrb[0].mxu0 %v4068
      %v5382 = vpop.f32.mrb[0].mxu0
      %v5383 = vadd.f32 %v1511, %v5382
      %v5384 = vpop.f32.mrb[0].mxu0
      %v5385 = vadd.f32 %v1511, %v5384
      %v5386 = vpop.f32.mrb[0].mxu0
      %v5387 = vadd.f32 %v1516, %v5386
      %v5388 = vpop.f32.mrb[0].mxu0
      %v5389 = vadd.f32 %v1516, %v5388
      %5390 = vmatprep.mubr.bf16.mxu0 %v4079
      %5391 = vmatmul.mubr.bf16.gmra.mrb[0].mxu0 %v4078
      %v5392 = vpop.f32.mrb[0].mxu0
      %v5393 = vadd.f32 %v1521, %v5392
      %v5394 = vpop.f32.mrb[0].mxu0
      %v5395 = vadd.f32 %v1521, %v5394
      %v5396 = vpop.f32.mrb[0].mxu0
      %v5397 = vadd.f32 %v1526, %v5396
      %v5398 = vpop.f32.mrb[0].mxu0
      %v5399 = vadd.f32 %v1526, %v5398
      %5400 = vmatprep.mubr.bf16.mxu0 %v4089
      %5401 = vmatmul.mubr.bf16.gmra.mrb[0].mxu0 %v4088
      %v5402 = vpop.f32.mrb[0].mxu0
      %v5403 = vadd.f32 %v1531, %v5402
      %v5404 = vpop.f32.mrb[0].mxu0
      %v5405 = vadd.f32 %v1531, %v5404
      %v5406 = vpop.f32.mrb[0].mxu0
      %v5407 = vadd.f32 %v1536, %v5406
      %v5408 = vpop.f32.mrb[0].mxu0
      %v5409 = vadd.f32 %v1536, %v5408
      %5410 = vmatprep.mubr.bf16.mxu0 %v4099
      %5411 = vmatmul.mubr.bf16.gmra.mrb[0].mxu0 %v4098
      %v5412 = vpop.f32.mrb[0].mxu0
      %v5413 = vadd.f32 %v1541, %v5412
      %v5414 = vpop.f32.mrb[0].mxu0
      %v5415 = vadd.f32 %v1541, %v5414
      %v5416 = vpop.f32.mrb[0].mxu0
      %v5417 = vadd.f32 %v1546, %v5416
      %v5418 = vpop.f32.mrb[0].mxu0
      %v5419 = vadd.f32 %v1546, %v5418
      %5420 = vmatprep.mubr.bf16.mxu0 %v4109
      %5421 = vmatmul.mubr.bf16.gmra.mrb[0].mxu0 %v4108
      %v5422 = vpop.f32.mrb[0].mxu0
      %v5423 = vadd.f32 %v1551, %v5422
      %v5424 = vpop.f32.mrb[0].mxu0
      %v5425 = vadd.f32 %v1551, %v5424
      %v5426 = vpop.f32.mrb[0].mxu0
      %v5427 = vadd.f32 %v1556, %v5426
      %v5428 = vpop.f32.mrb[0].mxu0
      %v5429 = vadd.f32 %v1556, %v5428
      %5430 = vmatprep.mubr.bf16.mxu0 %v4119
      %5431 = vmatmul.mubr.bf16.gmra.mrb[0].mxu0 %v4118
      %v5432 = vpop.f32.mrb[0].mxu0
      %v5433 = vadd.f32 %v1561, %v5432
      %v5434 = vpop.f32.mrb[0].mxu0
      %v5435 = vadd.f32 %v1561, %v5434
      %v5436 = vpop.f32.mrb[0].mxu0
      %v5437 = vadd.f32 %v1566, %v5436
      %v5438 = vpop.f32.mrb[0].mxu0
      %v5439 = vadd.f32 %v1566, %v5438
      %5440 = vmatprep.mubr.bf16.mxu0 %v4129
      %5441 = vmatmul.mubr.bf16.gmra.mrb[0].mxu0 %v4128
      %v5442 = vpop.f32.mrb[0].mxu0
      %v5443 = vadd.f32 %v1571, %v5442
      %v5444 = vpop.f32.mrb[0].mxu0
      %v5445 = vadd.f32 %v1571, %v5444
      %v5446 = vpop.f32.mrb[0].mxu0
      %v5447 = vadd.f32 %v1576, %v5446
      %v5448 = vpop.f32.mrb[0].mxu0
      %v5449 = vadd.f32 %v1576, %v5448
      %5450 = vmatprep.mubr.bf16.mxu0 %v4139
      %5451 = vmatmul.mubr.bf16.gmra.mrb[0].mxu0 %v4138
      %v5452 = vpop.f32.mrb[0].mxu0
      %v5453 = vadd.f32 %v1581, %v5452
      %v5454 = vpop.f32.mrb[0].mxu0
      %v5455 = vadd.f32 %v1581, %v5454
      %v5456 = vpop.f32.mrb[0].mxu0
      %v5457 = vadd.f32 %v1586, %v5456
      %v5458 = vpop.f32.mrb[0].mxu0
      %v5459 = vadd.f32 %v1586, %v5458
      %5460 = vmatprep.mubr.bf16.mxu0 %v4149
      %5461 = vmatmul.mubr.bf16.gmra.mrb[0].mxu0 %v4148
      %v5462 = vpop.f32.mrb[0].mxu0
      %v5463 = vadd.f32 %v1591, %v5462
      %v5464 = vpop.f32.mrb[0].mxu0
      %v5465 = vadd.f32 %v1591, %v5464
      %v5466 = vpop.f32.mrb[0].mxu0
      %v5467 = vadd.f32 %v1596, %v5466
      %v5468 = vpop.f32.mrb[0].mxu0
      %v5469 = vadd.f32 %v1596, %v5468
      %5470 = vmatprep.mubr.bf16.mxu0 %v4159
      %5471 = vmatmul.mubr.bf16.gmra.mrb[0].mxu0 %v4158
      %v5472 = vpop.f32.mrb[0].mxu0
      %v5473 = vadd.f32 %v1601, %v5472
      %v5474 = vpop.f32.mrb[0].mxu0
      %v5475 = vadd.f32 %v1601, %v5474
      %v5476 = vpop.f32.mrb[0].mxu0
      %v5477 = vadd.f32 %v1606, %v5476
      %v5478 = vpop.f32.mrb[0].mxu0
      %v5479 = vadd.f32 %v1606, %v5478
      %5480 = vmatprep.mubr.bf16.mxu0 %v4169
      %5481 = vmatmul.mubr.bf16.gmra.mrb[0].mxu0 %v4168
      %v5482 = vpop.f32.mrb[0].mxu0
      %v5483 = vadd.f32 %v1611, %v5482
      %v5484 = vpop.f32.mrb[0].mxu0
      %v5485 = vadd.f32 %v1611, %v5484
      %v5486 = vpop.f32.mrb[0].mxu0
      %v5487 = vadd.f32 %v1616, %v5486
      %v5488 = vpop.f32.mrb[0].mxu0
      %v5489 = vadd.f32 %v1616, %v5488
      %5490 = vmatprep.mubr.bf16.mxu0 %v4179
      %5491 = vmatmul.mubr.bf16.gmra.mrb[0].mxu0 %v4178
      %v5492 = vpop.f32.mrb[0].mxu0
      %v5493 = vadd.f32 %v1621, %v5492
      %v5494 = vpop.f32.mrb[0].mxu0
      %v5495 = vadd.f32 %v1621, %v5494
      %v5496 = vpop.f32.mrb[0].mxu0
      %v5497 = vadd.f32 %v1626, %v5496
      %v5498 = vpop.f32.mrb[0].mxu0
      %v5499 = vadd.f32 %v1626, %v5498
      %5500 = vmatprep.mubr.bf16.mxu0 %v4189
      %5501 = vmatmul.mubr.bf16.gmra.mrb[0].mxu0 %v4188
      %v5502 = vpop.f32.mrb[0].mxu0
      %v5503 = vadd.f32 %v1631, %v5502
      %v5504 = vpop.f32.mrb[0].mxu0
      %v5505 = vadd.f32 %v1631, %v5504
      %v5506 = vpop.f32.mrb[0].mxu0
      %v5507 = vadd.f32 %v1636, %v5506
      %v5508 = vpop.f32.mrb[0].mxu0
      %v5509 = vadd.f32 %v1636, %v5508
      %5510 = vmatprep.mubr.bf16.mxu0 %v4199
      %5511 = vmatmul.mubr.bf16.gmra.mrb[0].mxu0 %v4198
      %v5512 = vpop.f32.mrb[0].mxu0
      %v5513 = vadd.f32 %v1641, %v5512
      %v5514 = vpop.f32.mrb[0].mxu0
      %v5515 = vadd.f32 %v1641, %v5514
      %v5516 = vpop.f32.mrb[0].mxu0
      %v5517 = vadd.f32 %v1646, %v5516
      %v5518 = vpop.f32.mrb[0].mxu0
      %v5519 = vadd.f32 %v1646, %v5518
      %5520 = vmatprep.mubr.bf16.mxu0 %v4209
      %5521 = vmatmul.mubr.bf16.gmra.mrb[0].mxu0 %v4208
      %v5522 = vpop.f32.mrb[0].mxu0
      %v5523 = vadd.f32 %v1651, %v5522
      %v5524 = vpop.f32.mrb[0].mxu0
      %v5525 = vadd.f32 %v1651, %v5524
      %v5526 = vpop.f32.mrb[0].mxu0
      %v5527 = vadd.f32 %v1656, %v5526
      %v5528 = vpop.f32.mrb[0].mxu0
      %v5529 = vadd.f32 %v1656, %v5528
      %5530 = vmatprep.mubr.bf16.mxu0 %v4219
      %5531 = vmatmul.mubr.bf16.gmra.mrb[0].mxu0 %v4218
      %v5532 = vpop.f32.mrb[0].mxu0
      %v5533 = vadd.f32 %v1661, %v5532
      %v5534 = vpop.f32.mrb[0].mxu0
      %v5535 = vadd.f32 %v1661, %v5534
      %v5536 = vpop.f32.mrb[0].mxu0
      %v5537 = vadd.f32 %v1666, %v5536
      %v5538 = vpop.f32.mrb[0].mxu0
      %v5539 = vadd.f32 %v1666, %v5538
      %5540 = vmatprep.mubr.bf16.mxu0 %v4229
      %5541 = vmatmul.mubr.bf16.gmra.mrb[0].mxu0 %v4228
      %v5542 = vpop.f32.mrb[0].mxu0
      %v5543 = vadd.f32 %v1671, %v5542
      %v5544 = vpop.f32.mrb[0].mxu0
      %v5545 = vadd.f32 %v1671, %v5544
      %v5546 = vpop.f32.mrb[0].mxu0
      %v5547 = vadd.f32 %v1676, %v5546
      %v5548 = vpop.f32.mrb[0].mxu0
      %v5549 = vadd.f32 %v1676, %v5548
      %5550 = vmatprep.mubr.bf16.mxu0 %v4239
      %5551 = vmatmul.mubr.bf16.gmra.mrb[0].mxu0 %v4238
      %v5552 = vpop.f32.mrb[0].mxu0
      %v5553 = vadd.f32 %v1681, %v5552
      %v5554 = vpop.f32.mrb[0].mxu0
      %v5555 = vadd.f32 %v1681, %v5554
      %v5556 = vpop.f32.mrb[0].mxu0
      %v5557 = vadd.f32 %v1686, %v5556
      %v5558 = vpop.f32.mrb[0].mxu0
      %v5559 = vadd.f32 %v1686, %v5558
      %5560 = vmatprep.mubr.bf16.mxu0 %v4249
      %5561 = vmatmul.mubr.bf16.gmra.mrb[0].mxu0 %v4248
      %v5562 = vpop.f32.mrb[0].mxu0
      %v5563 = vadd.f32 %v1691, %v5562
      %v5564 = vpop.f32.mrb[0].mxu0
      %v5565 = vadd.f32 %v1691, %v5564
      %v5566 = vpop.f32.mrb[0].mxu0
      %v5567 = vadd.f32 %v1696, %v5566
      %v5568 = vpop.f32.mrb[0].mxu0
      %v5569 = vadd.f32 %v1696, %v5568
      %5570 = vmatprep.mubr.bf16.mxu0 %v4259
      %5571 = vmatmul.mubr.bf16.gmra.mrb[0].mxu0 %v4258
      %v5572 = vpop.f32.mrb[0].mxu0
      %v5573 = vadd.f32 %v1701, %v5572
      %v5574 = vpop.f32.mrb[0].mxu0
      %v5575 = vadd.f32 %v1701, %v5574
      %v5576 = vpop.f32.mrb[0].mxu0
      %v5577 = vadd.f32 %v1706, %v5576
      %v5578 = vpop.f32.mrb[0].mxu0
      %v5579 = vadd.f32 %v1706, %v5578
      %5580 = vmatprep.mubr.bf16.mxu0 %v4269
      %5581 = vmatmul.mubr.bf16.gmra.mrb[0].mxu0 %v4268
      %v5582 = vpop.f32.mrb[0].mxu0
      %v5583 = vadd.f32 %v1711, %v5582
      %v5584 = vpop.f32.mrb[0].mxu0
      %v5585 = vadd.f32 %v1711, %v5584
      %v5586 = vpop.f32.mrb[0].mxu0
      %v5587 = vadd.f32 %v1716, %v5586
      %v5588 = vpop.f32.mrb[0].mxu0
      %v5589 = vadd.f32 %v1716, %v5588
      %5590 = vmatprep.mubr.bf16.mxu0 %v4279
      %5591 = vmatmul.mubr.bf16.gmra.mrb[0].mxu0 %v4278
      %v5592 = vpop.f32.mrb[0].mxu0
      %v5593 = vadd.f32 %v1721, %v5592
      %v5594 = vpop.f32.mrb[0].mxu0
      %v5595 = vadd.f32 %v1721, %v5594
      %v5596 = vpop.f32.mrb[0].mxu0
      %v5597 = vadd.f32 %v1726, %v5596
      %v5598 = vpop.f32.mrb[0].mxu0
      %v5599 = vadd.f32 %v1726, %v5598
      %5600 = vmatprep.mubr.bf16.mxu0 %v4289
      %5601 = vmatmul.mubr.bf16.gmra.mrb[0].mxu0 %v4288
      %v5602 = vpop.f32.mrb[0].mxu0
      %v5603 = vadd.f32 %v1731, %v5602
      %v5604 = vpop.f32.mrb[0].mxu0
      %v5605 = vadd.f32 %v1731, %v5604
      %v5606 = vpop.f32.mrb[0].mxu0
      %v5607 = vadd.f32 %v1736, %v5606
      %v5608 = vpop.f32.mrb[0].mxu0
      %v5609 = vadd.f32 %v1736, %v5608
      %5610 = vmatprep.mubr.bf16.mxu0 %v4299
      %5611 = vmatmul.mubr.bf16.gmra.mrb[0].mxu0 %v4298
      %v5612 = vpop.f32.mrb[0].mxu0
      %v5613 = vadd.f32 %v1741, %v5612
      %v5614 = vpop.f32.mrb[0].mxu0
      %v5615 = vadd.f32 %v1741, %v5614
      %v5616 = vpop.f32.mrb[0].mxu0
      %v5617 = vadd.f32 %v1746, %v5616
      %v5618 = vpop.f32.mrb[0].mxu0
      %v5619 = vadd.f32 %v1746, %v5618
      %5620 = vmatprep.mubr.bf16.mxu0 %v4309
      %5621 = vmatmul.mubr.bf16.gmra.mrb[0].mxu0 %v4308
      %v5622 = vpop.f32.mrb[0].mxu0
      %v5623 = vadd.f32 %v1751, %v5622
      %v5624 = vpop.f32.mrb[0].mxu0
      %v5625 = vadd.f32 %v1751, %v5624
      %v5626 = vpop.f32.mrb[0].mxu0
      %v5627 = vadd.f32 %v1756, %v5626
      %v5628 = vpop.f32.mrb[0].mxu0
      %v5629 = vadd.f32 %v1756, %v5628
      %5630 = vmatprep.mubr.bf16.mxu0 %v4319
      %5631 = vmatmul.mubr.bf16.gmra.mrb[0].mxu0 %v4318
      %v5632 = vpop.f32.mrb[0].mxu0
      %v5633 = vadd.f32 %v1761, %v5632
      %v5634 = vpop.f32.mrb[0].mxu0
      %v5635 = vadd.f32 %v1761, %v5634
      %v5636 = vpop.f32.mrb[0].mxu0
      %v5637 = vadd.f32 %v1766, %v5636
      %v5638 = vpop.f32.mrb[0].mxu0
      %v5639 = vadd.f32 %v1766, %v5638
      %5640 = vmatprep.mubr.bf16.mxu0 %v4329
      %5641 = vmatmul.mubr.bf16.gmra.mrb[0].mxu0 %v4328
      %v5642 = vpop.f32.mrb[0].mxu0
      %v5643 = vadd.f32 %v1771, %v5642
      %v5644 = vpop.f32.mrb[0].mxu0
      %v5645 = vadd.f32 %v1771, %v5644
      %v5646 = vpop.f32.mrb[0].mxu0
      %v5647 = vadd.f32 %v1776, %v5646
      %v5648 = vpop.f32.mrb[0].mxu0
      %v5649 = vadd.f32 %v1776, %v5648
      %5650 = vmatprep.mubr.bf16.mxu0 %v4339
      %5651 = vmatmul.mubr.bf16.gmra.mrb[0].mxu0 %v4338
      %v5652 = vpop.f32.mrb[0].mxu0
      %v5653 = vadd.f32 %v1781, %v5652
      %v5654 = vpop.f32.mrb[0].mxu0
      %v5655 = vadd.f32 %v1781, %v5654
      %v5656 = vpop.f32.mrb[0].mxu0
      %v5657 = vadd.f32 %v1786, %v5656
      %v5658 = vpop.f32.mrb[0].mxu0
      %v5659 = vadd.f32 %v1786, %v5658
      %5660 = vmatprep.mubr.bf16.mxu0 %v4349
      %5661 = vmatmul.mubr.bf16.gmra.mrb[0].mxu0 %v4348
      %v5662 = vpop.f32.mrb[0].mxu0
      %v5663 = vadd.f32 %v1791, %v5662
      %v5664 = vpop.f32.mrb[0].mxu0
      %v5665 = vadd.f32 %v1791, %v5664
      %v5666 = vpop.f32.mrb[0].mxu0
      %v5667 = vadd.f32 %v1796, %v5666
      %v5668 = vpop.f32.mrb[0].mxu0
      %v5669 = vadd.f32 %v1796, %v5668
      %5670 = vmatprep.mubr.bf16.mxu0 %v4359
      %5671 = vmatmul.mubr.bf16.gmra.mrb[0].mxu0 %v4358
      %v5672 = vpop.f32.mrb[0].mxu0
      %v5673 = vadd.f32 %v1801, %v5672
      %v5674 = vpop.f32.mrb[0].mxu0
      %v5675 = vadd.f32 %v1801, %v5674
      %v5676 = vpop.f32.mrb[0].mxu0
      %v5677 = vadd.f32 %v1806, %v5676
      %v5678 = vpop.f32.mrb[0].mxu0
      %v5679 = vadd.f32 %v1806, %v5678
      %5680 = vmatprep.mubr.bf16.mxu0 %v4369
      %5681 = vmatmul.mubr.bf16.gmra.mrb[0].mxu0 %v4368
      %v5682 = vpop.f32.mrb[0].mxu0
      %v5683 = vadd.f32 %v1811, %v5682
      %v5684 = vpop.f32.mrb[0].mxu0
      %v5685 = vadd.f32 %v1811, %v5684
      %v5686 = vpop.f32.mrb[0].mxu0
      %v5687 = vadd.f32 %v1816, %v5686
      %v5688 = vpop.f32.mrb[0].mxu0
      %v5689 = vadd.f32 %v1816, %v5688
      %5690 = vmatprep.mubr.bf16.mxu0 %v4379
      %5691 = vmatmul.mubr.bf16.gmra.mrb[0].mxu0 %v4378
      %v5692 = vpop.f32.mrb[0].mxu0
      %v5693 = vadd.f32 %v1821, %v5692
      %v5694 = vpop.f32.mrb[0].mxu0
      %v5695 = vadd.f32 %v1821, %v5694
      %v5696 = vpop.f32.mrb[0].mxu0
      %v5697 = vadd.f32 %v1826, %v5696
      %v5698 = vpop.f32.mrb[0].mxu0
      %v5699 = vadd.f32 %v1826, %v5698
      %5700 = vmatprep.mubr.bf16.mxu0 %v4389
      %5701 = vmatmul.mubr.bf16.gmra.mrb[0].mxu0 %v4388
      %v5702 = vpop.f32.mrb[0].mxu0
      %v5703 = vadd.f32 %v1831, %v5702
      %v5704 = vpop.f32.mrb[0].mxu0
      %v5705 = vadd.f32 %v1831, %v5704
      %v5706 = vpop.f32.mrb[0].mxu0
      %v5707 = vadd.f32 %v1836, %v5706
      %v5708 = vpop.f32.mrb[0].mxu0
      %v5709 = vadd.f32 %v1836, %v5708
      %5710 = vmatprep.mubr.bf16.mxu0 %v4399
      %5711 = vmatmul.mubr.bf16.gmra.mrb[0].mxu0 %v4398
      %v5712 = vpop.f32.mrb[0].mxu0
      %v5713 = vadd.f32 %v1841, %v5712
      %v5714 = vpop.f32.mrb[0].mxu0
      %v5715 = vadd.f32 %v1841, %v5714
      %v5716 = vpop.f32.mrb[0].mxu0
      %v5717 = vadd.f32 %v1846, %v5716
      %v5718 = vpop.f32.mrb[0].mxu0
      %v5719 = vadd.f32 %v1846, %v5718
      %5720 = vmatprep.mubr.bf16.mxu0 %v4409
      %5721 = vmatmul.mubr.bf16.gmra.mrb[0].mxu0 %v4408
      %v5722 = vpop.f32.mrb[0].mxu0
      %v5723 = vadd.f32 %v1851, %v5722
      %v5724 = vpop.f32.mrb[0].mxu0
      %v5725 = vadd.f32 %v1851, %v5724
      %v5726 = vpop.f32.mrb[0].mxu0
      %v5727 = vadd.f32 %v1856, %v5726
      %v5728 = vpop.f32.mrb[0].mxu0
      %v5729 = vadd.f32 %v1856, %v5728
      %5730 = vmatprep.mubr.bf16.mxu0 %v4419
      %5731 = vmatmul.mubr.bf16.gmra.mrb[0].mxu0 %v4418
      %v5732 = vpop.f32.mrb[0].mxu0
      %v5733 = vadd.f32 %v1861, %v5732
      %v5734 = vpop.f32.mrb[0].mxu0
      %v5735 = vadd.f32 %v1861, %v5734
      %v5736 = vpop.f32.mrb[0].mxu0
      %v5737 = vadd.f32 %v1866, %v5736
      %v5738 = vpop.f32.mrb[0].mxu0
      %v5739 = vadd.f32 %v1866, %v5738
      %5740 = vmatprep.mubr.bf16.mxu0 %v4429
      %5741 = vmatmul.mubr.bf16.gmra.mrb[0].mxu0 %v4428
      %v5742 = vpop.f32.mrb[0].mxu0
      %v5743 = vadd.f32 %v1871, %v5742
      %v5744 = vpop.f32.mrb[0].mxu0
      %v5745 = vadd.f32 %v1871, %v5744
      %v5746 = vpop.f32.mrb[0].mxu0
      %v5747 = vadd.f32 %v1876, %v5746
      %v5748 = vpop.f32.mrb[0].mxu0
      %v5749 = vadd.f32 %v1876, %v5748
      %5750 = vmatprep.mubr.bf16.mxu0 %v4439
      %5751 = vmatmul.mubr.bf16.gmra.mrb[0].mxu0 %v4438
      %v5752 = vpop.f32.mrb[0].mxu0
      %v5753 = vadd.f32 %v1881, %v5752
      %v5754 = vpop.f32.mrb[0].mxu0
      %v5755 = vadd.f32 %v1881, %v5754
      %v5756 = vpop.f32.mrb[0].mxu0
      %v5757 = vadd.f32 %v1886, %v5756
      %v5758 = vpop.f32.mrb[0].mxu0
      %v5759 = vadd.f32 %v1886, %v5758
      %5760 = vmatprep.mubr.bf16.mxu0 %v4449
      %5761 = vmatmul.mubr.bf16.gmra.mrb[0].mxu0 %v4448
      %v5762 = vpop.f32.mrb[0].mxu0
      %v5763 = vadd.f32 %v1891, %v5762
      %v5764 = vpop.f32.mrb[0].mxu0
      %v5765 = vadd.f32 %v1891, %v5764
      %v5766 = vpop.f32.mrb[0].mxu0
      %v5767 = vadd.f32 %v1896, %v5766
      %v5768 = vpop.f32.mrb[0].mxu0
      %v5769 = vadd.f32 %v1896, %v5768
      %5770 = vmatprep.mubr.bf16.mxu0 %v4459
      %5771 = vmatmul.mubr.bf16.gmra.mrb[0].mxu0 %v4458
      %v5772 = vpop.f32.mrb[0].mxu0
      %v5773 = vadd.f32 %v1901, %v5772
      %v5774 = vpop.f32.mrb[0].mxu0
      %v5775 = vadd.f32 %v1901, %v5774
      %v5776 = vpop.f32.mrb[0].mxu0
      %v5777 = vadd.f32 %v1906, %v5776
      %v5778 = vpop.f32.mrb[0].mxu0
      %v5779 = vadd.f32 %v1906, %v5778
      %5780 = vmatprep.mubr.bf16.mxu0 %v4469
      %5781 = vmatmul.mubr.bf16.gmra.mrb[0].mxu0 %v4468
      %v5782 = vpop.f32.mrb[0].mxu0
      %v5783 = vadd.f32 %v1911, %v5782
      %v5784 = vpop.f32.mrb[0].mxu0
      %v5785 = vadd.f32 %v1911, %v5784
      %v5786 = vpop.f32.mrb[0].mxu0
      %v5787 = vadd.f32 %v1916, %v5786
      %v5788 = vpop.f32.mrb[0].mxu0
      %v5789 = vadd.f32 %v1916, %v5788
      %5790 = vmatprep.mubr.bf16.mxu0 %v4479
      %5791 = vmatmul.mubr.bf16.gmra.mrb[0].mxu0 %v4478
      %v5792 = vpop.f32.mrb[0].mxu0
      %v5793 = vadd.f32 %v1921, %v5792
      %v5794 = vpop.f32.mrb[0].mxu0
      %v5795 = vadd.f32 %v1921, %v5794
      %v5796 = vpop.f32.mrb[0].mxu0
      %v5797 = vadd.f32 %v1926, %v5796
      %v5798 = vpop.f32.mrb[0].mxu0
      %v5799 = vadd.f32 %v1926, %v5798
      %5800 = vmatprep.mubr.bf16.mxu0 %v4489
      %5801 = vmatmul.mubr.bf16.gmra.mrb[0].mxu0 %v4488
      %v5802 = vpop.f32.mrb[0].mxu0
      %v5803 = vadd.f32 %v1931, %v5802
      %v5804 = vpop.f32.mrb[0].mxu0
      %v5805 = vadd.f32 %v1931, %v5804
      %v5806 = vpop.f32.mrb[0].mxu0
      %v5807 = vadd.f32 %v1936, %v5806
      %v5808 = vpop.f32.mrb[0].mxu0
      %v5809 = vadd.f32 %v1936, %v5808
      %5810 = vmatprep.mubr.bf16.mxu0 %v4499
      %5811 = vmatmul.mubr.bf16.gmra.mrb[0].mxu0 %v4498
      %v5812 = vpop.f32.mrb[0].mxu0
      %v5813 = vadd.f32 %v1941, %v5812
      %v5814 = vpop.f32.mrb[0].mxu0
      %v5815 = vadd.f32 %v1941, %v5814
      %v5816 = vpop.f32.mrb[0].mxu0
      %v5817 = vadd.f32 %v1946, %v5816
      %v5818 = vpop.f32.mrb[0].mxu0
      %v5819 = vadd.f32 %v1946, %v5818
      %5820 = vmatprep.mubr.bf16.mxu0 %v4509
      %5821 = vmatmul.mubr.bf16.gmra.mrb[0].mxu0 %v4508
      %v5822 = vpop.f32.mrb[0].mxu0
      %v5823 = vadd.f32 %v1951, %v5822
      %v5824 = vpop.f32.mrb[0].mxu0
      %v5825 = vadd.f32 %v1951, %v5824
      %v5826 = vpop.f32.mrb[0].mxu0
      %v5827 = vadd.f32 %v1956, %v5826
      %v5828 = vpop.f32.mrb[0].mxu0
      %v5829 = vadd.f32 %v1956, %v5828
      %5830 = vmatprep.mubr.bf16.mxu0 %v4519
      %5831 = vmatmul.mubr.bf16.gmra.mrb[0].mxu0 %v4518
      %v5832 = vpop.f32.mrb[0].mxu0
      %v5833 = vadd.f32 %v1961, %v5832
      %v5834 = vpop.f32.mrb[0].mxu0
      %v5835 = vadd.f32 %v1961, %v5834
      %v5836 = vpop.f32.mrb[0].mxu0
      %v5837 = vadd.f32 %v1966, %v5836
      %v5838 = vpop.f32.mrb[0].mxu0
      %v5839 = vadd.f32 %v1966, %v5838
      %5840 = vmatprep.mubr.bf16.mxu0 %v4529
      %5841 = vmatmul.mubr.bf16.gmra.mrb[0].mxu0 %v4528
      %v5842 = vpop.f32.mrb[0].mxu0
      %v5843 = vadd.f32 %v1971, %v5842
      %v5844 = vpop.f32.mrb[0].mxu0
      %v5845 = vadd.f32 %v1971, %v5844
      %v5846 = vpop.f32.mrb[0].mxu0
      %v5847 = vadd.f32 %v1976, %v5846
      %v5848 = vpop.f32.mrb[0].mxu0
      %v5849 = vadd.f32 %v1976, %v5848
      %5850 = vmatprep.mubr.bf16.mxu0 %v4539
      %5851 = vmatmul.mubr.bf16.gmra.mrb[0].mxu0 %v4538
      %v5852 = vpop.f32.mrb[0].mxu0
      %v5853 = vadd.f32 %v1981, %v5852
      %v5854 = vpop.f32.mrb[0].mxu0
      %v5855 = vadd.f32 %v1981, %v5854
      %v5856 = vpop.f32.mrb[0].mxu0
      %v5857 = vadd.f32 %v1986, %v5856
      %v5858 = vpop.f32.mrb[0].mxu0
      %v5859 = vadd.f32 %v1986, %v5858
      %5860 = vmatprep.mubr.bf16.mxu0 %v4549
      %5861 = vmatmul.mubr.bf16.gmra.mrb[0].mxu0 %v4548
      %v5862 = vpop.f32.mrb[0].mxu0
      %v5863 = vadd.f32 %v1991, %v5862
      %v5864 = vpop.f32.mrb[0].mxu0
      %v5865 = vadd.f32 %v1991, %v5864
      %v5866 = vpop.f32.mrb[0].mxu0
      %v5867 = vadd.f32 %v1996, %v5866
      %v5868 = vpop.f32.mrb[0].mxu0
      %v5869 = vadd.f32 %v1996, %v5868
      %5870 = vmatprep.mubr.bf16.mxu0 %v4559
      %5871 = vmatmul.mubr.bf16.gmra.mrb[0].mxu0 %v4558
      %v5872 = vpop.f32.mrb[0].mxu0
      %v5873 = vadd.f32 %v2001, %v5872
      %v5874 = vpop.f32.mrb[0].mxu0
      %v5875 = vadd.f32 %v2001, %v5874
      %v5876 = vpop.f32.mrb[0].mxu0
      %v5877 = vadd.f32 %v2006, %v5876
      %v5878 = vpop.f32.mrb[0].mxu0
      %v5879 = vadd.f32 %v2006, %v5878
      %5880 = vmatprep.mubr.bf16.mxu0 %v4569
      %5881 = vmatmul.mubr.bf16.gmra.mrb[0].mxu0 %v4568
      %v5882 = vpop.f32.mrb[0].mxu0
      %v5883 = vadd.f32 %v2011, %v5882
      %v5884 = vpop.f32.mrb[0].mxu0
      %v5885 = vadd.f32 %v2011, %v5884
      %v5886 = vpop.f32.mrb[0].mxu0
      %v5887 = vadd.f32 %v2016, %v5886
      %v5888 = vpop.f32.mrb[0].mxu0
      %v5889 = vadd.f32 %v2016, %v5888
      %5890 = vmatprep.mubr.bf16.mxu0 %v4579
      %5891 = vmatmul.mubr.bf16.gmra.mrb[0].mxu0 %v4578
      %v5892 = vpop.f32.mrb[0].mxu0
      %v5893 = vadd.f32 %v2021, %v5892
      %v5894 = vpop.f32.mrb[0].mxu0
      %v5895 = vadd.f32 %v2021, %v5894
      %v5896 = vpop.f32.mrb[0].mxu0
      %v5897 = vadd.f32 %v2026, %v5896
      %v5898 = vpop.f32.mrb[0].mxu0
      %v5899 = vadd.f32 %v2026, %v5898
      %5900 = vmatprep.mubr.bf16.mxu0 %v4589
      %5901 = vmatmul.mubr.bf16.gmra.mrb[0].mxu0 %v4588
      %v5902 = vpop.f32.mrb[0].mxu0
      %v5903 = vadd.f32 %v2031, %v5902
      %v5904 = vpop.f32.mrb[0].mxu0
      %v5905 = vadd.f32 %v2031, %v5904
      %v5906 = vpop.f32.mrb[0].mxu0
      %v5907 = vadd.f32 %v2036, %v5906
      %v5908 = vpop.f32.mrb[0].mxu0
      %v5909 = vadd.f32 %v2036, %v5908
      %5910 = vmatprep.mubr.bf16.mxu0 %v4599
      %5911 = vmatmul.mubr.bf16.gmra.mrb[0].mxu0 %v4598
      %v5912 = vpop.f32.mrb[0].mxu0
      %v5913 = vadd.f32 %v2041, %v5912
      %v5914 = vpop.f32.mrb[0].mxu0
      %v5915 = vadd.f32 %v2041, %v5914
      %v5916 = vpop.f32.mrb[0].mxu0
      %v5917 = vadd.f32 %v2046, %v5916
      %v5918 = vpop.f32.mrb[0].mxu0
      %v5919 = vadd.f32 %v2046, %v5918
      %5920 = vmatprep.mubr.bf16.mxu0 %v4609
      %5921 = vmatmul.mubr.bf16.gmra.mrb[0].mxu0 %v4608
      %v5922 = vpop.f32.mrb[0].mxu0
      %v5923 = vadd.f32 %v2051, %v5922
      %v5924 = vpop.f32.mrb[0].mxu0
      %v5925 = vadd.f32 %v2051, %v5924
      %v5926 = vpop.f32.mrb[0].mxu0
      %v5927 = vadd.f32 %v2056, %v5926
      %v5928 = vpop.f32.mrb[0].mxu0
      %v5929 = vadd.f32 %v2056, %v5928
      %5930 = vmatprep.mubr.bf16.mxu0 %v4619
      %5931 = vmatmul.mubr.bf16.gmra.mrb[0].mxu0 %v4618
      %v5932 = vpop.f32.mrb[0].mxu0
      %v5933 = vadd.f32 %v2061, %v5932
      %v5934 = vpop.f32.mrb[0].mxu0
      %v5935 = vadd.f32 %v2061, %v5934
      %v5936 = vpop.f32.mrb[0].mxu0
      %v5937 = vadd.f32 %v2066, %v5936
      %v5938 = vpop.f32.mrb[0].mxu0
      %v5939 = vadd.f32 %v2066, %v5938
      %5940 = vmatprep.mubr.bf16.mxu0 %v4629
      %5941 = vmatmul.mubr.bf16.gmra.mrb[0].mxu0 %v4628
      %v5942 = vpop.f32.mrb[0].mxu0
      %v5943 = vadd.f32 %v2071, %v5942
      %v5944 = vpop.f32.mrb[0].mxu0
      %v5945 = vadd.f32 %v2071, %v5944
      %v5946 = vpop.f32.mrb[0].mxu0
      %v5947 = vadd.f32 %v2076, %v5946
      %v5948 = vpop.f32.mrb[0].mxu0
      %v5949 = vadd.f32 %v2076, %v5948
      %5950 = vmatprep.mubr.bf16.mxu0 %v4639
      %5951 = vmatmul.mubr.bf16.gmra.mrb[0].mxu0 %v4638
      %v5952 = vpop.f32.mrb[0].mxu0
      %v5953 = vadd.f32 %v2081, %v5952
      %v5954 = vpop.f32.mrb[0].mxu0
      %v5955 = vadd.f32 %v2081, %v5954
      %v5956 = vpop.f32.mrb[0].mxu0
      %v5957 = vadd.f32 %v2086, %v5956
      %v5958 = vpop.f32.mrb[0].mxu0
      %v5959 = vadd.f32 %v2086, %v5958
      %5960 = vmatprep.mubr.bf16.mxu0 %v4649
      %5961 = vmatmul.mubr.bf16.gmra.mrb[0].mxu0 %v4648
      %v5962 = vpop.f32.mrb[0].mxu0
      %v5963 = vadd.f32 %v2091, %v5962
      %v5964 = vpop.f32.mrb[0].mxu0
      %v5965 = vadd.f32 %v2091, %v5964
      %v5966 = vpop.f32.mrb[0].mxu0
      %v5967 = vadd.f32 %v2096, %v5966
      %v5968 = vpop.f32.mrb[0].mxu0
      %v5969 = vadd.f32 %v2096, %v5968
      %5970 = vdwg.mxu0
      %5971 = vmatprep.subr.bf16.mxu0 %v563
      %5972 = vmatpush1.bf16.msra.mxu0 %v562
      %5973 = vmatprep.subr.bf16.mxu0 %v565
      %5974 = vmatpush1.bf16.msra.mxu0 %v564
      %5975 = vmatprep.subr.bf16.mxu0 %v567
      %5976 = vmatpush1.bf16.msra.mxu0 %v566
      %5977 = vmatprep.subr.bf16.mxu0 %v569
      %5978 = vmatpush1.bf16.msra.mxu0 %v568
      %5979 = vmatprep.subr.bf16.mxu0 %v571
      %5980 = vmatpush1.bf16.msra.mxu0 %v570
      %5981 = vmatprep.subr.bf16.mxu0 %v573
      %5982 = vmatpush1.bf16.msra.mxu0 %v572
      %5983 = vmatprep.subr.bf16.mxu0 %v575
      %5984 = vmatpush1.bf16.msra.mxu0 %v574
      %5985 = vmatprep.subr.bf16.mxu0 %v577
      %5986 = vmatpush1.bf16.msra.mxu0 %v576
      %5987 = vmatprep.subr.bf16.mxu0 %v579
      %5988 = vmatpush1.bf16.msra.mxu0 %v578
      %5989 = vmatprep.subr.bf16.mxu0 %v581
      %5990 = vmatpush1.bf16.msra.mxu0 %v580
      %5991 = vmatprep.subr.bf16.mxu0 %v583
      %5992 = vmatpush1.bf16.msra.mxu0 %v582
      %5993 = vmatprep.subr.bf16.mxu0 %v585
      %5994 = vmatpush1.bf16.msra.mxu0 %v584
      %5995 = vmatprep.subr.bf16.mxu0 %v587
      %5996 = vmatpush1.bf16.msra.mxu0 %v586
      %5997 = vmatprep.subr.bf16.mxu0 %v589
      %5998 = vmatpush1.bf16.msra.mxu0 %v588
      %5999 = vmatprep.subr.bf16.mxu0 %v591
      %6000 = vmatpush1.bf16.msra.mxu0 %v590
      %6001 = vmatprep.subr.bf16.mxu0 %v593
      %6002 = vmatpush1.bf16.msra.mxu0 %v592
      %6003 = vmatprep.mubr.bf16.mxu0 %v4021
      %6004 = vmatmul.mubr.bf16.gmra.mrb[0].mxu0 %v4020
      %v6005 = vpop.f32.mrb[0].mxu0
      %v6006 = vadd.f32 %v5333, %v6005
      %v6007 = vpop.f32.mrb[0].mxu0
      %v6008 = vadd.f32 %v5335, %v6007
      %v6009 = vpop.f32.mrb[0].mxu0
      %v6010 = vadd.f32 %v5337, %v6009
      %v6011 = vpop.f32.mrb[0].mxu0
      %v6012 = vadd.f32 %v5339, %v6011
      %6013 = vmatprep.mubr.bf16.mxu0 %v4031
      %6014 = vmatmul.mubr.bf16.gmra.mrb[0].mxu0 %v4030
      %v6015 = vpop.f32.mrb[0].mxu0
      %v6016 = vadd.f32 %v5343, %v6015
      %v6017 = vpop.f32.mrb[0].mxu0
      %v6018 = vadd.f32 %v5345, %v6017
      %v6019 = vpop.f32.mrb[0].mxu0
      %v6020 = vadd.f32 %v5347, %v6019
      %v6021 = vpop.f32.mrb[0].mxu0
      %v6022 = vadd.f32 %v5349, %v6021
      %6023 = vmatprep.mubr.bf16.mxu0 %v4041
      %6024 = vmatmul.mubr.bf16.gmra.mrb[0].mxu0 %v4040
      %v6025 = vpop.f32.mrb[0].mxu0
      %v6026 = vadd.f32 %v5353, %v6025
      %v6027 = vpop.f32.mrb[0].mxu0
      %v6028 = vadd.f32 %v5355, %v6027
      %v6029 = vpop.f32.mrb[0].mxu0
      %v6030 = vadd.f32 %v5357, %v6029
      %v6031 = vpop.f32.mrb[0].mxu0
      %v6032 = vadd.f32 %v5359, %v6031
      %6033 = vmatprep.mubr.bf16.mxu0 %v4051
      %6034 = vmatmul.mubr.bf16.gmra.mrb[0].mxu0 %v4050
      %v6035 = vpop.f32.mrb[0].mxu0
      %v6036 = vadd.f32 %v5363, %v6035
      %v6037 = vpop.f32.mrb[0].mxu0
      %v6038 = vadd.f32 %v5365, %v6037
      %v6039 = vpop.f32.mrb[0].mxu0
      %v6040 = vadd.f32 %v5367, %v6039
      %v6041 = vpop.f32.mrb[0].mxu0
      %v6042 = vadd.f32 %v5369, %v6041
      %6043 = vmatprep.mubr.bf16.mxu0 %v4061
      %6044 = vmatmul.mubr.bf16.gmra.mrb[0].mxu0 %v4060
      %v6045 = vpop.f32.mrb[0].mxu0
      %v6046 = vadd.f32 %v5373, %v6045
      %v6047 = vpop.f32.mrb[0].mxu0
      %v6048 = vadd.f32 %v5375, %v6047
      %v6049 = vpop.f32.mrb[0].mxu0
      %v6050 = vadd.f32 %v5377, %v6049
      %v6051 = vpop.f32.mrb[0].mxu0
      %v6052 = vadd.f32 %v5379, %v6051
      %6053 = vmatprep.mubr.bf16.mxu0 %v4071
      %6054 = vmatmul.mubr.bf16.gmra.mrb[0].mxu0 %v4070
      %v6055 = vpop.f32.mrb[0].mxu0
      %v6056 = vadd.f32 %v5383, %v6055
      %v6057 = vpop.f32.mrb[0].mxu0
      %v6058 = vadd.f32 %v5385, %v6057
      %v6059 = vpop.f32.mrb[0].mxu0
      %v6060 = vadd.f32 %v5387, %v6059
      %v6061 = vpop.f32.mrb[0].mxu0
      %v6062 = vadd.f32 %v5389, %v6061
      %6063 = vmatprep.mubr.bf16.mxu0 %v4081
      %6064 = vmatmul.mubr.bf16.gmra.mrb[0].mxu0 %v4080
      %v6065 = vpop.f32.mrb[0].mxu0
      %v6066 = vadd.f32 %v5393, %v6065
      %v6067 = vpop.f32.mrb[0].mxu0
      %v6068 = vadd.f32 %v5395, %v6067
      %v6069 = vpop.f32.mrb[0].mxu0
      %v6070 = vadd.f32 %v5397, %v6069
      %v6071 = vpop.f32.mrb[0].mxu0
      %v6072 = vadd.f32 %v5399, %v6071
      %6073 = vmatprep.mubr.bf16.mxu0 %v4091
      %6074 = vmatmul.mubr.bf16.gmra.mrb[0].mxu0 %v4090
      %v6075 = vpop.f32.mrb[0].mxu0
      %v6076 = vadd.f32 %v5403, %v6075
      %v6077 = vpop.f32.mrb[0].mxu0
      %v6078 = vadd.f32 %v5405, %v6077
      %v6079 = vpop.f32.mrb[0].mxu0
      %v6080 = vadd.f32 %v5407, %v6079
      %v6081 = vpop.f32.mrb[0].mxu0
      %v6082 = vadd.f32 %v5409, %v6081
      %6083 = vmatprep.mubr.bf16.mxu0 %v4101
      %6084 = vmatmul.mubr.bf16.gmra.mrb[0].mxu0 %v4100
      %v6085 = vpop.f32.mrb[0].mxu0
      %v6086 = vadd.f32 %v5413, %v6085
      %v6087 = vpop.f32.mrb[0].mxu0
      %v6088 = vadd.f32 %v5415, %v6087
      %v6089 = vpop.f32.mrb[0].mxu0
      %v6090 = vadd.f32 %v5417, %v6089
      %v6091 = vpop.f32.mrb[0].mxu0
      %v6092 = vadd.f32 %v5419, %v6091
      %6093 = vmatprep.mubr.bf16.mxu0 %v4111
      %6094 = vmatmul.mubr.bf16.gmra.mrb[0].mxu0 %v4110
      %v6095 = vpop.f32.mrb[0].mxu0
      %v6096 = vadd.f32 %v5423, %v6095
      %v6097 = vpop.f32.mrb[0].mxu0
      %v6098 = vadd.f32 %v5425, %v6097
      %v6099 = vpop.f32.mrb[0].mxu0
      %v6100 = vadd.f32 %v5427, %v6099
      %v6101 = vpop.f32.mrb[0].mxu0
      %v6102 = vadd.f32 %v5429, %v6101
      %6103 = vmatprep.mubr.bf16.mxu0 %v4121
      %6104 = vmatmul.mubr.bf16.gmra.mrb[0].mxu0 %v4120
      %v6105 = vpop.f32.mrb[0].mxu0
      %v6106 = vadd.f32 %v5433, %v6105
      %v6107 = vpop.f32.mrb[0].mxu0
      %v6108 = vadd.f32 %v5435, %v6107
      %v6109 = vpop.f32.mrb[0].mxu0
      %v6110 = vadd.f32 %v5437, %v6109
      %v6111 = vpop.f32.mrb[0].mxu0
      %v6112 = vadd.f32 %v5439, %v6111
      %6113 = vmatprep.mubr.bf16.mxu0 %v4131
      %6114 = vmatmul.mubr.bf16.gmra.mrb[0].mxu0 %v4130
      %v6115 = vpop.f32.mrb[0].mxu0
      %v6116 = vadd.f32 %v5443, %v6115
      %v6117 = vpop.f32.mrb[0].mxu0
      %v6118 = vadd.f32 %v5445, %v6117
      %v6119 = vpop.f32.mrb[0].mxu0
      %v6120 = vadd.f32 %v5447, %v6119
      %v6121 = vpop.f32.mrb[0].mxu0
      %v6122 = vadd.f32 %v5449, %v6121
      %6123 = vmatprep.mubr.bf16.mxu0 %v4141
      %6124 = vmatmul.mubr.bf16.gmra.mrb[0].mxu0 %v4140
      %v6125 = vpop.f32.mrb[0].mxu0
      %v6126 = vadd.f32 %v5453, %v6125
      %v6127 = vpop.f32.mrb[0].mxu0
      %v6128 = vadd.f32 %v5455, %v6127
      %v6129 = vpop.f32.mrb[0].mxu0
      %v6130 = vadd.f32 %v5457, %v6129
      %v6131 = vpop.f32.mrb[0].mxu0
      %v6132 = vadd.f32 %v5459, %v6131
      %6133 = vmatprep.mubr.bf16.mxu0 %v4151
      %6134 = vmatmul.mubr.bf16.gmra.mrb[0].mxu0 %v4150
      %v6135 = vpop.f32.mrb[0].mxu0
      %v6136 = vadd.f32 %v5463, %v6135
      %v6137 = vpop.f32.mrb[0].mxu0
      %v6138 = vadd.f32 %v5465, %v6137
      %v6139 = vpop.f32.mrb[0].mxu0
      %v6140 = vadd.f32 %v5467, %v6139
      %v6141 = vpop.f32.mrb[0].mxu0
      %v6142 = vadd.f32 %v5469, %v6141
      %6143 = vmatprep.mubr.bf16.mxu0 %v4161
      %6144 = vmatmul.mubr.bf16.gmra.mrb[0].mxu0 %v4160
      %v6145 = vpop.f32.mrb[0].mxu0
      %v6146 = vadd.f32 %v5473, %v6145
      %v6147 = vpop.f32.mrb[0].mxu0
      %v6148 = vadd.f32 %v5475, %v6147
      %v6149 = vpop.f32.mrb[0].mxu0
      %v6150 = vadd.f32 %v5477, %v6149
      %v6151 = vpop.f32.mrb[0].mxu0
      %v6152 = vadd.f32 %v5479, %v6151
      %6153 = vmatprep.mubr.bf16.mxu0 %v4171
      %6154 = vmatmul.mubr.bf16.gmra.mrb[0].mxu0 %v4170
      %v6155 = vpop.f32.mrb[0].mxu0
      %v6156 = vadd.f32 %v5483, %v6155
      %v6157 = vpop.f32.mrb[0].mxu0
      %v6158 = vadd.f32 %v5485, %v6157
      %v6159 = vpop.f32.mrb[0].mxu0
      %v6160 = vadd.f32 %v5487, %v6159
      %v6161 = vpop.f32.mrb[0].mxu0
      %v6162 = vadd.f32 %v5489, %v6161
      %6163 = vmatprep.mubr.bf16.mxu0 %v4181
      %6164 = vmatmul.mubr.bf16.gmra.mrb[0].mxu0 %v4180
      %v6165 = vpop.f32.mrb[0].mxu0
      %v6166 = vadd.f32 %v5493, %v6165
      %v6167 = vpop.f32.mrb[0].mxu0
      %v6168 = vadd.f32 %v5495, %v6167
      %v6169 = vpop.f32.mrb[0].mxu0
      %v6170 = vadd.f32 %v5497, %v6169
      %v6171 = vpop.f32.mrb[0].mxu0
      %v6172 = vadd.f32 %v5499, %v6171
      %6173 = vmatprep.mubr.bf16.mxu0 %v4191
      %6174 = vmatmul.mubr.bf16.gmra.mrb[0].mxu0 %v4190
      %v6175 = vpop.f32.mrb[0].mxu0
      %v6176 = vadd.f32 %v5503, %v6175
      %v6177 = vpop.f32.mrb[0].mxu0
      %v6178 = vadd.f32 %v5505, %v6177
      %v6179 = vpop.f32.mrb[0].mxu0
      %v6180 = vadd.f32 %v5507, %v6179
      %v6181 = vpop.f32.mrb[0].mxu0
      %v6182 = vadd.f32 %v5509, %v6181
      %6183 = vmatprep.mubr.bf16.mxu0 %v4201
      %6184 = vmatmul.mubr.bf16.gmra.mrb[0].mxu0 %v4200
      %v6185 = vpop.f32.mrb[0].mxu0
      %v6186 = vadd.f32 %v5513, %v6185
      %v6187 = vpop.f32.mrb[0].mxu0
      %v6188 = vadd.f32 %v5515, %v6187
      %v6189 = vpop.f32.mrb[0].mxu0
      %v6190 = vadd.f32 %v5517, %v6189
      %v6191 = vpop.f32.mrb[0].mxu0
      %v6192 = vadd.f32 %v5519, %v6191
      %6193 = vmatprep.mubr.bf16.mxu0 %v4211
      %6194 = vmatmul.mubr.bf16.gmra.mrb[0].mxu0 %v4210
      %v6195 = vpop.f32.mrb[0].mxu0
      %v6196 = vadd.f32 %v5523, %v6195
      %v6197 = vpop.f32.mrb[0].mxu0
      %v6198 = vadd.f32 %v5525, %v6197
      %v6199 = vpop.f32.mrb[0].mxu0
      %v6200 = vadd.f32 %v5527, %v6199
      %v6201 = vpop.f32.mrb[0].mxu0
      %v6202 = vadd.f32 %v5529, %v6201
      %6203 = vmatprep.mubr.bf16.mxu0 %v4221
      %6204 = vmatmul.mubr.bf16.gmra.mrb[0].mxu0 %v4220
      %v6205 = vpop.f32.mrb[0].mxu0
      %v6206 = vadd.f32 %v5533, %v6205
      %v6207 = vpop.f32.mrb[0].mxu0
      %v6208 = vadd.f32 %v5535, %v6207
      %v6209 = vpop.f32.mrb[0].mxu0
      %v6210 = vadd.f32 %v5537, %v6209
      %v6211 = vpop.f32.mrb[0].mxu0
      %v6212 = vadd.f32 %v5539, %v6211
      %6213 = vmatprep.mubr.bf16.mxu0 %v4231
      %6214 = vmatmul.mubr.bf16.gmra.mrb[0].mxu0 %v4230
      %v6215 = vpop.f32.mrb[0].mxu0
      %v6216 = vadd.f32 %v5543, %v6215
      %v6217 = vpop.f32.mrb[0].mxu0
      %v6218 = vadd.f32 %v5545, %v6217
      %v6219 = vpop.f32.mrb[0].mxu0
      %v6220 = vadd.f32 %v5547, %v6219
      %v6221 = vpop.f32.mrb[0].mxu0
      %v6222 = vadd.f32 %v5549, %v6221
      %6223 = vmatprep.mubr.bf16.mxu0 %v4241
      %6224 = vmatmul.mubr.bf16.gmra.mrb[0].mxu0 %v4240
      %v6225 = vpop.f32.mrb[0].mxu0
      %v6226 = vadd.f32 %v5553, %v6225
      %v6227 = vpop.f32.mrb[0].mxu0
      %v6228 = vadd.f32 %v5555, %v6227
      %v6229 = vpop.f32.mrb[0].mxu0
      %v6230 = vadd.f32 %v5557, %v6229
      %v6231 = vpop.f32.mrb[0].mxu0
      %v6232 = vadd.f32 %v5559, %v6231
      %6233 = vmatprep.mubr.bf16.mxu0 %v4251
      %6234 = vmatmul.mubr.bf16.gmra.mrb[0].mxu0 %v4250
      %v6235 = vpop.f32.mrb[0].mxu0
      %v6236 = vadd.f32 %v5563, %v6235
      %v6237 = vpop.f32.mrb[0].mxu0
      %v6238 = vadd.f32 %v5565, %v6237
      %v6239 = vpop.f32.mrb[0].mxu0
      %v6240 = vadd.f32 %v5567, %v6239
      %v6241 = vpop.f32.mrb[0].mxu0
      %v6242 = vadd.f32 %v5569, %v6241
      %6243 = vmatprep.mubr.bf16.mxu0 %v4261
      %6244 = vmatmul.mubr.bf16.gmra.mrb[0].mxu0 %v4260
      %v6245 = vpop.f32.mrb[0].mxu0
      %v6246 = vadd.f32 %v5573, %v6245
      %v6247 = vpop.f32.mrb[0].mxu0
      %v6248 = vadd.f32 %v5575, %v6247
      %v6249 = vpop.f32.mrb[0].mxu0
      %v6250 = vadd.f32 %v5577, %v6249
      %v6251 = vpop.f32.mrb[0].mxu0
      %v6252 = vadd.f32 %v5579, %v6251
      %6253 = vmatprep.mubr.bf16.mxu0 %v4271
      %6254 = vmatmul.mubr.bf16.gmra.mrb[0].mxu0 %v4270
      %v6255 = vpop.f32.mrb[0].mxu0
      %v6256 = vadd.f32 %v5583, %v6255
      %v6257 = vpop.f32.mrb[0].mxu0
      %v6258 = vadd.f32 %v5585, %v6257
      %v6259 = vpop.f32.mrb[0].mxu0
      %v6260 = vadd.f32 %v5587, %v6259
      %v6261 = vpop.f32.mrb[0].mxu0
      %v6262 = vadd.f32 %v5589, %v6261
      %6263 = vmatprep.mubr.bf16.mxu0 %v4281
      %6264 = vmatmul.mubr.bf16.gmra.mrb[0].mxu0 %v4280
      %v6265 = vpop.f32.mrb[0].mxu0
      %v6266 = vadd.f32 %v5593, %v6265
      %v6267 = vpop.f32.mrb[0].mxu0
      %v6268 = vadd.f32 %v5595, %v6267
      %v6269 = vpop.f32.mrb[0].mxu0
      %v6270 = vadd.f32 %v5597, %v6269
      %v6271 = vpop.f32.mrb[0].mxu0
      %v6272 = vadd.f32 %v5599, %v6271
      %6273 = vmatprep.mubr.bf16.mxu0 %v4291
      %6274 = vmatmul.mubr.bf16.gmra.mrb[0].mxu0 %v4290
      %v6275 = vpop.f32.mrb[0].mxu0
      %v6276 = vadd.f32 %v5603, %v6275
      %v6277 = vpop.f32.mrb[0].mxu0
      %v6278 = vadd.f32 %v5605, %v6277
      %v6279 = vpop.f32.mrb[0].mxu0
      %v6280 = vadd.f32 %v5607, %v6279
      %v6281 = vpop.f32.mrb[0].mxu0
      %v6282 = vadd.f32 %v5609, %v6281
      %6283 = vmatprep.mubr.bf16.mxu0 %v4301
      %6284 = vmatmul.mubr.bf16.gmra.mrb[0].mxu0 %v4300
      %v6285 = vpop.f32.mrb[0].mxu0
      %v6286 = vadd.f32 %v5613, %v6285
      %v6287 = vpop.f32.mrb[0].mxu0
      %v6288 = vadd.f32 %v5615, %v6287
      %v6289 = vpop.f32.mrb[0].mxu0
      %v6290 = vadd.f32 %v5617, %v6289
      %v6291 = vpop.f32.mrb[0].mxu0
      %v6292 = vadd.f32 %v5619, %v6291
      %6293 = vmatprep.mubr.bf16.mxu0 %v4311
      %6294 = vmatmul.mubr.bf16.gmra.mrb[0].mxu0 %v4310
      %v6295 = vpop.f32.mrb[0].mxu0
      %v6296 = vadd.f32 %v5623, %v6295
      %v6297 = vpop.f32.mrb[0].mxu0
      %v6298 = vadd.f32 %v5625, %v6297
      %v6299 = vpop.f32.mrb[0].mxu0
      %v6300 = vadd.f32 %v5627, %v6299
      %v6301 = vpop.f32.mrb[0].mxu0
      %v6302 = vadd.f32 %v5629, %v6301
      %6303 = vmatprep.mubr.bf16.mxu0 %v4321
      %6304 = vmatmul.mubr.bf16.gmra.mrb[0].mxu0 %v4320
      %v6305 = vpop.f32.mrb[0].mxu0
      %v6306 = vadd.f32 %v5633, %v6305
      %v6307 = vpop.f32.mrb[0].mxu0
      %v6308 = vadd.f32 %v5635, %v6307
      %v6309 = vpop.f32.mrb[0].mxu0
      %v6310 = vadd.f32 %v5637, %v6309
      %v6311 = vpop.f32.mrb[0].mxu0
      %v6312 = vadd.f32 %v5639, %v6311
      %6313 = vmatprep.mubr.bf16.mxu0 %v4331
      %6314 = vmatmul.mubr.bf16.gmra.mrb[0].mxu0 %v4330
      %v6315 = vpop.f32.mrb[0].mxu0
      %v6316 = vadd.f32 %v5643, %v6315
      %v6317 = vpop.f32.mrb[0].mxu0
      %v6318 = vadd.f32 %v5645, %v6317
      %v6319 = vpop.f32.mrb[0].mxu0
      %v6320 = vadd.f32 %v5647, %v6319
      %v6321 = vpop.f32.mrb[0].mxu0
      %v6322 = vadd.f32 %v5649, %v6321
      %6323 = vmatprep.mubr.bf16.mxu0 %v4341
      %6324 = vmatmul.mubr.bf16.gmra.mrb[0].mxu0 %v4340
      %v6325 = vpop.f32.mrb[0].mxu0
      %v6326 = vadd.f32 %v5653, %v6325
      %v6327 = vpop.f32.mrb[0].mxu0
      %v6328 = vadd.f32 %v5655, %v6327
      %v6329 = vpop.f32.mrb[0].mxu0
      %v6330 = vadd.f32 %v5657, %v6329
      %v6331 = vpop.f32.mrb[0].mxu0
      %v6332 = vadd.f32 %v5659, %v6331
      %6333 = vmatprep.mubr.bf16.mxu0 %v4351
      %6334 = vmatmul.mubr.bf16.gmra.mrb[0].mxu0 %v4350
      %v6335 = vpop.f32.mrb[0].mxu0
      %v6336 = vadd.f32 %v5663, %v6335
      %v6337 = vpop.f32.mrb[0].mxu0
      %v6338 = vadd.f32 %v5665, %v6337
      %v6339 = vpop.f32.mrb[0].mxu0
      %v6340 = vadd.f32 %v5667, %v6339
      %v6341 = vpop.f32.mrb[0].mxu0
      %v6342 = vadd.f32 %v5669, %v6341
      %6343 = vmatprep.mubr.bf16.mxu0 %v4361
      %6344 = vmatmul.mubr.bf16.gmra.mrb[0].mxu0 %v4360
      %v6345 = vpop.f32.mrb[0].mxu0
      %v6346 = vadd.f32 %v5673, %v6345
      %v6347 = vpop.f32.mrb[0].mxu0
      %v6348 = vadd.f32 %v5675, %v6347
      %v6349 = vpop.f32.mrb[0].mxu0
      %v6350 = vadd.f32 %v5677, %v6349
      %v6351 = vpop.f32.mrb[0].mxu0
      %v6352 = vadd.f32 %v5679, %v6351
      %6353 = vmatprep.mubr.bf16.mxu0 %v4371
      %6354 = vmatmul.mubr.bf16.gmra.mrb[0].mxu0 %v4370
      %v6355 = vpop.f32.mrb[0].mxu0
      %v6356 = vadd.f32 %v5683, %v6355
      %v6357 = vpop.f32.mrb[0].mxu0
      %v6358 = vadd.f32 %v5685, %v6357
      %v6359 = vpop.f32.mrb[0].mxu0
      %v6360 = vadd.f32 %v5687, %v6359
      %v6361 = vpop.f32.mrb[0].mxu0
      %v6362 = vadd.f32 %v5689, %v6361
      %6363 = vmatprep.mubr.bf16.mxu0 %v4381
      %6364 = vmatmul.mubr.bf16.gmra.mrb[0].mxu0 %v4380
      %v6365 = vpop.f32.mrb[0].mxu0
      %v6366 = vadd.f32 %v5693, %v6365
      %v6367 = vpop.f32.mrb[0].mxu0
      %v6368 = vadd.f32 %v5695, %v6367
      %v6369 = vpop.f32.mrb[0].mxu0
      %v6370 = vadd.f32 %v5697, %v6369
      %v6371 = vpop.f32.mrb[0].mxu0
      %v6372 = vadd.f32 %v5699, %v6371
      %6373 = vmatprep.mubr.bf16.mxu0 %v4391
      %6374 = vmatmul.mubr.bf16.gmra.mrb[0].mxu0 %v4390
      %v6375 = vpop.f32.mrb[0].mxu0
      %v6376 = vadd.f32 %v5703, %v6375
      %v6377 = vpop.f32.mrb[0].mxu0
      %v6378 = vadd.f32 %v5705, %v6377
      %v6379 = vpop.f32.mrb[0].mxu0
      %v6380 = vadd.f32 %v5707, %v6379
      %v6381 = vpop.f32.mrb[0].mxu0
      %v6382 = vadd.f32 %v5709, %v6381
      %6383 = vmatprep.mubr.bf16.mxu0 %v4401
      %6384 = vmatmul.mubr.bf16.gmra.mrb[0].mxu0 %v4400
      %v6385 = vpop.f32.mrb[0].mxu0
      %v6386 = vadd.f32 %v5713, %v6385
      %v6387 = vpop.f32.mrb[0].mxu0
      %v6388 = vadd.f32 %v5715, %v6387
      %v6389 = vpop.f32.mrb[0].mxu0
      %v6390 = vadd.f32 %v5717, %v6389
      %v6391 = vpop.f32.mrb[0].mxu0
      %v6392 = vadd.f32 %v5719, %v6391
      %6393 = vmatprep.mubr.bf16.mxu0 %v4411
      %6394 = vmatmul.mubr.bf16.gmra.mrb[0].mxu0 %v4410
      %v6395 = vpop.f32.mrb[0].mxu0
      %v6396 = vadd.f32 %v5723, %v6395
      %v6397 = vpop.f32.mrb[0].mxu0
      %v6398 = vadd.f32 %v5725, %v6397
      %v6399 = vpop.f32.mrb[0].mxu0
      %v6400 = vadd.f32 %v5727, %v6399
      %v6401 = vpop.f32.mrb[0].mxu0
      %v6402 = vadd.f32 %v5729, %v6401
      %6403 = vmatprep.mubr.bf16.mxu0 %v4421
      %6404 = vmatmul.mubr.bf16.gmra.mrb[0].mxu0 %v4420
      %v6405 = vpop.f32.mrb[0].mxu0
      %v6406 = vadd.f32 %v5733, %v6405
      %v6407 = vpop.f32.mrb[0].mxu0
      %v6408 = vadd.f32 %v5735, %v6407
      %v6409 = vpop.f32.mrb[0].mxu0
      %v6410 = vadd.f32 %v5737, %v6409
      %v6411 = vpop.f32.mrb[0].mxu0
      %v6412 = vadd.f32 %v5739, %v6411
      %6413 = vmatprep.mubr.bf16.mxu0 %v4431
      %6414 = vmatmul.mubr.bf16.gmra.mrb[0].mxu0 %v4430
      %v6415 = vpop.f32.mrb[0].mxu0
      %v6416 = vadd.f32 %v5743, %v6415
      %v6417 = vpop.f32.mrb[0].mxu0
      %v6418 = vadd.f32 %v5745, %v6417
      %v6419 = vpop.f32.mrb[0].mxu0
      %v6420 = vadd.f32 %v5747, %v6419
      %v6421 = vpop.f32.mrb[0].mxu0
      %v6422 = vadd.f32 %v5749, %v6421
      %6423 = vmatprep.mubr.bf16.mxu0 %v4441
      %6424 = vmatmul.mubr.bf16.gmra.mrb[0].mxu0 %v4440
      %v6425 = vpop.f32.mrb[0].mxu0
      %v6426 = vadd.f32 %v5753, %v6425
      %v6427 = vpop.f32.mrb[0].mxu0
      %v6428 = vadd.f32 %v5755, %v6427
      %v6429 = vpop.f32.mrb[0].mxu0
      %v6430 = vadd.f32 %v5757, %v6429
      %v6431 = vpop.f32.mrb[0].mxu0
      %v6432 = vadd.f32 %v5759, %v6431
      %6433 = vmatprep.mubr.bf16.mxu0 %v4451
      %6434 = vmatmul.mubr.bf16.gmra.mrb[0].mxu0 %v4450
      %v6435 = vpop.f32.mrb[0].mxu0
      %v6436 = vadd.f32 %v5763, %v6435
      %v6437 = vpop.f32.mrb[0].mxu0
      %v6438 = vadd.f32 %v5765, %v6437
      %v6439 = vpop.f32.mrb[0].mxu0
      %v6440 = vadd.f32 %v5767, %v6439
      %v6441 = vpop.f32.mrb[0].mxu0
      %v6442 = vadd.f32 %v5769, %v6441
      %6443 = vmatprep.mubr.bf16.mxu0 %v4461
      %6444 = vmatmul.mubr.bf16.gmra.mrb[0].mxu0 %v4460
      %v6445 = vpop.f32.mrb[0].mxu0
      %v6446 = vadd.f32 %v5773, %v6445
      %v6447 = vpop.f32.mrb[0].mxu0
      %v6448 = vadd.f32 %v5775, %v6447
      %v6449 = vpop.f32.mrb[0].mxu0
      %v6450 = vadd.f32 %v5777, %v6449
      %v6451 = vpop.f32.mrb[0].mxu0
      %v6452 = vadd.f32 %v5779, %v6451
      %6453 = vmatprep.mubr.bf16.mxu0 %v4471
      %6454 = vmatmul.mubr.bf16.gmra.mrb[0].mxu0 %v4470
      %v6455 = vpop.f32.mrb[0].mxu0
      %v6456 = vadd.f32 %v5783, %v6455
      %v6457 = vpop.f32.mrb[0].mxu0
      %v6458 = vadd.f32 %v5785, %v6457
      %v6459 = vpop.f32.mrb[0].mxu0
      %v6460 = vadd.f32 %v5787, %v6459
      %v6461 = vpop.f32.mrb[0].mxu0
      %v6462 = vadd.f32 %v5789, %v6461
      %6463 = vmatprep.mubr.bf16.mxu0 %v4481
      %6464 = vmatmul.mubr.bf16.gmra.mrb[0].mxu0 %v4480
      %v6465 = vpop.f32.mrb[0].mxu0
      %v6466 = vadd.f32 %v5793, %v6465
      %v6467 = vpop.f32.mrb[0].mxu0
      %v6468 = vadd.f32 %v5795, %v6467
      %v6469 = vpop.f32.mrb[0].mxu0
      %v6470 = vadd.f32 %v5797, %v6469
      %v6471 = vpop.f32.mrb[0].mxu0
      %v6472 = vadd.f32 %v5799, %v6471
      %6473 = vmatprep.mubr.bf16.mxu0 %v4491
      %6474 = vmatmul.mubr.bf16.gmra.mrb[0].mxu0 %v4490
      %v6475 = vpop.f32.mrb[0].mxu0
      %v6476 = vadd.f32 %v5803, %v6475
      %v6477 = vpop.f32.mrb[0].mxu0
      %v6478 = vadd.f32 %v5805, %v6477
      %v6479 = vpop.f32.mrb[0].mxu0
      %v6480 = vadd.f32 %v5807, %v6479
      %v6481 = vpop.f32.mrb[0].mxu0
      %v6482 = vadd.f32 %v5809, %v6481
      %6483 = vmatprep.mubr.bf16.mxu0 %v4501
      %6484 = vmatmul.mubr.bf16.gmra.mrb[0].mxu0 %v4500
      %v6485 = vpop.f32.mrb[0].mxu0
      %v6486 = vadd.f32 %v5813, %v6485
      %v6487 = vpop.f32.mrb[0].mxu0
      %v6488 = vadd.f32 %v5815, %v6487
      %v6489 = vpop.f32.mrb[0].mxu0
      %v6490 = vadd.f32 %v5817, %v6489
      %v6491 = vpop.f32.mrb[0].mxu0
      %v6492 = vadd.f32 %v5819, %v6491
      %6493 = vmatprep.mubr.bf16.mxu0 %v4511
      %6494 = vmatmul.mubr.bf16.gmra.mrb[0].mxu0 %v4510
      %v6495 = vpop.f32.mrb[0].mxu0
      %v6496 = vadd.f32 %v5823, %v6495
      %v6497 = vpop.f32.mrb[0].mxu0
      %v6498 = vadd.f32 %v5825, %v6497
      %v6499 = vpop.f32.mrb[0].mxu0
      %v6500 = vadd.f32 %v5827, %v6499
      %v6501 = vpop.f32.mrb[0].mxu0
      %v6502 = vadd.f32 %v5829, %v6501
      %6503 = vmatprep.mubr.bf16.mxu0 %v4521
      %6504 = vmatmul.mubr.bf16.gmra.mrb[0].mxu0 %v4520
      %v6505 = vpop.f32.mrb[0].mxu0
      %v6506 = vadd.f32 %v5833, %v6505
      %v6507 = vpop.f32.mrb[0].mxu0
      %v6508 = vadd.f32 %v5835, %v6507
      %v6509 = vpop.f32.mrb[0].mxu0
      %v6510 = vadd.f32 %v5837, %v6509
      %v6511 = vpop.f32.mrb[0].mxu0
      %v6512 = vadd.f32 %v5839, %v6511
      %6513 = vmatprep.mubr.bf16.mxu0 %v4531
      %6514 = vmatmul.mubr.bf16.gmra.mrb[0].mxu0 %v4530
      %v6515 = vpop.f32.mrb[0].mxu0
      %v6516 = vadd.f32 %v5843, %v6515
      %v6517 = vpop.f32.mrb[0].mxu0
      %v6518 = vadd.f32 %v5845, %v6517
      %v6519 = vpop.f32.mrb[0].mxu0
      %v6520 = vadd.f32 %v5847, %v6519
      %v6521 = vpop.f32.mrb[0].mxu0
      %v6522 = vadd.f32 %v5849, %v6521
      %6523 = vmatprep.mubr.bf16.mxu0 %v4541
      %6524 = vmatmul.mubr.bf16.gmra.mrb[0].mxu0 %v4540
      %v6525 = vpop.f32.mrb[0].mxu0
      %v6526 = vadd.f32 %v5853, %v6525
      %v6527 = vpop.f32.mrb[0].mxu0
      %v6528 = vadd.f32 %v5855, %v6527
      %v6529 = vpop.f32.mrb[0].mxu0
      %v6530 = vadd.f32 %v5857, %v6529
      %v6531 = vpop.f32.mrb[0].mxu0
      %v6532 = vadd.f32 %v5859, %v6531
      %6533 = vmatprep.mubr.bf16.mxu0 %v4551
      %6534 = vmatmul.mubr.bf16.gmra.mrb[0].mxu0 %v4550
      %v6535 = vpop.f32.mrb[0].mxu0
      %v6536 = vadd.f32 %v5863, %v6535
      %v6537 = vpop.f32.mrb[0].mxu0
      %v6538 = vadd.f32 %v5865, %v6537
      %v6539 = vpop.f32.mrb[0].mxu0
      %v6540 = vadd.f32 %v5867, %v6539
      %v6541 = vpop.f32.mrb[0].mxu0
      %v6542 = vadd.f32 %v5869, %v6541
      %6543 = vmatprep.mubr.bf16.mxu0 %v4561
      %6544 = vmatmul.mubr.bf16.gmra.mrb[0].mxu0 %v4560
      %v6545 = vpop.f32.mrb[0].mxu0
      %v6546 = vadd.f32 %v5873, %v6545
      %v6547 = vpop.f32.mrb[0].mxu0
      %v6548 = vadd.f32 %v5875, %v6547
      %v6549 = vpop.f32.mrb[0].mxu0
      %v6550 = vadd.f32 %v5877, %v6549
      %v6551 = vpop.f32.mrb[0].mxu0
      %v6552 = vadd.f32 %v5879, %v6551
      %6553 = vmatprep.mubr.bf16.mxu0 %v4571
      %6554 = vmatmul.mubr.bf16.gmra.mrb[0].mxu0 %v4570
      %v6555 = vpop.f32.mrb[0].mxu0
      %v6556 = vadd.f32 %v5883, %v6555
      %v6557 = vpop.f32.mrb[0].mxu0
      %v6558 = vadd.f32 %v5885, %v6557
      %v6559 = vpop.f32.mrb[0].mxu0
      %v6560 = vadd.f32 %v5887, %v6559
      %v6561 = vpop.f32.mrb[0].mxu0
      %v6562 = vadd.f32 %v5889, %v6561
      %6563 = vmatprep.mubr.bf16.mxu0 %v4581
      %6564 = vmatmul.mubr.bf16.gmra.mrb[0].mxu0 %v4580
      %v6565 = vpop.f32.mrb[0].mxu0
      %v6566 = vadd.f32 %v5893, %v6565
      %v6567 = vpop.f32.mrb[0].mxu0
      %v6568 = vadd.f32 %v5895, %v6567
      %v6569 = vpop.f32.mrb[0].mxu0
      %v6570 = vadd.f32 %v5897, %v6569
      %v6571 = vpop.f32.mrb[0].mxu0
      %v6572 = vadd.f32 %v5899, %v6571
      %6573 = vmatprep.mubr.bf16.mxu0 %v4591
      %6574 = vmatmul.mubr.bf16.gmra.mrb[0].mxu0 %v4590
      %v6575 = vpop.f32.mrb[0].mxu0
      %v6576 = vadd.f32 %v5903, %v6575
      %v6577 = vpop.f32.mrb[0].mxu0
      %v6578 = vadd.f32 %v5905, %v6577
      %v6579 = vpop.f32.mrb[0].mxu0
      %v6580 = vadd.f32 %v5907, %v6579
      %v6581 = vpop.f32.mrb[0].mxu0
      %v6582 = vadd.f32 %v5909, %v6581
      %6583 = vmatprep.mubr.bf16.mxu0 %v4601
      %6584 = vmatmul.mubr.bf16.gmra.mrb[0].mxu0 %v4600
      %v6585 = vpop.f32.mrb[0].mxu0
      %v6586 = vadd.f32 %v5913, %v6585
      %v6587 = vpop.f32.mrb[0].mxu0
      %v6588 = vadd.f32 %v5915, %v6587
      %v6589 = vpop.f32.mrb[0].mxu0
      %v6590 = vadd.f32 %v5917, %v6589
      %v6591 = vpop.f32.mrb[0].mxu0
      %v6592 = vadd.f32 %v5919, %v6591
      %6593 = vmatprep.mubr.bf16.mxu0 %v4611
      %6594 = vmatmul.mubr.bf16.gmra.mrb[0].mxu0 %v4610
      %v6595 = vpop.f32.mrb[0].mxu0
      %v6596 = vadd.f32 %v5923, %v6595
      %v6597 = vpop.f32.mrb[0].mxu0
      %v6598 = vadd.f32 %v5925, %v6597
      %v6599 = vpop.f32.mrb[0].mxu0
      %v6600 = vadd.f32 %v5927, %v6599
      %v6601 = vpop.f32.mrb[0].mxu0
      %v6602 = vadd.f32 %v5929, %v6601
      %6603 = vmatprep.mubr.bf16.mxu0 %v4621
      %6604 = vmatmul.mubr.bf16.gmra.mrb[0].mxu0 %v4620
      %v6605 = vpop.f32.mrb[0].mxu0
      %v6606 = vadd.f32 %v5933, %v6605
      %v6607 = vpop.f32.mrb[0].mxu0
      %v6608 = vadd.f32 %v5935, %v6607
      %v6609 = vpop.f32.mrb[0].mxu0
      %v6610 = vadd.f32 %v5937, %v6609
      %v6611 = vpop.f32.mrb[0].mxu0
      %v6612 = vadd.f32 %v5939, %v6611
      %6613 = vmatprep.mubr.bf16.mxu0 %v4631
      %6614 = vmatmul.mubr.bf16.gmra.mrb[0].mxu0 %v4630
      %v6615 = vpop.f32.mrb[0].mxu0
      %v6616 = vadd.f32 %v5943, %v6615
      %v6617 = vpop.f32.mrb[0].mxu0
      %v6618 = vadd.f32 %v5945, %v6617
      %v6619 = vpop.f32.mrb[0].mxu0
      %v6620 = vadd.f32 %v5947, %v6619
      %v6621 = vpop.f32.mrb[0].mxu0
      %v6622 = vadd.f32 %v5949, %v6621
      %6623 = vmatprep.mubr.bf16.mxu0 %v4641
      %6624 = vmatmul.mubr.bf16.gmra.mrb[0].mxu0 %v4640
      %v6625 = vpop.f32.mrb[0].mxu0
      %v6626 = vadd.f32 %v5953, %v6625
      %v6627 = vpop.f32.mrb[0].mxu0
      %v6628 = vadd.f32 %v5955, %v6627
      %v6629 = vpop.f32.mrb[0].mxu0
      %v6630 = vadd.f32 %v5957, %v6629
      %v6631 = vpop.f32.mrb[0].mxu0
      %v6632 = vadd.f32 %v5959, %v6631
      %6633 = vmatprep.mubr.bf16.mxu0 %v4651
      %6634 = vmatmul.mubr.bf16.gmra.mrb[0].mxu0 %v4650
      %v6635 = vpop.f32.mrb[0].mxu0
      %v6636 = vadd.f32 %v5963, %v6635
      %v6637 = vpop.f32.mrb[0].mxu0
      %v6638 = vadd.f32 %v5965, %v6637
      %v6639 = vpop.f32.mrb[0].mxu0
      %v6640 = vadd.f32 %v5967, %v6639
      %v6641 = vpop.f32.mrb[0].mxu0
      %v6642 = vadd.f32 %v5969, %v6641
      %6643 = vdwg.mxu0
      %6644 = vmatprep.subr.bf16.mxu0 %v595
      %6645 = vmatpush1.bf16.msra.mxu0 %v594
      %6646 = vmatprep.subr.bf16.mxu0 %v597
      %6647 = vmatpush1.bf16.msra.mxu0 %v596
      %6648 = vmatprep.subr.bf16.mxu0 %v599
      %6649 = vmatpush1.bf16.msra.mxu0 %v598
      %6650 = vmatprep.subr.bf16.mxu0 %v601
      %6651 = vmatpush1.bf16.msra.mxu0 %v600
      %6652 = vmatprep.subr.bf16.mxu0 %v603
      %6653 = vmatpush1.bf16.msra.mxu0 %v602
      %6654 = vmatprep.subr.bf16.mxu0 %v605
      %6655 = vmatpush1.bf16.msra.mxu0 %v604
      %6656 = vmatprep.subr.bf16.mxu0 %v607
      %6657 = vmatpush1.bf16.msra.mxu0 %v606
      %6658 = vmatprep.subr.bf16.mxu0 %v609
      %6659 = vmatpush1.bf16.msra.mxu0 %v608
      %6660 = vmatprep.subr.bf16.mxu0 %v611
      %6661 = vmatpush1.bf16.msra.mxu0 %v610
      %6662 = vmatprep.subr.bf16.mxu0 %v613
      %6663 = vmatpush1.bf16.msra.mxu0 %v612
      %6664 = vmatprep.subr.bf16.mxu0 %v615
      %6665 = vmatpush1.bf16.msra.mxu0 %v614
      %6666 = vmatprep.subr.bf16.mxu0 %v617
      %6667 = vmatpush1.bf16.msra.mxu0 %v616
      %6668 = vmatprep.subr.bf16.mxu0 %v619
      %6669 = vmatpush1.bf16.msra.mxu0 %v618
      %6670 = vmatprep.subr.bf16.mxu0 %v621
      %6671 = vmatpush1.bf16.msra.mxu0 %v620
      %6672 = vmatprep.subr.bf16.mxu0 %v623
      %6673 = vmatpush1.bf16.msra.mxu0 %v622
      %6674 = vmatprep.subr.bf16.mxu0 %v625
      %6675 = vmatpush1.bf16.msra.mxu0 %v624
      %6676 = vmatprep.mubr.bf16.mxu0 %v4023
      %6677 = vmatmul.mubr.bf16.gmra.mrb[0].mxu0 %v4022
      %v6678 = vpop.f32.mrb[0].mxu0
      %v6679 = vadd.f32 %v6006, %v6678
      %v6680 = vpop.f32.mrb[0].mxu0
      %v6681 = vadd.f32 %v6008, %v6680
      %v6682 = vpop.f32.mrb[0].mxu0
      %v6683 = vadd.f32 %v6010, %v6682
      %v6684 = vpop.f32.mrb[0].mxu0
      %v6685 = vadd.f32 %v6012, %v6684
      %6686 = vmatprep.mubr.bf16.mxu0 %v4033
      %6687 = vmatmul.mubr.bf16.gmra.mrb[0].mxu0 %v4032
      %v6688 = vpop.f32.mrb[0].mxu0
      %v6689 = vadd.f32 %v6016, %v6688
      %v6690 = vpop.f32.mrb[0].mxu0
      %v6691 = vadd.f32 %v6018, %v6690
      %v6692 = vpop.f32.mrb[0].mxu0
      %v6693 = vadd.f32 %v6020, %v6692
      %v6694 = vpop.f32.mrb[0].mxu0
      %v6695 = vadd.f32 %v6022, %v6694
      %6696 = vmatprep.mubr.bf16.mxu0 %v4043
      %6697 = vmatmul.mubr.bf16.gmra.mrb[0].mxu0 %v4042
      %v6698 = vpop.f32.mrb[0].mxu0
      %v6699 = vadd.f32 %v6026, %v6698
      %v6700 = vpop.f32.mrb[0].mxu0
      %v6701 = vadd.f32 %v6028, %v6700
      %v6702 = vpop.f32.mrb[0].mxu0
      %v6703 = vadd.f32 %v6030, %v6702
      %v6704 = vpop.f32.mrb[0].mxu0
      %v6705 = vadd.f32 %v6032, %v6704
      %6706 = vmatprep.mubr.bf16.mxu0 %v4053
      %6707 = vmatmul.mubr.bf16.gmra.mrb[0].mxu0 %v4052
      %v6708 = vpop.f32.mrb[0].mxu0
      %v6709 = vadd.f32 %v6036, %v6708
      %v6710 = vpop.f32.mrb[0].mxu0
      %v6711 = vadd.f32 %v6038, %v6710
      %v6712 = vpop.f32.mrb[0].mxu0
      %v6713 = vadd.f32 %v6040, %v6712
      %v6714 = vpop.f32.mrb[0].mxu0
      %v6715 = vadd.f32 %v6042, %v6714
      %6716 = vmatprep.mubr.bf16.mxu0 %v4063
      %6717 = vmatmul.mubr.bf16.gmra.mrb[0].mxu0 %v4062
      %v6718 = vpop.f32.mrb[0].mxu0
      %v6719 = vadd.f32 %v6046, %v6718
      %v6720 = vpop.f32.mrb[0].mxu0
      %v6721 = vadd.f32 %v6048, %v6720
      %v6722 = vpop.f32.mrb[0].mxu0
      %v6723 = vadd.f32 %v6050, %v6722
      %v6724 = vpop.f32.mrb[0].mxu0
      %v6725 = vadd.f32 %v6052, %v6724
      %6726 = vmatprep.mubr.bf16.mxu0 %v4073
      %6727 = vmatmul.mubr.bf16.gmra.mrb[0].mxu0 %v4072
      %v6728 = vpop.f32.mrb[0].mxu0
      %v6729 = vadd.f32 %v6056, %v6728
      %v6730 = vpop.f32.mrb[0].mxu0
      %v6731 = vadd.f32 %v6058, %v6730
      %v6732 = vpop.f32.mrb[0].mxu0
      %v6733 = vadd.f32 %v6060, %v6732
      %v6734 = vpop.f32.mrb[0].mxu0
      %v6735 = vadd.f32 %v6062, %v6734
      %6736 = vmatprep.mubr.bf16.mxu0 %v4083
      %6737 = vmatmul.mubr.bf16.gmra.mrb[0].mxu0 %v4082
      %v6738 = vpop.f32.mrb[0].mxu0
      %v6739 = vadd.f32 %v6066, %v6738
      %v6740 = vpop.f32.mrb[0].mxu0
      %v6741 = vadd.f32 %v6068, %v6740
      %v6742 = vpop.f32.mrb[0].mxu0
      %v6743 = vadd.f32 %v6070, %v6742
      %v6744 = vpop.f32.mrb[0].mxu0
      %v6745 = vadd.f32 %v6072, %v6744
      %6746 = vmatprep.mubr.bf16.mxu0 %v4093
      %6747 = vmatmul.mubr.bf16.gmra.mrb[0].mxu0 %v4092
      %v6748 = vpop.f32.mrb[0].mxu0
      %v6749 = vadd.f32 %v6076, %v6748
      %v6750 = vpop.f32.mrb[0].mxu0
      %v6751 = vadd.f32 %v6078, %v6750
      %v6752 = vpop.f32.mrb[0].mxu0
      %v6753 = vadd.f32 %v6080, %v6752
      %v6754 = vpop.f32.mrb[0].mxu0
      %v6755 = vadd.f32 %v6082, %v6754
      %6756 = vmatprep.mubr.bf16.mxu0 %v4103
      %6757 = vmatmul.mubr.bf16.gmra.mrb[0].mxu0 %v4102
      %v6758 = vpop.f32.mrb[0].mxu0
      %v6759 = vadd.f32 %v6086, %v6758
      %v6760 = vpop.f32.mrb[0].mxu0
      %v6761 = vadd.f32 %v6088, %v6760
      %v6762 = vpop.f32.mrb[0].mxu0
      %v6763 = vadd.f32 %v6090, %v6762
      %v6764 = vpop.f32.mrb[0].mxu0
      %v6765 = vadd.f32 %v6092, %v6764
      %6766 = vmatprep.mubr.bf16.mxu0 %v4113
      %6767 = vmatmul.mubr.bf16.gmra.mrb[0].mxu0 %v4112
      %v6768 = vpop.f32.mrb[0].mxu0
      %v6769 = vadd.f32 %v6096, %v6768
      %v6770 = vpop.f32.mrb[0].mxu0
      %v6771 = vadd.f32 %v6098, %v6770
      %v6772 = vpop.f32.mrb[0].mxu0
      %v6773 = vadd.f32 %v6100, %v6772
      %v6774 = vpop.f32.mrb[0].mxu0
      %v6775 = vadd.f32 %v6102, %v6774
      %6776 = vmatprep.mubr.bf16.mxu0 %v4123
      %6777 = vmatmul.mubr.bf16.gmra.mrb[0].mxu0 %v4122
      %v6778 = vpop.f32.mrb[0].mxu0
      %v6779 = vadd.f32 %v6106, %v6778
      %v6780 = vpop.f32.mrb[0].mxu0
      %v6781 = vadd.f32 %v6108, %v6780
      %v6782 = vpop.f32.mrb[0].mxu0
      %v6783 = vadd.f32 %v6110, %v6782
      %v6784 = vpop.f32.mrb[0].mxu0
      %v6785 = vadd.f32 %v6112, %v6784
      %6786 = vmatprep.mubr.bf16.mxu0 %v4133
      %6787 = vmatmul.mubr.bf16.gmra.mrb[0].mxu0 %v4132
      %v6788 = vpop.f32.mrb[0].mxu0
      %v6789 = vadd.f32 %v6116, %v6788
      %v6790 = vpop.f32.mrb[0].mxu0
      %v6791 = vadd.f32 %v6118, %v6790
      %v6792 = vpop.f32.mrb[0].mxu0
      %v6793 = vadd.f32 %v6120, %v6792
      %v6794 = vpop.f32.mrb[0].mxu0
      %v6795 = vadd.f32 %v6122, %v6794
      %6796 = vmatprep.mubr.bf16.mxu0 %v4143
      %6797 = vmatmul.mubr.bf16.gmra.mrb[0].mxu0 %v4142
      %v6798 = vpop.f32.mrb[0].mxu0
      %v6799 = vadd.f32 %v6126, %v6798
      %v6800 = vpop.f32.mrb[0].mxu0
      %v6801 = vadd.f32 %v6128, %v6800
      %v6802 = vpop.f32.mrb[0].mxu0
      %v6803 = vadd.f32 %v6130, %v6802
      %v6804 = vpop.f32.mrb[0].mxu0
      %v6805 = vadd.f32 %v6132, %v6804
      %6806 = vmatprep.mubr.bf16.mxu0 %v4153
      %6807 = vmatmul.mubr.bf16.gmra.mrb[0].mxu0 %v4152
      %v6808 = vpop.f32.mrb[0].mxu0
      %v6809 = vadd.f32 %v6136, %v6808
      %v6810 = vpop.f32.mrb[0].mxu0
      %v6811 = vadd.f32 %v6138, %v6810
      %v6812 = vpop.f32.mrb[0].mxu0
      %v6813 = vadd.f32 %v6140, %v6812
      %v6814 = vpop.f32.mrb[0].mxu0
      %v6815 = vadd.f32 %v6142, %v6814
      %6816 = vmatprep.mubr.bf16.mxu0 %v4163
      %6817 = vmatmul.mubr.bf16.gmra.mrb[0].mxu0 %v4162
      %v6818 = vpop.f32.mrb[0].mxu0
      %v6819 = vadd.f32 %v6146, %v6818
      %v6820 = vpop.f32.mrb[0].mxu0
      %v6821 = vadd.f32 %v6148, %v6820
      %v6822 = vpop.f32.mrb[0].mxu0
      %v6823 = vadd.f32 %v6150, %v6822
      %v6824 = vpop.f32.mrb[0].mxu0
      %v6825 = vadd.f32 %v6152, %v6824
      %6826 = vmatprep.mubr.bf16.mxu0 %v4173
      %6827 = vmatmul.mubr.bf16.gmra.mrb[0].mxu0 %v4172
      %v6828 = vpop.f32.mrb[0].mxu0
      %v6829 = vadd.f32 %v6156, %v6828
      %v6830 = vpop.f32.mrb[0].mxu0
      %v6831 = vadd.f32 %v6158, %v6830
      %v6832 = vpop.f32.mrb[0].mxu0
      %v6833 = vadd.f32 %v6160, %v6832
      %v6834 = vpop.f32.mrb[0].mxu0
      %v6835 = vadd.f32 %v6162, %v6834
      %6836 = vmatprep.mubr.bf16.mxu0 %v4183
      %6837 = vmatmul.mubr.bf16.gmra.mrb[0].mxu0 %v4182
      %v6838 = vpop.f32.mrb[0].mxu0
      %v6839 = vadd.f32 %v6166, %v6838
      %v6840 = vpop.f32.mrb[0].mxu0
      %v6841 = vadd.f32 %v6168, %v6840
      %v6842 = vpop.f32.mrb[0].mxu0
      %v6843 = vadd.f32 %v6170, %v6842
      %v6844 = vpop.f32.mrb[0].mxu0
      %v6845 = vadd.f32 %v6172, %v6844
      %6846 = vmatprep.mubr.bf16.mxu0 %v4193
      %6847 = vmatmul.mubr.bf16.gmra.mrb[0].mxu0 %v4192
      %v6848 = vpop.f32.mrb[0].mxu0
      %v6849 = vadd.f32 %v6176, %v6848
      %v6850 = vpop.f32.mrb[0].mxu0
      %v6851 = vadd.f32 %v6178, %v6850
      %v6852 = vpop.f32.mrb[0].mxu0
      %v6853 = vadd.f32 %v6180, %v6852
      %v6854 = vpop.f32.mrb[0].mxu0
      %v6855 = vadd.f32 %v6182, %v6854
      %6856 = vmatprep.mubr.bf16.mxu0 %v4203
      %6857 = vmatmul.mubr.bf16.gmra.mrb[0].mxu0 %v4202
      %v6858 = vpop.f32.mrb[0].mxu0
      %v6859 = vadd.f32 %v6186, %v6858
      %v6860 = vpop.f32.mrb[0].mxu0
      %v6861 = vadd.f32 %v6188, %v6860
      %v6862 = vpop.f32.mrb[0].mxu0
      %v6863 = vadd.f32 %v6190, %v6862
      %v6864 = vpop.f32.mrb[0].mxu0
      %v6865 = vadd.f32 %v6192, %v6864
      %6866 = vmatprep.mubr.bf16.mxu0 %v4213
      %6867 = vmatmul.mubr.bf16.gmra.mrb[0].mxu0 %v4212
      %v6868 = vpop.f32.mrb[0].mxu0
      %v6869 = vadd.f32 %v6196, %v6868
      %v6870 = vpop.f32.mrb[0].mxu0
      %v6871 = vadd.f32 %v6198, %v6870
      %v6872 = vpop.f32.mrb[0].mxu0
      %v6873 = vadd.f32 %v6200, %v6872
      %v6874 = vpop.f32.mrb[0].mxu0
      %v6875 = vadd.f32 %v6202, %v6874
      %6876 = vmatprep.mubr.bf16.mxu0 %v4223
      %6877 = vmatmul.mubr.bf16.gmra.mrb[0].mxu0 %v4222
      %v6878 = vpop.f32.mrb[0].mxu0
      %v6879 = vadd.f32 %v6206, %v6878
      %v6880 = vpop.f32.mrb[0].mxu0
      %v6881 = vadd.f32 %v6208, %v6880
      %v6882 = vpop.f32.mrb[0].mxu0
      %v6883 = vadd.f32 %v6210, %v6882
      %v6884 = vpop.f32.mrb[0].mxu0
      %v6885 = vadd.f32 %v6212, %v6884
      %6886 = vmatprep.mubr.bf16.mxu0 %v4233
      %6887 = vmatmul.mubr.bf16.gmra.mrb[0].mxu0 %v4232
      %v6888 = vpop.f32.mrb[0].mxu0
      %v6889 = vadd.f32 %v6216, %v6888
      %v6890 = vpop.f32.mrb[0].mxu0
      %v6891 = vadd.f32 %v6218, %v6890
      %v6892 = vpop.f32.mrb[0].mxu0
      %v6893 = vadd.f32 %v6220, %v6892
      %v6894 = vpop.f32.mrb[0].mxu0
      %v6895 = vadd.f32 %v6222, %v6894
      %6896 = vmatprep.mubr.bf16.mxu0 %v4243
      %6897 = vmatmul.mubr.bf16.gmra.mrb[0].mxu0 %v4242
      %v6898 = vpop.f32.mrb[0].mxu0
      %v6899 = vadd.f32 %v6226, %v6898
      %v6900 = vpop.f32.mrb[0].mxu0
      %v6901 = vadd.f32 %v6228, %v6900
      %v6902 = vpop.f32.mrb[0].mxu0
      %v6903 = vadd.f32 %v6230, %v6902
      %v6904 = vpop.f32.mrb[0].mxu0
      %v6905 = vadd.f32 %v6232, %v6904
      %6906 = vmatprep.mubr.bf16.mxu0 %v4253
      %6907 = vmatmul.mubr.bf16.gmra.mrb[0].mxu0 %v4252
      %v6908 = vpop.f32.mrb[0].mxu0
      %v6909 = vadd.f32 %v6236, %v6908
      %v6910 = vpop.f32.mrb[0].mxu0
      %v6911 = vadd.f32 %v6238, %v6910
      %v6912 = vpop.f32.mrb[0].mxu0
      %v6913 = vadd.f32 %v6240, %v6912
      %v6914 = vpop.f32.mrb[0].mxu0
      %v6915 = vadd.f32 %v6242, %v6914
      %6916 = vmatprep.mubr.bf16.mxu0 %v4263
      %6917 = vmatmul.mubr.bf16.gmra.mrb[0].mxu0 %v4262
      %v6918 = vpop.f32.mrb[0].mxu0
      %v6919 = vadd.f32 %v6246, %v6918
      %v6920 = vpop.f32.mrb[0].mxu0
      %v6921 = vadd.f32 %v6248, %v6920
      %v6922 = vpop.f32.mrb[0].mxu0
      %v6923 = vadd.f32 %v6250, %v6922
      %v6924 = vpop.f32.mrb[0].mxu0
      %v6925 = vadd.f32 %v6252, %v6924
      %6926 = vmatprep.mubr.bf16.mxu0 %v4273
      %6927 = vmatmul.mubr.bf16.gmra.mrb[0].mxu0 %v4272
      %v6928 = vpop.f32.mrb[0].mxu0
      %v6929 = vadd.f32 %v6256, %v6928
      %v6930 = vpop.f32.mrb[0].mxu0
      %v6931 = vadd.f32 %v6258, %v6930
      %v6932 = vpop.f32.mrb[0].mxu0
      %v6933 = vadd.f32 %v6260, %v6932
      %v6934 = vpop.f32.mrb[0].mxu0
      %v6935 = vadd.f32 %v6262, %v6934
      %6936 = vmatprep.mubr.bf16.mxu0 %v4283
      %6937 = vmatmul.mubr.bf16.gmra.mrb[0].mxu0 %v4282
      %v6938 = vpop.f32.mrb[0].mxu0
      %v6939 = vadd.f32 %v6266, %v6938
      %v6940 = vpop.f32.mrb[0].mxu0
      %v6941 = vadd.f32 %v6268, %v6940
      %v6942 = vpop.f32.mrb[0].mxu0
      %v6943 = vadd.f32 %v6270, %v6942
      %v6944 = vpop.f32.mrb[0].mxu0
      %v6945 = vadd.f32 %v6272, %v6944
      %6946 = vmatprep.mubr.bf16.mxu0 %v4293
      %6947 = vmatmul.mubr.bf16.gmra.mrb[0].mxu0 %v4292
      %v6948 = vpop.f32.mrb[0].mxu0
      %v6949 = vadd.f32 %v6276, %v6948
      %v6950 = vpop.f32.mrb[0].mxu0
      %v6951 = vadd.f32 %v6278, %v6950
      %v6952 = vpop.f32.mrb[0].mxu0
      %v6953 = vadd.f32 %v6280, %v6952
      %v6954 = vpop.f32.mrb[0].mxu0
      %v6955 = vadd.f32 %v6282, %v6954
      %6956 = vmatprep.mubr.bf16.mxu0 %v4303
      %6957 = vmatmul.mubr.bf16.gmra.mrb[0].mxu0 %v4302
      %v6958 = vpop.f32.mrb[0].mxu0
      %v6959 = vadd.f32 %v6286, %v6958
      %v6960 = vpop.f32.mrb[0].mxu0
      %v6961 = vadd.f32 %v6288, %v6960
      %v6962 = vpop.f32.mrb[0].mxu0
      %v6963 = vadd.f32 %v6290, %v6962
      %v6964 = vpop.f32.mrb[0].mxu0
      %v6965 = vadd.f32 %v6292, %v6964
      %6966 = vmatprep.mubr.bf16.mxu0 %v4313
      %6967 = vmatmul.mubr.bf16.gmra.mrb[0].mxu0 %v4312
      %v6968 = vpop.f32.mrb[0].mxu0
      %v6969 = vadd.f32 %v6296, %v6968
      %v6970 = vpop.f32.mrb[0].mxu0
      %v6971 = vadd.f32 %v6298, %v6970
      %v6972 = vpop.f32.mrb[0].mxu0
      %v6973 = vadd.f32 %v6300, %v6972
      %v6974 = vpop.f32.mrb[0].mxu0
      %v6975 = vadd.f32 %v6302, %v6974
      %6976 = vmatprep.mubr.bf16.mxu0 %v4323
      %6977 = vmatmul.mubr.bf16.gmra.mrb[0].mxu0 %v4322
      %v6978 = vpop.f32.mrb[0].mxu0
      %v6979 = vadd.f32 %v6306, %v6978
      %v6980 = vpop.f32.mrb[0].mxu0
      %v6981 = vadd.f32 %v6308, %v6980
      %v6982 = vpop.f32.mrb[0].mxu0
      %v6983 = vadd.f32 %v6310, %v6982
      %v6984 = vpop.f32.mrb[0].mxu0
      %v6985 = vadd.f32 %v6312, %v6984
      %6986 = vmatprep.mubr.bf16.mxu0 %v4333
      %6987 = vmatmul.mubr.bf16.gmra.mrb[0].mxu0 %v4332
      %v6988 = vpop.f32.mrb[0].mxu0
      %v6989 = vadd.f32 %v6316, %v6988
      %v6990 = vpop.f32.mrb[0].mxu0
      %v6991 = vadd.f32 %v6318, %v6990
      %v6992 = vpop.f32.mrb[0].mxu0
      %v6993 = vadd.f32 %v6320, %v6992
      %v6994 = vpop.f32.mrb[0].mxu0
      %v6995 = vadd.f32 %v6322, %v6994
      %6996 = vmatprep.mubr.bf16.mxu0 %v4343
      %6997 = vmatmul.mubr.bf16.gmra.mrb[0].mxu0 %v4342
      %v6998 = vpop.f32.mrb[0].mxu0
      %v6999 = vadd.f32 %v6326, %v6998
      %v7000 = vpop.f32.mrb[0].mxu0
      %v7001 = vadd.f32 %v6328, %v7000
      %v7002 = vpop.f32.mrb[0].mxu0
      %v7003 = vadd.f32 %v6330, %v7002
      %v7004 = vpop.f32.mrb[0].mxu0
      %v7005 = vadd.f32 %v6332, %v7004
      %7006 = vmatprep.mubr.bf16.mxu0 %v4353
      %7007 = vmatmul.mubr.bf16.gmra.mrb[0].mxu0 %v4352
      %v7008 = vpop.f32.mrb[0].mxu0
      %v7009 = vadd.f32 %v6336, %v7008
      %v7010 = vpop.f32.mrb[0].mxu0
      %v7011 = vadd.f32 %v6338, %v7010
      %v7012 = vpop.f32.mrb[0].mxu0
      %v7013 = vadd.f32 %v6340, %v7012
      %v7014 = vpop.f32.mrb[0].mxu0
      %v7015 = vadd.f32 %v6342, %v7014
      %7016 = vmatprep.mubr.bf16.mxu0 %v4363
      %7017 = vmatmul.mubr.bf16.gmra.mrb[0].mxu0 %v4362
      %v7018 = vpop.f32.mrb[0].mxu0
      %v7019 = vadd.f32 %v6346, %v7018
      %v7020 = vpop.f32.mrb[0].mxu0
      %v7021 = vadd.f32 %v6348, %v7020
      %v7022 = vpop.f32.mrb[0].mxu0
      %v7023 = vadd.f32 %v6350, %v7022
      %v7024 = vpop.f32.mrb[0].mxu0
      %v7025 = vadd.f32 %v6352, %v7024
      %7026 = vmatprep.mubr.bf16.mxu0 %v4373
      %7027 = vmatmul.mubr.bf16.gmra.mrb[0].mxu0 %v4372
      %v7028 = vpop.f32.mrb[0].mxu0
      %v7029 = vadd.f32 %v6356, %v7028
      %v7030 = vpop.f32.mrb[0].mxu0
      %v7031 = vadd.f32 %v6358, %v7030
      %v7032 = vpop.f32.mrb[0].mxu0
      %v7033 = vadd.f32 %v6360, %v7032
      %v7034 = vpop.f32.mrb[0].mxu0
      %v7035 = vadd.f32 %v6362, %v7034
      %7036 = vmatprep.mubr.bf16.mxu0 %v4383
      %7037 = vmatmul.mubr.bf16.gmra.mrb[0].mxu0 %v4382
      %v7038 = vpop.f32.mrb[0].mxu0
      %v7039 = vadd.f32 %v6366, %v7038
      %v7040 = vpop.f32.mrb[0].mxu0
      %v7041 = vadd.f32 %v6368, %v7040
      %v7042 = vpop.f32.mrb[0].mxu0
      %v7043 = vadd.f32 %v6370, %v7042
      %v7044 = vpop.f32.mrb[0].mxu0
      %v7045 = vadd.f32 %v6372, %v7044
      %7046 = vmatprep.mubr.bf16.mxu0 %v4393
      %7047 = vmatmul.mubr.bf16.gmra.mrb[0].mxu0 %v4392
      %v7048 = vpop.f32.mrb[0].mxu0
      %v7049 = vadd.f32 %v6376, %v7048
      %v7050 = vpop.f32.mrb[0].mxu0
      %v7051 = vadd.f32 %v6378, %v7050
      %v7052 = vpop.f32.mrb[0].mxu0
      %v7053 = vadd.f32 %v6380, %v7052
      %v7054 = vpop.f32.mrb[0].mxu0
      %v7055 = vadd.f32 %v6382, %v7054
      %7056 = vmatprep.mubr.bf16.mxu0 %v4403
      %7057 = vmatmul.mubr.bf16.gmra.mrb[0].mxu0 %v4402
      %v7058 = vpop.f32.mrb[0].mxu0
      %v7059 = vadd.f32 %v6386, %v7058
      %v7060 = vpop.f32.mrb[0].mxu0
      %v7061 = vadd.f32 %v6388, %v7060
      %v7062 = vpop.f32.mrb[0].mxu0
      %v7063 = vadd.f32 %v6390, %v7062
      %v7064 = vpop.f32.mrb[0].mxu0
      %v7065 = vadd.f32 %v6392, %v7064
      %7066 = vmatprep.mubr.bf16.mxu0 %v4413
      %7067 = vmatmul.mubr.bf16.gmra.mrb[0].mxu0 %v4412
      %v7068 = vpop.f32.mrb[0].mxu0
      %v7069 = vadd.f32 %v6396, %v7068
      %v7070 = vpop.f32.mrb[0].mxu0
      %v7071 = vadd.f32 %v6398, %v7070
      %v7072 = vpop.f32.mrb[0].mxu0
      %v7073 = vadd.f32 %v6400, %v7072
      %v7074 = vpop.f32.mrb[0].mxu0
      %v7075 = vadd.f32 %v6402, %v7074
      %7076 = vmatprep.mubr.bf16.mxu0 %v4423
      %7077 = vmatmul.mubr.bf16.gmra.mrb[0].mxu0 %v4422
      %v7078 = vpop.f32.mrb[0].mxu0
      %v7079 = vadd.f32 %v6406, %v7078
      %v7080 = vpop.f32.mrb[0].mxu0
      %v7081 = vadd.f32 %v6408, %v7080
      %v7082 = vpop.f32.mrb[0].mxu0
      %v7083 = vadd.f32 %v6410, %v7082
      %v7084 = vpop.f32.mrb[0].mxu0
      %v7085 = vadd.f32 %v6412, %v7084
      %7086 = vmatprep.mubr.bf16.mxu0 %v4433
      %7087 = vmatmul.mubr.bf16.gmra.mrb[0].mxu0 %v4432
      %v7088 = vpop.f32.mrb[0].mxu0
      %v7089 = vadd.f32 %v6416, %v7088
      %v7090 = vpop.f32.mrb[0].mxu0
      %v7091 = vadd.f32 %v6418, %v7090
      %v7092 = vpop.f32.mrb[0].mxu0
      %v7093 = vadd.f32 %v6420, %v7092
      %v7094 = vpop.f32.mrb[0].mxu0
      %v7095 = vadd.f32 %v6422, %v7094
      %7096 = vmatprep.mubr.bf16.mxu0 %v4443
      %7097 = vmatmul.mubr.bf16.gmra.mrb[0].mxu0 %v4442
      %v7098 = vpop.f32.mrb[0].mxu0
      %v7099 = vadd.f32 %v6426, %v7098
      %v7100 = vpop.f32.mrb[0].mxu0
      %v7101 = vadd.f32 %v6428, %v7100
      %v7102 = vpop.f32.mrb[0].mxu0
      %v7103 = vadd.f32 %v6430, %v7102
      %v7104 = vpop.f32.mrb[0].mxu0
      %v7105 = vadd.f32 %v6432, %v7104
      %7106 = vmatprep.mubr.bf16.mxu0 %v4453
      %7107 = vmatmul.mubr.bf16.gmra.mrb[0].mxu0 %v4452
      %v7108 = vpop.f32.mrb[0].mxu0
      %v7109 = vadd.f32 %v6436, %v7108
      %v7110 = vpop.f32.mrb[0].mxu0
      %v7111 = vadd.f32 %v6438, %v7110
      %v7112 = vpop.f32.mrb[0].mxu0
      %v7113 = vadd.f32 %v6440, %v7112
      %v7114 = vpop.f32.mrb[0].mxu0
      %v7115 = vadd.f32 %v6442, %v7114
      %7116 = vmatprep.mubr.bf16.mxu0 %v4463
      %7117 = vmatmul.mubr.bf16.gmra.mrb[0].mxu0 %v4462
      %v7118 = vpop.f32.mrb[0].mxu0
      %v7119 = vadd.f32 %v6446, %v7118
      %v7120 = vpop.f32.mrb[0].mxu0
      %v7121 = vadd.f32 %v6448, %v7120
      %v7122 = vpop.f32.mrb[0].mxu0
      %v7123 = vadd.f32 %v6450, %v7122
      %v7124 = vpop.f32.mrb[0].mxu0
      %v7125 = vadd.f32 %v6452, %v7124
      %7126 = vmatprep.mubr.bf16.mxu0 %v4473
      %7127 = vmatmul.mubr.bf16.gmra.mrb[0].mxu0 %v4472
      %v7128 = vpop.f32.mrb[0].mxu0
      %v7129 = vadd.f32 %v6456, %v7128
      %v7130 = vpop.f32.mrb[0].mxu0
      %v7131 = vadd.f32 %v6458, %v7130
      %v7132 = vpop.f32.mrb[0].mxu0
      %v7133 = vadd.f32 %v6460, %v7132
      %v7134 = vpop.f32.mrb[0].mxu0
      %v7135 = vadd.f32 %v6462, %v7134
      %7136 = vmatprep.mubr.bf16.mxu0 %v4483
      %7137 = vmatmul.mubr.bf16.gmra.mrb[0].mxu0 %v4482
      %v7138 = vpop.f32.mrb[0].mxu0
      %v7139 = vadd.f32 %v6466, %v7138
      %v7140 = vpop.f32.mrb[0].mxu0
      %v7141 = vadd.f32 %v6468, %v7140
      %v7142 = vpop.f32.mrb[0].mxu0
      %v7143 = vadd.f32 %v6470, %v7142
      %v7144 = vpop.f32.mrb[0].mxu0
      %v7145 = vadd.f32 %v6472, %v7144
      %7146 = vmatprep.mubr.bf16.mxu0 %v4493
      %7147 = vmatmul.mubr.bf16.gmra.mrb[0].mxu0 %v4492
      %v7148 = vpop.f32.mrb[0].mxu0
      %v7149 = vadd.f32 %v6476, %v7148
      %v7150 = vpop.f32.mrb[0].mxu0
      %v7151 = vadd.f32 %v6478, %v7150
      %v7152 = vpop.f32.mrb[0].mxu0
      %v7153 = vadd.f32 %v6480, %v7152
      %v7154 = vpop.f32.mrb[0].mxu0
      %v7155 = vadd.f32 %v6482, %v7154
      %7156 = vmatprep.mubr.bf16.mxu0 %v4503
      %7157 = vmatmul.mubr.bf16.gmra.mrb[0].mxu0 %v4502
      %v7158 = vpop.f32.mrb[0].mxu0
      %v7159 = vadd.f32 %v6486, %v7158
      %v7160 = vpop.f32.mrb[0].mxu0
      %v7161 = vadd.f32 %v6488, %v7160
      %v7162 = vpop.f32.mrb[0].mxu0
      %v7163 = vadd.f32 %v6490, %v7162
      %v7164 = vpop.f32.mrb[0].mxu0
      %v7165 = vadd.f32 %v6492, %v7164
      %7166 = vmatprep.mubr.bf16.mxu0 %v4513
      %7167 = vmatmul.mubr.bf16.gmra.mrb[0].mxu0 %v4512
      %v7168 = vpop.f32.mrb[0].mxu0
      %v7169 = vadd.f32 %v6496, %v7168
      %v7170 = vpop.f32.mrb[0].mxu0
      %v7171 = vadd.f32 %v6498, %v7170
      %v7172 = vpop.f32.mrb[0].mxu0
      %v7173 = vadd.f32 %v6500, %v7172
      %v7174 = vpop.f32.mrb[0].mxu0
      %v7175 = vadd.f32 %v6502, %v7174
      %7176 = vmatprep.mubr.bf16.mxu0 %v4523
      %7177 = vmatmul.mubr.bf16.gmra.mrb[0].mxu0 %v4522
      %v7178 = vpop.f32.mrb[0].mxu0
      %v7179 = vadd.f32 %v6506, %v7178
      %v7180 = vpop.f32.mrb[0].mxu0
      %v7181 = vadd.f32 %v6508, %v7180
      %v7182 = vpop.f32.mrb[0].mxu0
      %v7183 = vadd.f32 %v6510, %v7182
      %v7184 = vpop.f32.mrb[0].mxu0
      %v7185 = vadd.f32 %v6512, %v7184
      %7186 = vmatprep.mubr.bf16.mxu0 %v4533
      %7187 = vmatmul.mubr.bf16.gmra.mrb[0].mxu0 %v4532
      %v7188 = vpop.f32.mrb[0].mxu0
      %v7189 = vadd.f32 %v6516, %v7188
      %v7190 = vpop.f32.mrb[0].mxu0
      %v7191 = vadd.f32 %v6518, %v7190
      %v7192 = vpop.f32.mrb[0].mxu0
      %v7193 = vadd.f32 %v6520, %v7192
      %v7194 = vpop.f32.mrb[0].mxu0
      %v7195 = vadd.f32 %v6522, %v7194
      %7196 = vmatprep.mubr.bf16.mxu0 %v4543
      %7197 = vmatmul.mubr.bf16.gmra.mrb[0].mxu0 %v4542
      %v7198 = vpop.f32.mrb[0].mxu0
      %v7199 = vadd.f32 %v6526, %v7198
      %v7200 = vpop.f32.mrb[0].mxu0
      %v7201 = vadd.f32 %v6528, %v7200
      %v7202 = vpop.f32.mrb[0].mxu0
      %v7203 = vadd.f32 %v6530, %v7202
      %v7204 = vpop.f32.mrb[0].mxu0
      %v7205 = vadd.f32 %v6532, %v7204
      %7206 = vmatprep.mubr.bf16.mxu0 %v4553
      %7207 = vmatmul.mubr.bf16.gmra.mrb[0].mxu0 %v4552
      %v7208 = vpop.f32.mrb[0].mxu0
      %v7209 = vadd.f32 %v6536, %v7208
      %v7210 = vpop.f32.mrb[0].mxu0
      %v7211 = vadd.f32 %v6538, %v7210
      %v7212 = vpop.f32.mrb[0].mxu0
      %v7213 = vadd.f32 %v6540, %v7212
      %v7214 = vpop.f32.mrb[0].mxu0
      %v7215 = vadd.f32 %v6542, %v7214
      %7216 = vmatprep.mubr.bf16.mxu0 %v4563
      %7217 = vmatmul.mubr.bf16.gmra.mrb[0].mxu0 %v4562
      %v7218 = vpop.f32.mrb[0].mxu0
      %v7219 = vadd.f32 %v6546, %v7218
      %v7220 = vpop.f32.mrb[0].mxu0
      %v7221 = vadd.f32 %v6548, %v7220
      %v7222 = vpop.f32.mrb[0].mxu0
      %v7223 = vadd.f32 %v6550, %v7222
      %v7224 = vpop.f32.mrb[0].mxu0
      %v7225 = vadd.f32 %v6552, %v7224
      %7226 = vmatprep.mubr.bf16.mxu0 %v4573
      %7227 = vmatmul.mubr.bf16.gmra.mrb[0].mxu0 %v4572
      %v7228 = vpop.f32.mrb[0].mxu0
      %v7229 = vadd.f32 %v6556, %v7228
      %v7230 = vpop.f32.mrb[0].mxu0
      %v7231 = vadd.f32 %v6558, %v7230
      %v7232 = vpop.f32.mrb[0].mxu0
      %v7233 = vadd.f32 %v6560, %v7232
      %v7234 = vpop.f32.mrb[0].mxu0
      %v7235 = vadd.f32 %v6562, %v7234
      %7236 = vmatprep.mubr.bf16.mxu0 %v4583
      %7237 = vmatmul.mubr.bf16.gmra.mrb[0].mxu0 %v4582
      %v7238 = vpop.f32.mrb[0].mxu0
      %v7239 = vadd.f32 %v6566, %v7238
      %v7240 = vpop.f32.mrb[0].mxu0
      %v7241 = vadd.f32 %v6568, %v7240
      %v7242 = vpop.f32.mrb[0].mxu0
      %v7243 = vadd.f32 %v6570, %v7242
      %v7244 = vpop.f32.mrb[0].mxu0
      %v7245 = vadd.f32 %v6572, %v7244
      %7246 = vmatprep.mubr.bf16.mxu0 %v4593
      %7247 = vmatmul.mubr.bf16.gmra.mrb[0].mxu0 %v4592
      %v7248 = vpop.f32.mrb[0].mxu0
      %v7249 = vadd.f32 %v6576, %v7248
      %v7250 = vpop.f32.mrb[0].mxu0
      %v7251 = vadd.f32 %v6578, %v7250
      %v7252 = vpop.f32.mrb[0].mxu0
      %v7253 = vadd.f32 %v6580, %v7252
      %v7254 = vpop.f32.mrb[0].mxu0
      %v7255 = vadd.f32 %v6582, %v7254
      %7256 = vmatprep.mubr.bf16.mxu0 %v4603
      %7257 = vmatmul.mubr.bf16.gmra.mrb[0].mxu0 %v4602
      %v7258 = vpop.f32.mrb[0].mxu0
      %v7259 = vadd.f32 %v6586, %v7258
      %v7260 = vpop.f32.mrb[0].mxu0
      %v7261 = vadd.f32 %v6588, %v7260
      %v7262 = vpop.f32.mrb[0].mxu0
      %v7263 = vadd.f32 %v6590, %v7262
      %v7264 = vpop.f32.mrb[0].mxu0
      %v7265 = vadd.f32 %v6592, %v7264
      %7266 = vmatprep.mubr.bf16.mxu0 %v4613
      %7267 = vmatmul.mubr.bf16.gmra.mrb[0].mxu0 %v4612
      %v7268 = vpop.f32.mrb[0].mxu0
      %v7269 = vadd.f32 %v6596, %v7268
      %v7270 = vpop.f32.mrb[0].mxu0
      %v7271 = vadd.f32 %v6598, %v7270
      %v7272 = vpop.f32.mrb[0].mxu0
      %v7273 = vadd.f32 %v6600, %v7272
      %v7274 = vpop.f32.mrb[0].mxu0
      %v7275 = vadd.f32 %v6602, %v7274
      %7276 = vmatprep.mubr.bf16.mxu0 %v4623
      %7277 = vmatmul.mubr.bf16.gmra.mrb[0].mxu0 %v4622
      %v7278 = vpop.f32.mrb[0].mxu0
      %v7279 = vadd.f32 %v6606, %v7278
      %v7280 = vpop.f32.mrb[0].mxu0
      %v7281 = vadd.f32 %v6608, %v7280
      %v7282 = vpop.f32.mrb[0].mxu0
      %v7283 = vadd.f32 %v6610, %v7282
      %v7284 = vpop.f32.mrb[0].mxu0
      %v7285 = vadd.f32 %v6612, %v7284
      %7286 = vmatprep.mubr.bf16.mxu0 %v4633
      %7287 = vmatmul.mubr.bf16.gmra.mrb[0].mxu0 %v4632
      %v7288 = vpop.f32.mrb[0].mxu0
      %v7289 = vadd.f32 %v6616, %v7288
      %v7290 = vpop.f32.mrb[0].mxu0
      %v7291 = vadd.f32 %v6618, %v7290
      %v7292 = vpop.f32.mrb[0].mxu0
      %v7293 = vadd.f32 %v6620, %v7292
      %v7294 = vpop.f32.mrb[0].mxu0
      %v7295 = vadd.f32 %v6622, %v7294
      %7296 = vmatprep.mubr.bf16.mxu0 %v4643
      %7297 = vmatmul.mubr.bf16.gmra.mrb[0].mxu0 %v4642
      %v7298 = vpop.f32.mrb[0].mxu0
      %v7299 = vadd.f32 %v6626, %v7298
      %v7300 = vpop.f32.mrb[0].mxu0
      %v7301 = vadd.f32 %v6628, %v7300
      %v7302 = vpop.f32.mrb[0].mxu0
      %v7303 = vadd.f32 %v6630, %v7302
      %v7304 = vpop.f32.mrb[0].mxu0
      %v7305 = vadd.f32 %v6632, %v7304
      %7306 = vmatprep.mubr.bf16.mxu0 %v4653
      %7307 = vmatmul.mubr.bf16.gmra.mrb[0].mxu0 %v4652
      %v7308 = vpop.f32.mrb[0].mxu0
      %v7309 = vadd.f32 %v6636, %v7308
      %v7310 = vpop.f32.mrb[0].mxu0
      %v7311 = vadd.f32 %v6638, %v7310
      %v7312 = vpop.f32.mrb[0].mxu0
      %v7313 = vadd.f32 %v6640, %v7312
      %v7314 = vpop.f32.mrb[0].mxu0
      %v7315 = vadd.f32 %v6642, %v7314
      %7316 = vdwg.mxu0
      %7317 = vmatprep.subr.bf16.mxu0 %v627
      %7318 = vmatpush1.bf16.msra.mxu0 %v626
      %7319 = vmatprep.subr.bf16.mxu0 %v629
      %7320 = vmatpush1.bf16.msra.mxu0 %v628
      %7321 = vmatprep.subr.bf16.mxu0 %v631
      %7322 = vmatpush1.bf16.msra.mxu0 %v630
      %7323 = vmatprep.subr.bf16.mxu0 %v633
      %7324 = vmatpush1.bf16.msra.mxu0 %v632
      %7325 = vmatprep.subr.bf16.mxu0 %v635
      %7326 = vmatpush1.bf16.msra.mxu0 %v634
      %7327 = vmatprep.subr.bf16.mxu0 %v637
      %7328 = vmatpush1.bf16.msra.mxu0 %v636
      %7329 = vmatprep.subr.bf16.mxu0 %v639
      %7330 = vmatpush1.bf16.msra.mxu0 %v638
      %7331 = vmatprep.subr.bf16.mxu0 %v641
      %7332 = vmatpush1.bf16.msra.mxu0 %v640
      %7333 = vmatprep.subr.bf16.mxu0 %v643
      %7334 = vmatpush1.bf16.msra.mxu0 %v642
      %7335 = vmatprep.subr.bf16.mxu0 %v645
      %7336 = vmatpush1.bf16.msra.mxu0 %v644
      %7337 = vmatprep.subr.bf16.mxu0 %v647
      %7338 = vmatpush1.bf16.msra.mxu0 %v646
      %7339 = vmatprep.subr.bf16.mxu0 %v649
      %7340 = vmatpush1.bf16.msra.mxu0 %v648
      %7341 = vmatprep.subr.bf16.mxu0 %v651
      %7342 = vmatpush1.bf16.msra.mxu0 %v650
      %7343 = vmatprep.subr.bf16.mxu0 %v653
      %7344 = vmatpush1.bf16.msra.mxu0 %v652
      %7345 = vmatprep.subr.bf16.mxu0 %v655
      %7346 = vmatpush1.bf16.msra.mxu0 %v654
      %7347 = vmatprep.subr.bf16.mxu0 %v657
      %7348 = vmatpush1.bf16.msra.mxu0 %v656
      %7349 = vmatprep.mubr.bf16.mxu0 %v4025
      %7350 = vmatmul.mubr.bf16.gmra.mrb[0].mxu0 %v4024
      %v7351 = vpop.f32.mrb[0].mxu0
      %v7352 = vadd.f32 %v6679, %v7351
      %v7353 = vpop.f32.mrb[0].mxu0
      %v7354 = vadd.f32 %v6681, %v7353
      %v7355 = vpop.f32.mrb[0].mxu0
      %v7356 = vadd.f32 %v6683, %v7355
      %v7357 = vpop.f32.mrb[0].mxu0
      %v7358 = vadd.f32 %v6685, %v7357
      %7359 = vmatprep.mubr.bf16.mxu0 %v4035
      %7360 = vmatmul.mubr.bf16.gmra.mrb[0].mxu0 %v4034
      %v7361 = vpop.f32.mrb[0].mxu0
      %v7362 = vadd.f32 %v6689, %v7361
      %v7363 = vpop.f32.mrb[0].mxu0
      %v7364 = vadd.f32 %v6691, %v7363
      %v7365 = vpop.f32.mrb[0].mxu0
      %v7366 = vadd.f32 %v6693, %v7365
      %v7367 = vpop.f32.mrb[0].mxu0
      %v7368 = vadd.f32 %v6695, %v7367
      %7369 = vmatprep.mubr.bf16.mxu0 %v4045
      %7370 = vmatmul.mubr.bf16.gmra.mrb[0].mxu0 %v4044
      %v7371 = vpop.f32.mrb[0].mxu0
      %v7372 = vadd.f32 %v6699, %v7371
      %v7373 = vpop.f32.mrb[0].mxu0
      %v7374 = vadd.f32 %v6701, %v7373
      %v7375 = vpop.f32.mrb[0].mxu0
      %v7376 = vadd.f32 %v6703, %v7375
      %v7377 = vpop.f32.mrb[0].mxu0
      %v7378 = vadd.f32 %v6705, %v7377
      %7379 = vmatprep.mubr.bf16.mxu0 %v4055
      %7380 = vmatmul.mubr.bf16.gmra.mrb[0].mxu0 %v4054
      %v7381 = vpop.f32.mrb[0].mxu0
      %v7382 = vadd.f32 %v6709, %v7381
      %v7383 = vpop.f32.mrb[0].mxu0
      %v7384 = vadd.f32 %v6711, %v7383
      %v7385 = vpop.f32.mrb[0].mxu0
      %v7386 = vadd.f32 %v6713, %v7385
      %v7387 = vpop.f32.mrb[0].mxu0
      %v7388 = vadd.f32 %v6715, %v7387
      %7389 = vmatprep.mubr.bf16.mxu0 %v4065
      %7390 = vmatmul.mubr.bf16.gmra.mrb[0].mxu0 %v4064
      %v7391 = vpop.f32.mrb[0].mxu0
      %v7392 = vadd.f32 %v6719, %v7391
      %v7393 = vpop.f32.mrb[0].mxu0
      %v7394 = vadd.f32 %v6721, %v7393
      %v7395 = vpop.f32.mrb[0].mxu0
      %v7396 = vadd.f32 %v6723, %v7395
      %v7397 = vpop.f32.mrb[0].mxu0
      %v7398 = vadd.f32 %v6725, %v7397
      %7399 = vmatprep.mubr.bf16.mxu0 %v4075
      %7400 = vmatmul.mubr.bf16.gmra.mrb[0].mxu0 %v4074
      %v7401 = vpop.f32.mrb[0].mxu0
      %v7402 = vadd.f32 %v6729, %v7401
      %v7403 = vpop.f32.mrb[0].mxu0
      %v7404 = vadd.f32 %v6731, %v7403
      %v7405 = vpop.f32.mrb[0].mxu0
      %v7406 = vadd.f32 %v6733, %v7405
      %v7407 = vpop.f32.mrb[0].mxu0
      %v7408 = vadd.f32 %v6735, %v7407
      %7409 = vmatprep.mubr.bf16.mxu0 %v4085
      %7410 = vmatmul.mubr.bf16.gmra.mrb[0].mxu0 %v4084
      %v7411 = vpop.f32.mrb[0].mxu0
      %v7412 = vadd.f32 %v6739, %v7411
      %v7413 = vpop.f32.mrb[0].mxu0
      %v7414 = vadd.f32 %v6741, %v7413
      %v7415 = vpop.f32.mrb[0].mxu0
      %v7416 = vadd.f32 %v6743, %v7415
      %v7417 = vpop.f32.mrb[0].mxu0
      %v7418 = vadd.f32 %v6745, %v7417
      %7419 = vmatprep.mubr.bf16.mxu0 %v4095
      %7420 = vmatmul.mubr.bf16.gmra.mrb[0].mxu0 %v4094
      %v7421 = vpop.f32.mrb[0].mxu0
      %v7422 = vadd.f32 %v6749, %v7421
      %v7423 = vpop.f32.mrb[0].mxu0
      %v7424 = vadd.f32 %v6751, %v7423
      %v7425 = vpop.f32.mrb[0].mxu0
      %v7426 = vadd.f32 %v6753, %v7425
      %v7427 = vpop.f32.mrb[0].mxu0
      %v7428 = vadd.f32 %v6755, %v7427
      %7429 = vmatprep.mubr.bf16.mxu0 %v4105
      %7430 = vmatmul.mubr.bf16.gmra.mrb[0].mxu0 %v4104
      %v7431 = vpop.f32.mrb[0].mxu0
      %v7432 = vadd.f32 %v6759, %v7431
      %v7433 = vpop.f32.mrb[0].mxu0
      %v7434 = vadd.f32 %v6761, %v7433
      %v7435 = vpop.f32.mrb[0].mxu0
      %v7436 = vadd.f32 %v6763, %v7435
      %v7437 = vpop.f32.mrb[0].mxu0
      %v7438 = vadd.f32 %v6765, %v7437
      %7439 = vmatprep.mubr.bf16.mxu0 %v4115
      %7440 = vmatmul.mubr.bf16.gmra.mrb[0].mxu0 %v4114
      %v7441 = vpop.f32.mrb[0].mxu0
      %v7442 = vadd.f32 %v6769, %v7441
      %v7443 = vpop.f32.mrb[0].mxu0
      %v7444 = vadd.f32 %v6771, %v7443
      %v7445 = vpop.f32.mrb[0].mxu0
      %v7446 = vadd.f32 %v6773, %v7445
      %v7447 = vpop.f32.mrb[0].mxu0
      %v7448 = vadd.f32 %v6775, %v7447
      %7449 = vmatprep.mubr.bf16.mxu0 %v4125
      %7450 = vmatmul.mubr.bf16.gmra.mrb[0].mxu0 %v4124
      %v7451 = vpop.f32.mrb[0].mxu0
      %v7452 = vadd.f32 %v6779, %v7451
      %v7453 = vpop.f32.mrb[0].mxu0
      %v7454 = vadd.f32 %v6781, %v7453
      %v7455 = vpop.f32.mrb[0].mxu0
      %v7456 = vadd.f32 %v6783, %v7455
      %v7457 = vpop.f32.mrb[0].mxu0
      %v7458 = vadd.f32 %v6785, %v7457
      %7459 = vmatprep.mubr.bf16.mxu0 %v4135
      %7460 = vmatmul.mubr.bf16.gmra.mrb[0].mxu0 %v4134
      %v7461 = vpop.f32.mrb[0].mxu0
      %v7462 = vadd.f32 %v6789, %v7461
      %v7463 = vpop.f32.mrb[0].mxu0
      %v7464 = vadd.f32 %v6791, %v7463
      %v7465 = vpop.f32.mrb[0].mxu0
      %v7466 = vadd.f32 %v6793, %v7465
      %v7467 = vpop.f32.mrb[0].mxu0
      %v7468 = vadd.f32 %v6795, %v7467
      %7469 = vmatprep.mubr.bf16.mxu0 %v4145
      %7470 = vmatmul.mubr.bf16.gmra.mrb[0].mxu0 %v4144
      %v7471 = vpop.f32.mrb[0].mxu0
      %v7472 = vadd.f32 %v6799, %v7471
      %v7473 = vpop.f32.mrb[0].mxu0
      %v7474 = vadd.f32 %v6801, %v7473
      %v7475 = vpop.f32.mrb[0].mxu0
      %v7476 = vadd.f32 %v6803, %v7475
      %v7477 = vpop.f32.mrb[0].mxu0
      %v7478 = vadd.f32 %v6805, %v7477
      %7479 = vmatprep.mubr.bf16.mxu0 %v4155
      %7480 = vmatmul.mubr.bf16.gmra.mrb[0].mxu0 %v4154
      %v7481 = vpop.f32.mrb[0].mxu0
      %v7482 = vadd.f32 %v6809, %v7481
      %v7483 = vpop.f32.mrb[0].mxu0
      %v7484 = vadd.f32 %v6811, %v7483
      %v7485 = vpop.f32.mrb[0].mxu0
      %v7486 = vadd.f32 %v6813, %v7485
      %v7487 = vpop.f32.mrb[0].mxu0
      %v7488 = vadd.f32 %v6815, %v7487
      %7489 = vmatprep.mubr.bf16.mxu0 %v4165
      %7490 = vmatmul.mubr.bf16.gmra.mrb[0].mxu0 %v4164
      %v7491 = vpop.f32.mrb[0].mxu0
      %v7492 = vadd.f32 %v6819, %v7491
      %v7493 = vpop.f32.mrb[0].mxu0
      %v7494 = vadd.f32 %v6821, %v7493
      %v7495 = vpop.f32.mrb[0].mxu0
      %v7496 = vadd.f32 %v6823, %v7495
      %v7497 = vpop.f32.mrb[0].mxu0
      %v7498 = vadd.f32 %v6825, %v7497
      %7499 = vmatprep.mubr.bf16.mxu0 %v4175
      %7500 = vmatmul.mubr.bf16.gmra.mrb[0].mxu0 %v4174
      %v7501 = vpop.f32.mrb[0].mxu0
      %v7502 = vadd.f32 %v6829, %v7501
      %v7503 = vpop.f32.mrb[0].mxu0
      %v7504 = vadd.f32 %v6831, %v7503
      %v7505 = vpop.f32.mrb[0].mxu0
      %v7506 = vadd.f32 %v6833, %v7505
      %v7507 = vpop.f32.mrb[0].mxu0
      %v7508 = vadd.f32 %v6835, %v7507
      %7509 = vmatprep.mubr.bf16.mxu0 %v4185
      %7510 = vmatmul.mubr.bf16.gmra.mrb[0].mxu0 %v4184
      %v7511 = vpop.f32.mrb[0].mxu0
      %v7512 = vadd.f32 %v6839, %v7511
      %v7513 = vpop.f32.mrb[0].mxu0
      %v7514 = vadd.f32 %v6841, %v7513
      %v7515 = vpop.f32.mrb[0].mxu0
      %v7516 = vadd.f32 %v6843, %v7515
      %v7517 = vpop.f32.mrb[0].mxu0
      %v7518 = vadd.f32 %v6845, %v7517
      %7519 = vmatprep.mubr.bf16.mxu0 %v4195
      %7520 = vmatmul.mubr.bf16.gmra.mrb[0].mxu0 %v4194
      %v7521 = vpop.f32.mrb[0].mxu0
      %v7522 = vadd.f32 %v6849, %v7521
      %v7523 = vpop.f32.mrb[0].mxu0
      %v7524 = vadd.f32 %v6851, %v7523
      %v7525 = vpop.f32.mrb[0].mxu0
      %v7526 = vadd.f32 %v6853, %v7525
      %v7527 = vpop.f32.mrb[0].mxu0
      %v7528 = vadd.f32 %v6855, %v7527
      %7529 = vmatprep.mubr.bf16.mxu0 %v4205
      %7530 = vmatmul.mubr.bf16.gmra.mrb[0].mxu0 %v4204
      %v7531 = vpop.f32.mrb[0].mxu0
      %v7532 = vadd.f32 %v6859, %v7531
      %v7533 = vpop.f32.mrb[0].mxu0
      %v7534 = vadd.f32 %v6861, %v7533
      %v7535 = vpop.f32.mrb[0].mxu0
      %v7536 = vadd.f32 %v6863, %v7535
      %v7537 = vpop.f32.mrb[0].mxu0
      %v7538 = vadd.f32 %v6865, %v7537
      %7539 = vmatprep.mubr.bf16.mxu0 %v4215
      %7540 = vmatmul.mubr.bf16.gmra.mrb[0].mxu0 %v4214
      %v7541 = vpop.f32.mrb[0].mxu0
      %v7542 = vadd.f32 %v6869, %v7541
      %v7543 = vpop.f32.mrb[0].mxu0
      %v7544 = vadd.f32 %v6871, %v7543
      %v7545 = vpop.f32.mrb[0].mxu0
      %v7546 = vadd.f32 %v6873, %v7545
      %v7547 = vpop.f32.mrb[0].mxu0
      %v7548 = vadd.f32 %v6875, %v7547
      %7549 = vmatprep.mubr.bf16.mxu0 %v4225
      %7550 = vmatmul.mubr.bf16.gmra.mrb[0].mxu0 %v4224
      %v7551 = vpop.f32.mrb[0].mxu0
      %v7552 = vadd.f32 %v6879, %v7551
      %v7553 = vpop.f32.mrb[0].mxu0
      %v7554 = vadd.f32 %v6881, %v7553
      %v7555 = vpop.f32.mrb[0].mxu0
      %v7556 = vadd.f32 %v6883, %v7555
      %v7557 = vpop.f32.mrb[0].mxu0
      %v7558 = vadd.f32 %v6885, %v7557
      %7559 = vmatprep.mubr.bf16.mxu0 %v4235
      %7560 = vmatmul.mubr.bf16.gmra.mrb[0].mxu0 %v4234
      %v7561 = vpop.f32.mrb[0].mxu0
      %v7562 = vadd.f32 %v6889, %v7561
      %v7563 = vpop.f32.mrb[0].mxu0
      %v7564 = vadd.f32 %v6891, %v7563
      %v7565 = vpop.f32.mrb[0].mxu0
      %v7566 = vadd.f32 %v6893, %v7565
      %v7567 = vpop.f32.mrb[0].mxu0
      %v7568 = vadd.f32 %v6895, %v7567
      %7569 = vmatprep.mubr.bf16.mxu0 %v4245
      %7570 = vmatmul.mubr.bf16.gmra.mrb[0].mxu0 %v4244
      %v7571 = vpop.f32.mrb[0].mxu0
      %v7572 = vadd.f32 %v6899, %v7571
      %v7573 = vpop.f32.mrb[0].mxu0
      %v7574 = vadd.f32 %v6901, %v7573
      %v7575 = vpop.f32.mrb[0].mxu0
      %v7576 = vadd.f32 %v6903, %v7575
      %v7577 = vpop.f32.mrb[0].mxu0
      %v7578 = vadd.f32 %v6905, %v7577
      %7579 = vmatprep.mubr.bf16.mxu0 %v4255
      %7580 = vmatmul.mubr.bf16.gmra.mrb[0].mxu0 %v4254
      %v7581 = vpop.f32.mrb[0].mxu0
      %v7582 = vadd.f32 %v6909, %v7581
      %v7583 = vpop.f32.mrb[0].mxu0
      %v7584 = vadd.f32 %v6911, %v7583
      %v7585 = vpop.f32.mrb[0].mxu0
      %v7586 = vadd.f32 %v6913, %v7585
      %v7587 = vpop.f32.mrb[0].mxu0
      %v7588 = vadd.f32 %v6915, %v7587
      %7589 = vmatprep.mubr.bf16.mxu0 %v4265
      %7590 = vmatmul.mubr.bf16.gmra.mrb[0].mxu0 %v4264
      %v7591 = vpop.f32.mrb[0].mxu0
      %v7592 = vadd.f32 %v6919, %v7591
      %v7593 = vpop.f32.mrb[0].mxu0
      %v7594 = vadd.f32 %v6921, %v7593
      %v7595 = vpop.f32.mrb[0].mxu0
      %v7596 = vadd.f32 %v6923, %v7595
      %v7597 = vpop.f32.mrb[0].mxu0
      %v7598 = vadd.f32 %v6925, %v7597
      %7599 = vmatprep.mubr.bf16.mxu0 %v4275
      %7600 = vmatmul.mubr.bf16.gmra.mrb[0].mxu0 %v4274
      %v7601 = vpop.f32.mrb[0].mxu0
      %v7602 = vadd.f32 %v6929, %v7601
      %v7603 = vpop.f32.mrb[0].mxu0
      %v7604 = vadd.f32 %v6931, %v7603
      %v7605 = vpop.f32.mrb[0].mxu0
      %v7606 = vadd.f32 %v6933, %v7605
      %v7607 = vpop.f32.mrb[0].mxu0
      %v7608 = vadd.f32 %v6935, %v7607
      %7609 = vmatprep.mubr.bf16.mxu0 %v4285
      %7610 = vmatmul.mubr.bf16.gmra.mrb[0].mxu0 %v4284
      %v7611 = vpop.f32.mrb[0].mxu0
      %v7612 = vadd.f32 %v6939, %v7611
      %v7613 = vpop.f32.mrb[0].mxu0
      %v7614 = vadd.f32 %v6941, %v7613
      %v7615 = vpop.f32.mrb[0].mxu0
      %v7616 = vadd.f32 %v6943, %v7615
      %v7617 = vpop.f32.mrb[0].mxu0
      %v7618 = vadd.f32 %v6945, %v7617
      %7619 = vmatprep.mubr.bf16.mxu0 %v4295
      %7620 = vmatmul.mubr.bf16.gmra.mrb[0].mxu0 %v4294
      %v7621 = vpop.f32.mrb[0].mxu0
      %v7622 = vadd.f32 %v6949, %v7621
      %v7623 = vpop.f32.mrb[0].mxu0
      %v7624 = vadd.f32 %v6951, %v7623
      %v7625 = vpop.f32.mrb[0].mxu0
      %v7626 = vadd.f32 %v6953, %v7625
      %v7627 = vpop.f32.mrb[0].mxu0
      %v7628 = vadd.f32 %v6955, %v7627
      %7629 = vmatprep.mubr.bf16.mxu0 %v4305
      %7630 = vmatmul.mubr.bf16.gmra.mrb[0].mxu0 %v4304
      %v7631 = vpop.f32.mrb[0].mxu0
      %v7632 = vadd.f32 %v6959, %v7631
      %v7633 = vpop.f32.mrb[0].mxu0
      %v7634 = vadd.f32 %v6961, %v7633
      %v7635 = vpop.f32.mrb[0].mxu0
      %v7636 = vadd.f32 %v6963, %v7635
      %v7637 = vpop.f32.mrb[0].mxu0
      %v7638 = vadd.f32 %v6965, %v7637
      %7639 = vmatprep.mubr.bf16.mxu0 %v4315
      %7640 = vmatmul.mubr.bf16.gmra.mrb[0].mxu0 %v4314
      %v7641 = vpop.f32.mrb[0].mxu0
      %v7642 = vadd.f32 %v6969, %v7641
      %v7643 = vpop.f32.mrb[0].mxu0
      %v7644 = vadd.f32 %v6971, %v7643
      %v7645 = vpop.f32.mrb[0].mxu0
      %v7646 = vadd.f32 %v6973, %v7645
      %v7647 = vpop.f32.mrb[0].mxu0
      %v7648 = vadd.f32 %v6975, %v7647
      %7649 = vmatprep.mubr.bf16.mxu0 %v4325
      %7650 = vmatmul.mubr.bf16.gmra.mrb[0].mxu0 %v4324
      %v7651 = vpop.f32.mrb[0].mxu0
      %v7652 = vadd.f32 %v6979, %v7651
      %v7653 = vpop.f32.mrb[0].mxu0
      %v7654 = vadd.f32 %v6981, %v7653
      %v7655 = vpop.f32.mrb[0].mxu0
      %v7656 = vadd.f32 %v6983, %v7655
      %v7657 = vpop.f32.mrb[0].mxu0
      %v7658 = vadd.f32 %v6985, %v7657
      %7659 = vmatprep.mubr.bf16.mxu0 %v4335
      %7660 = vmatmul.mubr.bf16.gmra.mrb[0].mxu0 %v4334
      %v7661 = vpop.f32.mrb[0].mxu0
      %v7662 = vadd.f32 %v6989, %v7661
      %v7663 = vpop.f32.mrb[0].mxu0
      %v7664 = vadd.f32 %v6991, %v7663
      %v7665 = vpop.f32.mrb[0].mxu0
      %v7666 = vadd.f32 %v6993, %v7665
      %v7667 = vpop.f32.mrb[0].mxu0
      %v7668 = vadd.f32 %v6995, %v7667
      %7669 = vmatprep.mubr.bf16.mxu0 %v4345
      %7670 = vmatmul.mubr.bf16.gmra.mrb[0].mxu0 %v4344
      %v7671 = vpop.f32.mrb[0].mxu0
      %v7672 = vadd.f32 %v6999, %v7671
      %v7673 = vpop.f32.mrb[0].mxu0
      %v7674 = vadd.f32 %v7001, %v7673
      %v7675 = vpop.f32.mrb[0].mxu0
      %v7676 = vadd.f32 %v7003, %v7675
      %v7677 = vpop.f32.mrb[0].mxu0
      %v7678 = vadd.f32 %v7005, %v7677
      %7679 = vmatprep.mubr.bf16.mxu0 %v4355
      %7680 = vmatmul.mubr.bf16.gmra.mrb[0].mxu0 %v4354
      %v7681 = vpop.f32.mrb[0].mxu0
      %v7682 = vadd.f32 %v7009, %v7681
      %v7683 = vpop.f32.mrb[0].mxu0
      %v7684 = vadd.f32 %v7011, %v7683
      %v7685 = vpop.f32.mrb[0].mxu0
      %v7686 = vadd.f32 %v7013, %v7685
      %v7687 = vpop.f32.mrb[0].mxu0
      %v7688 = vadd.f32 %v7015, %v7687
      %7689 = vmatprep.mubr.bf16.mxu0 %v4365
      %7690 = vmatmul.mubr.bf16.gmra.mrb[0].mxu0 %v4364
      %v7691 = vpop.f32.mrb[0].mxu0
      %v7692 = vadd.f32 %v7019, %v7691
      %v7693 = vpop.f32.mrb[0].mxu0
      %v7694 = vadd.f32 %v7021, %v7693
      %v7695 = vpop.f32.mrb[0].mxu0
      %v7696 = vadd.f32 %v7023, %v7695
      %v7697 = vpop.f32.mrb[0].mxu0
      %v7698 = vadd.f32 %v7025, %v7697
      %7699 = vmatprep.mubr.bf16.mxu0 %v4375
      %7700 = vmatmul.mubr.bf16.gmra.mrb[0].mxu0 %v4374
      %v7701 = vpop.f32.mrb[0].mxu0
      %v7702 = vadd.f32 %v7029, %v7701
      %v7703 = vpop.f32.mrb[0].mxu0
      %v7704 = vadd.f32 %v7031, %v7703
      %v7705 = vpop.f32.mrb[0].mxu0
      %v7706 = vadd.f32 %v7033, %v7705
      %v7707 = vpop.f32.mrb[0].mxu0
      %v7708 = vadd.f32 %v7035, %v7707
      %7709 = vmatprep.mubr.bf16.mxu0 %v4385
      %7710 = vmatmul.mubr.bf16.gmra.mrb[0].mxu0 %v4384
      %v7711 = vpop.f32.mrb[0].mxu0
      %v7712 = vadd.f32 %v7039, %v7711
      %v7713 = vpop.f32.mrb[0].mxu0
      %v7714 = vadd.f32 %v7041, %v7713
      %v7715 = vpop.f32.mrb[0].mxu0
      %v7716 = vadd.f32 %v7043, %v7715
      %v7717 = vpop.f32.mrb[0].mxu0
      %v7718 = vadd.f32 %v7045, %v7717
      %7719 = vmatprep.mubr.bf16.mxu0 %v4395
      %7720 = vmatmul.mubr.bf16.gmra.mrb[0].mxu0 %v4394
      %v7721 = vpop.f32.mrb[0].mxu0
      %v7722 = vadd.f32 %v7049, %v7721
      %v7723 = vpop.f32.mrb[0].mxu0
      %v7724 = vadd.f32 %v7051, %v7723
      %v7725 = vpop.f32.mrb[0].mxu0
      %v7726 = vadd.f32 %v7053, %v7725
      %v7727 = vpop.f32.mrb[0].mxu0
      %v7728 = vadd.f32 %v7055, %v7727
      %7729 = vmatprep.mubr.bf16.mxu0 %v4405
      %7730 = vmatmul.mubr.bf16.gmra.mrb[0].mxu0 %v4404
      %v7731 = vpop.f32.mrb[0].mxu0
      %v7732 = vadd.f32 %v7059, %v7731
      %v7733 = vpop.f32.mrb[0].mxu0
      %v7734 = vadd.f32 %v7061, %v7733
      %v7735 = vpop.f32.mrb[0].mxu0
      %v7736 = vadd.f32 %v7063, %v7735
      %v7737 = vpop.f32.mrb[0].mxu0
      %v7738 = vadd.f32 %v7065, %v7737
      %7739 = vmatprep.mubr.bf16.mxu0 %v4415
      %7740 = vmatmul.mubr.bf16.gmra.mrb[0].mxu0 %v4414
      %v7741 = vpop.f32.mrb[0].mxu0
      %v7742 = vadd.f32 %v7069, %v7741
      %v7743 = vpop.f32.mrb[0].mxu0
      %v7744 = vadd.f32 %v7071, %v7743
      %v7745 = vpop.f32.mrb[0].mxu0
      %v7746 = vadd.f32 %v7073, %v7745
      %v7747 = vpop.f32.mrb[0].mxu0
      %v7748 = vadd.f32 %v7075, %v7747
      %7749 = vmatprep.mubr.bf16.mxu0 %v4425
      %7750 = vmatmul.mubr.bf16.gmra.mrb[0].mxu0 %v4424
      %v7751 = vpop.f32.mrb[0].mxu0
      %v7752 = vadd.f32 %v7079, %v7751
      %v7753 = vpop.f32.mrb[0].mxu0
      %v7754 = vadd.f32 %v7081, %v7753
      %v7755 = vpop.f32.mrb[0].mxu0
      %v7756 = vadd.f32 %v7083, %v7755
      %v7757 = vpop.f32.mrb[0].mxu0
      %v7758 = vadd.f32 %v7085, %v7757
      %7759 = vmatprep.mubr.bf16.mxu0 %v4435
      %7760 = vmatmul.mubr.bf16.gmra.mrb[0].mxu0 %v4434
      %v7761 = vpop.f32.mrb[0].mxu0
      %v7762 = vadd.f32 %v7089, %v7761
      %v7763 = vpop.f32.mrb[0].mxu0
      %v7764 = vadd.f32 %v7091, %v7763
      %v7765 = vpop.f32.mrb[0].mxu0
      %v7766 = vadd.f32 %v7093, %v7765
      %v7767 = vpop.f32.mrb[0].mxu0
      %v7768 = vadd.f32 %v7095, %v7767
      %7769 = vmatprep.mubr.bf16.mxu0 %v4445
      %7770 = vmatmul.mubr.bf16.gmra.mrb[0].mxu0 %v4444
      %v7771 = vpop.f32.mrb[0].mxu0
      %v7772 = vadd.f32 %v7099, %v7771
      %v7773 = vpop.f32.mrb[0].mxu0
      %v7774 = vadd.f32 %v7101, %v7773
      %v7775 = vpop.f32.mrb[0].mxu0
      %v7776 = vadd.f32 %v7103, %v7775
      %v7777 = vpop.f32.mrb[0].mxu0
      %v7778 = vadd.f32 %v7105, %v7777
      %7779 = vmatprep.mubr.bf16.mxu0 %v4455
      %7780 = vmatmul.mubr.bf16.gmra.mrb[0].mxu0 %v4454
      %v7781 = vpop.f32.mrb[0].mxu0
      %v7782 = vadd.f32 %v7109, %v7781
      %v7783 = vpop.f32.mrb[0].mxu0
      %v7784 = vadd.f32 %v7111, %v7783
      %v7785 = vpop.f32.mrb[0].mxu0
      %v7786 = vadd.f32 %v7113, %v7785
      %v7787 = vpop.f32.mrb[0].mxu0
      %v7788 = vadd.f32 %v7115, %v7787
      %7789 = vmatprep.mubr.bf16.mxu0 %v4465
      %7790 = vmatmul.mubr.bf16.gmra.mrb[0].mxu0 %v4464
      %v7791 = vpop.f32.mrb[0].mxu0
      %v7792 = vadd.f32 %v7119, %v7791
      %v7793 = vpop.f32.mrb[0].mxu0
      %v7794 = vadd.f32 %v7121, %v7793
      %v7795 = vpop.f32.mrb[0].mxu0
      %v7796 = vadd.f32 %v7123, %v7795
      %v7797 = vpop.f32.mrb[0].mxu0
      %v7798 = vadd.f32 %v7125, %v7797
      %7799 = vmatprep.mubr.bf16.mxu0 %v4475
      %7800 = vmatmul.mubr.bf16.gmra.mrb[0].mxu0 %v4474
      %v7801 = vpop.f32.mrb[0].mxu0
      %v7802 = vadd.f32 %v7129, %v7801
      %v7803 = vpop.f32.mrb[0].mxu0
      %v7804 = vadd.f32 %v7131, %v7803
      %v7805 = vpop.f32.mrb[0].mxu0
      %v7806 = vadd.f32 %v7133, %v7805
      %v7807 = vpop.f32.mrb[0].mxu0
      %v7808 = vadd.f32 %v7135, %v7807
      %7809 = vmatprep.mubr.bf16.mxu0 %v4485
      %7810 = vmatmul.mubr.bf16.gmra.mrb[0].mxu0 %v4484
      %v7811 = vpop.f32.mrb[0].mxu0
      %v7812 = vadd.f32 %v7139, %v7811
      %v7813 = vpop.f32.mrb[0].mxu0
      %v7814 = vadd.f32 %v7141, %v7813
      %v7815 = vpop.f32.mrb[0].mxu0
      %v7816 = vadd.f32 %v7143, %v7815
      %v7817 = vpop.f32.mrb[0].mxu0
      %v7818 = vadd.f32 %v7145, %v7817
      %7819 = vmatprep.mubr.bf16.mxu0 %v4495
      %7820 = vmatmul.mubr.bf16.gmra.mrb[0].mxu0 %v4494
      %v7821 = vpop.f32.mrb[0].mxu0
      %v7822 = vadd.f32 %v7149, %v7821
      %v7823 = vpop.f32.mrb[0].mxu0
      %v7824 = vadd.f32 %v7151, %v7823
      %v7825 = vpop.f32.mrb[0].mxu0
      %v7826 = vadd.f32 %v7153, %v7825
      %v7827 = vpop.f32.mrb[0].mxu0
      %v7828 = vadd.f32 %v7155, %v7827
      %7829 = vmatprep.mubr.bf16.mxu0 %v4505
      %7830 = vmatmul.mubr.bf16.gmra.mrb[0].mxu0 %v4504
      %v7831 = vpop.f32.mrb[0].mxu0
      %v7832 = vadd.f32 %v7159, %v7831
      %v7833 = vpop.f32.mrb[0].mxu0
      %v7834 = vadd.f32 %v7161, %v7833
      %v7835 = vpop.f32.mrb[0].mxu0
      %v7836 = vadd.f32 %v7163, %v7835
      %v7837 = vpop.f32.mrb[0].mxu0
      %v7838 = vadd.f32 %v7165, %v7837
      %7839 = vmatprep.mubr.bf16.mxu0 %v4515
      %7840 = vmatmul.mubr.bf16.gmra.mrb[0].mxu0 %v4514
      %v7841 = vpop.f32.mrb[0].mxu0
      %v7842 = vadd.f32 %v7169, %v7841
      %v7843 = vpop.f32.mrb[0].mxu0
      %v7844 = vadd.f32 %v7171, %v7843
      %v7845 = vpop.f32.mrb[0].mxu0
      %v7846 = vadd.f32 %v7173, %v7845
      %v7847 = vpop.f32.mrb[0].mxu0
      %v7848 = vadd.f32 %v7175, %v7847
      %7849 = vmatprep.mubr.bf16.mxu0 %v4525
      %7850 = vmatmul.mubr.bf16.gmra.mrb[0].mxu0 %v4524
      %v7851 = vpop.f32.mrb[0].mxu0
      %v7852 = vadd.f32 %v7179, %v7851
      %v7853 = vpop.f32.mrb[0].mxu0
      %v7854 = vadd.f32 %v7181, %v7853
      %v7855 = vpop.f32.mrb[0].mxu0
      %v7856 = vadd.f32 %v7183, %v7855
      %v7857 = vpop.f32.mrb[0].mxu0
      %v7858 = vadd.f32 %v7185, %v7857
      %7859 = vmatprep.mubr.bf16.mxu0 %v4535
      %7860 = vmatmul.mubr.bf16.gmra.mrb[0].mxu0 %v4534
      %v7861 = vpop.f32.mrb[0].mxu0
      %v7862 = vadd.f32 %v7189, %v7861
      %v7863 = vpop.f32.mrb[0].mxu0
      %v7864 = vadd.f32 %v7191, %v7863
      %v7865 = vpop.f32.mrb[0].mxu0
      %v7866 = vadd.f32 %v7193, %v7865
      %v7867 = vpop.f32.mrb[0].mxu0
      %v7868 = vadd.f32 %v7195, %v7867
      %7869 = vmatprep.mubr.bf16.mxu0 %v4545
      %7870 = vmatmul.mubr.bf16.gmra.mrb[0].mxu0 %v4544
      %v7871 = vpop.f32.mrb[0].mxu0
      %v7872 = vadd.f32 %v7199, %v7871
      %v7873 = vpop.f32.mrb[0].mxu0
      %v7874 = vadd.f32 %v7201, %v7873
      %v7875 = vpop.f32.mrb[0].mxu0
      %v7876 = vadd.f32 %v7203, %v7875
      %v7877 = vpop.f32.mrb[0].mxu0
      %v7878 = vadd.f32 %v7205, %v7877
      %7879 = vmatprep.mubr.bf16.mxu0 %v4555
      %7880 = vmatmul.mubr.bf16.gmra.mrb[0].mxu0 %v4554
      %v7881 = vpop.f32.mrb[0].mxu0
      %v7882 = vadd.f32 %v7209, %v7881
      %v7883 = vpop.f32.mrb[0].mxu0
      %v7884 = vadd.f32 %v7211, %v7883
      %v7885 = vpop.f32.mrb[0].mxu0
      %v7886 = vadd.f32 %v7213, %v7885
      %v7887 = vpop.f32.mrb[0].mxu0
      %v7888 = vadd.f32 %v7215, %v7887
      %7889 = vmatprep.mubr.bf16.mxu0 %v4565
      %7890 = vmatmul.mubr.bf16.gmra.mrb[0].mxu0 %v4564
      %v7891 = vpop.f32.mrb[0].mxu0
      %v7892 = vadd.f32 %v7219, %v7891
      %v7893 = vpop.f32.mrb[0].mxu0
      %v7894 = vadd.f32 %v7221, %v7893
      %v7895 = vpop.f32.mrb[0].mxu0
      %v7896 = vadd.f32 %v7223, %v7895
      %v7897 = vpop.f32.mrb[0].mxu0
      %v7898 = vadd.f32 %v7225, %v7897
      %7899 = vmatprep.mubr.bf16.mxu0 %v4575
      %7900 = vmatmul.mubr.bf16.gmra.mrb[0].mxu0 %v4574
      %v7901 = vpop.f32.mrb[0].mxu0
      %v7902 = vadd.f32 %v7229, %v7901
      %v7903 = vpop.f32.mrb[0].mxu0
      %v7904 = vadd.f32 %v7231, %v7903
      %v7905 = vpop.f32.mrb[0].mxu0
      %v7906 = vadd.f32 %v7233, %v7905
      %v7907 = vpop.f32.mrb[0].mxu0
      %v7908 = vadd.f32 %v7235, %v7907
      %7909 = vmatprep.mubr.bf16.mxu0 %v4585
      %7910 = vmatmul.mubr.bf16.gmra.mrb[0].mxu0 %v4584
      %v7911 = vpop.f32.mrb[0].mxu0
      %v7912 = vadd.f32 %v7239, %v7911
      %v7913 = vpop.f32.mrb[0].mxu0
      %v7914 = vadd.f32 %v7241, %v7913
      %v7915 = vpop.f32.mrb[0].mxu0
      %v7916 = vadd.f32 %v7243, %v7915
      %v7917 = vpop.f32.mrb[0].mxu0
      %v7918 = vadd.f32 %v7245, %v7917
      %7919 = vmatprep.mubr.bf16.mxu0 %v4595
      %7920 = vmatmul.mubr.bf16.gmra.mrb[0].mxu0 %v4594
      %v7921 = vpop.f32.mrb[0].mxu0
      %v7922 = vadd.f32 %v7249, %v7921
      %v7923 = vpop.f32.mrb[0].mxu0
      %v7924 = vadd.f32 %v7251, %v7923
      %v7925 = vpop.f32.mrb[0].mxu0
      %v7926 = vadd.f32 %v7253, %v7925
      %v7927 = vpop.f32.mrb[0].mxu0
      %v7928 = vadd.f32 %v7255, %v7927
      %7929 = vmatprep.mubr.bf16.mxu0 %v4605
      %7930 = vmatmul.mubr.bf16.gmra.mrb[0].mxu0 %v4604
      %v7931 = vpop.f32.mrb[0].mxu0
      %v7932 = vadd.f32 %v7259, %v7931
      %v7933 = vpop.f32.mrb[0].mxu0
      %v7934 = vadd.f32 %v7261, %v7933
      %v7935 = vpop.f32.mrb[0].mxu0
      %v7936 = vadd.f32 %v7263, %v7935
      %v7937 = vpop.f32.mrb[0].mxu0
      %v7938 = vadd.f32 %v7265, %v7937
      %7939 = vmatprep.mubr.bf16.mxu0 %v4615
      %7940 = vmatmul.mubr.bf16.gmra.mrb[0].mxu0 %v4614
      %v7941 = vpop.f32.mrb[0].mxu0
      %v7942 = vadd.f32 %v7269, %v7941
      %v7943 = vpop.f32.mrb[0].mxu0
      %v7944 = vadd.f32 %v7271, %v7943
      %v7945 = vpop.f32.mrb[0].mxu0
      %v7946 = vadd.f32 %v7273, %v7945
      %v7947 = vpop.f32.mrb[0].mxu0
      %v7948 = vadd.f32 %v7275, %v7947
      %7949 = vmatprep.mubr.bf16.mxu0 %v4625
      %7950 = vmatmul.mubr.bf16.gmra.mrb[0].mxu0 %v4624
      %v7951 = vpop.f32.mrb[0].mxu0
      %v7952 = vadd.f32 %v7279, %v7951
      %v7953 = vpop.f32.mrb[0].mxu0
      %v7954 = vadd.f32 %v7281, %v7953
      %v7955 = vpop.f32.mrb[0].mxu0
      %v7956 = vadd.f32 %v7283, %v7955
      %v7957 = vpop.f32.mrb[0].mxu0
      %v7958 = vadd.f32 %v7285, %v7957
      %7959 = vmatprep.mubr.bf16.mxu0 %v4635
      %7960 = vmatmul.mubr.bf16.gmra.mrb[0].mxu0 %v4634
      %v7961 = vpop.f32.mrb[0].mxu0
      %v7962 = vadd.f32 %v7289, %v7961
      %v7963 = vpop.f32.mrb[0].mxu0
      %v7964 = vadd.f32 %v7291, %v7963
      %v7965 = vpop.f32.mrb[0].mxu0
      %v7966 = vadd.f32 %v7293, %v7965
      %v7967 = vpop.f32.mrb[0].mxu0
      %v7968 = vadd.f32 %v7295, %v7967
      %7969 = vmatprep.mubr.bf16.mxu0 %v4645
      %7970 = vmatmul.mubr.bf16.gmra.mrb[0].mxu0 %v4644
      %v7971 = vpop.f32.mrb[0].mxu0
      %v7972 = vadd.f32 %v7299, %v7971
      %v7973 = vpop.f32.mrb[0].mxu0
      %v7974 = vadd.f32 %v7301, %v7973
      %v7975 = vpop.f32.mrb[0].mxu0
      %v7976 = vadd.f32 %v7303, %v7975
      %v7977 = vpop.f32.mrb[0].mxu0
      %v7978 = vadd.f32 %v7305, %v7977
      %7979 = vmatprep.mubr.bf16.mxu0 %v4655
      %7980 = vmatmul.mubr.bf16.gmra.mrb[0].mxu0 %v4654
      %v7981 = vpop.f32.mrb[0].mxu0
      %v7982 = vadd.f32 %v7309, %v7981
      %v7983 = vpop.f32.mrb[0].mxu0
      %v7984 = vadd.f32 %v7311, %v7983
      %v7985 = vpop.f32.mrb[0].mxu0
      %v7986 = vadd.f32 %v7313, %v7985
      %v7987 = vpop.f32.mrb[0].mxu0
      %v7988 = vadd.f32 %v7315, %v7987
      %7989 = vdwg.mxu0
      %7990 = vmatprep.subr.bf16.mxu0 %v659
      %7991 = vmatpush1.bf16.msra.mxu0 %v658
      %7992 = vmatprep.subr.bf16.mxu0 %v661
      %7993 = vmatpush1.bf16.msra.mxu0 %v660
      %7994 = vmatprep.subr.bf16.mxu0 %v663
      %7995 = vmatpush1.bf16.msra.mxu0 %v662
      %7996 = vmatprep.subr.bf16.mxu0 %v665
      %7997 = vmatpush1.bf16.msra.mxu0 %v664
      %7998 = vmatprep.subr.bf16.mxu0 %v667
      %7999 = vmatpush1.bf16.msra.mxu0 %v666
      %8000 = vmatprep.subr.bf16.mxu0 %v669
      %8001 = vmatpush1.bf16.msra.mxu0 %v668
      %8002 = vmatprep.subr.bf16.mxu0 %v671
      %8003 = vmatpush1.bf16.msra.mxu0 %v670
      %8004 = vmatprep.subr.bf16.mxu0 %v673
      %8005 = vmatpush1.bf16.msra.mxu0 %v672
      %8006 = vmatprep.subr.bf16.mxu0 %v675
      %8007 = vmatpush1.bf16.msra.mxu0 %v674
      %8008 = vmatprep.subr.bf16.mxu0 %v677
      %8009 = vmatpush1.bf16.msra.mxu0 %v676
      %8010 = vmatprep.subr.bf16.mxu0 %v679
      %8011 = vmatpush1.bf16.msra.mxu0 %v678
      %8012 = vmatprep.subr.bf16.mxu0 %v681
      %8013 = vmatpush1.bf16.msra.mxu0 %v680
      %8014 = vmatprep.subr.bf16.mxu0 %v683
      %8015 = vmatpush1.bf16.msra.mxu0 %v682
      %8016 = vmatprep.subr.bf16.mxu0 %v685
      %8017 = vmatpush1.bf16.msra.mxu0 %v684
      %8018 = vmatprep.subr.bf16.mxu0 %v687
      %8019 = vmatpush1.bf16.msra.mxu0 %v686
      %8020 = vmatprep.subr.bf16.mxu0 %v689
      %8021 = vmatpush1.bf16.msra.mxu0 %v688
      %8022 = vmatprep.mubr.bf16.mxu0 %v4027
      %8023 = vmatmul.mubr.bf16.gmra.mrb[0].mxu0 %v4026
      %v8024 = vpop.f32.mrb[0].mxu0
      %v8025 = vadd.f32 %v7352, %v8024
      %v8026 = vpop.f32.mrb[0].mxu0
      %v8027 = vadd.f32 %v7354, %v8026
      %v8028 = vpop.f32.mrb[0].mxu0
      %v8029 = vadd.f32 %v7356, %v8028
      %v8030 = vpop.f32.mrb[0].mxu0
      %v8031 = vadd.f32 %v7358, %v8030
      %8032 = vmatprep.mubr.bf16.mxu0 %v4037
      %8033 = vmatmul.mubr.bf16.gmra.mrb[0].mxu0 %v4036
      %v8034 = vpop.f32.mrb[0].mxu0
      %v8035 = vadd.f32 %v7362, %v8034
      %v8036 = vpop.f32.mrb[0].mxu0
      %v8037 = vadd.f32 %v7364, %v8036
      %v8038 = vpop.f32.mrb[0].mxu0
      %v8039 = vadd.f32 %v7366, %v8038
      %v8040 = vpop.f32.mrb[0].mxu0
      %v8041 = vadd.f32 %v7368, %v8040
      %8042 = vmatprep.mubr.bf16.mxu0 %v4047
      %8043 = vmatmul.mubr.bf16.gmra.mrb[0].mxu0 %v4046
      %v8044 = vpop.f32.mrb[0].mxu0
      %v8045 = vadd.f32 %v7372, %v8044
      %v8046 = vpop.f32.mrb[0].mxu0
      %v8047 = vadd.f32 %v7374, %v8046
      %v8048 = vpop.f32.mrb[0].mxu0
      %v8049 = vadd.f32 %v7376, %v8048
      %v8050 = vpop.f32.mrb[0].mxu0
      %v8051 = vadd.f32 %v7378, %v8050
      %8052 = vmatprep.mubr.bf16.mxu0 %v4057
      %8053 = vmatmul.mubr.bf16.gmra.mrb[0].mxu0 %v4056
      %v8054 = vpop.f32.mrb[0].mxu0
      %v8055 = vadd.f32 %v7382, %v8054
      %v8056 = vpop.f32.mrb[0].mxu0
      %v8057 = vadd.f32 %v7384, %v8056
      %v8058 = vpop.f32.mrb[0].mxu0
      %v8059 = vadd.f32 %v7386, %v8058
      %v8060 = vpop.f32.mrb[0].mxu0
      %v8061 = vadd.f32 %v7388, %v8060
      %8062 = vmatprep.mubr.bf16.mxu0 %v4067
      %8063 = vmatmul.mubr.bf16.gmra.mrb[0].mxu0 %v4066
      %v8064 = vpop.f32.mrb[0].mxu0
      %v8065 = vadd.f32 %v7392, %v8064
      %v8066 = vpop.f32.mrb[0].mxu0
      %v8067 = vadd.f32 %v7394, %v8066
      %v8068 = vpop.f32.mrb[0].mxu0
      %v8069 = vadd.f32 %v7396, %v8068
      %v8070 = vpop.f32.mrb[0].mxu0
      %v8071 = vadd.f32 %v7398, %v8070
      %8072 = vmatprep.mubr.bf16.mxu0 %v4077
      %8073 = vmatmul.mubr.bf16.gmra.mrb[0].mxu0 %v4076
      %v8074 = vpop.f32.mrb[0].mxu0
      %v8075 = vadd.f32 %v7402, %v8074
      %v8076 = vpop.f32.mrb[0].mxu0
      %v8077 = vadd.f32 %v7404, %v8076
      %v8078 = vpop.f32.mrb[0].mxu0
      %v8079 = vadd.f32 %v7406, %v8078
      %v8080 = vpop.f32.mrb[0].mxu0
      %v8081 = vadd.f32 %v7408, %v8080
      %8082 = vmatprep.mubr.bf16.mxu0 %v4087
      %8083 = vmatmul.mubr.bf16.gmra.mrb[0].mxu0 %v4086
      %v8084 = vpop.f32.mrb[0].mxu0
      %v8085 = vadd.f32 %v7412, %v8084
      %v8086 = vpop.f32.mrb[0].mxu0
      %v8087 = vadd.f32 %v7414, %v8086
      %v8088 = vpop.f32.mrb[0].mxu0
      %v8089 = vadd.f32 %v7416, %v8088
      %v8090 = vpop.f32.mrb[0].mxu0
      %v8091 = vadd.f32 %v7418, %v8090
      %8092 = vmatprep.mubr.bf16.mxu0 %v4097
      %8093 = vmatmul.mubr.bf16.gmra.mrb[0].mxu0 %v4096
      %v8094 = vpop.f32.mrb[0].mxu0
      %v8095 = vadd.f32 %v7422, %v8094
      %v8096 = vpop.f32.mrb[0].mxu0
      %v8097 = vadd.f32 %v7424, %v8096
      %v8098 = vpop.f32.mrb[0].mxu0
      %v8099 = vadd.f32 %v7426, %v8098
      %v8100 = vpop.f32.mrb[0].mxu0
      %v8101 = vadd.f32 %v7428, %v8100
      %8102 = vmatprep.mubr.bf16.mxu0 %v4107
      %8103 = vmatmul.mubr.bf16.gmra.mrb[0].mxu0 %v4106
      %v8104 = vpop.f32.mrb[0].mxu0
      %v8105 = vadd.f32 %v7432, %v8104
      %v8106 = vpop.f32.mrb[0].mxu0
      %v8107 = vadd.f32 %v7434, %v8106
      %v8108 = vpop.f32.mrb[0].mxu0
      %v8109 = vadd.f32 %v7436, %v8108
      %v8110 = vpop.f32.mrb[0].mxu0
      %v8111 = vadd.f32 %v7438, %v8110
      %8112 = vmatprep.mubr.bf16.mxu0 %v4117
      %8113 = vmatmul.mubr.bf16.gmra.mrb[0].mxu0 %v4116
      %v8114 = vpop.f32.mrb[0].mxu0
      %v8115 = vadd.f32 %v7442, %v8114
      %v8116 = vpop.f32.mrb[0].mxu0
      %v8117 = vadd.f32 %v7444, %v8116
      %v8118 = vpop.f32.mrb[0].mxu0
      %v8119 = vadd.f32 %v7446, %v8118
      %v8120 = vpop.f32.mrb[0].mxu0
      %v8121 = vadd.f32 %v7448, %v8120
      %8122 = vmatprep.mubr.bf16.mxu0 %v4127
      %8123 = vmatmul.mubr.bf16.gmra.mrb[0].mxu0 %v4126
      %v8124 = vpop.f32.mrb[0].mxu0
      %v8125 = vadd.f32 %v7452, %v8124
      %v8126 = vpop.f32.mrb[0].mxu0
      %v8127 = vadd.f32 %v7454, %v8126
      %v8128 = vpop.f32.mrb[0].mxu0
      %v8129 = vadd.f32 %v7456, %v8128
      %v8130 = vpop.f32.mrb[0].mxu0
      %v8131 = vadd.f32 %v7458, %v8130
      %8132 = vmatprep.mubr.bf16.mxu0 %v4137
      %8133 = vmatmul.mubr.bf16.gmra.mrb[0].mxu0 %v4136
      %v8134 = vpop.f32.mrb[0].mxu0
      %v8135 = vadd.f32 %v7462, %v8134
      %v8136 = vpop.f32.mrb[0].mxu0
      %v8137 = vadd.f32 %v7464, %v8136
      %v8138 = vpop.f32.mrb[0].mxu0
      %v8139 = vadd.f32 %v7466, %v8138
      %v8140 = vpop.f32.mrb[0].mxu0
      %v8141 = vadd.f32 %v7468, %v8140
      %8142 = vmatprep.mubr.bf16.mxu0 %v4147
      %8143 = vmatmul.mubr.bf16.gmra.mrb[0].mxu0 %v4146
      %v8144 = vpop.f32.mrb[0].mxu0
      %v8145 = vadd.f32 %v7472, %v8144
      %v8146 = vpop.f32.mrb[0].mxu0
      %v8147 = vadd.f32 %v7474, %v8146
      %v8148 = vpop.f32.mrb[0].mxu0
      %v8149 = vadd.f32 %v7476, %v8148
      %v8150 = vpop.f32.mrb[0].mxu0
      %v8151 = vadd.f32 %v7478, %v8150
      %8152 = vmatprep.mubr.bf16.mxu0 %v4157
      %8153 = vmatmul.mubr.bf16.gmra.mrb[0].mxu0 %v4156
      %v8154 = vpop.f32.mrb[0].mxu0
      %v8155 = vadd.f32 %v7482, %v8154
      %v8156 = vpop.f32.mrb[0].mxu0
      %v8157 = vadd.f32 %v7484, %v8156
      %v8158 = vpop.f32.mrb[0].mxu0
      %v8159 = vadd.f32 %v7486, %v8158
      %v8160 = vpop.f32.mrb[0].mxu0
      %v8161 = vadd.f32 %v7488, %v8160
      %8162 = vmatprep.mubr.bf16.mxu0 %v4167
      %8163 = vmatmul.mubr.bf16.gmra.mrb[0].mxu0 %v4166
      %v8164 = vpop.f32.mrb[0].mxu0
      %v8165 = vadd.f32 %v7492, %v8164
      %v8166 = vpop.f32.mrb[0].mxu0
      %v8167 = vadd.f32 %v7494, %v8166
      %v8168 = vpop.f32.mrb[0].mxu0
      %v8169 = vadd.f32 %v7496, %v8168
      %v8170 = vpop.f32.mrb[0].mxu0
      %v8171 = vadd.f32 %v7498, %v8170
      %8172 = vmatprep.mubr.bf16.mxu0 %v4177
      %8173 = vmatmul.mubr.bf16.gmra.mrb[0].mxu0 %v4176
      %v8174 = vpop.f32.mrb[0].mxu0
      %v8175 = vadd.f32 %v7502, %v8174
      %v8176 = vpop.f32.mrb[0].mxu0
      %v8177 = vadd.f32 %v7504, %v8176
      %v8178 = vpop.f32.mrb[0].mxu0
      %v8179 = vadd.f32 %v7506, %v8178
      %v8180 = vpop.f32.mrb[0].mxu0
      %v8181 = vadd.f32 %v7508, %v8180
      %8182 = vmatprep.mubr.bf16.mxu0 %v4187
      %8183 = vmatmul.mubr.bf16.gmra.mrb[0].mxu0 %v4186
      %v8184 = vpop.f32.mrb[0].mxu0
      %v8185 = vadd.f32 %v7512, %v8184
      %v8186 = vpop.f32.mrb[0].mxu0
      %v8187 = vadd.f32 %v7514, %v8186
      %v8188 = vpop.f32.mrb[0].mxu0
      %v8189 = vadd.f32 %v7516, %v8188
      %v8190 = vpop.f32.mrb[0].mxu0
      %v8191 = vadd.f32 %v7518, %v8190
      %8192 = vmatprep.mubr.bf16.mxu0 %v4197
      %8193 = vmatmul.mubr.bf16.gmra.mrb[0].mxu0 %v4196
      %v8194 = vpop.f32.mrb[0].mxu0
      %v8195 = vadd.f32 %v7522, %v8194
      %v8196 = vpop.f32.mrb[0].mxu0
      %v8197 = vadd.f32 %v7524, %v8196
      %v8198 = vpop.f32.mrb[0].mxu0
      %v8199 = vadd.f32 %v7526, %v8198
      %v8200 = vpop.f32.mrb[0].mxu0
      %v8201 = vadd.f32 %v7528, %v8200
      %8202 = vmatprep.mubr.bf16.mxu0 %v4207
      %8203 = vmatmul.mubr.bf16.gmra.mrb[0].mxu0 %v4206
      %v8204 = vpop.f32.mrb[0].mxu0
      %v8205 = vadd.f32 %v7532, %v8204
      %v8206 = vpop.f32.mrb[0].mxu0
      %v8207 = vadd.f32 %v7534, %v8206
      %v8208 = vpop.f32.mrb[0].mxu0
      %v8209 = vadd.f32 %v7536, %v8208
      %v8210 = vpop.f32.mrb[0].mxu0
      %v8211 = vadd.f32 %v7538, %v8210
      %8212 = vmatprep.mubr.bf16.mxu0 %v4217
      %8213 = vmatmul.mubr.bf16.gmra.mrb[0].mxu0 %v4216
      %v8214 = vpop.f32.mrb[0].mxu0
      %v8215 = vadd.f32 %v7542, %v8214
      %v8216 = vpop.f32.mrb[0].mxu0
      %v8217 = vadd.f32 %v7544, %v8216
      %v8218 = vpop.f32.mrb[0].mxu0
      %v8219 = vadd.f32 %v7546, %v8218
      %v8220 = vpop.f32.mrb[0].mxu0
      %v8221 = vadd.f32 %v7548, %v8220
      %8222 = vmatprep.mubr.bf16.mxu0 %v4227
      %8223 = vmatmul.mubr.bf16.gmra.mrb[0].mxu0 %v4226
      %v8224 = vpop.f32.mrb[0].mxu0
      %v8225 = vadd.f32 %v7552, %v8224
      %v8226 = vpop.f32.mrb[0].mxu0
      %v8227 = vadd.f32 %v7554, %v8226
      %v8228 = vpop.f32.mrb[0].mxu0
      %v8229 = vadd.f32 %v7556, %v8228
      %v8230 = vpop.f32.mrb[0].mxu0
      %v8231 = vadd.f32 %v7558, %v8230
      %8232 = vmatprep.mubr.bf16.mxu0 %v4237
      %8233 = vmatmul.mubr.bf16.gmra.mrb[0].mxu0 %v4236
      %v8234 = vpop.f32.mrb[0].mxu0
      %v8235 = vadd.f32 %v7562, %v8234
      %v8236 = vpop.f32.mrb[0].mxu0
      %v8237 = vadd.f32 %v7564, %v8236
      %v8238 = vpop.f32.mrb[0].mxu0
      %v8239 = vadd.f32 %v7566, %v8238
      %v8240 = vpop.f32.mrb[0].mxu0
      %v8241 = vadd.f32 %v7568, %v8240
      %8242 = vmatprep.mubr.bf16.mxu0 %v4247
      %8243 = vmatmul.mubr.bf16.gmra.mrb[0].mxu0 %v4246
      %v8244 = vpop.f32.mrb[0].mxu0
      %v8245 = vadd.f32 %v7572, %v8244
      %v8246 = vpop.f32.mrb[0].mxu0
      %v8247 = vadd.f32 %v7574, %v8246
      %v8248 = vpop.f32.mrb[0].mxu0
      %v8249 = vadd.f32 %v7576, %v8248
      %v8250 = vpop.f32.mrb[0].mxu0
      %v8251 = vadd.f32 %v7578, %v8250
      %8252 = vmatprep.mubr.bf16.mxu0 %v4257
      %8253 = vmatmul.mubr.bf16.gmra.mrb[0].mxu0 %v4256
      %v8254 = vpop.f32.mrb[0].mxu0
      %v8255 = vadd.f32 %v7582, %v8254
      %v8256 = vpop.f32.mrb[0].mxu0
      %v8257 = vadd.f32 %v7584, %v8256
      %v8258 = vpop.f32.mrb[0].mxu0
      %v8259 = vadd.f32 %v7586, %v8258
      %v8260 = vpop.f32.mrb[0].mxu0
      %v8261 = vadd.f32 %v7588, %v8260
      %8262 = vmatprep.mubr.bf16.mxu0 %v4267
      %8263 = vmatmul.mubr.bf16.gmra.mrb[0].mxu0 %v4266
      %v8264 = vpop.f32.mrb[0].mxu0
      %v8265 = vadd.f32 %v7592, %v8264
      %v8266 = vpop.f32.mrb[0].mxu0
      %v8267 = vadd.f32 %v7594, %v8266
      %v8268 = vpop.f32.mrb[0].mxu0
      %v8269 = vadd.f32 %v7596, %v8268
      %v8270 = vpop.f32.mrb[0].mxu0
      %v8271 = vadd.f32 %v7598, %v8270
      %8272 = vmatprep.mubr.bf16.mxu0 %v4277
      %8273 = vmatmul.mubr.bf16.gmra.mrb[0].mxu0 %v4276
      %v8274 = vpop.f32.mrb[0].mxu0
      %v8275 = vadd.f32 %v7602, %v8274
      %v8276 = vpop.f32.mrb[0].mxu0
      %v8277 = vadd.f32 %v7604, %v8276
      %v8278 = vpop.f32.mrb[0].mxu0
      %v8279 = vadd.f32 %v7606, %v8278
      %v8280 = vpop.f32.mrb[0].mxu0
      %v8281 = vadd.f32 %v7608, %v8280
      %8282 = vmatprep.mubr.bf16.mxu0 %v4287
      %8283 = vmatmul.mubr.bf16.gmra.mrb[0].mxu0 %v4286
      %v8284 = vpop.f32.mrb[0].mxu0
      %v8285 = vadd.f32 %v7612, %v8284
      %v8286 = vpop.f32.mrb[0].mxu0
      %v8287 = vadd.f32 %v7614, %v8286
      %v8288 = vpop.f32.mrb[0].mxu0
      %v8289 = vadd.f32 %v7616, %v8288
      %v8290 = vpop.f32.mrb[0].mxu0
      %v8291 = vadd.f32 %v7618, %v8290
      %8292 = vmatprep.mubr.bf16.mxu0 %v4297
      %8293 = vmatmul.mubr.bf16.gmra.mrb[0].mxu0 %v4296
      %v8294 = vpop.f32.mrb[0].mxu0
      %v8295 = vadd.f32 %v7622, %v8294
      %v8296 = vpop.f32.mrb[0].mxu0
      %v8297 = vadd.f32 %v7624, %v8296
      %v8298 = vpop.f32.mrb[0].mxu0
      %v8299 = vadd.f32 %v7626, %v8298
      %v8300 = vpop.f32.mrb[0].mxu0
      %v8301 = vadd.f32 %v7628, %v8300
      %8302 = vmatprep.mubr.bf16.mxu0 %v4307
      %8303 = vmatmul.mubr.bf16.gmra.mrb[0].mxu0 %v4306
      %v8304 = vpop.f32.mrb[0].mxu0
      %v8305 = vadd.f32 %v7632, %v8304
      %v8306 = vpop.f32.mrb[0].mxu0
      %v8307 = vadd.f32 %v7634, %v8306
      %v8308 = vpop.f32.mrb[0].mxu0
      %v8309 = vadd.f32 %v7636, %v8308
      %v8310 = vpop.f32.mrb[0].mxu0
      %v8311 = vadd.f32 %v7638, %v8310
      %8312 = vmatprep.mubr.bf16.mxu0 %v4317
      %8313 = vmatmul.mubr.bf16.gmra.mrb[0].mxu0 %v4316
      %v8314 = vpop.f32.mrb[0].mxu0
      %v8315 = vadd.f32 %v7642, %v8314
      %v8316 = vpop.f32.mrb[0].mxu0
      %v8317 = vadd.f32 %v7644, %v8316
      %v8318 = vpop.f32.mrb[0].mxu0
      %v8319 = vadd.f32 %v7646, %v8318
      %v8320 = vpop.f32.mrb[0].mxu0
      %v8321 = vadd.f32 %v7648, %v8320
      %8322 = vmatprep.mubr.bf16.mxu0 %v4327
      %8323 = vmatmul.mubr.bf16.gmra.mrb[0].mxu0 %v4326
      %v8324 = vpop.f32.mrb[0].mxu0
      %v8325 = vadd.f32 %v7652, %v8324
      %v8326 = vpop.f32.mrb[0].mxu0
      %v8327 = vadd.f32 %v7654, %v8326
      %v8328 = vpop.f32.mrb[0].mxu0
      %v8329 = vadd.f32 %v7656, %v8328
      %v8330 = vpop.f32.mrb[0].mxu0
      %v8331 = vadd.f32 %v7658, %v8330
      %8332 = vmatprep.mubr.bf16.mxu0 %v4337
      %8333 = vmatmul.mubr.bf16.gmra.mrb[0].mxu0 %v4336
      %v8334 = vpop.f32.mrb[0].mxu0
      %v8335 = vadd.f32 %v7662, %v8334
      %v8336 = vpop.f32.mrb[0].mxu0
      %v8337 = vadd.f32 %v7664, %v8336
      %v8338 = vpop.f32.mrb[0].mxu0
      %v8339 = vadd.f32 %v7666, %v8338
      %v8340 = vpop.f32.mrb[0].mxu0
      %v8341 = vadd.f32 %v7668, %v8340
      %8342 = vmatprep.mubr.bf16.mxu0 %v4347
      %8343 = vmatmul.mubr.bf16.gmra.mrb[0].mxu0 %v4346
      %v8344 = vpop.f32.mrb[0].mxu0
      %v8345 = vadd.f32 %v7672, %v8344
      %v8346 = vpop.f32.mrb[0].mxu0
      %v8347 = vadd.f32 %v7674, %v8346
      %v8348 = vpop.f32.mrb[0].mxu0
      %v8349 = vadd.f32 %v7676, %v8348
      %v8350 = vpop.f32.mrb[0].mxu0
      %v8351 = vadd.f32 %v7678, %v8350
      %8352 = vmatprep.mubr.bf16.mxu0 %v4357
      %8353 = vmatmul.mubr.bf16.gmra.mrb[0].mxu0 %v4356
      %v8354 = vpop.f32.mrb[0].mxu0
      %v8355 = vadd.f32 %v7682, %v8354
      %v8356 = vpop.f32.mrb[0].mxu0
      %v8357 = vadd.f32 %v7684, %v8356
      %v8358 = vpop.f32.mrb[0].mxu0
      %v8359 = vadd.f32 %v7686, %v8358
      %v8360 = vpop.f32.mrb[0].mxu0
      %v8361 = vadd.f32 %v7688, %v8360
      %8362 = vmatprep.mubr.bf16.mxu0 %v4367
      %8363 = vmatmul.mubr.bf16.gmra.mrb[0].mxu0 %v4366
      %v8364 = vpop.f32.mrb[0].mxu0
      %v8365 = vadd.f32 %v7692, %v8364
      %v8366 = vpop.f32.mrb[0].mxu0
      %v8367 = vadd.f32 %v7694, %v8366
      %v8368 = vpop.f32.mrb[0].mxu0
      %v8369 = vadd.f32 %v7696, %v8368
      %v8370 = vpop.f32.mrb[0].mxu0
      %v8371 = vadd.f32 %v7698, %v8370
      %8372 = vmatprep.mubr.bf16.mxu0 %v4377
      %8373 = vmatmul.mubr.bf16.gmra.mrb[0].mxu0 %v4376
      %v8374 = vpop.f32.mrb[0].mxu0
      %v8375 = vadd.f32 %v7702, %v8374
      %v8376 = vpop.f32.mrb[0].mxu0
      %v8377 = vadd.f32 %v7704, %v8376
      %v8378 = vpop.f32.mrb[0].mxu0
      %v8379 = vadd.f32 %v7706, %v8378
      %v8380 = vpop.f32.mrb[0].mxu0
      %v8381 = vadd.f32 %v7708, %v8380
      %8382 = vmatprep.mubr.bf16.mxu0 %v4387
      %8383 = vmatmul.mubr.bf16.gmra.mrb[0].mxu0 %v4386
      %v8384 = vpop.f32.mrb[0].mxu0
      %v8385 = vadd.f32 %v7712, %v8384
      %v8386 = vpop.f32.mrb[0].mxu0
      %v8387 = vadd.f32 %v7714, %v8386
      %v8388 = vpop.f32.mrb[0].mxu0
      %v8389 = vadd.f32 %v7716, %v8388
      %v8390 = vpop.f32.mrb[0].mxu0
      %v8391 = vadd.f32 %v7718, %v8390
      %8392 = vmatprep.mubr.bf16.mxu0 %v4397
      %8393 = vmatmul.mubr.bf16.gmra.mrb[0].mxu0 %v4396
      %v8394 = vpop.f32.mrb[0].mxu0
      %v8395 = vadd.f32 %v7722, %v8394
      %v8396 = vpop.f32.mrb[0].mxu0
      %v8397 = vadd.f32 %v7724, %v8396
      %v8398 = vpop.f32.mrb[0].mxu0
      %v8399 = vadd.f32 %v7726, %v8398
      %v8400 = vpop.f32.mrb[0].mxu0
      %v8401 = vadd.f32 %v7728, %v8400
      %8402 = vmatprep.mubr.bf16.mxu0 %v4407
      %8403 = vmatmul.mubr.bf16.gmra.mrb[0].mxu0 %v4406
      %v8404 = vpop.f32.mrb[0].mxu0
      %v8405 = vadd.f32 %v7732, %v8404
      %v8406 = vpop.f32.mrb[0].mxu0
      %v8407 = vadd.f32 %v7734, %v8406
      %v8408 = vpop.f32.mrb[0].mxu0
      %v8409 = vadd.f32 %v7736, %v8408
      %v8410 = vpop.f32.mrb[0].mxu0
      %v8411 = vadd.f32 %v7738, %v8410
      %8412 = vmatprep.mubr.bf16.mxu0 %v4417
      %8413 = vmatmul.mubr.bf16.gmra.mrb[0].mxu0 %v4416
      %v8414 = vpop.f32.mrb[0].mxu0
      %v8415 = vadd.f32 %v7742, %v8414
      %v8416 = vpop.f32.mrb[0].mxu0
      %v8417 = vadd.f32 %v7744, %v8416
      %v8418 = vpop.f32.mrb[0].mxu0
      %v8419 = vadd.f32 %v7746, %v8418
      %v8420 = vpop.f32.mrb[0].mxu0
      %v8421 = vadd.f32 %v7748, %v8420
      %8422 = vmatprep.mubr.bf16.mxu0 %v4427
      %8423 = vmatmul.mubr.bf16.gmra.mrb[0].mxu0 %v4426
      %v8424 = vpop.f32.mrb[0].mxu0
      %v8425 = vadd.f32 %v7752, %v8424
      %v8426 = vpop.f32.mrb[0].mxu0
      %v8427 = vadd.f32 %v7754, %v8426
      %v8428 = vpop.f32.mrb[0].mxu0
      %v8429 = vadd.f32 %v7756, %v8428
      %v8430 = vpop.f32.mrb[0].mxu0
      %v8431 = vadd.f32 %v7758, %v8430
      %8432 = vmatprep.mubr.bf16.mxu0 %v4437
      %8433 = vmatmul.mubr.bf16.gmra.mrb[0].mxu0 %v4436
      %v8434 = vpop.f32.mrb[0].mxu0
      %v8435 = vadd.f32 %v7762, %v8434
      %v8436 = vpop.f32.mrb[0].mxu0
      %v8437 = vadd.f32 %v7764, %v8436
      %v8438 = vpop.f32.mrb[0].mxu0
      %v8439 = vadd.f32 %v7766, %v8438
      %v8440 = vpop.f32.mrb[0].mxu0
      %v8441 = vadd.f32 %v7768, %v8440
      %8442 = vmatprep.mubr.bf16.mxu0 %v4447
      %8443 = vmatmul.mubr.bf16.gmra.mrb[0].mxu0 %v4446
      %v8444 = vpop.f32.mrb[0].mxu0
      %v8445 = vadd.f32 %v7772, %v8444
      %v8446 = vpop.f32.mrb[0].mxu0
      %v8447 = vadd.f32 %v7774, %v8446
      %v8448 = vpop.f32.mrb[0].mxu0
      %v8449 = vadd.f32 %v7776, %v8448
      %v8450 = vpop.f32.mrb[0].mxu0
      %v8451 = vadd.f32 %v7778, %v8450
      %8452 = vmatprep.mubr.bf16.mxu0 %v4457
      %8453 = vmatmul.mubr.bf16.gmra.mrb[0].mxu0 %v4456
      %v8454 = vpop.f32.mrb[0].mxu0
      %v8455 = vadd.f32 %v7782, %v8454
      %v8456 = vpop.f32.mrb[0].mxu0
      %v8457 = vadd.f32 %v7784, %v8456
      %v8458 = vpop.f32.mrb[0].mxu0
      %v8459 = vadd.f32 %v7786, %v8458
      %v8460 = vpop.f32.mrb[0].mxu0
      %v8461 = vadd.f32 %v7788, %v8460
      %8462 = vmatprep.mubr.bf16.mxu0 %v4467
      %8463 = vmatmul.mubr.bf16.gmra.mrb[0].mxu0 %v4466
      %v8464 = vpop.f32.mrb[0].mxu0
      %v8465 = vadd.f32 %v7792, %v8464
      %v8466 = vpop.f32.mrb[0].mxu0
      %v8467 = vadd.f32 %v7794, %v8466
      %v8468 = vpop.f32.mrb[0].mxu0
      %v8469 = vadd.f32 %v7796, %v8468
      %v8470 = vpop.f32.mrb[0].mxu0
      %v8471 = vadd.f32 %v7798, %v8470
      %8472 = vmatprep.mubr.bf16.mxu0 %v4477
      %8473 = vmatmul.mubr.bf16.gmra.mrb[0].mxu0 %v4476
      %v8474 = vpop.f32.mrb[0].mxu0
      %v8475 = vadd.f32 %v7802, %v8474
      %v8476 = vpop.f32.mrb[0].mxu0
      %v8477 = vadd.f32 %v7804, %v8476
      %v8478 = vpop.f32.mrb[0].mxu0
      %v8479 = vadd.f32 %v7806, %v8478
      %v8480 = vpop.f32.mrb[0].mxu0
      %v8481 = vadd.f32 %v7808, %v8480
      %8482 = vmatprep.mubr.bf16.mxu0 %v4487
      %8483 = vmatmul.mubr.bf16.gmra.mrb[0].mxu0 %v4486
      %v8484 = vpop.f32.mrb[0].mxu0
      %v8485 = vadd.f32 %v7812, %v8484
      %v8486 = vpop.f32.mrb[0].mxu0
      %v8487 = vadd.f32 %v7814, %v8486
      %v8488 = vpop.f32.mrb[0].mxu0
      %v8489 = vadd.f32 %v7816, %v8488
      %v8490 = vpop.f32.mrb[0].mxu0
      %v8491 = vadd.f32 %v7818, %v8490
      %8492 = vmatprep.mubr.bf16.mxu0 %v4497
      %8493 = vmatmul.mubr.bf16.gmra.mrb[0].mxu0 %v4496
      %v8494 = vpop.f32.mrb[0].mxu0
      %v8495 = vadd.f32 %v7822, %v8494
      %v8496 = vpop.f32.mrb[0].mxu0
      %v8497 = vadd.f32 %v7824, %v8496
      %v8498 = vpop.f32.mrb[0].mxu0
      %v8499 = vadd.f32 %v7826, %v8498
      %v8500 = vpop.f32.mrb[0].mxu0
      %v8501 = vadd.f32 %v7828, %v8500
      %8502 = vmatprep.mubr.bf16.mxu0 %v4507
      %8503 = vmatmul.mubr.bf16.gmra.mrb[0].mxu0 %v4506
      %v8504 = vpop.f32.mrb[0].mxu0
      %v8505 = vadd.f32 %v7832, %v8504
      %v8506 = vpop.f32.mrb[0].mxu0
      %v8507 = vadd.f32 %v7834, %v8506
      %v8508 = vpop.f32.mrb[0].mxu0
      %v8509 = vadd.f32 %v7836, %v8508
      %v8510 = vpop.f32.mrb[0].mxu0
      %v8511 = vadd.f32 %v7838, %v8510
      %8512 = vmatprep.mubr.bf16.mxu0 %v4517
      %8513 = vmatmul.mubr.bf16.gmra.mrb[0].mxu0 %v4516
      %v8514 = vpop.f32.mrb[0].mxu0
      %v8515 = vadd.f32 %v7842, %v8514
      %v8516 = vpop.f32.mrb[0].mxu0
      %v8517 = vadd.f32 %v7844, %v8516
      %v8518 = vpop.f32.mrb[0].mxu0
      %v8519 = vadd.f32 %v7846, %v8518
      %v8520 = vpop.f32.mrb[0].mxu0
      %v8521 = vadd.f32 %v7848, %v8520
      %8522 = vmatprep.mubr.bf16.mxu0 %v4527
      %8523 = vmatmul.mubr.bf16.gmra.mrb[0].mxu0 %v4526
      %v8524 = vpop.f32.mrb[0].mxu0
      %v8525 = vadd.f32 %v7852, %v8524
      %v8526 = vpop.f32.mrb[0].mxu0
      %v8527 = vadd.f32 %v7854, %v8526
      %v8528 = vpop.f32.mrb[0].mxu0
      %v8529 = vadd.f32 %v7856, %v8528
      %v8530 = vpop.f32.mrb[0].mxu0
      %v8531 = vadd.f32 %v7858, %v8530
      %8532 = vmatprep.mubr.bf16.mxu0 %v4537
      %8533 = vmatmul.mubr.bf16.gmra.mrb[0].mxu0 %v4536
      %v8534 = vpop.f32.mrb[0].mxu0
      %v8535 = vadd.f32 %v7862, %v8534
      %v8536 = vpop.f32.mrb[0].mxu0
      %v8537 = vadd.f32 %v7864, %v8536
      %v8538 = vpop.f32.mrb[0].mxu0
      %v8539 = vadd.f32 %v7866, %v8538
      %v8540 = vpop.f32.mrb[0].mxu0
      %v8541 = vadd.f32 %v7868, %v8540
      %8542 = vmatprep.mubr.bf16.mxu0 %v4547
      %8543 = vmatmul.mubr.bf16.gmra.mrb[0].mxu0 %v4546
      %v8544 = vpop.f32.mrb[0].mxu0
      %v8545 = vadd.f32 %v7872, %v8544
      %v8546 = vpop.f32.mrb[0].mxu0
      %v8547 = vadd.f32 %v7874, %v8546
      %v8548 = vpop.f32.mrb[0].mxu0
      %v8549 = vadd.f32 %v7876, %v8548
      %v8550 = vpop.f32.mrb[0].mxu0
      %v8551 = vadd.f32 %v7878, %v8550
      %8552 = vmatprep.mubr.bf16.mxu0 %v4557
      %8553 = vmatmul.mubr.bf16.gmra.mrb[0].mxu0 %v4556
      %v8554 = vpop.f32.mrb[0].mxu0
      %v8555 = vadd.f32 %v7882, %v8554
      %v8556 = vpop.f32.mrb[0].mxu0
      %v8557 = vadd.f32 %v7884, %v8556
      %v8558 = vpop.f32.mrb[0].mxu0
      %v8559 = vadd.f32 %v7886, %v8558
      %v8560 = vpop.f32.mrb[0].mxu0
      %v8561 = vadd.f32 %v7888, %v8560
      %8562 = vmatprep.mubr.bf16.mxu0 %v4567
      %8563 = vmatmul.mubr.bf16.gmra.mrb[0].mxu0 %v4566
      %v8564 = vpop.f32.mrb[0].mxu0
      %v8565 = vadd.f32 %v7892, %v8564
      %v8566 = vpop.f32.mrb[0].mxu0
      %v8567 = vadd.f32 %v7894, %v8566
      %v8568 = vpop.f32.mrb[0].mxu0
      %v8569 = vadd.f32 %v7896, %v8568
      %v8570 = vpop.f32.mrb[0].mxu0
      %v8571 = vadd.f32 %v7898, %v8570
      %8572 = vmatprep.mubr.bf16.mxu0 %v4577
      %8573 = vmatmul.mubr.bf16.gmra.mrb[0].mxu0 %v4576
      %v8574 = vpop.f32.mrb[0].mxu0
      %v8575 = vadd.f32 %v7902, %v8574
      %v8576 = vpop.f32.mrb[0].mxu0
      %v8577 = vadd.f32 %v7904, %v8576
      %v8578 = vpop.f32.mrb[0].mxu0
      %v8579 = vadd.f32 %v7906, %v8578
      %v8580 = vpop.f32.mrb[0].mxu0
      %v8581 = vadd.f32 %v7908, %v8580
      %8582 = vmatprep.mubr.bf16.mxu0 %v4587
      %8583 = vmatmul.mubr.bf16.gmra.mrb[0].mxu0 %v4586
      %v8584 = vpop.f32.mrb[0].mxu0
      %v8585 = vadd.f32 %v7912, %v8584
      %v8586 = vpop.f32.mrb[0].mxu0
      %v8587 = vadd.f32 %v7914, %v8586
      %v8588 = vpop.f32.mrb[0].mxu0
      %v8589 = vadd.f32 %v7916, %v8588
      %v8590 = vpop.f32.mrb[0].mxu0
      %v8591 = vadd.f32 %v7918, %v8590
      %8592 = vmatprep.mubr.bf16.mxu0 %v4597
      %8593 = vmatmul.mubr.bf16.gmra.mrb[0].mxu0 %v4596
      %v8594 = vpop.f32.mrb[0].mxu0
      %v8595 = vadd.f32 %v7922, %v8594
      %v8596 = vpop.f32.mrb[0].mxu0
      %v8597 = vadd.f32 %v7924, %v8596
      %v8598 = vpop.f32.mrb[0].mxu0
      %v8599 = vadd.f32 %v7926, %v8598
      %v8600 = vpop.f32.mrb[0].mxu0
      %v8601 = vadd.f32 %v7928, %v8600
      %8602 = vmatprep.mubr.bf16.mxu0 %v4607
      %8603 = vmatmul.mubr.bf16.gmra.mrb[0].mxu0 %v4606
      %v8604 = vpop.f32.mrb[0].mxu0
      %v8605 = vadd.f32 %v7932, %v8604
      %v8606 = vpop.f32.mrb[0].mxu0
      %v8607 = vadd.f32 %v7934, %v8606
      %v8608 = vpop.f32.mrb[0].mxu0
      %v8609 = vadd.f32 %v7936, %v8608
      %v8610 = vpop.f32.mrb[0].mxu0
      %v8611 = vadd.f32 %v7938, %v8610
      %8612 = vmatprep.mubr.bf16.mxu0 %v4617
      %8613 = vmatmul.mubr.bf16.gmra.mrb[0].mxu0 %v4616
      %v8614 = vpop.f32.mrb[0].mxu0
      %v8615 = vadd.f32 %v7942, %v8614
      %v8616 = vpop.f32.mrb[0].mxu0
      %v8617 = vadd.f32 %v7944, %v8616
      %v8618 = vpop.f32.mrb[0].mxu0
      %v8619 = vadd.f32 %v7946, %v8618
      %v8620 = vpop.f32.mrb[0].mxu0
      %v8621 = vadd.f32 %v7948, %v8620
      %8622 = vmatprep.mubr.bf16.mxu0 %v4627
      %8623 = vmatmul.mubr.bf16.gmra.mrb[0].mxu0 %v4626
      %v8624 = vpop.f32.mrb[0].mxu0
      %v8625 = vadd.f32 %v7952, %v8624
      %v8626 = vpop.f32.mrb[0].mxu0
      %v8627 = vadd.f32 %v7954, %v8626
      %v8628 = vpop.f32.mrb[0].mxu0
      %v8629 = vadd.f32 %v7956, %v8628
      %v8630 = vpop.f32.mrb[0].mxu0
      %v8631 = vadd.f32 %v7958, %v8630
      %8632 = vmatprep.mubr.bf16.mxu0 %v4637
      %8633 = vmatmul.mubr.bf16.gmra.mrb[0].mxu0 %v4636
      %v8634 = vpop.f32.mrb[0].mxu0
      %v8635 = vadd.f32 %v7962, %v8634
      %v8636 = vpop.f32.mrb[0].mxu0
      %v8637 = vadd.f32 %v7964, %v8636
      %v8638 = vpop.f32.mrb[0].mxu0
      %v8639 = vadd.f32 %v7966, %v8638
      %v8640 = vpop.f32.mrb[0].mxu0
      %v8641 = vadd.f32 %v7968, %v8640
      %8642 = vmatprep.mubr.bf16.mxu0 %v4647
      %8643 = vmatmul.mubr.bf16.gmra.mrb[0].mxu0 %v4646
      %v8644 = vpop.f32.mrb[0].mxu0
      %v8645 = vadd.f32 %v7972, %v8644
      %v8646 = vpop.f32.mrb[0].mxu0
      %v8647 = vadd.f32 %v7974, %v8646
      %v8648 = vpop.f32.mrb[0].mxu0
      %v8649 = vadd.f32 %v7976, %v8648
      %v8650 = vpop.f32.mrb[0].mxu0
      %v8651 = vadd.f32 %v7978, %v8650
      %8652 = vmatprep.mubr.bf16.mxu0 %v4657
      %8653 = vmatmul.mubr.bf16.gmra.mrb[0].mxu0 %v4656
      %v8654 = vpop.f32.mrb[0].mxu0
      %v8655 = vadd.f32 %v7982, %v8654
      %v8656 = vpop.f32.mrb[0].mxu0
      %v8657 = vadd.f32 %v7984, %v8656
      %v8658 = vpop.f32.mrb[0].mxu0
      %v8659 = vadd.f32 %v7986, %v8658
      %v8660 = vpop.f32.mrb[0].mxu0
      %v8661 = vadd.f32 %v7988, %v8660
      %8662 = vdwg.mxu0
      %v8663 = vmax.f32 %v8025, 0.0
      %v8664 = vmax.f32 %v8027, 0.0
      %v8665 = vmax.f32 %v8029, 0.0
      %v8666 = vmax.f32 %v8031, 0.0
      %v8667 = vmax.f32 %v8035, 0.0
      %v8668 = vmax.f32 %v8037, 0.0
      %v8669 = vmax.f32 %v8039, 0.0
      %v8670 = vmax.f32 %v8041, 0.0
      %v8671 = vmax.f32 %v8045, 0.0
      %v8672 = vmax.f32 %v8047, 0.0
      %v8673 = vmax.f32 %v8049, 0.0
      %v8674 = vmax.f32 %v8051, 0.0
      %v8675 = vmax.f32 %v8055, 0.0
      %v8676 = vmax.f32 %v8057, 0.0
      %v8677 = vmax.f32 %v8059, 0.0
      %v8678 = vmax.f32 %v8061, 0.0
      %v8679 = vmax.f32 %v8065, 0.0
      %v8680 = vmax.f32 %v8067, 0.0
      %v8681 = vmax.f32 %v8069, 0.0
      %v8682 = vmax.f32 %v8071, 0.0
      %v8683 = vmax.f32 %v8075, 0.0
      %v8684 = vmax.f32 %v8077, 0.0
      %v8685 = vmax.f32 %v8079, 0.0
      %v8686 = vmax.f32 %v8081, 0.0
      %v8687 = vmax.f32 %v8085, 0.0
      %v8688 = vmax.f32 %v8087, 0.0
      %v8689 = vmax.f32 %v8089, 0.0
      %v8690 = vmax.f32 %v8091, 0.0
      %v8691 = vmax.f32 %v8095, 0.0
      %v8692 = vmax.f32 %v8097, 0.0
      %v8693 = vmax.f32 %v8099, 0.0
      %v8694 = vmax.f32 %v8101, 0.0
      %v8695 = vmax.f32 %v8105, 0.0
      %v8696 = vmax.f32 %v8107, 0.0
      %v8697 = vmax.f32 %v8109, 0.0
      %v8698 = vmax.f32 %v8111, 0.0
      %v8699 = vmax.f32 %v8115, 0.0
      %v8700 = vmax.f32 %v8117, 0.0
      %v8701 = vmax.f32 %v8119, 0.0
      %v8702 = vmax.f32 %v8121, 0.0
      %v8703 = vmax.f32 %v8125, 0.0
      %v8704 = vmax.f32 %v8127, 0.0
      %v8705 = vmax.f32 %v8129, 0.0
      %v8706 = vmax.f32 %v8131, 0.0
      %v8707 = vmax.f32 %v8135, 0.0
      %v8708 = vmax.f32 %v8137, 0.0
      %v8709 = vmax.f32 %v8139, 0.0
      %v8710 = vmax.f32 %v8141, 0.0
      %v8711 = vmax.f32 %v8145, 0.0
      %v8712 = vmax.f32 %v8147, 0.0
      %v8713 = vmax.f32 %v8149, 0.0
      %v8714 = vmax.f32 %v8151, 0.0
      %v8715 = vmax.f32 %v8155, 0.0
      %v8716 = vmax.f32 %v8157, 0.0
      %v8717 = vmax.f32 %v8159, 0.0
      %v8718 = vmax.f32 %v8161, 0.0
      %v8719 = vmax.f32 %v8165, 0.0
      %v8720 = vmax.f32 %v8167, 0.0
      %v8721 = vmax.f32 %v8169, 0.0
      %v8722 = vmax.f32 %v8171, 0.0
      %v8723 = vmax.f32 %v8175, 0.0
      %v8724 = vmax.f32 %v8177, 0.0
      %v8725 = vmax.f32 %v8179, 0.0
      %v8726 = vmax.f32 %v8181, 0.0
      %v8727 = vmax.f32 %v8185, 0.0
      %v8728 = vmax.f32 %v8187, 0.0
      %v8729 = vmax.f32 %v8189, 0.0
      %v8730 = vmax.f32 %v8191, 0.0
      %v8731 = vmax.f32 %v8195, 0.0
      %v8732 = vmax.f32 %v8197, 0.0
      %v8733 = vmax.f32 %v8199, 0.0
      %v8734 = vmax.f32 %v8201, 0.0
      %v8735 = vmax.f32 %v8205, 0.0
      %v8736 = vmax.f32 %v8207, 0.0
      %v8737 = vmax.f32 %v8209, 0.0
      %v8738 = vmax.f32 %v8211, 0.0
      %v8739 = vmax.f32 %v8215, 0.0
      %v8740 = vmax.f32 %v8217, 0.0
      %v8741 = vmax.f32 %v8219, 0.0
      %v8742 = vmax.f32 %v8221, 0.0
      %v8743 = vmax.f32 %v8225, 0.0
      %v8744 = vmax.f32 %v8227, 0.0
      %v8745 = vmax.f32 %v8229, 0.0
      %v8746 = vmax.f32 %v8231, 0.0
      %v8747 = vmax.f32 %v8235, 0.0
      %v8748 = vmax.f32 %v8237, 0.0
      %v8749 = vmax.f32 %v8239, 0.0
      %v8750 = vmax.f32 %v8241, 0.0
      %v8751 = vmax.f32 %v8245, 0.0
      %v8752 = vmax.f32 %v8247, 0.0
      %v8753 = vmax.f32 %v8249, 0.0
      %v8754 = vmax.f32 %v8251, 0.0
      %v8755 = vmax.f32 %v8255, 0.0
      %v8756 = vmax.f32 %v8257, 0.0
      %v8757 = vmax.f32 %v8259, 0.0
      %v8758 = vmax.f32 %v8261, 0.0
      %v8759 = vmax.f32 %v8265, 0.0
      %v8760 = vmax.f32 %v8267, 0.0
      %v8761 = vmax.f32 %v8269, 0.0
      %v8762 = vmax.f32 %v8271, 0.0
      %v8763 = vmax.f32 %v8275, 0.0
      %v8764 = vmax.f32 %v8277, 0.0
      %v8765 = vmax.f32 %v8279, 0.0
      %v8766 = vmax.f32 %v8281, 0.0
      %v8767 = vmax.f32 %v8285, 0.0
      %v8768 = vmax.f32 %v8287, 0.0
      %v8769 = vmax.f32 %v8289, 0.0
      %v8770 = vmax.f32 %v8291, 0.0
      %v8771 = vmax.f32 %v8295, 0.0
      %v8772 = vmax.f32 %v8297, 0.0
      %v8773 = vmax.f32 %v8299, 0.0
      %v8774 = vmax.f32 %v8301, 0.0
      %v8775 = vmax.f32 %v8305, 0.0
      %v8776 = vmax.f32 %v8307, 0.0
      %v8777 = vmax.f32 %v8309, 0.0
      %v8778 = vmax.f32 %v8311, 0.0
      %v8779 = vmax.f32 %v8315, 0.0
      %v8780 = vmax.f32 %v8317, 0.0
      %v8781 = vmax.f32 %v8319, 0.0
      %v8782 = vmax.f32 %v8321, 0.0
      %v8783 = vmax.f32 %v8325, 0.0
      %v8784 = vmax.f32 %v8327, 0.0
      %v8785 = vmax.f32 %v8329, 0.0
      %v8786 = vmax.f32 %v8331, 0.0
      %v8787 = vmax.f32 %v8335, 0.0
      %v8788 = vmax.f32 %v8337, 0.0
      %v8789 = vmax.f32 %v8339, 0.0
      %v8790 = vmax.f32 %v8341, 0.0
      %v8791 = vmax.f32 %v8345, 0.0
      %v8792 = vmax.f32 %v8347, 0.0
      %v8793 = vmax.f32 %v8349, 0.0
      %v8794 = vmax.f32 %v8351, 0.0
      %v8795 = vmax.f32 %v8355, 0.0
      %v8796 = vmax.f32 %v8357, 0.0
      %v8797 = vmax.f32 %v8359, 0.0
      %v8798 = vmax.f32 %v8361, 0.0
      %v8799 = vmax.f32 %v8365, 0.0
      %v8800 = vmax.f32 %v8367, 0.0
      %v8801 = vmax.f32 %v8369, 0.0
      %v8802 = vmax.f32 %v8371, 0.0
      %v8803 = vmax.f32 %v8375, 0.0
      %v8804 = vmax.f32 %v8377, 0.0
      %v8805 = vmax.f32 %v8379, 0.0
      %v8806 = vmax.f32 %v8381, 0.0
      %v8807 = vmax.f32 %v8385, 0.0
      %v8808 = vmax.f32 %v8387, 0.0
      %v8809 = vmax.f32 %v8389, 0.0
      %v8810 = vmax.f32 %v8391, 0.0
      %v8811 = vmax.f32 %v8395, 0.0
      %v8812 = vmax.f32 %v8397, 0.0
      %v8813 = vmax.f32 %v8399, 0.0
      %v8814 = vmax.f32 %v8401, 0.0
      %v8815 = vmax.f32 %v8405, 0.0
      %v8816 = vmax.f32 %v8407, 0.0
      %v8817 = vmax.f32 %v8409, 0.0
      %v8818 = vmax.f32 %v8411, 0.0
      %v8819 = vmax.f32 %v8415, 0.0
      %v8820 = vmax.f32 %v8417, 0.0
      %v8821 = vmax.f32 %v8419, 0.0
      %v8822 = vmax.f32 %v8421, 0.0
      %v8823 = vmax.f32 %v8425, 0.0
      %v8824 = vmax.f32 %v8427, 0.0
      %v8825 = vmax.f32 %v8429, 0.0
      %v8826 = vmax.f32 %v8431, 0.0
      %v8827 = vmax.f32 %v8435, 0.0
      %v8828 = vmax.f32 %v8437, 0.0
      %v8829 = vmax.f32 %v8439, 0.0
      %v8830 = vmax.f32 %v8441, 0.0
      %v8831 = vmax.f32 %v8445, 0.0
      %v8832 = vmax.f32 %v8447, 0.0
      %v8833 = vmax.f32 %v8449, 0.0
      %v8834 = vmax.f32 %v8451, 0.0
      %v8835 = vmax.f32 %v8455, 0.0
      %v8836 = vmax.f32 %v8457, 0.0
      %v8837 = vmax.f32 %v8459, 0.0
      %v8838 = vmax.f32 %v8461, 0.0
      %v8839 = vmax.f32 %v8465, 0.0
      %v8840 = vmax.f32 %v8467, 0.0
      %v8841 = vmax.f32 %v8469, 0.0
      %v8842 = vmax.f32 %v8471, 0.0
      %v8843 = vmax.f32 %v8475, 0.0
      %v8844 = vmax.f32 %v8477, 0.0
      %v8845 = vmax.f32 %v8479, 0.0
      %v8846 = vmax.f32 %v8481, 0.0
      %v8847 = vmax.f32 %v8485, 0.0
      %v8848 = vmax.f32 %v8487, 0.0
      %v8849 = vmax.f32 %v8489, 0.0
      %v8850 = vmax.f32 %v8491, 0.0
      %v8851 = vmax.f32 %v8495, 0.0
      %v8852 = vmax.f32 %v8497, 0.0
      %v8853 = vmax.f32 %v8499, 0.0
      %v8854 = vmax.f32 %v8501, 0.0
      %v8855 = vmax.f32 %v8505, 0.0
      %v8856 = vmax.f32 %v8507, 0.0
      %v8857 = vmax.f32 %v8509, 0.0
      %v8858 = vmax.f32 %v8511, 0.0
      %v8859 = vmax.f32 %v8515, 0.0
      %v8860 = vmax.f32 %v8517, 0.0
      %v8861 = vmax.f32 %v8519, 0.0
      %v8862 = vmax.f32 %v8521, 0.0
      %v8863 = vmax.f32 %v8525, 0.0
      %v8864 = vmax.f32 %v8527, 0.0
      %v8865 = vmax.f32 %v8529, 0.0
      %v8866 = vmax.f32 %v8531, 0.0
      %v8867 = vmax.f32 %v8535, 0.0
      %v8868 = vmax.f32 %v8537, 0.0
      %v8869 = vmax.f32 %v8539, 0.0
      %v8870 = vmax.f32 %v8541, 0.0
      %v8871 = vmax.f32 %v8545, 0.0
      %v8872 = vmax.f32 %v8547, 0.0
      %v8873 = vmax.f32 %v8549, 0.0
      %v8874 = vmax.f32 %v8551, 0.0
      %v8875 = vmax.f32 %v8555, 0.0
      %v8876 = vmax.f32 %v8557, 0.0
      %v8877 = vmax.f32 %v8559, 0.0
      %v8878 = vmax.f32 %v8561, 0.0
      %v8879 = vmax.f32 %v8565, 0.0
      %v8880 = vmax.f32 %v8567, 0.0
      %v8881 = vmax.f32 %v8569, 0.0
      %v8882 = vmax.f32 %v8571, 0.0
      %v8883 = vmax.f32 %v8575, 0.0
      %v8884 = vmax.f32 %v8577, 0.0
      %v8885 = vmax.f32 %v8579, 0.0
      %v8886 = vmax.f32 %v8581, 0.0
      %v8887 = vmax.f32 %v8585, 0.0
      %v8888 = vmax.f32 %v8587, 0.0
      %v8889 = vmax.f32 %v8589, 0.0
      %v8890 = vmax.f32 %v8591, 0.0
      %v8891 = vmax.f32 %v8595, 0.0
      %v8892 = vmax.f32 %v8597, 0.0
      %v8893 = vmax.f32 %v8599, 0.0
      %v8894 = vmax.f32 %v8601, 0.0
      %v8895 = vmax.f32 %v8605, 0.0
      %v8896 = vmax.f32 %v8607, 0.0
      %v8897 = vmax.f32 %v8609, 0.0
      %v8898 = vmax.f32 %v8611, 0.0
      %v8899 = vmax.f32 %v8615, 0.0
      %v8900 = vmax.f32 %v8617, 0.0
      %v8901 = vmax.f32 %v8619, 0.0
      %v8902 = vmax.f32 %v8621, 0.0
      %v8903 = vmax.f32 %v8625, 0.0
      %v8904 = vmax.f32 %v8627, 0.0
      %v8905 = vmax.f32 %v8629, 0.0
      %v8906 = vmax.f32 %v8631, 0.0
      %v8907 = vmax.f32 %v8635, 0.0
      %v8908 = vmax.f32 %v8637, 0.0
      %v8909 = vmax.f32 %v8639, 0.0
      %v8910 = vmax.f32 %v8641, 0.0
      %v8911 = vmax.f32 %v8645, 0.0
      %v8912 = vmax.f32 %v8647, 0.0
      %v8913 = vmax.f32 %v8649, 0.0
      %v8914 = vmax.f32 %v8651, 0.0
      %v8915 = vmax.f32 %v8655, 0.0
      %v8916 = vmax.f32 %v8657, 0.0
      %v8917 = vmax.f32 %v8659, 0.0
      %v8918 = vmax.f32 %v8661, 0.0
      %8919 = vst [vmem:[%s208] sm:$0xff] %v8663
      %8920 = vst [vmem:[%s208 + $0x8] sm:$0xff] %v8664
      %8921 = vst [vmem:[%s208 + $0x10] sm:$0xff] %v8665
      %8922 = vst [vmem:[%s208 + $0x18] sm:$0xff] %v8666
      %8923 = vst [vmem:[%s208 + $0x20] sm:$0xff] %v8667
      %8924 = vst [vmem:[%s208 + $0x28] sm:$0xff] %v8668
      %8925 = vst [vmem:[%s208 + $0x30] sm:$0xff] %v8669
      %8926 = vst [vmem:[%s208 + $0x38] sm:$0xff] %v8670
      %8927 = vst [vmem:[%s208 + $0x40] sm:$0xff] %v8671
      %8928 = vst [vmem:[%s208 + $0x48] sm:$0xff] %v8672
      %8929 = vst [vmem:[%s208 + $0x50] sm:$0xff] %v8673
      %8930 = vst [vmem:[%s208 + $0x58] sm:$0xff] %v8674
      %8931 = vst [vmem:[%s208 + $0x60] sm:$0xff] %v8675
      %8932 = vst [vmem:[%s208 + $0x68] sm:$0xff] %v8676
      %8933 = vst [vmem:[%s208 + $0x70] sm:$0xff] %v8677
      %8934 = vst [vmem:[%s208 + $0x78] sm:$0xff] %v8678
      %8935 = vst [vmem:[%s208 + $0x80] sm:$0xff] %v8679
      %8936 = vst [vmem:[%s208 + $0x88] sm:$0xff] %v8680
      %8937 = vst [vmem:[%s208 + $0x90] sm:$0xff] %v8681
      %8938 = vst [vmem:[%s208 + $0x98] sm:$0xff] %v8682
      %8939 = vst [vmem:[%s208 + $0xa0] sm:$0xff] %v8683
      %8940 = vst [vmem:[%s208 + $0xa8] sm:$0xff] %v8684
      %8941 = vst [vmem:[%s208 + $0xb0] sm:$0xff] %v8685
      %8942 = vst [vmem:[%s208 + $0xb8] sm:$0xff] %v8686
      %8943 = vst [vmem:[%s208 + $0xc0] sm:$0xff] %v8687
      %8944 = vst [vmem:[%s208 + $0xc8] sm:$0xff] %v8688
      %8945 = vst [vmem:[%s208 + $0xd0] sm:$0xff] %v8689
      %8946 = vst [vmem:[%s208 + $0xd8] sm:$0xff] %v8690
      %8947 = vst [vmem:[%s208 + $0xe0] sm:$0xff] %v8691
      %8948 = vst [vmem:[%s208 + $0xe8] sm:$0xff] %v8692
      %8949 = vst [vmem:[%s208 + $0xf0] sm:$0xff] %v8693
      %8950 = vst [vmem:[%s208 + $0xf8] sm:$0xff] %v8694
      %8951 = vst [vmem:[%s208 + $0x100] sm:$0xff] %v8695
      %8952 = vst [vmem:[%s208 + $0x108] sm:$0xff] %v8696
      %8953 = vst [vmem:[%s208 + $0x110] sm:$0xff] %v8697
      %8954 = vst [vmem:[%s208 + $0x118] sm:$0xff] %v8698
      %8955 = vst [vmem:[%s208 + $0x120] sm:$0xff] %v8699
      %8956 = vst [vmem:[%s208 + $0x128] sm:$0xff] %v8700
      %8957 = vst [vmem:[%s208 + $0x130] sm:$0xff] %v8701
      %8958 = vst [vmem:[%s208 + $0x138] sm:$0xff] %v8702
      %8959 = vst [vmem:[%s208 + $0x140] sm:$0xff] %v8703
      %8960 = vst [vmem:[%s208 + $0x148] sm:$0xff] %v8704
      %8961 = vst [vmem:[%s208 + $0x150] sm:$0xff] %v8705
      %8962 = vst [vmem:[%s208 + $0x158] sm:$0xff] %v8706
      %8963 = vst [vmem:[%s208 + $0x160] sm:$0xff] %v8707
      %8964 = vst [vmem:[%s208 + $0x168] sm:$0xff] %v8708
      %8965 = vst [vmem:[%s208 + $0x170] sm:$0xff] %v8709
      %8966 = vst [vmem:[%s208 + $0x178] sm:$0xff] %v8710
      %8967 = vst [vmem:[%s208 + $0x180] sm:$0xff] %v8711
      %8968 = vst [vmem:[%s208 + $0x188] sm:$0xff] %v8712
      %8969 = vst [vmem:[%s208 + $0x190] sm:$0xff] %v8713
      %8970 = vst [vmem:[%s208 + $0x198] sm:$0xff] %v8714
      %8971 = vst [vmem:[%s208 + $0x1a0] sm:$0xff] %v8715
      %8972 = vst [vmem:[%s208 + $0x1a8] sm:$0xff] %v8716
      %8973 = vst [vmem:[%s208 + $0x1b0] sm:$0xff] %v8717
      %8974 = vst [vmem:[%s208 + $0x1b8] sm:$0xff] %v8718
      %8975 = vst [vmem:[%s208 + $0x1c0] sm:$0xff] %v8719
      %8976 = vst [vmem:[%s208 + $0x1c8] sm:$0xff] %v8720
      %8977 = vst [vmem:[%s208 + $0x1d0] sm:$0xff] %v8721
      %8978 = vst [vmem:[%s208 + $0x1d8] sm:$0xff] %v8722
      %8979 = vst [vmem:[%s208 + $0x1e0] sm:$0xff] %v8723
      %8980 = vst [vmem:[%s208 + $0x1e8] sm:$0xff] %v8724
      %8981 = vst [vmem:[%s208 + $0x1f0] sm:$0xff] %v8725
      %8982 = vst [vmem:[%s208 + $0x1f8] sm:$0xff] %v8726
      %8983 = vst [vmem:[%s208 + $0x200] sm:$0xff] %v8727
      %8984 = vst [vmem:[%s208 + $0x208] sm:$0xff] %v8728
      %8985 = vst [vmem:[%s208 + $0x210] sm:$0xff] %v8729
      %8986 = vst [vmem:[%s208 + $0x218] sm:$0xff] %v8730
      %8987 = vst [vmem:[%s208 + $0x220] sm:$0xff] %v8731
      %8988 = vst [vmem:[%s208 + $0x228] sm:$0xff] %v8732
      %8989 = vst [vmem:[%s208 + $0x230] sm:$0xff] %v8733
      %8990 = vst [vmem:[%s208 + $0x238] sm:$0xff] %v8734
      %8991 = vst [vmem:[%s208 + $0x240] sm:$0xff] %v8735
      %8992 = vst [vmem:[%s208 + $0x248] sm:$0xff] %v8736
      %8993 = vst [vmem:[%s208 + $0x250] sm:$0xff] %v8737
      %8994 = vst [vmem:[%s208 + $0x258] sm:$0xff] %v8738
      %8995 = vst [vmem:[%s208 + $0x260] sm:$0xff] %v8739
      %8996 = vst [vmem:[%s208 + $0x268] sm:$0xff] %v8740
      %8997 = vst [vmem:[%s208 + $0x270] sm:$0xff] %v8741
      %8998 = vst [vmem:[%s208 + $0x278] sm:$0xff] %v8742
      %8999 = vst [vmem:[%s208 + $0x280] sm:$0xff] %v8743
      %9000 = vst [vmem:[%s208 + $0x288] sm:$0xff] %v8744
      %9001 = vst [vmem:[%s208 + $0x290] sm:$0xff] %v8745
      %9002 = vst [vmem:[%s208 + $0x298] sm:$0xff] %v8746
      %9003 = vst [vmem:[%s208 + $0x2a0] sm:$0xff] %v8747
      %9004 = vst [vmem:[%s208 + $0x2a8] sm:$0xff] %v8748
      %9005 = vst [vmem:[%s208 + $0x2b0] sm:$0xff] %v8749
      %9006 = vst [vmem:[%s208 + $0x2b8] sm:$0xff] %v8750
      %9007 = vst [vmem:[%s208 + $0x2c0] sm:$0xff] %v8751
      %9008 = vst [vmem:[%s208 + $0x2c8] sm:$0xff] %v8752
      %9009 = vst [vmem:[%s208 + $0x2d0] sm:$0xff] %v8753
      %9010 = vst [vmem:[%s208 + $0x2d8] sm:$0xff] %v8754
      %9011 = vst [vmem:[%s208 + $0x2e0] sm:$0xff] %v8755
      %9012 = vst [vmem:[%s208 + $0x2e8] sm:$0xff] %v8756
      %9013 = vst [vmem:[%s208 + $0x2f0] sm:$0xff] %v8757
      %9014 = vst [vmem:[%s208 + $0x2f8] sm:$0xff] %v8758
      %9015 = vst [vmem:[%s208 + $0x300] sm:$0xff] %v8759
      %9016 = vst [vmem:[%s208 + $0x308] sm:$0xff] %v8760
      %9017 = vst [vmem:[%s208 + $0x310] sm:$0xff] %v8761
      %9018 = vst [vmem:[%s208 + $0x318] sm:$0xff] %v8762
      %9019 = vst [vmem:[%s208 + $0x320] sm:$0xff] %v8763
      %9020 = vst [vmem:[%s208 + $0x328] sm:$0xff] %v8764
      %9021 = vst [vmem:[%s208 + $0x330] sm:$0xff] %v8765
      %9022 = vst [vmem:[%s208 + $0x338] sm:$0xff] %v8766
      %9023 = vst [vmem:[%s208 + $0x340] sm:$0xff] %v8767
      %9024 = vst [vmem:[%s208 + $0x348] sm:$0xff] %v8768
      %9025 = vst [vmem:[%s208 + $0x350] sm:$0xff] %v8769
      %9026 = vst [vmem:[%s208 + $0x358] sm:$0xff] %v8770
      %9027 = vst [vmem:[%s208 + $0x360] sm:$0xff] %v8771
      %9028 = vst [vmem:[%s208 + $0x368] sm:$0xff] %v8772
      %9029 = vst [vmem:[%s208 + $0x370] sm:$0xff] %v8773
      %9030 = vst [vmem:[%s208 + $0x378] sm:$0xff] %v8774
      %9031 = vst [vmem:[%s208 + $0x380] sm:$0xff] %v8775
      %9032 = vst [vmem:[%s208 + $0x388] sm:$0xff] %v8776
      %9033 = vst [vmem:[%s208 + $0x390] sm:$0xff] %v8777
      %9034 = vst [vmem:[%s208 + $0x398] sm:$0xff] %v8778
      %9035 = vst [vmem:[%s208 + $0x3a0] sm:$0xff] %v8779
      %9036 = vst [vmem:[%s208 + $0x3a8] sm:$0xff] %v8780
      %9037 = vst [vmem:[%s208 + $0x3b0] sm:$0xff] %v8781
      %9038 = vst [vmem:[%s208 + $0x3b8] sm:$0xff] %v8782
      %9039 = vst [vmem:[%s208 + $0x3c0] sm:$0xff] %v8783
      %9040 = vst [vmem:[%s208 + $0x3c8] sm:$0xff] %v8784
      %9041 = vst [vmem:[%s208 + $0x3d0] sm:$0xff] %v8785
      %9042 = vst [vmem:[%s208 + $0x3d8] sm:$0xff] %v8786
      %9043 = vst [vmem:[%s208 + $0x3e0] sm:$0xff] %v8787
      %9044 = vst [vmem:[%s208 + $0x3e8] sm:$0xff] %v8788
      %9045 = vst [vmem:[%s208 + $0x3f0] sm:$0xff] %v8789
      %9046 = vst [vmem:[%s208 + $0x3f8] sm:$0xff] %v8790
      %9047 = vst [vmem:[%s208 + $0x400] sm:$0xff] %v8791
      %9048 = vst [vmem:[%s208 + $0x408] sm:$0xff] %v8792
      %9049 = vst [vmem:[%s208 + $0x410] sm:$0xff] %v8793
      %9050 = vst [vmem:[%s208 + $0x418] sm:$0xff] %v8794
      %9051 = vst [vmem:[%s208 + $0x420] sm:$0xff] %v8795
      %9052 = vst [vmem:[%s208 + $0x428] sm:$0xff] %v8796
      %9053 = vst [vmem:[%s208 + $0x430] sm:$0xff] %v8797
      %9054 = vst [vmem:[%s208 + $0x438] sm:$0xff] %v8798
      %9055 = vst [vmem:[%s208 + $0x440] sm:$0xff] %v8799
      %9056 = vst [vmem:[%s208 + $0x448] sm:$0xff] %v8800
      %9057 = vst [vmem:[%s208 + $0x450] sm:$0xff] %v8801
      %9058 = vst [vmem:[%s208 + $0x458] sm:$0xff] %v8802
      %9059 = vst [vmem:[%s208 + $0x460] sm:$0xff] %v8803
      %9060 = vst [vmem:[%s208 + $0x468] sm:$0xff] %v8804
      %9061 = vst [vmem:[%s208 + $0x470] sm:$0xff] %v8805
      %9062 = vst [vmem:[%s208 + $0x478] sm:$0xff] %v8806
      %9063 = vst [vmem:[%s208 + $0x480] sm:$0xff] %v8807
      %9064 = vst [vmem:[%s208 + $0x488] sm:$0xff] %v8808
      %9065 = vst [vmem:[%s208 + $0x490] sm:$0xff] %v8809
      %9066 = vst [vmem:[%s208 + $0x498] sm:$0xff] %v8810
      %9067 = vst [vmem:[%s208 + $0x4a0] sm:$0xff] %v8811
      %9068 = vst [vmem:[%s208 + $0x4a8] sm:$0xff] %v8812
      %9069 = vst [vmem:[%s208 + $0x4b0] sm:$0xff] %v8813
      %9070 = vst [vmem:[%s208 + $0x4b8] sm:$0xff] %v8814
      %9071 = vst [vmem:[%s208 + $0x4c0] sm:$0xff] %v8815
      %9072 = vst [vmem:[%s208 + $0x4c8] sm:$0xff] %v8816
      %9073 = vst [vmem:[%s208 + $0x4d0] sm:$0xff] %v8817
      %9074 = vst [vmem:[%s208 + $0x4d8] sm:$0xff] %v8818
      %9075 = vst [vmem:[%s208 + $0x4e0] sm:$0xff] %v8819
      %9076 = vst [vmem:[%s208 + $0x4e8] sm:$0xff] %v8820
      %9077 = vst [vmem:[%s208 + $0x4f0] sm:$0xff] %v8821
      %9078 = vst [vmem:[%s208 + $0x4f8] sm:$0xff] %v8822
      %9079 = vst [vmem:[%s208 + $0x500] sm:$0xff] %v8823
      %9080 = vst [vmem:[%s208 + $0x508] sm:$0xff] %v8824
      %9081 = vst [vmem:[%s208 + $0x510] sm:$0xff] %v8825
      %9082 = vst [vmem:[%s208 + $0x518] sm:$0xff] %v8826
      %9083 = vst [vmem:[%s208 + $0x520] sm:$0xff] %v8827
      %9084 = vst [vmem:[%s208 + $0x528] sm:$0xff] %v8828
      %9085 = vst [vmem:[%s208 + $0x530] sm:$0xff] %v8829
      %9086 = vst [vmem:[%s208 + $0x538] sm:$0xff] %v8830
      %9087 = vst [vmem:[%s208 + $0x540] sm:$0xff] %v8831
      %9088 = vst [vmem:[%s208 + $0x548] sm:$0xff] %v8832
      %9089 = vst [vmem:[%s208 + $0x550] sm:$0xff] %v8833
      %9090 = vst [vmem:[%s208 + $0x558] sm:$0xff] %v8834
      %9091 = vst [vmem:[%s208 + $0x560] sm:$0xff] %v8835
      %9092 = vst [vmem:[%s208 + $0x568] sm:$0xff] %v8836
      %9093 = vst [vmem:[%s208 + $0x570] sm:$0xff] %v8837
      %9094 = vst [vmem:[%s208 + $0x578] sm:$0xff] %v8838
      %9095 = vst [vmem:[%s208 + $0x580] sm:$0xff] %v8839
      %9096 = vst [vmem:[%s208 + $0x588] sm:$0xff] %v8840
      %9097 = vst [vmem:[%s208 + $0x590] sm:$0xff] %v8841
      %9098 = vst [vmem:[%s208 + $0x598] sm:$0xff] %v8842
      %9099 = vst [vmem:[%s208 + $0x5a0] sm:$0xff] %v8843
      %9100 = vst [vmem:[%s208 + $0x5a8] sm:$0xff] %v8844
      %9101 = vst [vmem:[%s208 + $0x5b0] sm:$0xff] %v8845
      %9102 = vst [vmem:[%s208 + $0x5b8] sm:$0xff] %v8846
      %9103 = vst [vmem:[%s208 + $0x5c0] sm:$0xff] %v8847
      %9104 = vst [vmem:[%s208 + $0x5c8] sm:$0xff] %v8848
      %9105 = vst [vmem:[%s208 + $0x5d0] sm:$0xff] %v8849
      %9106 = vst [vmem:[%s208 + $0x5d8] sm:$0xff] %v8850
      %9107 = vst [vmem:[%s208 + $0x5e0] sm:$0xff] %v8851
      %9108 = vst [vmem:[%s208 + $0x5e8] sm:$0xff] %v8852
      %9109 = vst [vmem:[%s208 + $0x5f0] sm:$0xff] %v8853
      %9110 = vst [vmem:[%s208 + $0x5f8] sm:$0xff] %v8854
      %9111 = vst [vmem:[%s208 + $0x600] sm:$0xff] %v8855
      %9112 = vst [vmem:[%s208 + $0x608] sm:$0xff] %v8856
      %9113 = vst [vmem:[%s208 + $0x610] sm:$0xff] %v8857
      %9114 = vst [vmem:[%s208 + $0x618] sm:$0xff] %v8858
      %9115 = vst [vmem:[%s208 + $0x620] sm:$0xff] %v8859
      %9116 = vst [vmem:[%s208 + $0x628] sm:$0xff] %v8860
      %9117 = vst [vmem:[%s208 + $0x630] sm:$0xff] %v8861
      %9118 = vst [vmem:[%s208 + $0x638] sm:$0xff] %v8862
      %9119 = vst [vmem:[%s208 + $0x640] sm:$0xff] %v8863
      %9120 = vst [vmem:[%s208 + $0x648] sm:$0xff] %v8864
      %9121 = vst [vmem:[%s208 + $0x650] sm:$0xff] %v8865
      %9122 = vst [vmem:[%s208 + $0x658] sm:$0xff] %v8866
      %9123 = vst [vmem:[%s208 + $0x660] sm:$0xff] %v8867
      %9124 = vst [vmem:[%s208 + $0x668] sm:$0xff] %v8868
      %9125 = vst [vmem:[%s208 + $0x670] sm:$0xff] %v8869
      %9126 = vst [vmem:[%s208 + $0x678] sm:$0xff] %v8870
      %9127 = vst [vmem:[%s208 + $0x680] sm:$0xff] %v8871
      %9128 = vst [vmem:[%s208 + $0x688] sm:$0xff] %v8872
      %9129 = vst [vmem:[%s208 + $0x690] sm:$0xff] %v8873
      %9130 = vst [vmem:[%s208 + $0x698] sm:$0xff] %v8874
      %9131 = vst [vmem:[%s208 + $0x6a0] sm:$0xff] %v8875
      %9132 = vst [vmem:[%s208 + $0x6a8] sm:$0xff] %v8876
      %9133 = vst [vmem:[%s208 + $0x6b0] sm:$0xff] %v8877
      %9134 = vst [vmem:[%s208 + $0x6b8] sm:$0xff] %v8878
      %9135 = vst [vmem:[%s208 + $0x6c0] sm:$0xff] %v8879
      %9136 = vst [vmem:[%s208 + $0x6c8] sm:$0xff] %v8880
      %9137 = vst [vmem:[%s208 + $0x6d0] sm:$0xff] %v8881
      %9138 = vst [vmem:[%s208 + $0x6d8] sm:$0xff] %v8882
      %9139 = vst [vmem:[%s208 + $0x6e0] sm:$0xff] %v8883
      %9140 = vst [vmem:[%s208 + $0x6e8] sm:$0xff] %v8884
      %9141 = vst [vmem:[%s208 + $0x6f0] sm:$0xff] %v8885
      %9142 = vst [vmem:[%s208 + $0x6f8] sm:$0xff] %v8886
      %9143 = vst [vmem:[%s208 + $0x700] sm:$0xff] %v8887
      %9144 = vst [vmem:[%s208 + $0x708] sm:$0xff] %v8888
      %9145 = vst [vmem:[%s208 + $0x710] sm:$0xff] %v8889
      %9146 = vst [vmem:[%s208 + $0x718] sm:$0xff] %v8890
      %9147 = vst [vmem:[%s208 + $0x720] sm:$0xff] %v8891
      %9148 = vst [vmem:[%s208 + $0x728] sm:$0xff] %v8892
      %9149 = vst [vmem:[%s208 + $0x730] sm:$0xff] %v8893
      %9150 = vst [vmem:[%s208 + $0x738] sm:$0xff] %v8894
      %9151 = vst [vmem:[%s208 + $0x740] sm:$0xff] %v8895
      %9152 = vst [vmem:[%s208 + $0x748] sm:$0xff] %v8896
      %9153 = vst [vmem:[%s208 + $0x750] sm:$0xff] %v8897
      %9154 = vst [vmem:[%s208 + $0x758] sm:$0xff] %v8898
      %9155 = vst [vmem:[%s208 + $0x760] sm:$0xff] %v8899
      %9156 = vst [vmem:[%s208 + $0x768] sm:$0xff] %v8900
      %9157 = vst [vmem:[%s208 + $0x770] sm:$0xff] %v8901
      %9158 = vst [vmem:[%s208 + $0x778] sm:$0xff] %v8902
      %9159 = vst [vmem:[%s208 + $0x780] sm:$0xff] %v8903
      %9160 = vst [vmem:[%s208 + $0x788] sm:$0xff] %v8904
      %9161 = vst [vmem:[%s208 + $0x790] sm:$0xff] %v8905
      %9162 = vst [vmem:[%s208 + $0x798] sm:$0xff] %v8906
      %9163 = vst [vmem:[%s208 + $0x7a0] sm:$0xff] %v8907
      %9164 = vst [vmem:[%s208 + $0x7a8] sm:$0xff] %v8908
      %9165 = vst [vmem:[%s208 + $0x7b0] sm:$0xff] %v8909
      %9166 = vst [vmem:[%s208 + $0x7b8] sm:$0xff] %v8910
      %9167 = vst [vmem:[%s208 + $0x7c0] sm:$0xff] %v8911
      %9168 = vst [vmem:[%s208 + $0x7c8] sm:$0xff] %v8912
      %9169 = vst [vmem:[%s208 + $0x7d0] sm:$0xff] %v8913
      %9170 = vst [vmem:[%s208 + $0x7d8] sm:$0xff] %v8914
      %9171 = vst [vmem:[%s208 + $0x7e0] sm:$0xff] %v8915
      %9172 = vst [vmem:[%s208 + $0x7e8] sm:$0xff] %v8916
      %9173 = vst [vmem:[%s208 + $0x7f0] sm:$0xff] %v8917
      %9174 = vst [vmem:[%s208 + $0x7f8] sm:$0xff] %v8918
      %s9175 = smul.u32 2, %s19
      %p9176 = scmp.lt.s32.totalorder %s18, 1
      %s9177 = scalar_select %p9176, %s18, 1
      %p9178 = scmp.lt.s32.totalorder %s9175, 1
      %s9179 = scalar_select %p9178, %s9175, 1
      %s9180 = smul.addr %s9177, 256
      %s9181 = sadd.s32 %s9179, %s9180
      %s9182 = smul.addr %s9181, 8
      %s9183 = scalar_lea.vmem %s3, %s9182
      // Predicated region
      $region33: #{cbr1x1_nchw.1} parent=31 // pred_check
        %p9184 = pneg %p116
      $region34: #{cbr1x1_nchw.1} parent=31 // pred_check_branch
        %9186 = sbr.rel (%p9184) target = $region36
      $region35: #{cbr1x1_nchw.1} parent=31 // pred_region
        %s9187 = smul.u32 2, %s19
      $region36: #{cbr1x1_nchw.1} parent=31 // pred_fallthru
        _
    $region32: #{cbr1x1_nchw.1} parent=5 // pred_fallthru
      _
    %p9188 = scmp.le.s32.totalorder 2, %s9
    // Predicated region
    $region37: #{cbr1x1_nchw.1} parent=5 // pred_check
      %p9189 = pneg %p9188
    $region38: #{cbr1x1_nchw.1} parent=5 // pred_check_branch
      %9191 = sbr.rel (%p9189) target = $region40
    $region39: #{cbr1x1_nchw.1} parent=5 // pred_region
      %s9192 = ssub.s32 %s9, 2
      // Predicated region
      $region41: #{cbr1x1_nchw.1} parent=39 // pred_check
        %p9193 = pneg %p122
      $region42: #{cbr1x1_nchw.1} parent=39 // pred_check_branch
        %9195 = sbr.rel (%p9193) target = $region44
      $region43: #{cbr1x1_nchw.1} parent=39 // pred_region
        %s9196 = smul.u32 2, %s21
        %p9197 = scmp.lt.s32.totalorder %s20, 1
        %s9198 = scalar_select %p9197, %s20, 1
        %p9199 = scmp.lt.s32.totalorder %s9196, 1
        %s9200 = scalar_select %p9199, %s9196, 1
        %s9201 = smul.addr %s9198, 256
        %s9202 = sadd.s32 %s9200, %s9201
        %s9203 = smul.addr %s9202, 8
        %s9204 = scalar_lea.vmem %s3, %s9203
      $region44: #{cbr1x1_nchw.1} parent=39 // pred_fallthru
        _
    $region40: #{cbr1x1_nchw.1} parent=5 // pred_fallthru
      _
  $region6: #{cbr1x1_nchw.1} parent=0 // loop_footer
    %s13 = sadd.s32 1, %s9
  $region7: #{cbr1x1_nchw.1} parent=0 // loop_footer_branch
    %8 = sbr.rel target = $region3
  $region8: #{cbr1x1_nchw.1} parent=0 // loop_exit
    _

</llo_original>
